<compile_context>
chip_gen: v5e
topology: v5e:2x2
jax: 0.10.0
libtpu: 0.0.40
codegen_flags: <defaults>
</compile_context>

<pallas_src>
import functools

import jax
import jax.numpy as jnp
from jax.experimental import pallas as pl
from jax.experimental.pallas import tpu as pltpu

_LANE = 128
_SUBLANE_BF16 = 16
_HIDDEN_SIZES = [256, 512, 512, 512, 512, 512, 512, 512, 512, 512, 512, 256]


def _round_up(x, m):
    return ((x + m - 1) // m) * m


# ------------------------------ fused kernel ------------------------------

def _mlp12_fused_kernel(x_ref, w1_ref, b1_ref, w2_ref, b2_ref,
                        wmid_ref, bmid_ref, w12_ref, b12_ref,
                        wout_ref, bout_ref, o_ref):
    """One (TILE_M, kin_pad) activation tile through all 13 layers.

    Matmul inputs are bf16 (native MXU input), accumulation/bias/ReLU in f32.
    All weights are full VMEM blocks with constant block index, so they are
    fetched once and reused for every grid step.
    """

    def layer(h_bf16, w, b_f32, relu):
        acc = jnp.dot(h_bf16, w, preferred_element_type=jnp.float32)
        acc = acc + b_f32                      # (TILE_M, N) + (1, N), f32
        if relu:
            acc = jnp.maximum(acc, 0.0)
        return acc.astype(jnp.bfloat16)

    h = layer(x_ref[...], w1_ref[...], b1_ref[...], True)        # kin_pad -> 256
    h = layer(h, w2_ref[...], b2_ref[...], True)                 # 256     -> 512
    for i in range(wmid_ref.shape[0]):                           # 9 x (512 -> 512)
        h = layer(h, wmid_ref[i], bmid_ref[i], True)
    h = layer(h, w12_ref[...], b12_ref[...], True)               # 512     -> 256
    y = jnp.dot(h, wout_ref[...], preferred_element_type=jnp.float32)
    y = y + bout_ref[...]                                        # 256 -> nout_pad (no ReLU)
    o_ref[...] = y.astype(o_ref.dtype)


def mlp12_pallas_padded(xp, packed, *, tile_m):
    """xp: (Mp, kin_pad) bf16 with Mp % tile_m == 0.
    Returns (Mp, nout_pad) f32 (padded output columns are exact zeros)."""
    Mp, kin_pad = xp.shape
    nout_pad = packed["wout"].shape[1]
    n_mid = packed["wmid"].shape[0]
    assert Mp % tile_m == 0

    weights = (packed["w1"], packed["b1"], packed["w2"], packed["b2"],
               packed["wmid"], packed["bmid"], packed["w12"], packed["b12"],
               packed["wout"], packed["bout"])

    def const_map(ndim):
        # Constant block index -> weight stays VMEM-resident across grid steps.
        return lambda i: (0,) * ndim

    in_specs = [pl.BlockSpec((tile_m, kin_pad), lambda i: (i, 0))]
    in_specs += [pl.BlockSpec(w.shape, const_map(w.ndim)) for w in weights]
    out_specs = pl.BlockSpec((tile_m, nout_pad), lambda i: (i, 0))

    flops = 2 * Mp * (kin_pad * 256 + 256 * 512 + n_mid * 512 * 512
                      + 512 * 256 + 256 * nout_pad)
    bytes_accessed = (int(xp.size) * xp.dtype.itemsize
                      + sum(int(w.size) * w.dtype.itemsize for w in weights)
                      + Mp * nout_pad * 4)
    cost = pl.CostEstimate(flops=flops, transcendentals=0,
                           bytes_accessed=bytes_accessed)

    return pl.pallas_call(
        _mlp12_fused_kernel,
        out_shape=jax.ShapeDtypeStruct((Mp, nout_pad), jnp.float32),
        grid=(Mp // tile_m,),
        in_specs=in_specs,
        out_specs=out_specs,
        compiler_params=pltpu.CompilerParams(
            dimension_semantics=("parallel",),        # shard batch grid on v7x megacore
            vmem_limit_bytes=32 << 20),
        cost_estimate=cost,
    )(xp, *weights)


# ------------------------- parameter construction -------------------------

def init_mlp12_params(key, n_inputs: int, n_outputs: int):
    """Deterministic init mimicking torch.nn.Linear (uniform +-1/sqrt(fan_in)).
    Weights are stored as (in_features, out_features)."""
    dims = [n_inputs] + _HIDDEN_SIZES + [n_outputs]
    params = []
    for i in range(len(dims) - 1):
        fan_in, fan_out = dims[i], dims[i + 1]
        key, kw, kb = jax.random.split(key, 3)
        bound = 1.0 / jnp.sqrt(jnp.float32(fan_in))
        w = jax.random.uniform(kw, (fan_in, fan_out), jnp.float32, -bound, bound)
        b = jax.random.uniform(kb, (fan_out,), jnp.float32, -bound, bound)
        params.append((w, b))
    return params


def pack_params(params, n_inputs: int, n_outputs: int):
    """Pad boundary layers to lane width, stack the nine 512x512 layers, cast
    weights to bf16 (biases stay f32)."""
    assert len(params) == 13
    kin_pad = _round_up(n_inputs, _LANE)
    nout_pad = _round_up(n_outputs, _LANE)

    w1, b1 = params[0]             # (n_in, 256)
    w2, b2 = params[1]             # (256, 512)
    mids = params[2:11]            # nine (512, 512) layers: fc3..fc11
    w12, b12 = params[11]          # (512, 256)
    wo, bo = params[12]            # (256, n_out)

    w1p = jnp.pad(w1, ((0, kin_pad - n_inputs), (0, 0)))
    wop = jnp.pad(wo, ((0, 0), (0, nout_pad - n_outputs)))
    bop = jnp.pad(bo[None, :], ((0, 0), (0, nout_pad - n_outputs)))

    packed = dict(
        w1=w1p.astype(jnp.bfloat16),
        b1=b1[None, :],                                               # f32 (1, 256)
        w2=w2.astype(jnp.bfloat16),
        b2=b2[None, :],                                               # f32 (1, 512)
        wmid=jnp.stack([w for (w, _) in mids]).astype(jnp.bfloat16),  # (9, 512, 512)
        bmid=jnp.stack([b[None, :] for (_, b) in mids]),              # (9, 1, 512) f32
        w12=w12.astype(jnp.bfloat16),
        b12=b12[None, :],                                             # f32 (1, 256)
        wout=wop.astype(jnp.bfloat16),
        bout=bop,                                                     # f32 (1, nout_pad)
    )
    return packed


def mlp12_forward(x, packed, *, n_inputs: int, n_outputs: int, tile_m: int = 256):
    """x: (M, n_inputs) f32 -> (M, n_outputs) f32."""
    M = x.shape[0]
    kin_pad = packed["w1"].shape[0]
    # Clamp the batch tile: never below 16 rows (bf16 sublane pack), never more
    # than the (sublane-rounded) batch.
    tile_m = max(_SUBLANE_BF16, min(tile_m, _round_up(M, _SUBLANE_BF16)))
    Mp = _round_up(M, tile_m)
    xp = jnp.pad(x, ((0, Mp - M), (0, kin_pad - n_inputs))).astype(jnp.bfloat16)
    out_pad = mlp12_pallas_padded(xp, packed, tile_m=tile_m)
    return out_pad[:M, :n_outputs]


# ----------------------------- reference check -----------------------------

def mlp12_ref_bf16(x, params):
    """Pure-JAX reference mirroring the kernel's bf16-matmul / f32-accumulate numerics."""
    h = x.astype(jnp.bfloat16)
    n = len(params)
    for i, (w, b) in enumerate(params):
        acc = jnp.dot(h, w.astype(jnp.bfloat16),
                      preferred_element_type=jnp.float32) + b
        if i < n - 1:
            acc = jnp.maximum(acc, 0.0)
            h = acc.astype(jnp.bfloat16)
        else:
            return acc


if __name__ == "__main__":
    batch = 40          # not a multiple of the tile -> exercises M padding
    n_inputs = 32
    n_outputs = 8
    tile_m = 16         # small tile so the grid has several steps at this batch

    key = jax.random.PRNGKey(0)
    key_x, key_p = jax.random.split(key)

    x = jax.random.normal(key_x, (batch, n_inputs), dtype=jnp.float32)
    params = init_mlp12_params(key_p, n_inputs, n_outputs)
    packed = pack_params(params, n_inputs, n_outputs)

    fwd = jax.jit(functools.partial(mlp12_forward,
                                    n_inputs=n_inputs, n_outputs=n_outputs,
                                    tile_m=tile_m))
    out = jax.block_until_ready(fwd(x, packed))

    ref = mlp12_ref_bf16(x, params)
    assert out.shape == (batch, n_outputs), out.shape
    max_err = float(jnp.max(jnp.abs(out - ref)))
    assert max_err < 2e-2, max_err

    print("KERNEL_OK")
</pallas_src>

<mosaic_0001>
module attributes {stable_mosaic.version = 11 : i64} {
  func.func @_mlp12_fused_kernel(%arg0: i32, %arg1: memref<16x128xbf16, #tpu.memory_space<vmem>>, %arg2: memref<128x256xbf16, #tpu.memory_space<vmem>>, %arg3: memref<1x256xf32, #tpu.memory_space<vmem>>, %arg4: memref<256x512xbf16, #tpu.memory_space<vmem>>, %arg5: memref<1x512xf32, #tpu.memory_space<vmem>>, %arg6: memref<9x512x512xbf16, #tpu.memory_space<vmem>>, %arg7: memref<9x1x512xf32, #tpu.memory_space<vmem>>, %arg8: memref<512x256xbf16, #tpu.memory_space<vmem>>, %arg9: memref<1x256xf32, #tpu.memory_space<vmem>>, %arg10: memref<256x128xbf16, #tpu.memory_space<vmem>>, %arg11: memref<1x128xf32, #tpu.memory_space<vmem>>, %arg12: memref<16x128xf32, #tpu.memory_space<vmem>>) attributes {dimension_semantics = [#tpu.dimension_semantics<parallel>], iteration_bounds = array<i64: 3>, scalar_prefetch = 0 : i64, scratch_operands = 0 : i64, tpu.core_type = #tpu.core_type<tc>, window_params = [{transform_indices = @transform_0, window_bounds = array<i64: 16, 128>}, {pipeline_mode = #tpu.pipeline_mode<synchronous>, transform_indices = @transform_1, window_bounds = array<i64: 128, 256>}, {pipeline_mode = #tpu.pipeline_mode<synchronous>, transform_indices = @transform_2, window_bounds = array<i64: 1, 256>}, {pipeline_mode = #tpu.pipeline_mode<synchronous>, transform_indices = @transform_3, window_bounds = array<i64: 256, 512>}, {pipeline_mode = #tpu.pipeline_mode<synchronous>, transform_indices = @transform_4, window_bounds = array<i64: 1, 512>}, {pipeline_mode = #tpu.pipeline_mode<synchronous>, transform_indices = @transform_5, window_bounds = array<i64: 9, 512, 512>}, {pipeline_mode = #tpu.pipeline_mode<synchronous>, transform_indices = @transform_6, window_bounds = array<i64: 9, 1, 512>}, {pipeline_mode = #tpu.pipeline_mode<synchronous>, transform_indices = @transform_7, window_bounds = array<i64: 512, 256>}, {pipeline_mode = #tpu.pipeline_mode<synchronous>, transform_indices = @transform_8, window_bounds = array<i64: 1, 256>}, {pipeline_mode = #tpu.pipeline_mode<synchronous>, transform_indices = @transform_9, window_bounds = array<i64: 256, 128>}, {pipeline_mode = #tpu.pipeline_mode<synchronous>, transform_indices = @transform_10, window_bounds = array<i64: 1, 128>}, {transform_indices = @transform_11, window_bounds = array<i64: 16, 128>}]} {
    %c0 = arith.constant 0 : index
    %c0_0 = arith.constant 0 : index
    %0 = vector.load %arg1[%c0, %c0_0] : memref<16x128xbf16, #tpu.memory_space<vmem>>, vector<16x128xbf16>
    %c0_1 = arith.constant 0 : index
    %c0_2 = arith.constant 0 : index
    %1 = vector.load %arg2[%c0_1, %c0_2] : memref<128x256xbf16, #tpu.memory_space<vmem>>, vector<128x256xbf16>
    %c0_3 = arith.constant 0 : index
    %c0_4 = arith.constant 0 : index
    %2 = vector.load %arg3[%c0_3, %c0_4] : memref<1x256xf32, #tpu.memory_space<vmem>>, vector<1x256xf32>
    %cst = arith.constant dense<0.000000e+00> : vector<16x256xf32>
    %3 = tpu.matmul %0, %1, %cst {dimension_numbers = #tpu.dot_dimension_numbers<[1], [0], [0], [1], [0, 0, 1, 1], [], []>} : vector<16x128xbf16>, vector<128x256xbf16>, vector<16x256xf32> -> vector<16x256xf32>
    %4 = vector.broadcast %2 : vector<1x256xf32> to vector<16x256xf32>
    %5 = arith.addf %3, %4 : vector<16x256xf32>
    %cst_5 = arith.constant 0.000000e+00 : f32
    %6 = vector.broadcast %cst_5 : f32 to vector<16x256xf32>
    %7 = arith.maximumf %5, %6 : vector<16x256xf32>
    %8 = arith.truncf %7 : vector<16x256xf32> to vector<16x256xbf16>
    %c0_6 = arith.constant 0 : index
    %c0_7 = arith.constant 0 : index
    %9 = vector.load %arg4[%c0_6, %c0_7] : memref<256x512xbf16, #tpu.memory_space<vmem>>, vector<256x512xbf16>
    %c0_8 = arith.constant 0 : index
    %c0_9 = arith.constant 0 : index
    %10 = vector.load %arg5[%c0_8, %c0_9] : memref<1x512xf32, #tpu.memory_space<vmem>>, vector<1x512xf32>
    %cst_10 = arith.constant dense<0.000000e+00> : vector<16x512xf32>
    %11 = tpu.matmul %8, %9, %cst_10 {dimension_numbers = #tpu.dot_dimension_numbers<[1], [0], [0], [1], [0, 0, 1, 1], [], []>} : vector<16x256xbf16>, vector<256x512xbf16>, vector<16x512xf32> -> vector<16x512xf32>
    %12 = vector.broadcast %10 : vector<1x512xf32> to vector<16x512xf32>
    %13 = arith.addf %11, %12 : vector<16x512xf32>
    %cst_11 = arith.constant 0.000000e+00 : f32
    %14 = vector.broadcast %cst_11 : f32 to vector<16x512xf32>
    %15 = arith.maximumf %13, %14 : vector<16x512xf32>
    %16 = arith.truncf %15 : vector<16x512xf32> to vector<16x512xbf16>
    %c0_12 = arith.constant 0 : index
    %c0_13 = arith.constant 0 : index
    %c0_14 = arith.constant 0 : index
    %17 = vector.load %arg6[%c0_12, %c0_13, %c0_14] : memref<9x512x512xbf16, #tpu.memory_space<vmem>>, vector<1x512x512xbf16>
    %18 = vector.shape_cast %17 : vector<1x512x512xbf16> to vector<512x512xbf16>
    %c0_15 = arith.constant 0 : index
    %c0_16 = arith.constant 0 : index
    %c0_17 = arith.constant 0 : index
    %19 = vector.load %arg7[%c0_15, %c0_16, %c0_17] : memref<9x1x512xf32, #tpu.memory_space<vmem>>, vector<1x1x512xf32>
    %20 = vector.shape_cast %19 : vector<1x1x512xf32> to vector<1x512xf32>
    %cst_18 = arith.constant dense<0.000000e+00> : vector<16x512xf32>
    %21 = tpu.matmul %16, %18, %cst_18 {dimension_numbers = #tpu.dot_dimension_numbers<[1], [0], [0], [1], [0, 0, 1, 1], [], []>} : vector<16x512xbf16>, vector<512x512xbf16>, vector<16x512xf32> -> vector<16x512xf32>
    %22 = vector.broadcast %20 : vector<1x512xf32> to vector<16x512xf32>
    %23 = arith.addf %21, %22 : vector<16x512xf32>
    %cst_19 = arith.constant 0.000000e+00 : f32
    %24 = vector.broadcast %cst_19 : f32 to vector<16x512xf32>
    %25 = arith.maximumf %23, %24 : vector<16x512xf32>
    %26 = arith.truncf %25 : vector<16x512xf32> to vector<16x512xbf16>
    %c1 = arith.constant 1 : index
    %c0_20 = arith.constant 0 : index
    %c0_21 = arith.constant 0 : index
    %27 = vector.load %arg6[%c1, %c0_20, %c0_21] : memref<9x512x512xbf16, #tpu.memory_space<vmem>>, vector<1x512x512xbf16>
    %28 = vector.shape_cast %27 : vector<1x512x512xbf16> to vector<512x512xbf16>
    %c1_22 = arith.constant 1 : index
    %c0_23 = arith.constant 0 : index
    %c0_24 = arith.constant 0 : index
    %29 = vector.load %arg7[%c1_22, %c0_23, %c0_24] : memref<9x1x512xf32, #tpu.memory_space<vmem>>, vector<1x1x512xf32>
    %30 = vector.shape_cast %29 : vector<1x1x512xf32> to vector<1x512xf32>
    %cst_25 = arith.constant dense<0.000000e+00> : vector<16x512xf32>
    %31 = tpu.matmul %26, %28, %cst_25 {dimension_numbers = #tpu.dot_dimension_numbers<[1], [0], [0], [1], [0, 0, 1, 1], [], []>} : vector<16x512xbf16>, vector<512x512xbf16>, vector<16x512xf32> -> vector<16x512xf32>
    %32 = vector.broadcast %30 : vector<1x512xf32> to vector<16x512xf32>
    %33 = arith.addf %31, %32 : vector<16x512xf32>
    %cst_26 = arith.constant 0.000000e+00 : f32
    %34 = vector.broadcast %cst_26 : f32 to vector<16x512xf32>
    %35 = arith.maximumf %33, %34 : vector<16x512xf32>
    %36 = arith.truncf %35 : vector<16x512xf32> to vector<16x512xbf16>
    %c2 = arith.constant 2 : index
    %c0_27 = arith.constant 0 : index
    %c0_28 = arith.constant 0 : index
    %37 = vector.load %arg6[%c2, %c0_27, %c0_28] : memref<9x512x512xbf16, #tpu.memory_space<vmem>>, vector<1x512x512xbf16>
    %38 = vector.shape_cast %37 : vector<1x512x512xbf16> to vector<512x512xbf16>
    %c2_29 = arith.constant 2 : index
    %c0_30 = arith.constant 0 : index
    %c0_31 = arith.constant 0 : index
    %39 = vector.load %arg7[%c2_29, %c0_30, %c0_31] : memref<9x1x512xf32, #tpu.memory_space<vmem>>, vector<1x1x512xf32>
    %40 = vector.shape_cast %39 : vector<1x1x512xf32> to vector<1x512xf32>
    %cst_32 = arith.constant dense<0.000000e+00> : vector<16x512xf32>
    %41 = tpu.matmul %36, %38, %cst_32 {dimension_numbers = #tpu.dot_dimension_numbers<[1], [0], [0], [1], [0, 0, 1, 1], [], []>} : vector<16x512xbf16>, vector<512x512xbf16>, vector<16x512xf32> -> vector<16x512xf32>
    %42 = vector.broadcast %40 : vector<1x512xf32> to vector<16x512xf32>
    %43 = arith.addf %41, %42 : vector<16x512xf32>
    %cst_33 = arith.constant 0.000000e+00 : f32
    %44 = vector.broadcast %cst_33 : f32 to vector<16x512xf32>
    %45 = arith.maximumf %43, %44 : vector<16x512xf32>
    %46 = arith.truncf %45 : vector<16x512xf32> to vector<16x512xbf16>
    %c3 = arith.constant 3 : index
    %c0_34 = arith.constant 0 : index
    %c0_35 = arith.constant 0 : index
    %47 = vector.load %arg6[%c3, %c0_34, %c0_35] : memref<9x512x512xbf16, #tpu.memory_space<vmem>>, vector<1x512x512xbf16>
    %48 = vector.shape_cast %47 : vector<1x512x512xbf16> to vector<512x512xbf16>
    %c3_36 = arith.constant 3 : index
    %c0_37 = arith.constant 0 : index
    %c0_38 = arith.constant 0 : index
    %49 = vector.load %arg7[%c3_36, %c0_37, %c0_38] : memref<9x1x512xf32, #tpu.memory_space<vmem>>, vector<1x1x512xf32>
    %50 = vector.shape_cast %49 : vector<1x1x512xf32> to vector<1x512xf32>
    %cst_39 = arith.constant dense<0.000000e+00> : vector<16x512xf32>
    %51 = tpu.matmul %46, %48, %cst_39 {dimension_numbers = #tpu.dot_dimension_numbers<[1], [0], [0], [1], [0, 0, 1, 1], [], []>} : vector<16x512xbf16>, vector<512x512xbf16>, vector<16x512xf32> -> vector<16x512xf32>
    %52 = vector.broadcast %50 : vector<1x512xf32> to vector<16x512xf32>
    %53 = arith.addf %51, %52 : vector<16x512xf32>
    %cst_40 = arith.constant 0.000000e+00 : f32
    %54 = vector.broadcast %cst_40 : f32 to vector<16x512xf32>
    %55 = arith.maximumf %53, %54 : vector<16x512xf32>
    %56 = arith.truncf %55 : vector<16x512xf32> to vector<16x512xbf16>
    %c4 = arith.constant 4 : index
    %c0_41 = arith.constant 0 : index
    %c0_42 = arith.constant 0 : index
    %57 = vector.load %arg6[%c4, %c0_41, %c0_42] : memref<9x512x512xbf16, #tpu.memory_space<vmem>>, vector<1x512x512xbf16>
    %58 = vector.shape_cast %57 : vector<1x512x512xbf16> to vector<512x512xbf16>
    %c4_43 = arith.constant 4 : index
    %c0_44 = arith.constant 0 : index
    %c0_45 = arith.constant 0 : index
    %59 = vector.load %arg7[%c4_43, %c0_44, %c0_45] : memref<9x1x512xf32, #tpu.memory_space<vmem>>, vector<1x1x512xf32>
    %60 = vector.shape_cast %59 : vector<1x1x512xf32> to vector<1x512xf32>
    %cst_46 = arith.constant dense<0.000000e+00> : vector<16x512xf32>
    %61 = tpu.matmul %56, %58, %cst_46 {dimension_numbers = #tpu.dot_dimension_numbers<[1], [0], [0], [1], [0, 0, 1, 1], [], []>} : vector<16x512xbf16>, vector<512x512xbf16>, vector<16x512xf32> -> vector<16x512xf32>
    %62 = vector.broadcast %60 : vector<1x512xf32> to vector<16x512xf32>
    %63 = arith.addf %61, %62 : vector<16x512xf32>
    %cst_47 = arith.constant 0.000000e+00 : f32
    %64 = vector.broadcast %cst_47 : f32 to vector<16x512xf32>
    %65 = arith.maximumf %63, %64 : vector<16x512xf32>
    %66 = arith.truncf %65 : vector<16x512xf32> to vector<16x512xbf16>
    %c5 = arith.constant 5 : index
    %c0_48 = arith.constant 0 : index
    %c0_49 = arith.constant 0 : index
    %67 = vector.load %arg6[%c5, %c0_48, %c0_49] : memref<9x512x512xbf16, #tpu.memory_space<vmem>>, vector<1x512x512xbf16>
    %68 = vector.shape_cast %67 : vector<1x512x512xbf16> to vector<512x512xbf16>
    %c5_50 = arith.constant 5 : index
    %c0_51 = arith.constant 0 : index
    %c0_52 = arith.constant 0 : index
    %69 = vector.load %arg7[%c5_50, %c0_51, %c0_52] : memref<9x1x512xf32, #tpu.memory_space<vmem>>, vector<1x1x512xf32>
    %70 = vector.shape_cast %69 : vector<1x1x512xf32> to vector<1x512xf32>
    %cst_53 = arith.constant dense<0.000000e+00> : vector<16x512xf32>
    %71 = tpu.matmul %66, %68, %cst_53 {dimension_numbers = #tpu.dot_dimension_numbers<[1], [0], [0], [1], [0, 0, 1, 1], [], []>} : vector<16x512xbf16>, vector<512x512xbf16>, vector<16x512xf32> -> vector<16x512xf32>
    %72 = vector.broadcast %70 : vector<1x512xf32> to vector<16x512xf32>
    %73 = arith.addf %71, %72 : vector<16x512xf32>
    %cst_54 = arith.constant 0.000000e+00 : f32
    %74 = vector.broadcast %cst_54 : f32 to vector<16x512xf32>
    %75 = arith.maximumf %73, %74 : vector<16x512xf32>
    %76 = arith.truncf %75 : vector<16x512xf32> to vector<16x512xbf16>
    %c6 = arith.constant 6 : index
    %c0_55 = arith.constant 0 : index
    %c0_56 = arith.constant 0 : index
    %77 = vector.load %arg6[%c6, %c0_55, %c0_56] : memref<9x512x512xbf16, #tpu.memory_space<vmem>>, vector<1x512x512xbf16>
    %78 = vector.shape_cast %77 : vector<1x512x512xbf16> to vector<512x512xbf16>
    %c6_57 = arith.constant 6 : index
    %c0_58 = arith.constant 0 : index
    %c0_59 = arith.constant 0 : index
    %79 = vector.load %arg7[%c6_57, %c0_58, %c0_59] : memref<9x1x512xf32, #tpu.memory_space<vmem>>, vector<1x1x512xf32>
    %80 = vector.shape_cast %79 : vector<1x1x512xf32> to vector<1x512xf32>
    %cst_60 = arith.constant dense<0.000000e+00> : vector<16x512xf32>
    %81 = tpu.matmul %76, %78, %cst_60 {dimension_numbers = #tpu.dot_dimension_numbers<[1], [0], [0], [1], [0, 0, 1, 1], [], []>} : vector<16x512xbf16>, vector<512x512xbf16>, vector<16x512xf32> -> vector<16x512xf32>
    %82 = vector.broadcast %80 : vector<1x512xf32> to vector<16x512xf32>
    %83 = arith.addf %81, %82 : vector<16x512xf32>
    %cst_61 = arith.constant 0.000000e+00 : f32
    %84 = vector.broadcast %cst_61 : f32 to vector<16x512xf32>
    %85 = arith.maximumf %83, %84 : vector<16x512xf32>
    %86 = arith.truncf %85 : vector<16x512xf32> to vector<16x512xbf16>
    %c7 = arith.constant 7 : index
    %c0_62 = arith.constant 0 : index
    %c0_63 = arith.constant 0 : index
    %87 = vector.load %arg6[%c7, %c0_62, %c0_63] : memref<9x512x512xbf16, #tpu.memory_space<vmem>>, vector<1x512x512xbf16>
    %88 = vector.shape_cast %87 : vector<1x512x512xbf16> to vector<512x512xbf16>
    %c7_64 = arith.constant 7 : index
    %c0_65 = arith.constant 0 : index
    %c0_66 = arith.constant 0 : index
    %89 = vector.load %arg7[%c7_64, %c0_65, %c0_66] : memref<9x1x512xf32, #tpu.memory_space<vmem>>, vector<1x1x512xf32>
    %90 = vector.shape_cast %89 : vector<1x1x512xf32> to vector<1x512xf32>
    %cst_67 = arith.constant dense<0.000000e+00> : vector<16x512xf32>
    %91 = tpu.matmul %86, %88, %cst_67 {dimension_numbers = #tpu.dot_dimension_numbers<[1], [0], [0], [1], [0, 0, 1, 1], [], []>} : vector<16x512xbf16>, vector<512x512xbf16>, vector<16x512xf32> -> vector<16x512xf32>
    %92 = vector.broadcast %90 : vector<1x512xf32> to vector<16x512xf32>
    %93 = arith.addf %91, %92 : vector<16x512xf32>
    %cst_68 = arith.constant 0.000000e+00 : f32
    %94 = vector.broadcast %cst_68 : f32 to vector<16x512xf32>
    %95 = arith.maximumf %93, %94 : vector<16x512xf32>
    %96 = arith.truncf %95 : vector<16x512xf32> to vector<16x512xbf16>
    %c8 = arith.constant 8 : index
    %c0_69 = arith.constant 0 : index
    %c0_70 = arith.constant 0 : index
    %97 = vector.load %arg6[%c8, %c0_69, %c0_70] : memref<9x512x512xbf16, #tpu.memory_space<vmem>>, vector<1x512x512xbf16>
    %98 = vector.shape_cast %97 : vector<1x512x512xbf16> to vector<512x512xbf16>
    %c8_71 = arith.constant 8 : index
    %c0_72 = arith.constant 0 : index
    %c0_73 = arith.constant 0 : index
    %99 = vector.load %arg7[%c8_71, %c0_72, %c0_73] : memref<9x1x512xf32, #tpu.memory_space<vmem>>, vector<1x1x512xf32>
    %100 = vector.shape_cast %99 : vector<1x1x512xf32> to vector<1x512xf32>
    %cst_74 = arith.constant dense<0.000000e+00> : vector<16x512xf32>
    %101 = tpu.matmul %96, %98, %cst_74 {dimension_numbers = #tpu.dot_dimension_numbers<[1], [0], [0], [1], [0, 0, 1, 1], [], []>} : vector<16x512xbf16>, vector<512x512xbf16>, vector<16x512xf32> -> vector<16x512xf32>
    %102 = vector.broadcast %100 : vector<1x512xf32> to vector<16x512xf32>
    %103 = arith.addf %101, %102 : vector<16x512xf32>
    %cst_75 = arith.constant 0.000000e+00 : f32
    %104 = vector.broadcast %cst_75 : f32 to vector<16x512xf32>
    %105 = arith.maximumf %103, %104 : vector<16x512xf32>
    %106 = arith.truncf %105 : vector<16x512xf32> to vector<16x512xbf16>
    %c0_76 = arith.constant 0 : index
    %c0_77 = arith.constant 0 : index
    %107 = vector.load %arg8[%c0_76, %c0_77] : memref<512x256xbf16, #tpu.memory_space<vmem>>, vector<512x256xbf16>
    %c0_78 = arith.constant 0 : index
    %c0_79 = arith.constant 0 : index
    %108 = vector.load %arg9[%c0_78, %c0_79] : memref<1x256xf32, #tpu.memory_space<vmem>>, vector<1x256xf32>
    %cst_80 = arith.constant dense<0.000000e+00> : vector<16x256xf32>
    %109 = tpu.matmul %106, %107, %cst_80 {dimension_numbers = #tpu.dot_dimension_numbers<[1], [0], [0], [1], [0, 0, 1, 1], [], []>} : vector<16x512xbf16>, vector<512x256xbf16>, vector<16x256xf32> -> vector<16x256xf32>
    %110 = vector.broadcast %108 : vector<1x256xf32> to vector<16x256xf32>
    %111 = arith.addf %109, %110 : vector<16x256xf32>
    %cst_81 = arith.constant 0.000000e+00 : f32
    %112 = vector.broadcast %cst_81 : f32 to vector<16x256xf32>
    %113 = arith.maximumf %111, %112 : vector<16x256xf32>
    %114 = arith.truncf %113 : vector<16x256xf32> to vector<16x256xbf16>
    %c0_82 = arith.constant 0 : index
    %c0_83 = arith.constant 0 : index
    %115 = vector.load %arg10[%c0_82, %c0_83] : memref<256x128xbf16, #tpu.memory_space<vmem>>, vector<256x128xbf16>
    %cst_84 = arith.constant dense<0.000000e+00> : vector<16x128xf32>
    %116 = tpu.matmul %114, %115, %cst_84 {dimension_numbers = #tpu.dot_dimension_numbers<[1], [0], [0], [1], [0, 0, 1, 1], [], []>} : vector<16x256xbf16>, vector<256x128xbf16>, vector<16x128xf32> -> vector<16x128xf32>
    %c0_85 = arith.constant 0 : index
    %c0_86 = arith.constant 0 : index
    %117 = vector.load %arg11[%c0_85, %c0_86] : memref<1x128xf32, #tpu.memory_space<vmem>>, vector<1x128xf32>
    %118 = vector.broadcast %117 : vector<1x128xf32> to vector<16x128xf32>
    %119 = arith.addf %116, %118 : vector<16x128xf32>
    %c0_87 = arith.constant 0 : index
    %c0_88 = arith.constant 0 : index
    %120 = vector.load %arg12[%c0_87, %c0_88] : memref<16x128xf32, #tpu.memory_space<vmem>>, vector<16x128xf32>
    tpu.vector_store %arg12[%c0_87, %c0_88], %119 {strides = array<i32>} : memref<16x128xf32, #tpu.memory_space<vmem>>, vector<16x128xf32>,
    return
  }
  func.func @transform_0(%arg0: i32) -> (i32, i32) {
    %c0_i32 = arith.constant 0 : i32
    %c0_i32_0 = arith.constant 0 : i32
    return %arg0, %c0_i32 : i32, i32
  }
  func.func @transform_1(%arg0: i32) -> (i32, i32) {
    %c0_i32 = arith.constant 0 : i32
    %c0_i32_0 = arith.constant 0 : i32
    %c0_i32_1 = arith.constant 0 : i32
    return %c0_i32, %c0_i32_0 : i32, i32
  }
  func.func @transform_2(%arg0: i32) -> (i32, i32) {
    %c0_i32 = arith.constant 0 : i32
    %c0_i32_0 = arith.constant 0 : i32
    %c0_i32_1 = arith.constant 0 : i32
    return %c0_i32, %c0_i32_0 : i32, i32
  }
  func.func @transform_3(%arg0: i32) -> (i32, i32) {
    %c0_i32 = arith.constant 0 : i32
    %c0_i32_0 = arith.constant 0 : i32
    %c0_i32_1 = arith.constant 0 : i32
    return %c0_i32, %c0_i32_0 : i32, i32
  }
  func.func @transform_4(%arg0: i32) -> (i32, i32) {
    %c0_i32 = arith.constant 0 : i32
    %c0_i32_0 = arith.constant 0 : i32
    %c0_i32_1 = arith.constant 0 : i32
    return %c0_i32, %c0_i32_0 : i32, i32
  }
  func.func @transform_5(%arg0: i32) -> (i32, i32, i32) {
    %c0_i32 = arith.constant 0 : i32
    %c0_i32_0 = arith.constant 0 : i32
    %c0_i32_1 = arith.constant 0 : i32
    %c0_i32_2 = arith.constant 0 : i32
    return %c0_i32, %c0_i32_0, %c0_i32_1 : i32, i32, i32
  }
  func.func @transform_6(%arg0: i32) -> (i32, i32, i32) {
    %c0_i32 = arith.constant 0 : i32
    %c0_i32_0 = arith.constant 0 : i32
    %c0_i32_1 = arith.constant 0 : i32
    %c0_i32_2 = arith.constant 0 : i32
    return %c0_i32, %c0_i32_0, %c0_i32_1 : i32, i32, i32
  }
  func.func @transform_7(%arg0: i32) -> (i32, i32) {
    %c0_i32 = arith.constant 0 : i32
    %c0_i32_0 = arith.constant 0 : i32
    %c0_i32_1 = arith.constant 0 : i32
    return %c0_i32, %c0_i32_0 : i32, i32
  }
  func.func @transform_8(%arg0: i32) -> (i32, i32) {
    %c0_i32 = arith.constant 0 : i32
    %c0_i32_0 = arith.constant 0 : i32
    %c0_i32_1 = arith.constant 0 : i32
    return %c0_i32, %c0_i32_0 : i32, i32
  }
  func.func @transform_9(%arg0: i32) -> (i32, i32) {
    %c0_i32 = arith.constant 0 : i32
    %c0_i32_0 = arith.constant 0 : i32
    %c0_i32_1 = arith.constant 0 : i32
    return %c0_i32, %c0_i32_0 : i32, i32
  }
  func.func @transform_10(%arg0: i32) -> (i32, i32) {
    %c0_i32 = arith.constant 0 : i32
    %c0_i32_0 = arith.constant 0 : i32
    %c0_i32_1 = arith.constant 0 : i32
    return %c0_i32, %c0_i32_0 : i32, i32
  }
  func.func @transform_11(%arg0: i32) -> (i32, i32) {
    %c0_i32 = arith.constant 0 : i32
    %c0_i32_0 = arith.constant 0 : i32
    return %arg0, %c0_i32 : i32, i32
  }
}

</mosaic_0001>

<llo_original>
// kernel: mlp12_forward.1
$region0: #{mlp12_forward.1}
  #allocation0 [shape = 'u32[]', space=smem, size = 0x4, offset = 0x4, fixed_abs, tag = 'smem constant byte address 0x4 - core index']
  #allocation1 [shape = 'u32[72,128]{1,0:T(1,128)}', space=vmem, size = 0x9000, scoped, tag = 'internal scratch']
  %s0 = inlined_call_operand.vmem [shape: bf16[48,128], index: 0, kind: input, shape index: {}]
  %s1 = inlined_call_operand.hbm [shape: bf16[128,256], index: 1, kind: input, shape index: {}]
  %s2 = inlined_call_operand.hbm [shape: f32[1,256], index: 2, kind: input, shape index: {}]
  %s3 = inlined_call_operand.hbm [shape: bf16[256,512], index: 3, kind: input, shape index: {}]
  %s4 = inlined_call_operand.hbm [shape: f32[1,512], index: 4, kind: input, shape index: {}]
  %s5 = inlined_call_operand.hbm [shape: bf16[9,512,512], index: 5, kind: input, shape index: {}]
  %s6 = inlined_call_operand.hbm [shape: f32[9,1,512], index: 6, kind: input, shape index: {}]
  %s7 = inlined_call_operand.hbm [shape: bf16[512,256], index: 7, kind: input, shape index: {}]
  %s8 = inlined_call_operand.hbm [shape: f32[1,256], index: 8, kind: input, shape index: {}]
  %s9 = inlined_call_operand.hbm [shape: bf16[256,128], index: 9, kind: input, shape index: {}]
  %s10 = inlined_call_operand.hbm [shape: f32[1,128], index: 10, kind: input, shape index: {}]
  %s11 = inlined_call_operand.vmem [shape: f32[48,128], index: 11, kind: output, shape index: {}]
  %s12 = sld [smem:[#allocation0]]
  $region117: #{mlp12_forward.1} parent=0
    _
  %s14 = ssub.s32 1, %s12
  %s15 = scalar_select 0, %s14, %s12
  $region1: #{mlp12_forward.1} parent=0
    #allocation2 [shape = 'u8[65536]{0}', space=vmem, size = 0x10000, scoped, tag = 'input window, operand 1, single buffered']
    #allocation3 [shape = 's32[2]{0}', space=sflag, size = 0x8, scoped, tag = 'scoped memory for mlp12_forward.1']
    #allocation4 [shape = 'u8[1024]{0}', space=vmem, size = 0x400, scoped, tag = 'input window, operand 2, single buffered']
    #allocation5 [shape = 's32[1]{0}', space=sflag, size = 0x4, scoped, tag = 'scoped memory for mlp12_forward.1']
    #allocation6 [shape = 'u8[262144]{0}', space=vmem, size = 0x40000, scoped, tag = 'input window, operand 3, single buffered']
    #allocation7 [shape = 'u8[2048]{0}', space=vmem, size = 0x800, scoped, tag = 'input window, operand 4, single buffered']
    #allocation8 [shape = 's32[1]{0}', space=sflag, size = 0x4, scoped, tag = 'scoped memory for mlp12_forward.1']
    #allocation9 [shape = 'u8[4718592]{0}', space=vmem, size = 0x480000, scoped, tag = 'input window, operand 5, single buffered']
    #allocation10 [shape = 'u8[18432]{0}', space=vmem, size = 0x4800, scoped, tag = 'input window, operand 6, single buffered']
    #allocation11 [shape = 's32[1]{0}', space=sflag, size = 0x4, scoped, tag = 'scoped memory for mlp12_forward.1']
    #allocation12 [shape = 'u8[262144]{0}', space=vmem, size = 0x40000, scoped, tag = 'input window, operand 7, single buffered']
    #allocation13 [shape = 'u8[1024]{0}', space=vmem, size = 0x400, scoped, tag = 'input window, operand 8, single buffered']
    #allocation14 [shape = 's32[1]{0}', space=sflag, size = 0x4, scoped, tag = 'scoped memory for mlp12_forward.1']
    #allocation15 [shape = 'u8[65536]{0}', space=vmem, size = 0x10000, scoped, tag = 'input window, operand 9, single buffered']
    #allocation16 [shape = 'u8[512]{0}', space=vmem, size = 0x400, scoped, tag = 'input window, operand 10, single buffered']
    #allocation17 [shape = 's32[1]{0}', space=sflag, size = 0x4, scoped, tag = 'scoped memory for mlp12_forward.1']
    %16 = vsyncpa [#allocation3], 0
    %17 = vsyncpa [#allocation5], 0
    %18 = vsyncpa [#allocation8], 0
    %19 = vsyncpa [#allocation11], 0
    %20 = vsyncpa [#allocation14], 0
    %21 = vsyncpa [#allocation17], 0
    loop: start=0, step=1, limit=5
    $region2: #{mlp12_forward.1} parent=1 // loop_pre_header
      _
    $region3: #{mlp12_forward.1} parent=1 // loop_header
      %s23 = sphi 0, %s27
      %p24 = scmp.ge.s32.totalorder %s23, 5
      %s33 = sphi 0, %s35
      %s36 = sphi 0, %s33
      %s37 = sphi 0, %s36
      %s53 = sphi 0, %s37
      %s57 = sphi 0, %s57
      %s59 = sphi 0, %s57
      %s60 = sphi 0, %s59
      %s74 = sphi 0, %s60
      %s78 = sphi 0, %s78
      %s80 = sphi 0, %s78
      %s81 = sphi 0, %s80
      %s95 = sphi 0, %s81
      %s99 = sphi 0, %s99
      %s101 = sphi 0, %s99
      %s102 = sphi 0, %s101
      %s116 = sphi 0, %s102
      %s120 = sphi 0, %s120
      %s122 = sphi 0, %s120
      %s123 = sphi 0, %s122
      %s137 = sphi 0, %s123
      %s141 = sphi 0, %s141
      %s143 = sphi 0, %s141
      %s144 = sphi 0, %s143
      %s158 = sphi 0, %s144
      %s162 = sphi 0, %s162
      %s164 = sphi 0, %s162
      %s165 = sphi 0, %s164
      %s179 = sphi 0, %s165
      %s183 = sphi 0, %s183
      %s185 = sphi 0, %s183
      %s186 = sphi 0, %s185
      %s200 = sphi 0, %s186
      %s204 = sphi 0, %s204
      %s206 = sphi 0, %s204
      %s207 = sphi 0, %s206
      %s221 = sphi 0, %s207
      %s225 = sphi 0, %s225
      %s227 = sphi 0, %s225
      %s228 = sphi 0, %s227
      %s242 = sphi 0, %s228
      %s246 = sphi 0, %s246
      %s248 = sphi 0, %s246
      %s249 = sphi 0, %s248
      %s263 = sphi 0, %s249
      %s269 = sphi 0, %s271
      %s272 = sphi 0, %s269
      %s273 = sphi 0, %s272
      %s289 = sphi 0, %s273
    $region4: #{mlp12_forward.1} parent=1 // loop_header_branch
      %26 = sbr.rel (%p24) target = $region8
    $region5: #{mlp12_forward.1} parent=1 // loop_body
      %s28 = ssub.s32 %s23, 1
      %s29 = ssub.s32 %s23, 2
      %s30 = sadd.s32 %s23, 1
      %s31 = ssub.s32 %s23, %s30
      %p32 = scmp.eq.s32.totalorder %s31, 0
      %s34 = sadd.s32 %s33, 1
      %s35 = scalar_select %p32, %s33, %s34
      %p38 = pneg %p32
      %p39 = scmp.eq.s32.totalorder %s23, 2
      %p40 = por %p38, %p39
      %p41 = scmp.ne.s32.totalorder %s33, %s36
      %p42 = scmp.eq.s32.totalorder %s23, 0
      %p43 = por %p41, %p42
      %p44 = scmp.ne.s32.totalorder %s33, %s36
      %p45 = scmp.eq.s32.totalorder %s28, 2
      %p46 = por %p44, %p45
      %p47 = scmp.ne.s32.totalorder %s36, %s37
      %p48 = scmp.eq.s32.totalorder %s28, 0
      %p49 = por %p47, %p48
      %p50 = scmp.ne.s32.totalorder %s36, %s37
      %p51 = scmp.eq.s32.totalorder %s29, 2
      %p52 = por %p50, %p51
      %p54 = scmp.ne.s32.totalorder %s37, %s53
      %p55 = scmp.eq.s32.totalorder %s29, 0
      %p56 = por %p54, %p55
      %s58 = sadd.s32 %s57, 1
      %p61 = scmp.eq.s32.totalorder %s23, 2
      %p62 = scmp.ne.s32.totalorder %s57, %s59
      %p63 = scmp.eq.s32.totalorder %s23, 0
      %p64 = por %p62, %p63
      %p65 = scmp.ne.s32.totalorder %s57, %s59
      %p66 = scmp.eq.s32.totalorder %s28, 2
      %p67 = por %p65, %p66
      %p68 = scmp.ne.s32.totalorder %s59, %s60
      %p69 = scmp.eq.s32.totalorder %s28, 0
      %p70 = por %p68, %p69
      %p71 = scmp.ne.s32.totalorder %s59, %s60
      %p72 = scmp.eq.s32.totalorder %s29, 2
      %p73 = por %p71, %p72
      %p75 = scmp.ne.s32.totalorder %s60, %s74
      %p76 = scmp.eq.s32.totalorder %s29, 0
      %p77 = por %p75, %p76
      %s79 = sadd.s32 %s78, 1
      %p82 = scmp.eq.s32.totalorder %s23, 2
      %p83 = scmp.ne.s32.totalorder %s78, %s80
      %p84 = scmp.eq.s32.totalorder %s23, 0
      %p85 = por %p83, %p84
      %p86 = scmp.ne.s32.totalorder %s78, %s80
      %p87 = scmp.eq.s32.totalorder %s28, 2
      %p88 = por %p86, %p87
      %p89 = scmp.ne.s32.totalorder %s80, %s81
      %p90 = scmp.eq.s32.totalorder %s28, 0
      %p91 = por %p89, %p90
      %p92 = scmp.ne.s32.totalorder %s80, %s81
      %p93 = scmp.eq.s32.totalorder %s29, 2
      %p94 = por %p92, %p93
      %p96 = scmp.ne.s32.totalorder %s81, %s95
      %p97 = scmp.eq.s32.totalorder %s29, 0
      %p98 = por %p96, %p97
      %s100 = sadd.s32 %s99, 1
      %p103 = scmp.eq.s32.totalorder %s23, 2
      %p104 = scmp.ne.s32.totalorder %s99, %s101
      %p105 = scmp.eq.s32.totalorder %s23, 0
      %p106 = por %p104, %p105
      %p107 = scmp.ne.s32.totalorder %s99, %s101
      %p108 = scmp.eq.s32.totalorder %s28, 2
      %p109 = por %p107, %p108
      %p110 = scmp.ne.s32.totalorder %s101, %s102
      %p111 = scmp.eq.s32.totalorder %s28, 0
      %p112 = por %p110, %p111
      %p113 = scmp.ne.s32.totalorder %s101, %s102
      %p114 = scmp.eq.s32.totalorder %s29, 2
      %p115 = por %p113, %p114
      %p117 = scmp.ne.s32.totalorder %s102, %s116
      %p118 = scmp.eq.s32.totalorder %s29, 0
      %p119 = por %p117, %p118
      %s121 = sadd.s32 %s120, 1
      %p124 = scmp.eq.s32.totalorder %s23, 2
      %p125 = scmp.ne.s32.totalorder %s120, %s122
      %p126 = scmp.eq.s32.totalorder %s23, 0
      %p127 = por %p125, %p126
      %p128 = scmp.ne.s32.totalorder %s120, %s122
      %p129 = scmp.eq.s32.totalorder %s28, 2
      %p130 = por %p128, %p129
      %p131 = scmp.ne.s32.totalorder %s122, %s123
      %p132 = scmp.eq.s32.totalorder %s28, 0
      %p133 = por %p131, %p132
      %p134 = scmp.ne.s32.totalorder %s122, %s123
      %p135 = scmp.eq.s32.totalorder %s29, 2
      %p136 = por %p134, %p135
      %p138 = scmp.ne.s32.totalorder %s123, %s137
      %p139 = scmp.eq.s32.totalorder %s29, 0
      %p140 = por %p138, %p139
      %s142 = sadd.s32 %s141, 1
      %p145 = scmp.eq.s32.totalorder %s23, 2
      %p146 = scmp.ne.s32.totalorder %s141, %s143
      %p147 = scmp.eq.s32.totalorder %s23, 0
      %p148 = por %p146, %p147
      %p149 = scmp.ne.s32.totalorder %s141, %s143
      %p150 = scmp.eq.s32.totalorder %s28, 2
      %p151 = por %p149, %p150
      %p152 = scmp.ne.s32.totalorder %s143, %s144
      %p153 = scmp.eq.s32.totalorder %s28, 0
      %p154 = por %p152, %p153
      %p155 = scmp.ne.s32.totalorder %s143, %s144
      %p156 = scmp.eq.s32.totalorder %s29, 2
      %p157 = por %p155, %p156
      %p159 = scmp.ne.s32.totalorder %s144, %s158
      %p160 = scmp.eq.s32.totalorder %s29, 0
      %p161 = por %p159, %p160
      %s163 = sadd.s32 %s162, 1
      %p166 = scmp.eq.s32.totalorder %s23, 2
      %p167 = scmp.ne.s32.totalorder %s162, %s164
      %p168 = scmp.eq.s32.totalorder %s23, 0
      %p169 = por %p167, %p168
      %p170 = scmp.ne.s32.totalorder %s162, %s164
      %p171 = scmp.eq.s32.totalorder %s28, 2
      %p172 = por %p170, %p171
      %p173 = scmp.ne.s32.totalorder %s164, %s165
      %p174 = scmp.eq.s32.totalorder %s28, 0
      %p175 = por %p173, %p174
      %p176 = scmp.ne.s32.totalorder %s164, %s165
      %p177 = scmp.eq.s32.totalorder %s29, 2
      %p178 = por %p176, %p177
      %p180 = scmp.ne.s32.totalorder %s165, %s179
      %p181 = scmp.eq.s32.totalorder %s29, 0
      %p182 = por %p180, %p181
      %s184 = sadd.s32 %s183, 1
      %p187 = scmp.eq.s32.totalorder %s23, 2
      %p188 = scmp.ne.s32.totalorder %s183, %s185
      %p189 = scmp.eq.s32.totalorder %s23, 0
      %p190 = por %p188, %p189
      %p191 = scmp.ne.s32.totalorder %s183, %s185
      %p192 = scmp.eq.s32.totalorder %s28, 2
      %p193 = por %p191, %p192
      %p194 = scmp.ne.s32.totalorder %s185, %s186
      %p195 = scmp.eq.s32.totalorder %s28, 0
      %p196 = por %p194, %p195
      %p197 = scmp.ne.s32.totalorder %s185, %s186
      %p198 = scmp.eq.s32.totalorder %s29, 2
      %p199 = por %p197, %p198
      %p201 = scmp.ne.s32.totalorder %s186, %s200
      %p202 = scmp.eq.s32.totalorder %s29, 0
      %p203 = por %p201, %p202
      %s205 = sadd.s32 %s204, 1
      %p208 = scmp.eq.s32.totalorder %s23, 2
      %p209 = scmp.ne.s32.totalorder %s204, %s206
      %p210 = scmp.eq.s32.totalorder %s23, 0
      %p211 = por %p209, %p210
      %p212 = scmp.ne.s32.totalorder %s204, %s206
      %p213 = scmp.eq.s32.totalorder %s28, 2
      %p214 = por %p212, %p213
      %p215 = scmp.ne.s32.totalorder %s206, %s207
      %p216 = scmp.eq.s32.totalorder %s28, 0
      %p217 = por %p215, %p216
      %p218 = scmp.ne.s32.totalorder %s206, %s207
      %p219 = scmp.eq.s32.totalorder %s29, 2
      %p220 = por %p218, %p219
      %p222 = scmp.ne.s32.totalorder %s207, %s221
      %p223 = scmp.eq.s32.totalorder %s29, 0
      %p224 = por %p222, %p223
      %s226 = sadd.s32 %s225, 1
      %p229 = scmp.eq.s32.totalorder %s23, 2
      %p230 = scmp.ne.s32.totalorder %s225, %s227
      %p231 = scmp.eq.s32.totalorder %s23, 0
      %p232 = por %p230, %p231
      %p233 = scmp.ne.s32.totalorder %s225, %s227
      %p234 = scmp.eq.s32.totalorder %s28, 2
      %p235 = por %p233, %p234
      %p236 = scmp.ne.s32.totalorder %s227, %s228
      %p237 = scmp.eq.s32.totalorder %s28, 0
      %p238 = por %p236, %p237
      %p239 = scmp.ne.s32.totalorder %s227, %s228
      %p240 = scmp.eq.s32.totalorder %s29, 2
      %p241 = por %p239, %p240
      %p243 = scmp.ne.s32.totalorder %s228, %s242
      %p244 = scmp.eq.s32.totalorder %s29, 0
      %p245 = por %p243, %p244
      %s247 = sadd.s32 %s246, 1
      %p250 = scmp.eq.s32.totalorder %s23, 2
      %p251 = scmp.ne.s32.totalorder %s246, %s248
      %p252 = scmp.eq.s32.totalorder %s23, 0
      %p253 = por %p251, %p252
      %p254 = scmp.ne.s32.totalorder %s246, %s248
      %p255 = scmp.eq.s32.totalorder %s28, 2
      %p256 = por %p254, %p255
      %p257 = scmp.ne.s32.totalorder %s248, %s249
      %p258 = scmp.eq.s32.totalorder %s28, 0
      %p259 = por %p257, %p258
      %p260 = scmp.ne.s32.totalorder %s248, %s249
      %p261 = scmp.eq.s32.totalorder %s29, 2
      %p262 = por %p260, %p261
      %p264 = scmp.ne.s32.totalorder %s249, %s263
      %p265 = scmp.eq.s32.totalorder %s29, 0
      %p266 = por %p264, %p265
      %s267 = ssub.s32 %s23, %s30
      %p268 = scmp.eq.s32.totalorder %s267, 0
      %s270 = sadd.s32 %s269, 1
      %s271 = scalar_select %p268, %s269, %s270
      %p274 = pneg %p268
      %p275 = scmp.eq.s32.totalorder %s23, 2
      %p276 = por %p274, %p275
      %p277 = scmp.ne.s32.totalorder %s269, %s272
      %p278 = scmp.eq.s32.totalorder %s23, 0
      %p279 = por %p277, %p278
      %p280 = scmp.ne.s32.totalorder %s269, %s272
      %p281 = scmp.eq.s32.totalorder %s28, 2
      %p282 = por %p280, %p281
      %p283 = scmp.ne.s32.totalorder %s272, %s273
      %p284 = scmp.eq.s32.totalorder %s28, 0
      %p285 = por %p283, %p284
      %p286 = scmp.ne.s32.totalorder %s272, %s273
      %p287 = scmp.eq.s32.totalorder %s29, 2
      %p288 = por %p286, %p287
      %p290 = scmp.ne.s32.totalorder %s273, %s289
      %p291 = scmp.eq.s32.totalorder %s29, 0
      %p292 = por %p290, %p291
      %p293 = scmp.le.s32.totalorder 1, %s23
      %p294 = scmp.lt.s32.totalorder %s23, 4
      %p295 = pnand %p293, %p294
      %p296 = pneg %p295
      // Predicated region
      $region9: #{mlp12_forward.1} parent=5 // pred_check
        _
      $region10: #{mlp12_forward.1} parent=5 // pred_check_branch
        %298 = sbr.rel (%p295) target = $region12
      $region11: #{mlp12_forward.1} parent=5 // pred_region
        %s299 = ssub.s32 %s23, 1
        // Predicated region
        $region13: #{mlp12_forward.1} parent=11 // pred_check
          %p300 = pneg %p70
        $region14: #{mlp12_forward.1} parent=11 // pred_check_branch
          %302 = sbr.rel (%p300) target = $region16
        $region15: #{mlp12_forward.1} parent=11 // pred_region
          %304 = vsyncadd [#allocation3], 0
          %s305 = sshll.u32 %s1, 4
          %s306 = int_to_ptr.hbm [resolvable:$true] %s305
          %s307 = sshll.u32 [#allocation2], 4
          %s308 = int_to_ptr.vmem [resolvable:$true] %s307
          %313 = dma.hbm_to_vmem [thread:$0]  %s306, 2048, %s308, [#allocation3], 128, 128, 8
        $region16: #{mlp12_forward.1} parent=11 // pred_fallthru
          _
        // Predicated region
        $region17: #{mlp12_forward.1} parent=11 // pred_check
          %p314 = pneg %p91
        $region18: #{mlp12_forward.1} parent=11 // pred_check_branch
          %316 = sbr.rel (%p314) target = $region20
        $region19: #{mlp12_forward.1} parent=11 // pred_region
          %318 = vsyncadd [#allocation5], 0
          %s320 = sshll.u32 %s2, 4
          %s321 = int_to_ptr.hbm [resolvable:$true] %s320
          %s322 = sshll.u32 [#allocation4], 4
          %s323 = int_to_ptr.vmem [resolvable:$true] %s322
          %325 = dma.hbm_to_vmem [thread:$0]  %s321, 32, %s323, [#allocation5]
        $region20: #{mlp12_forward.1} parent=11 // pred_fallthru
          _
        // Predicated region
        $region21: #{mlp12_forward.1} parent=11 // pred_check
          %p326 = pneg %p112
        $region22: #{mlp12_forward.1} parent=11 // pred_check_branch
          %328 = sbr.rel (%p326) target = $region24
        $region23: #{mlp12_forward.1} parent=11 // pred_region
          %330 = vsyncadd [#allocation5], 0
          %s331 = sshll.u32 %s3, 4
          %s332 = int_to_ptr.hbm [resolvable:$true] %s331
          %s333 = sshll.u32 [#allocation6], 4
          %s334 = int_to_ptr.vmem [resolvable:$true] %s333
          %339 = dma.hbm_to_vmem [thread:$0]  %s332, 8192, %s334, [#allocation5], 256, 256, 16
        $region24: #{mlp12_forward.1} parent=11 // pred_fallthru
          _
        // Predicated region
        $region25: #{mlp12_forward.1} parent=11 // pred_check
          %p340 = pneg %p133
        $region26: #{mlp12_forward.1} parent=11 // pred_check_branch
          %342 = sbr.rel (%p340) target = $region28
        $region27: #{mlp12_forward.1} parent=11 // pred_region
          %344 = vsyncadd [#allocation8], 0
          %s346 = sshll.u32 %s4, 4
          %s347 = int_to_ptr.hbm [resolvable:$true] %s346
          %s348 = sshll.u32 [#allocation7], 4
          %s349 = int_to_ptr.vmem [resolvable:$true] %s348
          %351 = dma.hbm_to_vmem [thread:$0]  %s347, 64, %s349, [#allocation8]
        $region28: #{mlp12_forward.1} parent=11 // pred_fallthru
          _
        // Predicated region
        $region29: #{mlp12_forward.1} parent=11 // pred_check
          %p352 = pneg %p154
        $region30: #{mlp12_forward.1} parent=11 // pred_check_branch
          %354 = sbr.rel (%p352) target = $region32
        $region31: #{mlp12_forward.1} parent=11 // pred_region
          %356 = vsyncadd [#allocation8], 0
          %s357 = sshll.u32 %s5, 4
          %s358 = int_to_ptr.hbm [resolvable:$true] %s357
          %s359 = sshll.u32 [#allocation9], 4
          %s360 = int_to_ptr.vmem [resolvable:$true] %s359
          %365 = dma.hbm_to_vmem [thread:$0]  %s358, 147456, %s360, [#allocation8], 256, 256, 16
        $region32: #{mlp12_forward.1} parent=11 // pred_fallthru
          _
        // Predicated region
        $region33: #{mlp12_forward.1} parent=11 // pred_check
          %p366 = pneg %p175
        $region34: #{mlp12_forward.1} parent=11 // pred_check_branch
          %368 = sbr.rel (%p366) target = $region36
        $region35: #{mlp12_forward.1} parent=11 // pred_region
          %370 = vsyncadd [#allocation11], 0
          %s371 = sshll.u32 %s6, 4
          %s372 = int_to_ptr.hbm [resolvable:$true] %s371
          %s373 = sshll.u32 [#allocation10], 4
          %s374 = int_to_ptr.vmem [resolvable:$true] %s373
          %379 = dma.hbm_to_vmem [thread:$0]  %s372, 576, %s374, [#allocation11], 64, 64, 4
        $region36: #{mlp12_forward.1} parent=11 // pred_fallthru
          _
        // Predicated region
        $region37: #{mlp12_forward.1} parent=11 // pred_check
          %p380 = pneg %p196
        $region38: #{mlp12_forward.1} parent=11 // pred_check_branch
          %382 = sbr.rel (%p380) target = $region40
        $region39: #{mlp12_forward.1} parent=11 // pred_region
          %384 = vsyncadd [#allocation11], 0
          %s385 = sshll.u32 %s7, 4
          %s386 = int_to_ptr.hbm [resolvable:$true] %s385
          %s387 = sshll.u32 [#allocation12], 4
          %s388 = int_to_ptr.vmem [resolvable:$true] %s387
          %393 = dma.hbm_to_vmem [thread:$0]  %s386, 8192, %s388, [#allocation11], 128, 128, 8
        $region40: #{mlp12_forward.1} parent=11 // pred_fallthru
          _
        // Predicated region
        $region41: #{mlp12_forward.1} parent=11 // pred_check
          %p394 = pneg %p217
        $region42: #{mlp12_forward.1} parent=11 // pred_check_branch
          %396 = sbr.rel (%p394) target = $region44
        $region43: #{mlp12_forward.1} parent=11 // pred_region
          %398 = vsyncadd [#allocation14], 0
          %s400 = sshll.u32 %s8, 4
          %s401 = int_to_ptr.hbm [resolvable:$true] %s400
          %s402 = sshll.u32 [#allocation13], 4
          %s403 = int_to_ptr.vmem [resolvable:$true] %s402
          %405 = dma.hbm_to_vmem [thread:$0]  %s401, 32, %s403, [#allocation14]
        $region44: #{mlp12_forward.1} parent=11 // pred_fallthru
          _
        // Predicated region
        $region45: #{mlp12_forward.1} parent=11 // pred_check
          %p406 = pneg %p238
        $region46: #{mlp12_forward.1} parent=11 // pred_check_branch
          %408 = sbr.rel (%p406) target = $region48
        $region47: #{mlp12_forward.1} parent=11 // pred_region
          %410 = vsyncadd [#allocation14], 0
          %s411 = sshll.u32 %s9, 4
          %s412 = int_to_ptr.hbm [resolvable:$true] %s411
          %s413 = sshll.u32 [#allocation15], 4
          %s414 = int_to_ptr.vmem [resolvable:$true] %s413
          %419 = dma.hbm_to_vmem [thread:$0]  %s412, 2048, %s414, [#allocation14], 64, 64, 4
        $region48: #{mlp12_forward.1} parent=11 // pred_fallthru
          _
        // Predicated region
        $region49: #{mlp12_forward.1} parent=11 // pred_check
          %p420 = pneg %p259
        $region50: #{mlp12_forward.1} parent=11 // pred_check_branch
          %422 = sbr.rel (%p420) target = $region52
        $region51: #{mlp12_forward.1} parent=11 // pred_region
          %424 = vsyncadd [#allocation17], 0
          %s426 = sshll.u32 %s10, 4
          %s427 = int_to_ptr.hbm [resolvable:$true] %s426
          %s428 = sshll.u32 [#allocation16], 4
          %s429 = int_to_ptr.vmem [resolvable:$true] %s428
          %431 = dma.hbm_to_vmem [thread:$0]  %s427, 16, %s429, [#allocation17]
        $region52: #{mlp12_forward.1} parent=11 // pred_fallthru
          _
      $region12: #{mlp12_forward.1} parent=5 // pred_fallthru
        _
      %p432 = scmp.lt.s32.totalorder %s23, 3
      // Predicated region
      $region53: #{mlp12_forward.1} parent=5 // pred_check
        %p433 = pneg %p432
      $region54: #{mlp12_forward.1} parent=5 // pred_check_branch
        %435 = sbr.rel (%p433) target = $region56
      $region55: #{mlp12_forward.1} parent=5 // pred_region
        // Predicated region
        $region57: #{mlp12_forward.1} parent=55 // pred_check
          %p436 = pneg %p43
        $region58: #{mlp12_forward.1} parent=55 // pred_check_branch
          %438 = sbr.rel (%p436) target = $region60
        $region59: #{mlp12_forward.1} parent=55 // pred_region
          %s439 = smul.u32 2, %s23
          %p440 = scmp.lt.s32.totalorder %s439, 5
          %s441 = scalar_select %p440, %s439, 5
          %s442 = smul.addr %s441, 4
          %s443 = scalar_lea.vmem %s0, %s442
          %s444 = smul.u32 2, %s23
        $region60: #{mlp12_forward.1} parent=55 // pred_fallthru
          _
      $region56: #{mlp12_forward.1} parent=5 // pred_fallthru
        _
      %p445 = scmp.le.s32.totalorder 1, %s23
      %p446 = scmp.lt.s32.totalorder %s23, 4
      %p447 = pnand %p445, %p446
      %p448 = pneg %p447
      // Predicated region
      $region61: #{mlp12_forward.1} parent=5 // pred_check
        _
      $region62: #{mlp12_forward.1} parent=5 // pred_check_branch
        %450 = sbr.rel (%p447) target = $region64
      $region63: #{mlp12_forward.1} parent=5 // pred_region
        %s451 = ssub.s32 %s23, 1
        // Predicated region
        $region65: #{mlp12_forward.1} parent=63 // pred_check
          %p452 = pneg %p70
        $region66: #{mlp12_forward.1} parent=63 // pred_check_branch
          %454 = sbr.rel (%p452) target = $region68
        $region67: #{mlp12_forward.1} parent=63 // pred_region
          %456 = dma.done [#allocation3], 2048
        $region68: #{mlp12_forward.1} parent=63 // pred_fallthru
          _
        // Predicated region
        $region69: #{mlp12_forward.1} parent=63 // pred_check
          %p457 = pneg %p91
        $region70: #{mlp12_forward.1} parent=63 // pred_check_branch
          %459 = sbr.rel (%p457) target = $region72
        $region71: #{mlp12_forward.1} parent=63 // pred_region
          %461 = dma.done [#allocation5], 32
        $region72: #{mlp12_forward.1} parent=63 // pred_fallthru
          _
        // Predicated region
        $region73: #{mlp12_forward.1} parent=63 // pred_check
          %p462 = pneg %p112
        $region74: #{mlp12_forward.1} parent=63 // pred_check_branch
          %464 = sbr.rel (%p462) target = $region76
        $region75: #{mlp12_forward.1} parent=63 // pred_region
          %466 = dma.done [#allocation5], 8192
        $region76: #{mlp12_forward.1} parent=63 // pred_fallthru
          _
        // Predicated region
        $region77: #{mlp12_forward.1} parent=63 // pred_check
          %p467 = pneg %p133
        $region78: #{mlp12_forward.1} parent=63 // pred_check_branch
          %469 = sbr.rel (%p467) target = $region80
        $region79: #{mlp12_forward.1} parent=63 // pred_region
          %471 = dma.done [#allocation8], 64
        $region80: #{mlp12_forward.1} parent=63 // pred_fallthru
          _
        // Predicated region
        $region81: #{mlp12_forward.1} parent=63 // pred_check
          %p472 = pneg %p154
        $region82: #{mlp12_forward.1} parent=63 // pred_check_branch
          %474 = sbr.rel (%p472) target = $region84
        $region83: #{mlp12_forward.1} parent=63 // pred_region
          %476 = dma.done [#allocation8], 147456
        $region84: #{mlp12_forward.1} parent=63 // pred_fallthru
          _
        // Predicated region
        $region85: #{mlp12_forward.1} parent=63 // pred_check
          %p477 = pneg %p175
        $region86: #{mlp12_forward.1} parent=63 // pred_check_branch
          %479 = sbr.rel (%p477) target = $region88
        $region87: #{mlp12_forward.1} parent=63 // pred_region
          %481 = dma.done [#allocation11], 576
        $region88: #{mlp12_forward.1} parent=63 // pred_fallthru
          _
        // Predicated region
        $region89: #{mlp12_forward.1} parent=63 // pred_check
          %p482 = pneg %p196
        $region90: #{mlp12_forward.1} parent=63 // pred_check_branch
          %484 = sbr.rel (%p482) target = $region92
        $region91: #{mlp12_forward.1} parent=63 // pred_region
          %486 = dma.done [#allocation11], 8192
        $region92: #{mlp12_forward.1} parent=63 // pred_fallthru
          _
        // Predicated region
        $region93: #{mlp12_forward.1} parent=63 // pred_check
          %p487 = pneg %p217
        $region94: #{mlp12_forward.1} parent=63 // pred_check_branch
          %489 = sbr.rel (%p487) target = $region96
        $region95: #{mlp12_forward.1} parent=63 // pred_region
          %491 = dma.done [#allocation14], 32
        $region96: #{mlp12_forward.1} parent=63 // pred_fallthru
          _
        // Predicated region
        $region97: #{mlp12_forward.1} parent=63 // pred_check
          %p492 = pneg %p238
        $region98: #{mlp12_forward.1} parent=63 // pred_check_branch
          %494 = sbr.rel (%p492) target = $region100
        $region99: #{mlp12_forward.1} parent=63 // pred_region
          %496 = dma.done [#allocation14], 2048
        $region100: #{mlp12_forward.1} parent=63 // pred_fallthru
          _
        // Predicated region
        $region101: #{mlp12_forward.1} parent=63 // pred_check
          %p497 = pneg %p259
        $region102: #{mlp12_forward.1} parent=63 // pred_check_branch
          %499 = sbr.rel (%p497) target = $region104
        $region103: #{mlp12_forward.1} parent=63 // pred_region
          %501 = dma.done [#allocation17], 16
        $region104: #{mlp12_forward.1} parent=63 // pred_fallthru
          _
        %s502 = smul.u32 2, %s28
        %p503 = scmp.lt.s32.totalorder %s502, 5
        %s504 = scalar_select %p503, %s502, 5
        %s505 = smul.addr %s504, 4
        %s506 = scalar_lea.vmem %s0, %s505
        %p507 = pneg %p49
        %p508 = pneg %p46
        %p509 = pneg %p70
        %p510 = pneg %p67
        %p511 = pneg %p91
        %p512 = pneg %p88
        %p513 = pneg %p112
        %p514 = pneg %p109
        %p515 = pneg %p133
        %p516 = pneg %p130
        %p517 = pneg %p154
        %p518 = pneg %p151
        %p519 = pneg %p175
        %p520 = pneg %p172
        %p521 = pneg %p196
        %p522 = pneg %p193
        %p523 = pneg %p217
        %p524 = pneg %p214
        %p525 = pneg %p238
        %p526 = pneg %p235
        %p527 = pneg %p259
        %p528 = pneg %p256
        %p529 = pneg %p285
        %p530 = pneg %p282
        %s531 = smul.u32 2, %s28
        %p532 = scmp.lt.s32.totalorder %s531, 5
        %s533 = scalar_select %p532, %s531, 5
        %s534 = smul.addr %s533, 8
        %s535 = scalar_lea.vmem %s11, %s534
        %s536 = smul.u32 2, %s28
        %p537 = scmp.lt.s32.totalorder %s536, 5
        %s538 = scalar_select %p537, %s536, 5
        %s539 = smul.addr %s538, 4
        %s540 = scalar_lea.vmem %s0, %s539
        %s541 = smul.u32 2, %s28
        %s542 = smul.u32 2, %s28
        %p543 = scmp.lt.s32.totalorder %s542, 5
        %s544 = scalar_select %p543, %s542, 5
        %s545 = smul.addr %s544, 8
        %s546 = scalar_lea.vmem %s11, %s545
        %s547 = smul.u32 2, %s28
        %v548 = vld [vmem:[%s540] sm:$0xf]
        %v549 = vld [vmem:[%s540 + $0x4] sm:$0xf]
        %v550 = vld [vmem:[#allocation2] sm:$0xff]
        %v551 = vld [vmem:[#allocation2 + $0x8] sm:$0xff]
        %v552 = vld [vmem:[#allocation2 + $0x10] sm:$0xff]
        %v553 = vld [vmem:[#allocation2 + $0x18] sm:$0xff]
        %v554 = vld [vmem:[#allocation2 + $0x20] sm:$0xff]
        %v555 = vld [vmem:[#allocation2 + $0x28] sm:$0xff]
        %v556 = vld [vmem:[#allocation2 + $0x30] sm:$0xff]
        %v557 = vld [vmem:[#allocation2 + $0x38] sm:$0xff]
        %v558 = vld [vmem:[#allocation2 + $0x40] sm:$0xff]
        %v559 = vld [vmem:[#allocation2 + $0x48] sm:$0xff]
        %v560 = vld [vmem:[#allocation2 + $0x50] sm:$0xff]
        %v561 = vld [vmem:[#allocation2 + $0x58] sm:$0xff]
        %v562 = vld [vmem:[#allocation2 + $0x60] sm:$0xff]
        %v563 = vld [vmem:[#allocation2 + $0x68] sm:$0xff]
        %v564 = vld [vmem:[#allocation2 + $0x70] sm:$0xff]
        %v565 = vld [vmem:[#allocation2 + $0x78] sm:$0xff]
        %v566 = vld [vmem:[#allocation4] sm:$0x3]
        %v568 = vperm.slane %v566, 0
        %v569 = vperm.slane %v566, 1
        %v574 = vunpack.c.l.b16 %v548
        %v575 = vunpack.c.l.b16 %v549
        %v576 = vpack.c.b16 %v575, %v574
        %v594 = vunpack.c.l.b16 %v550
        %v595 = vunpack.c.h.b16 %v550
        %v596 = vunpack.c.l.b16 %v551
        %v597 = vunpack.c.h.b16 %v551
        %v598 = vunpack.c.l.b16 %v552
        %v599 = vunpack.c.h.b16 %v552
        %v600 = vunpack.c.l.b16 %v553
        %v601 = vunpack.c.h.b16 %v553
        %v602 = vunpack.c.l.b16 %v554
        %v603 = vunpack.c.h.b16 %v554
        %v604 = vunpack.c.l.b16 %v555
        %v605 = vunpack.c.h.b16 %v555
        %v606 = vunpack.c.l.b16 %v556
        %v607 = vunpack.c.h.b16 %v556
        %v608 = vunpack.c.l.b16 %v557
        %v609 = vunpack.c.h.b16 %v557
        %v610 = vunpack.c.l.b16 %v558
        %v611 = vunpack.c.h.b16 %v558
        %v612 = vunpack.c.l.b16 %v559
        %v613 = vunpack.c.h.b16 %v559
        %v614 = vunpack.c.l.b16 %v560
        %v615 = vunpack.c.h.b16 %v560
        %v616 = vunpack.c.l.b16 %v561
        %v617 = vunpack.c.h.b16 %v561
        %v618 = vunpack.c.l.b16 %v562
        %v619 = vunpack.c.h.b16 %v562
        %v620 = vunpack.c.l.b16 %v563
        %v621 = vunpack.c.h.b16 %v563
        %v622 = vunpack.c.l.b16 %v564
        %v623 = vunpack.c.h.b16 %v564
        %v624 = vunpack.c.l.b16 %v565
        %v625 = vunpack.c.h.b16 %v565
        %v626 = vpack.c.b16 %v596, %v594
        %v627 = vpack.c.b16 %v597, %v595
        %v628 = vpack.c.b16 %v600, %v598
        %v629 = vpack.c.b16 %v601, %v599
        %v630 = vpack.c.b16 %v604, %v602
        %v631 = vpack.c.b16 %v605, %v603
        %v632 = vpack.c.b16 %v608, %v606
        %v633 = vpack.c.b16 %v609, %v607
        %v634 = vpack.c.b16 %v612, %v610
        %v635 = vpack.c.b16 %v613, %v611
        %v636 = vpack.c.b16 %v616, %v614
        %v637 = vpack.c.b16 %v617, %v615
        %v638 = vpack.c.b16 %v620, %v618
        %v639 = vpack.c.b16 %v621, %v619
        %v640 = vpack.c.b16 %v624, %v622
        %v641 = vpack.c.b16 %v625, %v623
        %658 = vmatpush.bf16.msra.mxu0 %v640
        %659 = vmatpush.bf16.msra.mxu0 %v638
        %660 = vmatpush.bf16.msra.mxu0 %v636
        %661 = vmatpush.bf16.msra.mxu0 %v634
        %662 = vmatpush.bf16.msra.mxu0 %v632
        %663 = vmatpush.bf16.msra.mxu0 %v630
        %664 = vmatpush.bf16.msra.mxu0 %v628
        %665 = vmatpush.bf16.msra.mxu0 %v626
        %666 = vmatmul.bf16.gmra.mxu0 %v576
        %v667 = vpop.f32.mrf.mxu0
        %v668 = vadd.f32 %v568, %v667
        %v669 = vpop.f32.mrf.mxu0
        %v670 = vadd.f32 %v568, %v669
        %671 = vdwg.mxu0
        %672 = vmatpush.bf16.msra.mxu0 %v641
        %673 = vmatpush.bf16.msra.mxu0 %v639
        %674 = vmatpush.bf16.msra.mxu0 %v637
        %675 = vmatpush.bf16.msra.mxu0 %v635
        %676 = vmatpush.bf16.msra.mxu0 %v633
        %677 = vmatpush.bf16.msra.mxu0 %v631
        %678 = vmatpush.bf16.msra.mxu0 %v629
        %679 = vmatpush.bf16.msra.mxu0 %v627
        %680 = vmatmul.bf16.gmra.mxu0 %v576
        %v681 = vpop.f32.mrf.mxu0
        %v682 = vadd.f32 %v569, %v681
        %v683 = vpop.f32.mrf.mxu0
        %v684 = vadd.f32 %v569, %v683
        %685 = vdwg.mxu0
        %v686 = vmax.f32 %v668, 0.0
        %v687 = vmax.f32 %v682, 0.0
        %v688 = vmax.f32 %v670, 0.0
        %v689 = vmax.f32 %v684, 0.0
        %v690 = vpack.c.bf16 %v688, %v686
        %v691 = vpack.c.bf16 %v689, %v687
        %v692 = vld [vmem:[#allocation6] sm:$0xff]
        %v693 = vld [vmem:[#allocation6 + $0x8] sm:$0xff]
        %v694 = vld [vmem:[#allocation6 + $0x10] sm:$0xff]
        %v695 = vld [vmem:[#allocation6 + $0x18] sm:$0xff]
        %v696 = vld [vmem:[#allocation6 + $0x20] sm:$0xff]
        %v697 = vld [vmem:[#allocation6 + $0x28] sm:$0xff]
        %v698 = vld [vmem:[#allocation6 + $0x30] sm:$0xff]
        %v699 = vld [vmem:[#allocation6 + $0x38] sm:$0xff]
        %v700 = vld [vmem:[#allocation6 + $0x40] sm:$0xff]
        %v701 = vld [vmem:[#allocation6 + $0x48] sm:$0xff]
        %v702 = vld [vmem:[#allocation6 + $0x50] sm:$0xff]
        %v703 = vld [vmem:[#allocation6 + $0x58] sm:$0xff]
        %v704 = vld [vmem:[#allocation6 + $0x60] sm:$0xff]
        %v705 = vld [vmem:[#allocation6 + $0x68] sm:$0xff]
        %v706 = vld [vmem:[#allocation6 + $0x70] sm:$0xff]
        %v707 = vld [vmem:[#allocation6 + $0x78] sm:$0xff]
        %v708 = vld [vmem:[#allocation6 + $0x80] sm:$0xff]
        %v709 = vld [vmem:[#allocation6 + $0x88] sm:$0xff]
        %v710 = vld [vmem:[#allocation6 + $0x90] sm:$0xff]
        %v711 = vld [vmem:[#allocation6 + $0x98] sm:$0xff]
        %v712 = vld [vmem:[#allocation6 + $0xa0] sm:$0xff]
        %v713 = vld [vmem:[#allocation6 + $0xa8] sm:$0xff]
        %v714 = vld [vmem:[#allocation6 + $0xb0] sm:$0xff]
        %v715 = vld [vmem:[#allocation6 + $0xb8] sm:$0xff]
        %v716 = vld [vmem:[#allocation6 + $0xc0] sm:$0xff]
        %v717 = vld [vmem:[#allocation6 + $0xc8] sm:$0xff]
        %v718 = vld [vmem:[#allocation6 + $0xd0] sm:$0xff]
        %v719 = vld [vmem:[#allocation6 + $0xd8] sm:$0xff]
        %v720 = vld [vmem:[#allocation6 + $0xe0] sm:$0xff]
        %v721 = vld [vmem:[#allocation6 + $0xe8] sm:$0xff]
        %v722 = vld [vmem:[#allocation6 + $0xf0] sm:$0xff]
        %v723 = vld [vmem:[#allocation6 + $0xf8] sm:$0xff]
        %v724 = vld [vmem:[#allocation6 + $0x100] sm:$0xff]
        %v725 = vld [vmem:[#allocation6 + $0x108] sm:$0xff]
        %v726 = vld [vmem:[#allocation6 + $0x110] sm:$0xff]
        %v727 = vld [vmem:[#allocation6 + $0x118] sm:$0xff]
        %v728 = vld [vmem:[#allocation6 + $0x120] sm:$0xff]
        %v729 = vld [vmem:[#allocation6 + $0x128] sm:$0xff]
        %v730 = vld [vmem:[#allocation6 + $0x130] sm:$0xff]
        %v731 = vld [vmem:[#allocation6 + $0x138] sm:$0xff]
        %v732 = vld [vmem:[#allocation6 + $0x140] sm:$0xff]
        %v733 = vld [vmem:[#allocation6 + $0x148] sm:$0xff]
        %v734 = vld [vmem:[#allocation6 + $0x150] sm:$0xff]
        %v735 = vld [vmem:[#allocation6 + $0x158] sm:$0xff]
        %v736 = vld [vmem:[#allocation6 + $0x160] sm:$0xff]
        %v737 = vld [vmem:[#allocation6 + $0x168] sm:$0xff]
        %v738 = vld [vmem:[#allocation6 + $0x170] sm:$0xff]
        %v739 = vld [vmem:[#allocation6 + $0x178] sm:$0xff]
        %v740 = vld [vmem:[#allocation6 + $0x180] sm:$0xff]
        %v741 = vld [vmem:[#allocation6 + $0x188] sm:$0xff]
        %v742 = vld [vmem:[#allocation6 + $0x190] sm:$0xff]
        %v743 = vld [vmem:[#allocation6 + $0x198] sm:$0xff]
        %v744 = vld [vmem:[#allocation6 + $0x1a0] sm:$0xff]
        %v745 = vld [vmem:[#allocation6 + $0x1a8] sm:$0xff]
        %v746 = vld [vmem:[#allocation6 + $0x1b0] sm:$0xff]
        %v747 = vld [vmem:[#allocation6 + $0x1b8] sm:$0xff]
        %v748 = vld [vmem:[#allocation6 + $0x1c0] sm:$0xff]
        %v749 = vld [vmem:[#allocation6 + $0x1c8] sm:$0xff]
        %v750 = vld [vmem:[#allocation6 + $0x1d0] sm:$0xff]
        %v751 = vld [vmem:[#allocation6 + $0x1d8] sm:$0xff]
        %v752 = vld [vmem:[#allocation6 + $0x1e0] sm:$0xff]
        %v753 = vld [vmem:[#allocation6 + $0x1e8] sm:$0xff]
        %v754 = vld [vmem:[#allocation6 + $0x1f0] sm:$0xff]
        %v755 = vld [vmem:[#allocation6 + $0x1f8] sm:$0xff]
        %v756 = vld [vmem:[#allocation7] sm:$0xf]
        %v758 = vperm.slane %v756, 0
        %v759 = vperm.slane %v756, 1
        %v760 = vperm.slane %v756, 2
        %v761 = vperm.slane %v756, 3
        %v830 = vunpack.c.l.b16 %v692
        %v831 = vunpack.c.h.b16 %v692
        %v832 = vunpack.c.l.b16 %v693
        %v833 = vunpack.c.h.b16 %v693
        %v834 = vunpack.c.l.b16 %v694
        %v835 = vunpack.c.h.b16 %v694
        %v836 = vunpack.c.l.b16 %v695
        %v837 = vunpack.c.h.b16 %v695
        %v838 = vunpack.c.l.b16 %v696
        %v839 = vunpack.c.h.b16 %v696
        %v840 = vunpack.c.l.b16 %v697
        %v841 = vunpack.c.h.b16 %v697
        %v842 = vunpack.c.l.b16 %v698
        %v843 = vunpack.c.h.b16 %v698
        %v844 = vunpack.c.l.b16 %v699
        %v845 = vunpack.c.h.b16 %v699
        %v846 = vunpack.c.l.b16 %v700
        %v847 = vunpack.c.h.b16 %v700
        %v848 = vunpack.c.l.b16 %v701
        %v849 = vunpack.c.h.b16 %v701
        %v850 = vunpack.c.l.b16 %v702
        %v851 = vunpack.c.h.b16 %v702
        %v852 = vunpack.c.l.b16 %v703
        %v853 = vunpack.c.h.b16 %v703
        %v854 = vunpack.c.l.b16 %v704
        %v855 = vunpack.c.h.b16 %v704
        %v856 = vunpack.c.l.b16 %v705
        %v857 = vunpack.c.h.b16 %v705
        %v858 = vunpack.c.l.b16 %v706
        %v859 = vunpack.c.h.b16 %v706
        %v860 = vunpack.c.l.b16 %v707
        %v861 = vunpack.c.h.b16 %v707
        %v862 = vunpack.c.l.b16 %v708
        %v863 = vunpack.c.h.b16 %v708
        %v864 = vunpack.c.l.b16 %v709
        %v865 = vunpack.c.h.b16 %v709
        %v866 = vunpack.c.l.b16 %v710
        %v867 = vunpack.c.h.b16 %v710
        %v868 = vunpack.c.l.b16 %v711
        %v869 = vunpack.c.h.b16 %v711
        %v870 = vunpack.c.l.b16 %v712
        %v871 = vunpack.c.h.b16 %v712
        %v872 = vunpack.c.l.b16 %v713
        %v873 = vunpack.c.h.b16 %v713
        %v874 = vunpack.c.l.b16 %v714
        %v875 = vunpack.c.h.b16 %v714
        %v876 = vunpack.c.l.b16 %v715
        %v877 = vunpack.c.h.b16 %v715
        %v878 = vunpack.c.l.b16 %v716
        %v879 = vunpack.c.h.b16 %v716
        %v880 = vunpack.c.l.b16 %v717
        %v881 = vunpack.c.h.b16 %v717
        %v882 = vunpack.c.l.b16 %v718
        %v883 = vunpack.c.h.b16 %v718
        %v884 = vunpack.c.l.b16 %v719
        %v885 = vunpack.c.h.b16 %v719
        %v886 = vunpack.c.l.b16 %v720
        %v887 = vunpack.c.h.b16 %v720
        %v888 = vunpack.c.l.b16 %v721
        %v889 = vunpack.c.h.b16 %v721
        %v890 = vunpack.c.l.b16 %v722
        %v891 = vunpack.c.h.b16 %v722
        %v892 = vunpack.c.l.b16 %v723
        %v893 = vunpack.c.h.b16 %v723
        %v894 = vunpack.c.l.b16 %v724
        %v895 = vunpack.c.h.b16 %v724
        %v896 = vunpack.c.l.b16 %v725
        %v897 = vunpack.c.h.b16 %v725
        %v898 = vunpack.c.l.b16 %v726
        %v899 = vunpack.c.h.b16 %v726
        %v900 = vunpack.c.l.b16 %v727
        %v901 = vunpack.c.h.b16 %v727
        %v902 = vunpack.c.l.b16 %v728
        %v903 = vunpack.c.h.b16 %v728
        %v904 = vunpack.c.l.b16 %v729
        %v905 = vunpack.c.h.b16 %v729
        %v906 = vunpack.c.l.b16 %v730
        %v907 = vunpack.c.h.b16 %v730
        %v908 = vunpack.c.l.b16 %v731
        %v909 = vunpack.c.h.b16 %v731
        %v910 = vunpack.c.l.b16 %v732
        %v911 = vunpack.c.h.b16 %v732
        %v912 = vunpack.c.l.b16 %v733
        %v913 = vunpack.c.h.b16 %v733
        %v914 = vunpack.c.l.b16 %v734
        %v915 = vunpack.c.h.b16 %v734
        %v916 = vunpack.c.l.b16 %v735
        %v917 = vunpack.c.h.b16 %v735
        %v918 = vunpack.c.l.b16 %v736
        %v919 = vunpack.c.h.b16 %v736
        %v920 = vunpack.c.l.b16 %v737
        %v921 = vunpack.c.h.b16 %v737
        %v922 = vunpack.c.l.b16 %v738
        %v923 = vunpack.c.h.b16 %v738
        %v924 = vunpack.c.l.b16 %v739
        %v925 = vunpack.c.h.b16 %v739
        %v926 = vunpack.c.l.b16 %v740
        %v927 = vunpack.c.h.b16 %v740
        %v928 = vunpack.c.l.b16 %v741
        %v929 = vunpack.c.h.b16 %v741
        %v930 = vunpack.c.l.b16 %v742
        %v931 = vunpack.c.h.b16 %v742
        %v932 = vunpack.c.l.b16 %v743
        %v933 = vunpack.c.h.b16 %v743
        %v934 = vunpack.c.l.b16 %v744
        %v935 = vunpack.c.h.b16 %v744
        %v936 = vunpack.c.l.b16 %v745
        %v937 = vunpack.c.h.b16 %v745
        %v938 = vunpack.c.l.b16 %v746
        %v939 = vunpack.c.h.b16 %v746
        %v940 = vunpack.c.l.b16 %v747
        %v941 = vunpack.c.h.b16 %v747
        %v942 = vunpack.c.l.b16 %v748
        %v943 = vunpack.c.h.b16 %v748
        %v944 = vunpack.c.l.b16 %v749
        %v945 = vunpack.c.h.b16 %v749
        %v946 = vunpack.c.l.b16 %v750
        %v947 = vunpack.c.h.b16 %v750
        %v948 = vunpack.c.l.b16 %v751
        %v949 = vunpack.c.h.b16 %v751
        %v950 = vunpack.c.l.b16 %v752
        %v951 = vunpack.c.h.b16 %v752
        %v952 = vunpack.c.l.b16 %v753
        %v953 = vunpack.c.h.b16 %v753
        %v954 = vunpack.c.l.b16 %v754
        %v955 = vunpack.c.h.b16 %v754
        %v956 = vunpack.c.l.b16 %v755
        %v957 = vunpack.c.h.b16 %v755
        %v958 = vpack.c.b16 %v834, %v830
        %v959 = vpack.c.b16 %v835, %v831
        %v960 = vpack.c.b16 %v836, %v832
        %v961 = vpack.c.b16 %v837, %v833
        %v962 = vpack.c.b16 %v842, %v838
        %v963 = vpack.c.b16 %v843, %v839
        %v964 = vpack.c.b16 %v844, %v840
        %v965 = vpack.c.b16 %v845, %v841
        %v966 = vpack.c.b16 %v850, %v846
        %v967 = vpack.c.b16 %v851, %v847
        %v968 = vpack.c.b16 %v852, %v848
        %v969 = vpack.c.b16 %v853, %v849
        %v970 = vpack.c.b16 %v858, %v854
        %v971 = vpack.c.b16 %v859, %v855
        %v972 = vpack.c.b16 %v860, %v856
        %v973 = vpack.c.b16 %v861, %v857
        %v974 = vpack.c.b16 %v866, %v862
        %v975 = vpack.c.b16 %v867, %v863
        %v976 = vpack.c.b16 %v868, %v864
        %v977 = vpack.c.b16 %v869, %v865
        %v978 = vpack.c.b16 %v874, %v870
        %v979 = vpack.c.b16 %v875, %v871
        %v980 = vpack.c.b16 %v876, %v872
        %v981 = vpack.c.b16 %v877, %v873
        %v982 = vpack.c.b16 %v882, %v878
        %v983 = vpack.c.b16 %v883, %v879
        %v984 = vpack.c.b16 %v884, %v880
        %v985 = vpack.c.b16 %v885, %v881
        %v986 = vpack.c.b16 %v890, %v886
        %v987 = vpack.c.b16 %v891, %v887
        %v988 = vpack.c.b16 %v892, %v888
        %v989 = vpack.c.b16 %v893, %v889
        %v990 = vpack.c.b16 %v898, %v894
        %v991 = vpack.c.b16 %v899, %v895
        %v992 = vpack.c.b16 %v900, %v896
        %v993 = vpack.c.b16 %v901, %v897
        %v994 = vpack.c.b16 %v906, %v902
        %v995 = vpack.c.b16 %v907, %v903
        %v996 = vpack.c.b16 %v908, %v904
        %v997 = vpack.c.b16 %v909, %v905
        %v998 = vpack.c.b16 %v914, %v910
        %v999 = vpack.c.b16 %v915, %v911
        %v1000 = vpack.c.b16 %v916, %v912
        %v1001 = vpack.c.b16 %v917, %v913
        %v1002 = vpack.c.b16 %v922, %v918
        %v1003 = vpack.c.b16 %v923, %v919
        %v1004 = vpack.c.b16 %v924, %v920
        %v1005 = vpack.c.b16 %v925, %v921
        %v1006 = vpack.c.b16 %v930, %v926
        %v1007 = vpack.c.b16 %v931, %v927
        %v1008 = vpack.c.b16 %v932, %v928
        %v1009 = vpack.c.b16 %v933, %v929
        %v1010 = vpack.c.b16 %v938, %v934
        %v1011 = vpack.c.b16 %v939, %v935
        %v1012 = vpack.c.b16 %v940, %v936
        %v1013 = vpack.c.b16 %v941, %v937
        %v1014 = vpack.c.b16 %v946, %v942
        %v1015 = vpack.c.b16 %v947, %v943
        %v1016 = vpack.c.b16 %v948, %v944
        %v1017 = vpack.c.b16 %v949, %v945
        %v1018 = vpack.c.b16 %v954, %v950
        %v1019 = vpack.c.b16 %v955, %v951
        %v1020 = vpack.c.b16 %v956, %v952
        %v1021 = vpack.c.b16 %v957, %v953
        %1086 = vmatpush.bf16.msra.mxu0 %v986
        %1087 = vmatpush.bf16.msra.mxu0 %v982
        %1088 = vmatpush.bf16.msra.mxu0 %v978
        %1089 = vmatpush.bf16.msra.mxu0 %v974
        %1090 = vmatpush.bf16.msra.mxu0 %v970
        %1091 = vmatpush.bf16.msra.mxu0 %v966
        %1092 = vmatpush.bf16.msra.mxu0 %v962
        %1093 = vmatpush.bf16.msra.mxu0 %v958
        %1094 = vmatmul.bf16.gmra.mxu0 %v690
        %v1095 = vpop.f32.mrf.mxu0
        %v1096 = vadd.f32 %v758, %v1095
        %v1097 = vpop.f32.mrf.mxu0
        %v1098 = vadd.f32 %v758, %v1097
        %1099 = vdwg.mxu0
        %1100 = vmatpush.bf16.msra.mxu0 %v1018
        %1101 = vmatpush.bf16.msra.mxu0 %v1014
        %1102 = vmatpush.bf16.msra.mxu0 %v1010
        %1103 = vmatpush.bf16.msra.mxu0 %v1006
        %1104 = vmatpush.bf16.msra.mxu0 %v1002
        %1105 = vmatpush.bf16.msra.mxu0 %v998
        %1106 = vmatpush.bf16.msra.mxu0 %v994
        %1107 = vmatpush.bf16.msra.mxu0 %v990
        %1108 = vmatmul.bf16.gmra.mxu0 %v691
        %v1109 = vpop.f32.mrf.mxu0
        %v1110 = vadd.f32 %v1096, %v1109
        %v1111 = vpop.f32.mrf.mxu0
        %v1112 = vadd.f32 %v1098, %v1111
        %1113 = vdwg.mxu0
        %1114 = vmatpush.bf16.msra.mxu0 %v987
        %1115 = vmatpush.bf16.msra.mxu0 %v983
        %1116 = vmatpush.bf16.msra.mxu0 %v979
        %1117 = vmatpush.bf16.msra.mxu0 %v975
        %1118 = vmatpush.bf16.msra.mxu0 %v971
        %1119 = vmatpush.bf16.msra.mxu0 %v967
        %1120 = vmatpush.bf16.msra.mxu0 %v963
        %1121 = vmatpush.bf16.msra.mxu0 %v959
        %1122 = vmatmul.bf16.gmra.mxu0 %v690
        %v1123 = vpop.f32.mrf.mxu0
        %v1124 = vadd.f32 %v759, %v1123
        %v1125 = vpop.f32.mrf.mxu0
        %v1126 = vadd.f32 %v759, %v1125
        %1127 = vdwg.mxu0
        %1128 = vmatpush.bf16.msra.mxu0 %v1019
        %1129 = vmatpush.bf16.msra.mxu0 %v1015
        %1130 = vmatpush.bf16.msra.mxu0 %v1011
        %1131 = vmatpush.bf16.msra.mxu0 %v1007
        %1132 = vmatpush.bf16.msra.mxu0 %v1003
        %1133 = vmatpush.bf16.msra.mxu0 %v999
        %1134 = vmatpush.bf16.msra.mxu0 %v995
        %1135 = vmatpush.bf16.msra.mxu0 %v991
        %1136 = vmatmul.bf16.gmra.mxu0 %v691
        %v1137 = vpop.f32.mrf.mxu0
        %v1138 = vadd.f32 %v1124, %v1137
        %v1139 = vpop.f32.mrf.mxu0
        %v1140 = vadd.f32 %v1126, %v1139
        %1141 = vdwg.mxu0
        %1142 = vmatpush.bf16.msra.mxu0 %v988
        %1143 = vmatpush.bf16.msra.mxu0 %v984
        %1144 = vmatpush.bf16.msra.mxu0 %v980
        %1145 = vmatpush.bf16.msra.mxu0 %v976
        %1146 = vmatpush.bf16.msra.mxu0 %v972
        %1147 = vmatpush.bf16.msra.mxu0 %v968
        %1148 = vmatpush.bf16.msra.mxu0 %v964
        %1149 = vmatpush.bf16.msra.mxu0 %v960
        %1150 = vmatmul.bf16.gmra.mxu0 %v690
        %v1151 = vpop.f32.mrf.mxu0
        %v1152 = vadd.f32 %v760, %v1151
        %v1153 = vpop.f32.mrf.mxu0
        %v1154 = vadd.f32 %v760, %v1153
        %1155 = vdwg.mxu0
        %1156 = vmatpush.bf16.msra.mxu0 %v1020
        %1157 = vmatpush.bf16.msra.mxu0 %v1016
        %1158 = vmatpush.bf16.msra.mxu0 %v1012
        %1159 = vmatpush.bf16.msra.mxu0 %v1008
        %1160 = vmatpush.bf16.msra.mxu0 %v1004
        %1161 = vmatpush.bf16.msra.mxu0 %v1000
        %1162 = vmatpush.bf16.msra.mxu0 %v996
        %1163 = vmatpush.bf16.msra.mxu0 %v992
        %1164 = vmatmul.bf16.gmra.mxu0 %v691
        %v1165 = vpop.f32.mrf.mxu0
        %v1166 = vadd.f32 %v1152, %v1165
        %v1167 = vpop.f32.mrf.mxu0
        %v1168 = vadd.f32 %v1154, %v1167
        %1169 = vdwg.mxu0
        %1170 = vmatpush.bf16.msra.mxu0 %v989
        %1171 = vmatpush.bf16.msra.mxu0 %v985
        %1172 = vmatpush.bf16.msra.mxu0 %v981
        %1173 = vmatpush.bf16.msra.mxu0 %v977
        %1174 = vmatpush.bf16.msra.mxu0 %v973
        %1175 = vmatpush.bf16.msra.mxu0 %v969
        %1176 = vmatpush.bf16.msra.mxu0 %v965
        %1177 = vmatpush.bf16.msra.mxu0 %v961
        %1178 = vmatmul.bf16.gmra.mxu0 %v690
        %v1179 = vpop.f32.mrf.mxu0
        %v1180 = vadd.f32 %v761, %v1179
        %v1181 = vpop.f32.mrf.mxu0
        %v1182 = vadd.f32 %v761, %v1181
        %1183 = vdwg.mxu0
        %1184 = vmatpush.bf16.msra.mxu0 %v1021
        %1185 = vmatpush.bf16.msra.mxu0 %v1017
        %1186 = vmatpush.bf16.msra.mxu0 %v1013
        %1187 = vmatpush.bf16.msra.mxu0 %v1009
        %1188 = vmatpush.bf16.msra.mxu0 %v1005
        %1189 = vmatpush.bf16.msra.mxu0 %v1001
        %1190 = vmatpush.bf16.msra.mxu0 %v997
        %1191 = vmatpush.bf16.msra.mxu0 %v993
        %1192 = vmatmul.bf16.gmra.mxu0 %v691
        %v1193 = vpop.f32.mrf.mxu0
        %v1194 = vadd.f32 %v1180, %v1193
        %v1195 = vpop.f32.mrf.mxu0
        %v1196 = vadd.f32 %v1182, %v1195
        %1197 = vdwg.mxu0
        %v1198 = vmax.f32 %v1110, 0.0
        %v1199 = vmax.f32 %v1138, 0.0
        %v1200 = vmax.f32 %v1166, 0.0
        %v1201 = vmax.f32 %v1194, 0.0
        %v1202 = vmax.f32 %v1112, 0.0
        %v1203 = vmax.f32 %v1140, 0.0
        %v1204 = vmax.f32 %v1168, 0.0
        %v1205 = vmax.f32 %v1196, 0.0
        %v1206 = vpack.c.bf16 %v1202, %v1198
        %v1207 = vpack.c.bf16 %v1203, %v1199
        %v1208 = vpack.c.bf16 %v1204, %v1200
        %v1209 = vpack.c.bf16 %v1205, %v1201
        %v1210 = vld [vmem:[#allocation9] sm:$0xff]
        %v1211 = vld [vmem:[#allocation9 + $0x8] sm:$0xff]
        %v1212 = vld [vmem:[#allocation9 + $0x10] sm:$0xff]
        %v1213 = vld [vmem:[#allocation9 + $0x18] sm:$0xff]
        %v1214 = vld [vmem:[#allocation9 + $0x20] sm:$0xff]
        %v1215 = vld [vmem:[#allocation9 + $0x28] sm:$0xff]
        %v1216 = vld [vmem:[#allocation9 + $0x30] sm:$0xff]
        %v1217 = vld [vmem:[#allocation9 + $0x38] sm:$0xff]
        %v1218 = vld [vmem:[#allocation9 + $0x40] sm:$0xff]
        %v1219 = vld [vmem:[#allocation9 + $0x48] sm:$0xff]
        %v1220 = vld [vmem:[#allocation9 + $0x50] sm:$0xff]
        %v1221 = vld [vmem:[#allocation9 + $0x58] sm:$0xff]
        %v1222 = vld [vmem:[#allocation9 + $0x60] sm:$0xff]
        %v1223 = vld [vmem:[#allocation9 + $0x68] sm:$0xff]
        %v1224 = vld [vmem:[#allocation9 + $0x70] sm:$0xff]
        %v1225 = vld [vmem:[#allocation9 + $0x78] sm:$0xff]
        %v1226 = vld [vmem:[#allocation9 + $0x80] sm:$0xff]
        %v1227 = vld [vmem:[#allocation9 + $0x88] sm:$0xff]
        %v1228 = vld [vmem:[#allocation9 + $0x90] sm:$0xff]
        %v1229 = vld [vmem:[#allocation9 + $0x98] sm:$0xff]
        %v1230 = vld [vmem:[#allocation9 + $0xa0] sm:$0xff]
        %v1231 = vld [vmem:[#allocation9 + $0xa8] sm:$0xff]
        %v1232 = vld [vmem:[#allocation9 + $0xb0] sm:$0xff]
        %v1233 = vld [vmem:[#allocation9 + $0xb8] sm:$0xff]
        %v1234 = vld [vmem:[#allocation9 + $0xc0] sm:$0xff]
        %v1235 = vld [vmem:[#allocation9 + $0xc8] sm:$0xff]
        %v1236 = vld [vmem:[#allocation9 + $0xd0] sm:$0xff]
        %v1237 = vld [vmem:[#allocation9 + $0xd8] sm:$0xff]
        %v1238 = vld [vmem:[#allocation9 + $0xe0] sm:$0xff]
        %v1239 = vld [vmem:[#allocation9 + $0xe8] sm:$0xff]
        %v1240 = vld [vmem:[#allocation9 + $0xf0] sm:$0xff]
        %v1241 = vld [vmem:[#allocation9 + $0xf8] sm:$0xff]
        %v1242 = vld [vmem:[#allocation9 + $0x100] sm:$0xff]
        %v1243 = vld [vmem:[#allocation9 + $0x108] sm:$0xff]
        %v1244 = vld [vmem:[#allocation9 + $0x110] sm:$0xff]
        %v1245 = vld [vmem:[#allocation9 + $0x118] sm:$0xff]
        %v1246 = vld [vmem:[#allocation9 + $0x120] sm:$0xff]
        %v1247 = vld [vmem:[#allocation9 + $0x128] sm:$0xff]
        %v1248 = vld [vmem:[#allocation9 + $0x130] sm:$0xff]
        %v1249 = vld [vmem:[#allocation9 + $0x138] sm:$0xff]
        %v1250 = vld [vmem:[#allocation9 + $0x140] sm:$0xff]
        %v1251 = vld [vmem:[#allocation9 + $0x148] sm:$0xff]
        %v1252 = vld [vmem:[#allocation9 + $0x150] sm:$0xff]
        %v1253 = vld [vmem:[#allocation9 + $0x158] sm:$0xff]
        %v1254 = vld [vmem:[#allocation9 + $0x160] sm:$0xff]
        %v1255 = vld [vmem:[#allocation9 + $0x168] sm:$0xff]
        %v1256 = vld [vmem:[#allocation9 + $0x170] sm:$0xff]
        %v1257 = vld [vmem:[#allocation9 + $0x178] sm:$0xff]
        %v1258 = vld [vmem:[#allocation9 + $0x180] sm:$0xff]
        %v1259 = vld [vmem:[#allocation9 + $0x188] sm:$0xff]
        %v1260 = vld [vmem:[#allocation9 + $0x190] sm:$0xff]
        %v1261 = vld [vmem:[#allocation9 + $0x198] sm:$0xff]
        %v1262 = vld [vmem:[#allocation9 + $0x1a0] sm:$0xff]
        %v1263 = vld [vmem:[#allocation9 + $0x1a8] sm:$0xff]
        %v1264 = vld [vmem:[#allocation9 + $0x1b0] sm:$0xff]
        %v1265 = vld [vmem:[#allocation9 + $0x1b8] sm:$0xff]
        %v1266 = vld [vmem:[#allocation9 + $0x1c0] sm:$0xff]
        %v1267 = vld [vmem:[#allocation9 + $0x1c8] sm:$0xff]
        %v1268 = vld [vmem:[#allocation9 + $0x1d0] sm:$0xff]
        %v1269 = vld [vmem:[#allocation9 + $0x1d8] sm:$0xff]
        %v1270 = vld [vmem:[#allocation9 + $0x1e0] sm:$0xff]
        %v1271 = vld [vmem:[#allocation9 + $0x1e8] sm:$0xff]
        %v1272 = vld [vmem:[#allocation9 + $0x1f0] sm:$0xff]
        %v1273 = vld [vmem:[#allocation9 + $0x1f8] sm:$0xff]
        %v1274 = vld [vmem:[#allocation9 + $0x200] sm:$0xff]
        %v1275 = vld [vmem:[#allocation9 + $0x208] sm:$0xff]
        %v1276 = vld [vmem:[#allocation9 + $0x210] sm:$0xff]
        %v1277 = vld [vmem:[#allocation9 + $0x218] sm:$0xff]
        %v1278 = vld [vmem:[#allocation9 + $0x220] sm:$0xff]
        %v1279 = vld [vmem:[#allocation9 + $0x228] sm:$0xff]
        %v1280 = vld [vmem:[#allocation9 + $0x230] sm:$0xff]
        %v1281 = vld [vmem:[#allocation9 + $0x238] sm:$0xff]
        %v1282 = vld [vmem:[#allocation9 + $0x240] sm:$0xff]
        %v1283 = vld [vmem:[#allocation9 + $0x248] sm:$0xff]
        %v1284 = vld [vmem:[#allocation9 + $0x250] sm:$0xff]
        %v1285 = vld [vmem:[#allocation9 + $0x258] sm:$0xff]
        %v1286 = vld [vmem:[#allocation9 + $0x260] sm:$0xff]
        %v1287 = vld [vmem:[#allocation9 + $0x268] sm:$0xff]
        %v1288 = vld [vmem:[#allocation9 + $0x270] sm:$0xff]
        %v1289 = vld [vmem:[#allocation9 + $0x278] sm:$0xff]
        %v1290 = vld [vmem:[#allocation9 + $0x280] sm:$0xff]
        %v1291 = vld [vmem:[#allocation9 + $0x288] sm:$0xff]
        %v1292 = vld [vmem:[#allocation9 + $0x290] sm:$0xff]
        %v1293 = vld [vmem:[#allocation9 + $0x298] sm:$0xff]
        %v1294 = vld [vmem:[#allocation9 + $0x2a0] sm:$0xff]
        %v1295 = vld [vmem:[#allocation9 + $0x2a8] sm:$0xff]
        %v1296 = vld [vmem:[#allocation9 + $0x2b0] sm:$0xff]
        %v1297 = vld [vmem:[#allocation9 + $0x2b8] sm:$0xff]
        %v1298 = vld [vmem:[#allocation9 + $0x2c0] sm:$0xff]
        %v1299 = vld [vmem:[#allocation9 + $0x2c8] sm:$0xff]
        %v1300 = vld [vmem:[#allocation9 + $0x2d0] sm:$0xff]
        %v1301 = vld [vmem:[#allocation9 + $0x2d8] sm:$0xff]
        %v1302 = vld [vmem:[#allocation9 + $0x2e0] sm:$0xff]
        %v1303 = vld [vmem:[#allocation9 + $0x2e8] sm:$0xff]
        %v1304 = vld [vmem:[#allocation9 + $0x2f0] sm:$0xff]
        %v1305 = vld [vmem:[#allocation9 + $0x2f8] sm:$0xff]
        %v1306 = vld [vmem:[#allocation9 + $0x300] sm:$0xff]
        %v1307 = vld [vmem:[#allocation9 + $0x308] sm:$0xff]
        %v1308 = vld [vmem:[#allocation9 + $0x310] sm:$0xff]
        %v1309 = vld [vmem:[#allocation9 + $0x318] sm:$0xff]
        %v1310 = vld [vmem:[#allocation9 + $0x320] sm:$0xff]
        %v1311 = vld [vmem:[#allocation9 + $0x328] sm:$0xff]
        %v1312 = vld [vmem:[#allocation9 + $0x330] sm:$0xff]
        %v1313 = vld [vmem:[#allocation9 + $0x338] sm:$0xff]
        %v1314 = vld [vmem:[#allocation9 + $0x340] sm:$0xff]
        %v1315 = vld [vmem:[#allocation9 + $0x348] sm:$0xff]
        %v1316 = vld [vmem:[#allocation9 + $0x350] sm:$0xff]
        %v1317 = vld [vmem:[#allocation9 + $0x358] sm:$0xff]
        %v1318 = vld [vmem:[#allocation9 + $0x360] sm:$0xff]
        %v1319 = vld [vmem:[#allocation9 + $0x368] sm:$0xff]
        %v1320 = vld [vmem:[#allocation9 + $0x370] sm:$0xff]
        %v1321 = vld [vmem:[#allocation9 + $0x378] sm:$0xff]
        %v1322 = vld [vmem:[#allocation9 + $0x380] sm:$0xff]
        %v1323 = vld [vmem:[#allocation9 + $0x388] sm:$0xff]
        %v1324 = vld [vmem:[#allocation9 + $0x390] sm:$0xff]
        %v1325 = vld [vmem:[#allocation9 + $0x398] sm:$0xff]
        %v1326 = vld [vmem:[#allocation9 + $0x3a0] sm:$0xff]
        %v1327 = vld [vmem:[#allocation9 + $0x3a8] sm:$0xff]
        %v1328 = vld [vmem:[#allocation9 + $0x3b0] sm:$0xff]
        %v1329 = vld [vmem:[#allocation9 + $0x3b8] sm:$0xff]
        %v1330 = vld [vmem:[#allocation9 + $0x3c0] sm:$0xff]
        %v1331 = vld [vmem:[#allocation9 + $0x3c8] sm:$0xff]
        %v1332 = vld [vmem:[#allocation9 + $0x3d0] sm:$0xff]
        %v1333 = vld [vmem:[#allocation9 + $0x3d8] sm:$0xff]
        %v1334 = vld [vmem:[#allocation9 + $0x3e0] sm:$0xff]
        %v1335 = vld [vmem:[#allocation9 + $0x3e8] sm:$0xff]
        %v1336 = vld [vmem:[#allocation9 + $0x3f0] sm:$0xff]
        %v1337 = vld [vmem:[#allocation9 + $0x3f8] sm:$0xff]
        %v1338 = vld [vmem:[#allocation10] sm:$0xf]
        %v1340 = vperm.slane %v1338, 0
        %v1341 = vperm.slane %v1338, 1
        %v1342 = vperm.slane %v1338, 2
        %v1343 = vperm.slane %v1338, 3
        %v1476 = vunpack.c.l.b16 %v1210
        %v1477 = vunpack.c.h.b16 %v1210
        %v1478 = vunpack.c.l.b16 %v1211
        %v1479 = vunpack.c.h.b16 %v1211
        %v1480 = vunpack.c.l.b16 %v1212
        %v1481 = vunpack.c.h.b16 %v1212
        %v1482 = vunpack.c.l.b16 %v1213
        %v1483 = vunpack.c.h.b16 %v1213
        %v1484 = vunpack.c.l.b16 %v1214
        %v1485 = vunpack.c.h.b16 %v1214
        %v1486 = vunpack.c.l.b16 %v1215
        %v1487 = vunpack.c.h.b16 %v1215
        %v1488 = vunpack.c.l.b16 %v1216
        %v1489 = vunpack.c.h.b16 %v1216
        %v1490 = vunpack.c.l.b16 %v1217
        %v1491 = vunpack.c.h.b16 %v1217
        %v1492 = vunpack.c.l.b16 %v1218
        %v1493 = vunpack.c.h.b16 %v1218
        %v1494 = vunpack.c.l.b16 %v1219
        %v1495 = vunpack.c.h.b16 %v1219
        %v1496 = vunpack.c.l.b16 %v1220
        %v1497 = vunpack.c.h.b16 %v1220
        %v1498 = vunpack.c.l.b16 %v1221
        %v1499 = vunpack.c.h.b16 %v1221
        %v1500 = vunpack.c.l.b16 %v1222
        %v1501 = vunpack.c.h.b16 %v1222
        %v1502 = vunpack.c.l.b16 %v1223
        %v1503 = vunpack.c.h.b16 %v1223
        %v1504 = vunpack.c.l.b16 %v1224
        %v1505 = vunpack.c.h.b16 %v1224
        %v1506 = vunpack.c.l.b16 %v1225
        %v1507 = vunpack.c.h.b16 %v1225
        %v1508 = vunpack.c.l.b16 %v1226
        %v1509 = vunpack.c.h.b16 %v1226
        %v1510 = vunpack.c.l.b16 %v1227
        %v1511 = vunpack.c.h.b16 %v1227
        %v1512 = vunpack.c.l.b16 %v1228
        %v1513 = vunpack.c.h.b16 %v1228
        %v1514 = vunpack.c.l.b16 %v1229
        %v1515 = vunpack.c.h.b16 %v1229
        %v1516 = vunpack.c.l.b16 %v1230
        %v1517 = vunpack.c.h.b16 %v1230
        %v1518 = vunpack.c.l.b16 %v1231
        %v1519 = vunpack.c.h.b16 %v1231
        %v1520 = vunpack.c.l.b16 %v1232
        %v1521 = vunpack.c.h.b16 %v1232
        %v1522 = vunpack.c.l.b16 %v1233
        %v1523 = vunpack.c.h.b16 %v1233
        %v1524 = vunpack.c.l.b16 %v1234
        %v1525 = vunpack.c.h.b16 %v1234
        %v1526 = vunpack.c.l.b16 %v1235
        %v1527 = vunpack.c.h.b16 %v1235
        %v1528 = vunpack.c.l.b16 %v1236
        %v1529 = vunpack.c.h.b16 %v1236
        %v1530 = vunpack.c.l.b16 %v1237
        %v1531 = vunpack.c.h.b16 %v1237
        %v1532 = vunpack.c.l.b16 %v1238
        %v1533 = vunpack.c.h.b16 %v1238
        %v1534 = vunpack.c.l.b16 %v1239
        %v1535 = vunpack.c.h.b16 %v1239
        %v1536 = vunpack.c.l.b16 %v1240
        %v1537 = vunpack.c.h.b16 %v1240
        %v1538 = vunpack.c.l.b16 %v1241
        %v1539 = vunpack.c.h.b16 %v1241
        %v1540 = vunpack.c.l.b16 %v1242
        %v1541 = vunpack.c.h.b16 %v1242
        %v1542 = vunpack.c.l.b16 %v1243
        %v1543 = vunpack.c.h.b16 %v1243
        %v1544 = vunpack.c.l.b16 %v1244
        %v1545 = vunpack.c.h.b16 %v1244
        %v1546 = vunpack.c.l.b16 %v1245
        %v1547 = vunpack.c.h.b16 %v1245
        %v1548 = vunpack.c.l.b16 %v1246
        %v1549 = vunpack.c.h.b16 %v1246
        %v1550 = vunpack.c.l.b16 %v1247
        %v1551 = vunpack.c.h.b16 %v1247
        %v1552 = vunpack.c.l.b16 %v1248
        %v1553 = vunpack.c.h.b16 %v1248
        %v1554 = vunpack.c.l.b16 %v1249
        %v1555 = vunpack.c.h.b16 %v1249
        %v1556 = vunpack.c.l.b16 %v1250
        %v1557 = vunpack.c.h.b16 %v1250
        %v1558 = vunpack.c.l.b16 %v1251
        %v1559 = vunpack.c.h.b16 %v1251
        %v1560 = vunpack.c.l.b16 %v1252
        %v1561 = vunpack.c.h.b16 %v1252
        %v1562 = vunpack.c.l.b16 %v1253
        %v1563 = vunpack.c.h.b16 %v1253
        %v1564 = vunpack.c.l.b16 %v1254
        %v1565 = vunpack.c.h.b16 %v1254
        %v1566 = vunpack.c.l.b16 %v1255
        %v1567 = vunpack.c.h.b16 %v1255
        %v1568 = vunpack.c.l.b16 %v1256
        %v1569 = vunpack.c.h.b16 %v1256
        %v1570 = vunpack.c.l.b16 %v1257
        %v1571 = vunpack.c.h.b16 %v1257
        %v1572 = vunpack.c.l.b16 %v1258
        %v1573 = vunpack.c.h.b16 %v1258
        %v1574 = vunpack.c.l.b16 %v1259
        %v1575 = vunpack.c.h.b16 %v1259
        %v1576 = vunpack.c.l.b16 %v1260
        %v1577 = vunpack.c.h.b16 %v1260
        %v1578 = vunpack.c.l.b16 %v1261
        %v1579 = vunpack.c.h.b16 %v1261
        %v1580 = vunpack.c.l.b16 %v1262
        %v1581 = vunpack.c.h.b16 %v1262
        %v1582 = vunpack.c.l.b16 %v1263
        %v1583 = vunpack.c.h.b16 %v1263
        %v1584 = vunpack.c.l.b16 %v1264
        %v1585 = vunpack.c.h.b16 %v1264
        %v1586 = vunpack.c.l.b16 %v1265
        %v1587 = vunpack.c.h.b16 %v1265
        %v1588 = vunpack.c.l.b16 %v1266
        %v1589 = vunpack.c.h.b16 %v1266
        %v1590 = vunpack.c.l.b16 %v1267
        %v1591 = vunpack.c.h.b16 %v1267
        %v1592 = vunpack.c.l.b16 %v1268
        %v1593 = vunpack.c.h.b16 %v1268
        %v1594 = vunpack.c.l.b16 %v1269
        %v1595 = vunpack.c.h.b16 %v1269
        %v1596 = vunpack.c.l.b16 %v1270
        %v1597 = vunpack.c.h.b16 %v1270
        %v1598 = vunpack.c.l.b16 %v1271
        %v1599 = vunpack.c.h.b16 %v1271
        %v1600 = vunpack.c.l.b16 %v1272
        %v1601 = vunpack.c.h.b16 %v1272
        %v1602 = vunpack.c.l.b16 %v1273
        %v1603 = vunpack.c.h.b16 %v1273
        %v1604 = vunpack.c.l.b16 %v1274
        %v1605 = vunpack.c.h.b16 %v1274
        %v1606 = vunpack.c.l.b16 %v1275
        %v1607 = vunpack.c.h.b16 %v1275
        %v1608 = vunpack.c.l.b16 %v1276
        %v1609 = vunpack.c.h.b16 %v1276
        %v1610 = vunpack.c.l.b16 %v1277
        %v1611 = vunpack.c.h.b16 %v1277
        %v1612 = vunpack.c.l.b16 %v1278
        %v1613 = vunpack.c.h.b16 %v1278
        %v1614 = vunpack.c.l.b16 %v1279
        %v1615 = vunpack.c.h.b16 %v1279
        %v1616 = vunpack.c.l.b16 %v1280
        %v1617 = vunpack.c.h.b16 %v1280
        %v1618 = vunpack.c.l.b16 %v1281
        %v1619 = vunpack.c.h.b16 %v1281
        %v1620 = vunpack.c.l.b16 %v1282
        %v1621 = vunpack.c.h.b16 %v1282
        %v1622 = vunpack.c.l.b16 %v1283
        %v1623 = vunpack.c.h.b16 %v1283
        %v1624 = vunpack.c.l.b16 %v1284
        %v1625 = vunpack.c.h.b16 %v1284
        %v1626 = vunpack.c.l.b16 %v1285
        %v1627 = vunpack.c.h.b16 %v1285
        %v1628 = vunpack.c.l.b16 %v1286
        %v1629 = vunpack.c.h.b16 %v1286
        %v1630 = vunpack.c.l.b16 %v1287
        %v1631 = vunpack.c.h.b16 %v1287
        %v1632 = vunpack.c.l.b16 %v1288
        %v1633 = vunpack.c.h.b16 %v1288
        %v1634 = vunpack.c.l.b16 %v1289
        %v1635 = vunpack.c.h.b16 %v1289
        %v1636 = vunpack.c.l.b16 %v1290
        %v1637 = vunpack.c.h.b16 %v1290
        %v1638 = vunpack.c.l.b16 %v1291
        %v1639 = vunpack.c.h.b16 %v1291
        %v1640 = vunpack.c.l.b16 %v1292
        %v1641 = vunpack.c.h.b16 %v1292
        %v1642 = vunpack.c.l.b16 %v1293
        %v1643 = vunpack.c.h.b16 %v1293
        %v1644 = vunpack.c.l.b16 %v1294
        %v1645 = vunpack.c.h.b16 %v1294
        %v1646 = vunpack.c.l.b16 %v1295
        %v1647 = vunpack.c.h.b16 %v1295
        %v1648 = vunpack.c.l.b16 %v1296
        %v1649 = vunpack.c.h.b16 %v1296
        %v1650 = vunpack.c.l.b16 %v1297
        %v1651 = vunpack.c.h.b16 %v1297
        %v1652 = vunpack.c.l.b16 %v1298
        %v1653 = vunpack.c.h.b16 %v1298
        %v1654 = vunpack.c.l.b16 %v1299
        %v1655 = vunpack.c.h.b16 %v1299
        %v1656 = vunpack.c.l.b16 %v1300
        %v1657 = vunpack.c.h.b16 %v1300
        %v1658 = vunpack.c.l.b16 %v1301
        %v1659 = vunpack.c.h.b16 %v1301
        %v1660 = vunpack.c.l.b16 %v1302
        %v1661 = vunpack.c.h.b16 %v1302
        %v1662 = vunpack.c.l.b16 %v1303
        %v1663 = vunpack.c.h.b16 %v1303
        %v1664 = vunpack.c.l.b16 %v1304
        %v1665 = vunpack.c.h.b16 %v1304
        %v1666 = vunpack.c.l.b16 %v1305
        %v1667 = vunpack.c.h.b16 %v1305
        %v1668 = vunpack.c.l.b16 %v1306
        %v1669 = vunpack.c.h.b16 %v1306
        %v1670 = vunpack.c.l.b16 %v1307
        %v1671 = vunpack.c.h.b16 %v1307
        %v1672 = vunpack.c.l.b16 %v1308
        %v1673 = vunpack.c.h.b16 %v1308
        %v1674 = vunpack.c.l.b16 %v1309
        %v1675 = vunpack.c.h.b16 %v1309
        %v1676 = vunpack.c.l.b16 %v1310
        %v1677 = vunpack.c.h.b16 %v1310
        %v1678 = vunpack.c.l.b16 %v1311
        %v1679 = vunpack.c.h.b16 %v1311
        %v1680 = vunpack.c.l.b16 %v1312
        %v1681 = vunpack.c.h.b16 %v1312
        %v1682 = vunpack.c.l.b16 %v1313
        %v1683 = vunpack.c.h.b16 %v1313
        %v1684 = vunpack.c.l.b16 %v1314
        %v1685 = vunpack.c.h.b16 %v1314
        %v1686 = vunpack.c.l.b16 %v1315
        %v1687 = vunpack.c.h.b16 %v1315
        %v1688 = vunpack.c.l.b16 %v1316
        %v1689 = vunpack.c.h.b16 %v1316
        %v1690 = vunpack.c.l.b16 %v1317
        %v1691 = vunpack.c.h.b16 %v1317
        %v1692 = vunpack.c.l.b16 %v1318
        %v1693 = vunpack.c.h.b16 %v1318
        %v1694 = vunpack.c.l.b16 %v1319
        %v1695 = vunpack.c.h.b16 %v1319
        %v1696 = vunpack.c.l.b16 %v1320
        %v1697 = vunpack.c.h.b16 %v1320
        %v1698 = vunpack.c.l.b16 %v1321
        %v1699 = vunpack.c.h.b16 %v1321
        %v1700 = vunpack.c.l.b16 %v1322
        %v1701 = vunpack.c.h.b16 %v1322
        %v1702 = vunpack.c.l.b16 %v1323
        %v1703 = vunpack.c.h.b16 %v1323
        %v1704 = vunpack.c.l.b16 %v1324
        %v1705 = vunpack.c.h.b16 %v1324
        %v1706 = vunpack.c.l.b16 %v1325
        %v1707 = vunpack.c.h.b16 %v1325
        %v1708 = vunpack.c.l.b16 %v1326
        %v1709 = vunpack.c.h.b16 %v1326
        %v1710 = vunpack.c.l.b16 %v1327
        %v1711 = vunpack.c.h.b16 %v1327
        %v1712 = vunpack.c.l.b16 %v1328
        %v1713 = vunpack.c.h.b16 %v1328
        %v1714 = vunpack.c.l.b16 %v1329
        %v1715 = vunpack.c.h.b16 %v1329
        %v1716 = vunpack.c.l.b16 %v1330
        %v1717 = vunpack.c.h.b16 %v1330
        %v1718 = vunpack.c.l.b16 %v1331
        %v1719 = vunpack.c.h.b16 %v1331
        %v1720 = vunpack.c.l.b16 %v1332
        %v1721 = vunpack.c.h.b16 %v1332
        %v1722 = vunpack.c.l.b16 %v1333
        %v1723 = vunpack.c.h.b16 %v1333
        %v1724 = vunpack.c.l.b16 %v1334
        %v1725 = vunpack.c.h.b16 %v1334
        %v1726 = vunpack.c.l.b16 %v1335
        %v1727 = vunpack.c.h.b16 %v1335
        %v1728 = vunpack.c.l.b16 %v1336
        %v1729 = vunpack.c.h.b16 %v1336
        %v1730 = vunpack.c.l.b16 %v1337
        %v1731 = vunpack.c.h.b16 %v1337
        %v1732 = vpack.c.b16 %v1480, %v1476
        %v1733 = vpack.c.b16 %v1481, %v1477
        %v1734 = vpack.c.b16 %v1482, %v1478
        %v1735 = vpack.c.b16 %v1483, %v1479
        %v1736 = vpack.c.b16 %v1488, %v1484
        %v1737 = vpack.c.b16 %v1489, %v1485
        %v1738 = vpack.c.b16 %v1490, %v1486
        %v1739 = vpack.c.b16 %v1491, %v1487
        %v1740 = vpack.c.b16 %v1496, %v1492
        %v1741 = vpack.c.b16 %v1497, %v1493
        %v1742 = vpack.c.b16 %v1498, %v1494
        %v1743 = vpack.c.b16 %v1499, %v1495
        %v1744 = vpack.c.b16 %v1504, %v1500
        %v1745 = vpack.c.b16 %v1505, %v1501
        %v1746 = vpack.c.b16 %v1506, %v1502
        %v1747 = vpack.c.b16 %v1507, %v1503
        %v1748 = vpack.c.b16 %v1512, %v1508
        %v1749 = vpack.c.b16 %v1513, %v1509
        %v1750 = vpack.c.b16 %v1514, %v1510
        %v1751 = vpack.c.b16 %v1515, %v1511
        %v1752 = vpack.c.b16 %v1520, %v1516
        %v1753 = vpack.c.b16 %v1521, %v1517
        %v1754 = vpack.c.b16 %v1522, %v1518
        %v1755 = vpack.c.b16 %v1523, %v1519
        %v1756 = vpack.c.b16 %v1528, %v1524
        %v1757 = vpack.c.b16 %v1529, %v1525
        %v1758 = vpack.c.b16 %v1530, %v1526
        %v1759 = vpack.c.b16 %v1531, %v1527
        %v1760 = vpack.c.b16 %v1536, %v1532
        %v1761 = vpack.c.b16 %v1537, %v1533
        %v1762 = vpack.c.b16 %v1538, %v1534
        %v1763 = vpack.c.b16 %v1539, %v1535
        %v1764 = vpack.c.b16 %v1544, %v1540
        %v1765 = vpack.c.b16 %v1545, %v1541
        %v1766 = vpack.c.b16 %v1546, %v1542
        %v1767 = vpack.c.b16 %v1547, %v1543
        %v1768 = vpack.c.b16 %v1552, %v1548
        %v1769 = vpack.c.b16 %v1553, %v1549
        %v1770 = vpack.c.b16 %v1554, %v1550
        %v1771 = vpack.c.b16 %v1555, %v1551
        %v1772 = vpack.c.b16 %v1560, %v1556
        %v1773 = vpack.c.b16 %v1561, %v1557
        %v1774 = vpack.c.b16 %v1562, %v1558
        %v1775 = vpack.c.b16 %v1563, %v1559
        %v1776 = vpack.c.b16 %v1568, %v1564
        %v1777 = vpack.c.b16 %v1569, %v1565
        %v1778 = vpack.c.b16 %v1570, %v1566
        %v1779 = vpack.c.b16 %v1571, %v1567
        %v1780 = vpack.c.b16 %v1576, %v1572
        %v1781 = vpack.c.b16 %v1577, %v1573
        %v1782 = vpack.c.b16 %v1578, %v1574
        %v1783 = vpack.c.b16 %v1579, %v1575
        %v1784 = vpack.c.b16 %v1584, %v1580
        %v1785 = vpack.c.b16 %v1585, %v1581
        %v1786 = vpack.c.b16 %v1586, %v1582
        %v1787 = vpack.c.b16 %v1587, %v1583
        %v1788 = vpack.c.b16 %v1592, %v1588
        %v1789 = vpack.c.b16 %v1593, %v1589
        %v1790 = vpack.c.b16 %v1594, %v1590
        %v1791 = vpack.c.b16 %v1595, %v1591
        %v1792 = vpack.c.b16 %v1600, %v1596
        %v1793 = vpack.c.b16 %v1601, %v1597
        %v1794 = vpack.c.b16 %v1602, %v1598
        %v1795 = vpack.c.b16 %v1603, %v1599
        %v1796 = vpack.c.b16 %v1608, %v1604
        %v1797 = vpack.c.b16 %v1609, %v1605
        %v1798 = vpack.c.b16 %v1610, %v1606
        %v1799 = vpack.c.b16 %v1611, %v1607
        %v1800 = vpack.c.b16 %v1616, %v1612
        %v1801 = vpack.c.b16 %v1617, %v1613
        %v1802 = vpack.c.b16 %v1618, %v1614
        %v1803 = vpack.c.b16 %v1619, %v1615
        %v1804 = vpack.c.b16 %v1624, %v1620
        %v1805 = vpack.c.b16 %v1625, %v1621
        %v1806 = vpack.c.b16 %v1626, %v1622
        %v1807 = vpack.c.b16 %v1627, %v1623
        %v1808 = vpack.c.b16 %v1632, %v1628
        %v1809 = vpack.c.b16 %v1633, %v1629
        %v1810 = vpack.c.b16 %v1634, %v1630
        %v1811 = vpack.c.b16 %v1635, %v1631
        %v1812 = vpack.c.b16 %v1640, %v1636
        %v1813 = vpack.c.b16 %v1641, %v1637
        %v1814 = vpack.c.b16 %v1642, %v1638
        %v1815 = vpack.c.b16 %v1643, %v1639
        %v1816 = vpack.c.b16 %v1648, %v1644
        %v1817 = vpack.c.b16 %v1649, %v1645
        %v1818 = vpack.c.b16 %v1650, %v1646
        %v1819 = vpack.c.b16 %v1651, %v1647
        %v1820 = vpack.c.b16 %v1656, %v1652
        %v1821 = vpack.c.b16 %v1657, %v1653
        %v1822 = vpack.c.b16 %v1658, %v1654
        %v1823 = vpack.c.b16 %v1659, %v1655
        %v1824 = vpack.c.b16 %v1664, %v1660
        %v1825 = vpack.c.b16 %v1665, %v1661
        %v1826 = vpack.c.b16 %v1666, %v1662
        %v1827 = vpack.c.b16 %v1667, %v1663
        %v1828 = vpack.c.b16 %v1672, %v1668
        %v1829 = vpack.c.b16 %v1673, %v1669
        %v1830 = vpack.c.b16 %v1674, %v1670
        %v1831 = vpack.c.b16 %v1675, %v1671
        %v1832 = vpack.c.b16 %v1680, %v1676
        %v1833 = vpack.c.b16 %v1681, %v1677
        %v1834 = vpack.c.b16 %v1682, %v1678
        %v1835 = vpack.c.b16 %v1683, %v1679
        %v1836 = vpack.c.b16 %v1688, %v1684
        %v1837 = vpack.c.b16 %v1689, %v1685
        %v1838 = vpack.c.b16 %v1690, %v1686
        %v1839 = vpack.c.b16 %v1691, %v1687
        %v1840 = vpack.c.b16 %v1696, %v1692
        %v1841 = vpack.c.b16 %v1697, %v1693
        %v1842 = vpack.c.b16 %v1698, %v1694
        %v1843 = vpack.c.b16 %v1699, %v1695
        %v1844 = vpack.c.b16 %v1704, %v1700
        %v1845 = vpack.c.b16 %v1705, %v1701
        %v1846 = vpack.c.b16 %v1706, %v1702
        %v1847 = vpack.c.b16 %v1707, %v1703
        %v1848 = vpack.c.b16 %v1712, %v1708
        %v1849 = vpack.c.b16 %v1713, %v1709
        %v1850 = vpack.c.b16 %v1714, %v1710
        %v1851 = vpack.c.b16 %v1715, %v1711
        %v1852 = vpack.c.b16 %v1720, %v1716
        %v1853 = vpack.c.b16 %v1721, %v1717
        %v1854 = vpack.c.b16 %v1722, %v1718
        %v1855 = vpack.c.b16 %v1723, %v1719
        %v1856 = vpack.c.b16 %v1728, %v1724
        %v1857 = vpack.c.b16 %v1729, %v1725
        %v1858 = vpack.c.b16 %v1730, %v1726
        %v1859 = vpack.c.b16 %v1731, %v1727
        %1988 = vmatpush.bf16.msra.mxu0 %v1760
        %1989 = vmatpush.bf16.msra.mxu0 %v1756
        %1990 = vmatpush.bf16.msra.mxu0 %v1752
        %1991 = vmatpush.bf16.msra.mxu0 %v1748
        %1992 = vmatpush.bf16.msra.mxu0 %v1744
        %1993 = vmatpush.bf16.msra.mxu0 %v1740
        %1994 = vmatpush.bf16.msra.mxu0 %v1736
        %1995 = vmatpush.bf16.msra.mxu0 %v1732
        %1996 = vmatmul.bf16.gmra.mxu0 %v1206
        %v1997 = vpop.f32.mrf.mxu0
        %v1998 = vadd.f32 %v1340, %v1997
        %v1999 = vpop.f32.mrf.mxu0
        %v2000 = vadd.f32 %v1340, %v1999
        %2001 = vdwg.mxu0
        %2002 = vmatpush.bf16.msra.mxu0 %v1792
        %2003 = vmatpush.bf16.msra.mxu0 %v1788
        %2004 = vmatpush.bf16.msra.mxu0 %v1784
        %2005 = vmatpush.bf16.msra.mxu0 %v1780
        %2006 = vmatpush.bf16.msra.mxu0 %v1776
        %2007 = vmatpush.bf16.msra.mxu0 %v1772
        %2008 = vmatpush.bf16.msra.mxu0 %v1768
        %2009 = vmatpush.bf16.msra.mxu0 %v1764
        %2010 = vmatmul.bf16.gmra.mxu0 %v1207
        %v2011 = vpop.f32.mrf.mxu0
        %v2012 = vadd.f32 %v1998, %v2011
        %v2013 = vpop.f32.mrf.mxu0
        %v2014 = vadd.f32 %v2000, %v2013
        %2015 = vdwg.mxu0
        %2016 = vmatpush.bf16.msra.mxu0 %v1824
        %2017 = vmatpush.bf16.msra.mxu0 %v1820
        %2018 = vmatpush.bf16.msra.mxu0 %v1816
        %2019 = vmatpush.bf16.msra.mxu0 %v1812
        %2020 = vmatpush.bf16.msra.mxu0 %v1808
        %2021 = vmatpush.bf16.msra.mxu0 %v1804
        %2022 = vmatpush.bf16.msra.mxu0 %v1800
        %2023 = vmatpush.bf16.msra.mxu0 %v1796
        %2024 = vmatmul.bf16.gmra.mxu0 %v1208
        %v2025 = vpop.f32.mrf.mxu0
        %v2026 = vadd.f32 %v2012, %v2025
        %v2027 = vpop.f32.mrf.mxu0
        %v2028 = vadd.f32 %v2014, %v2027
        %2029 = vdwg.mxu0
        %2030 = vmatpush.bf16.msra.mxu0 %v1856
        %2031 = vmatpush.bf16.msra.mxu0 %v1852
        %2032 = vmatpush.bf16.msra.mxu0 %v1848
        %2033 = vmatpush.bf16.msra.mxu0 %v1844
        %2034 = vmatpush.bf16.msra.mxu0 %v1840
        %2035 = vmatpush.bf16.msra.mxu0 %v1836
        %2036 = vmatpush.bf16.msra.mxu0 %v1832
        %2037 = vmatpush.bf16.msra.mxu0 %v1828
        %2038 = vmatmul.bf16.gmra.mxu0 %v1209
        %v2039 = vpop.f32.mrf.mxu0
        %v2040 = vadd.f32 %v2026, %v2039
        %v2041 = vpop.f32.mrf.mxu0
        %v2042 = vadd.f32 %v2028, %v2041
        %2043 = vdwg.mxu0
        %2044 = vmatpush.bf16.msra.mxu0 %v1761
        %2045 = vmatpush.bf16.msra.mxu0 %v1757
        %2046 = vmatpush.bf16.msra.mxu0 %v1753
        %2047 = vmatpush.bf16.msra.mxu0 %v1749
        %2048 = vmatpush.bf16.msra.mxu0 %v1745
        %2049 = vmatpush.bf16.msra.mxu0 %v1741
        %2050 = vmatpush.bf16.msra.mxu0 %v1737
        %2051 = vmatpush.bf16.msra.mxu0 %v1733
        %2052 = vmatmul.bf16.gmra.mxu0 %v1206
        %v2053 = vpop.f32.mrf.mxu0
        %v2054 = vadd.f32 %v1341, %v2053
        %v2055 = vpop.f32.mrf.mxu0
        %v2056 = vadd.f32 %v1341, %v2055
        %2057 = vdwg.mxu0
        %2058 = vmatpush.bf16.msra.mxu0 %v1793
        %2059 = vmatpush.bf16.msra.mxu0 %v1789
        %2060 = vmatpush.bf16.msra.mxu0 %v1785
        %2061 = vmatpush.bf16.msra.mxu0 %v1781
        %2062 = vmatpush.bf16.msra.mxu0 %v1777
        %2063 = vmatpush.bf16.msra.mxu0 %v1773
        %2064 = vmatpush.bf16.msra.mxu0 %v1769
        %2065 = vmatpush.bf16.msra.mxu0 %v1765
        %2066 = vmatmul.bf16.gmra.mxu0 %v1207
        %v2067 = vpop.f32.mrf.mxu0
        %v2068 = vadd.f32 %v2054, %v2067
        %v2069 = vpop.f32.mrf.mxu0
        %v2070 = vadd.f32 %v2056, %v2069
        %2071 = vdwg.mxu0
        %2072 = vmatpush.bf16.msra.mxu0 %v1825
        %2073 = vmatpush.bf16.msra.mxu0 %v1821
        %2074 = vmatpush.bf16.msra.mxu0 %v1817
        %2075 = vmatpush.bf16.msra.mxu0 %v1813
        %2076 = vmatpush.bf16.msra.mxu0 %v1809
        %2077 = vmatpush.bf16.msra.mxu0 %v1805
        %2078 = vmatpush.bf16.msra.mxu0 %v1801
        %2079 = vmatpush.bf16.msra.mxu0 %v1797
        %2080 = vmatmul.bf16.gmra.mxu0 %v1208
        %v2081 = vpop.f32.mrf.mxu0
        %v2082 = vadd.f32 %v2068, %v2081
        %v2083 = vpop.f32.mrf.mxu0
        %v2084 = vadd.f32 %v2070, %v2083
        %2085 = vdwg.mxu0
        %2086 = vmatpush.bf16.msra.mxu0 %v1857
        %2087 = vmatpush.bf16.msra.mxu0 %v1853
        %2088 = vmatpush.bf16.msra.mxu0 %v1849
        %2089 = vmatpush.bf16.msra.mxu0 %v1845
        %2090 = vmatpush.bf16.msra.mxu0 %v1841
        %2091 = vmatpush.bf16.msra.mxu0 %v1837
        %2092 = vmatpush.bf16.msra.mxu0 %v1833
        %2093 = vmatpush.bf16.msra.mxu0 %v1829
        %2094 = vmatmul.bf16.gmra.mxu0 %v1209
        %v2095 = vpop.f32.mrf.mxu0
        %v2096 = vadd.f32 %v2082, %v2095
        %v2097 = vpop.f32.mrf.mxu0
        %v2098 = vadd.f32 %v2084, %v2097
        %2099 = vdwg.mxu0
        %2100 = vmatpush.bf16.msra.mxu0 %v1762
        %2101 = vmatpush.bf16.msra.mxu0 %v1758
        %2102 = vmatpush.bf16.msra.mxu0 %v1754
        %2103 = vmatpush.bf16.msra.mxu0 %v1750
        %2104 = vmatpush.bf16.msra.mxu0 %v1746
        %2105 = vmatpush.bf16.msra.mxu0 %v1742
        %2106 = vmatpush.bf16.msra.mxu0 %v1738
        %2107 = vmatpush.bf16.msra.mxu0 %v1734
        %2108 = vmatmul.bf16.gmra.mxu0 %v1206
        %v2109 = vpop.f32.mrf.mxu0
        %v2110 = vadd.f32 %v1342, %v2109
        %v2111 = vpop.f32.mrf.mxu0
        %v2112 = vadd.f32 %v1342, %v2111
        %2113 = vdwg.mxu0
        %2114 = vmatpush.bf16.msra.mxu0 %v1794
        %2115 = vmatpush.bf16.msra.mxu0 %v1790
        %2116 = vmatpush.bf16.msra.mxu0 %v1786
        %2117 = vmatpush.bf16.msra.mxu0 %v1782
        %2118 = vmatpush.bf16.msra.mxu0 %v1778
        %2119 = vmatpush.bf16.msra.mxu0 %v1774
        %2120 = vmatpush.bf16.msra.mxu0 %v1770
        %2121 = vmatpush.bf16.msra.mxu0 %v1766
        %2122 = vmatmul.bf16.gmra.mxu0 %v1207
        %v2123 = vpop.f32.mrf.mxu0
        %v2124 = vadd.f32 %v2110, %v2123
        %v2125 = vpop.f32.mrf.mxu0
        %v2126 = vadd.f32 %v2112, %v2125
        %2127 = vdwg.mxu0
        %2128 = vmatpush.bf16.msra.mxu0 %v1826
        %2129 = vmatpush.bf16.msra.mxu0 %v1822
        %2130 = vmatpush.bf16.msra.mxu0 %v1818
        %2131 = vmatpush.bf16.msra.mxu0 %v1814
        %2132 = vmatpush.bf16.msra.mxu0 %v1810
        %2133 = vmatpush.bf16.msra.mxu0 %v1806
        %2134 = vmatpush.bf16.msra.mxu0 %v1802
        %2135 = vmatpush.bf16.msra.mxu0 %v1798
        %2136 = vmatmul.bf16.gmra.mxu0 %v1208
        %v2137 = vpop.f32.mrf.mxu0
        %v2138 = vadd.f32 %v2124, %v2137
        %v2139 = vpop.f32.mrf.mxu0
        %v2140 = vadd.f32 %v2126, %v2139
        %2141 = vdwg.mxu0
        %2142 = vmatpush.bf16.msra.mxu0 %v1858
        %2143 = vmatpush.bf16.msra.mxu0 %v1854
        %2144 = vmatpush.bf16.msra.mxu0 %v1850
        %2145 = vmatpush.bf16.msra.mxu0 %v1846
        %2146 = vmatpush.bf16.msra.mxu0 %v1842
        %2147 = vmatpush.bf16.msra.mxu0 %v1838
        %2148 = vmatpush.bf16.msra.mxu0 %v1834
        %2149 = vmatpush.bf16.msra.mxu0 %v1830
        %2150 = vmatmul.bf16.gmra.mxu0 %v1209
        %v2151 = vpop.f32.mrf.mxu0
        %v2152 = vadd.f32 %v2138, %v2151
        %v2153 = vpop.f32.mrf.mxu0
        %v2154 = vadd.f32 %v2140, %v2153
        %2155 = vdwg.mxu0
        %2156 = vmatpush.bf16.msra.mxu0 %v1763
        %2157 = vmatpush.bf16.msra.mxu0 %v1759
        %2158 = vmatpush.bf16.msra.mxu0 %v1755
        %2159 = vmatpush.bf16.msra.mxu0 %v1751
        %2160 = vmatpush.bf16.msra.mxu0 %v1747
        %2161 = vmatpush.bf16.msra.mxu0 %v1743
        %2162 = vmatpush.bf16.msra.mxu0 %v1739
        %2163 = vmatpush.bf16.msra.mxu0 %v1735
        %2164 = vmatmul.bf16.gmra.mxu0 %v1206
        %v2165 = vpop.f32.mrf.mxu0
        %v2166 = vadd.f32 %v1343, %v2165
        %v2167 = vpop.f32.mrf.mxu0
        %v2168 = vadd.f32 %v1343, %v2167
        %2169 = vdwg.mxu0
        %2170 = vmatpush.bf16.msra.mxu0 %v1795
        %2171 = vmatpush.bf16.msra.mxu0 %v1791
        %2172 = vmatpush.bf16.msra.mxu0 %v1787
        %2173 = vmatpush.bf16.msra.mxu0 %v1783
        %2174 = vmatpush.bf16.msra.mxu0 %v1779
        %2175 = vmatpush.bf16.msra.mxu0 %v1775
        %2176 = vmatpush.bf16.msra.mxu0 %v1771
        %2177 = vmatpush.bf16.msra.mxu0 %v1767
        %2178 = vmatmul.bf16.gmra.mxu0 %v1207
        %v2179 = vpop.f32.mrf.mxu0
        %v2180 = vadd.f32 %v2166, %v2179
        %v2181 = vpop.f32.mrf.mxu0
        %v2182 = vadd.f32 %v2168, %v2181
        %2183 = vdwg.mxu0
        %2184 = vmatpush.bf16.msra.mxu0 %v1827
        %2185 = vmatpush.bf16.msra.mxu0 %v1823
        %2186 = vmatpush.bf16.msra.mxu0 %v1819
        %2187 = vmatpush.bf16.msra.mxu0 %v1815
        %2188 = vmatpush.bf16.msra.mxu0 %v1811
        %2189 = vmatpush.bf16.msra.mxu0 %v1807
        %2190 = vmatpush.bf16.msra.mxu0 %v1803
        %2191 = vmatpush.bf16.msra.mxu0 %v1799
        %2192 = vmatmul.bf16.gmra.mxu0 %v1208
        %v2193 = vpop.f32.mrf.mxu0
        %v2194 = vadd.f32 %v2180, %v2193
        %v2195 = vpop.f32.mrf.mxu0
        %v2196 = vadd.f32 %v2182, %v2195
        %2197 = vdwg.mxu0
        %2198 = vmatpush.bf16.msra.mxu0 %v1859
        %2199 = vmatpush.bf16.msra.mxu0 %v1855
        %2200 = vmatpush.bf16.msra.mxu0 %v1851
        %2201 = vmatpush.bf16.msra.mxu0 %v1847
        %2202 = vmatpush.bf16.msra.mxu0 %v1843
        %2203 = vmatpush.bf16.msra.mxu0 %v1839
        %2204 = vmatpush.bf16.msra.mxu0 %v1835
        %2205 = vmatpush.bf16.msra.mxu0 %v1831
        %2206 = vmatmul.bf16.gmra.mxu0 %v1209
        %v2207 = vpop.f32.mrf.mxu0
        %v2208 = vadd.f32 %v2194, %v2207
        %v2209 = vpop.f32.mrf.mxu0
        %v2210 = vadd.f32 %v2196, %v2209
        %2211 = vdwg.mxu0
        %v2212 = vmax.f32 %v2040, 0.0
        %v2213 = vmax.f32 %v2096, 0.0
        %v2214 = vmax.f32 %v2152, 0.0
        %v2215 = vmax.f32 %v2208, 0.0
        %v2216 = vmax.f32 %v2042, 0.0
        %v2217 = vmax.f32 %v2098, 0.0
        %v2218 = vmax.f32 %v2154, 0.0
        %v2219 = vmax.f32 %v2210, 0.0
        %v2220 = vpack.c.bf16 %v2216, %v2212
        %v2221 = vpack.c.bf16 %v2217, %v2213
        %v2222 = vpack.c.bf16 %v2218, %v2214
        %v2223 = vpack.c.bf16 %v2219, %v2215
        %s2224 = scalar_lea.vmem [#allocation9], 1024
        %v2225 = vld [vmem:[%s2224] sm:$0xff]
        %v2226 = vld [vmem:[%s2224 + $0x8] sm:$0xff]
        %v2227 = vld [vmem:[%s2224 + $0x10] sm:$0xff]
        %v2228 = vld [vmem:[%s2224 + $0x18] sm:$0xff]
        %v2229 = vld [vmem:[%s2224 + $0x20] sm:$0xff]
        %v2230 = vld [vmem:[%s2224 + $0x28] sm:$0xff]
        %v2231 = vld [vmem:[%s2224 + $0x30] sm:$0xff]
        %v2232 = vld [vmem:[%s2224 + $0x38] sm:$0xff]
        %v2233 = vld [vmem:[%s2224 + $0x40] sm:$0xff]
        %v2234 = vld [vmem:[%s2224 + $0x48] sm:$0xff]
        %v2235 = vld [vmem:[%s2224 + $0x50] sm:$0xff]
        %v2236 = vld [vmem:[%s2224 + $0x58] sm:$0xff]
        %v2237 = vld [vmem:[%s2224 + $0x60] sm:$0xff]
        %v2238 = vld [vmem:[%s2224 + $0x68] sm:$0xff]
        %v2239 = vld [vmem:[%s2224 + $0x70] sm:$0xff]
        %v2240 = vld [vmem:[%s2224 + $0x78] sm:$0xff]
        %v2241 = vld [vmem:[%s2224 + $0x80] sm:$0xff]
        %v2242 = vld [vmem:[%s2224 + $0x88] sm:$0xff]
        %v2243 = vld [vmem:[%s2224 + $0x90] sm:$0xff]
        %v2244 = vld [vmem:[%s2224 + $0x98] sm:$0xff]
        %v2245 = vld [vmem:[%s2224 + $0xa0] sm:$0xff]
        %v2246 = vld [vmem:[%s2224 + $0xa8] sm:$0xff]
        %v2247 = vld [vmem:[%s2224 + $0xb0] sm:$0xff]
        %v2248 = vld [vmem:[%s2224 + $0xb8] sm:$0xff]
        %v2249 = vld [vmem:[%s2224 + $0xc0] sm:$0xff]
        %v2250 = vld [vmem:[%s2224 + $0xc8] sm:$0xff]
        %v2251 = vld [vmem:[%s2224 + $0xd0] sm:$0xff]
        %v2252 = vld [vmem:[%s2224 + $0xd8] sm:$0xff]
        %v2253 = vld [vmem:[%s2224 + $0xe0] sm:$0xff]
        %v2254 = vld [vmem:[%s2224 + $0xe8] sm:$0xff]
        %v2255 = vld [vmem:[%s2224 + $0xf0] sm:$0xff]
        %v2256 = vld [vmem:[%s2224 + $0xf8] sm:$0xff]
        %v2257 = vld [vmem:[%s2224 + $0x100] sm:$0xff]
        %v2258 = vld [vmem:[%s2224 + $0x108] sm:$0xff]
        %v2259 = vld [vmem:[%s2224 + $0x110] sm:$0xff]
        %v2260 = vld [vmem:[%s2224 + $0x118] sm:$0xff]
        %v2261 = vld [vmem:[%s2224 + $0x120] sm:$0xff]
        %v2262 = vld [vmem:[%s2224 + $0x128] sm:$0xff]
        %v2263 = vld [vmem:[%s2224 + $0x130] sm:$0xff]
        %v2264 = vld [vmem:[%s2224 + $0x138] sm:$0xff]
        %v2265 = vld [vmem:[%s2224 + $0x140] sm:$0xff]
        %v2266 = vld [vmem:[%s2224 + $0x148] sm:$0xff]
        %v2267 = vld [vmem:[%s2224 + $0x150] sm:$0xff]
        %v2268 = vld [vmem:[%s2224 + $0x158] sm:$0xff]
        %v2269 = vld [vmem:[%s2224 + $0x160] sm:$0xff]
        %v2270 = vld [vmem:[%s2224 + $0x168] sm:$0xff]
        %v2271 = vld [vmem:[%s2224 + $0x170] sm:$0xff]
        %v2272 = vld [vmem:[%s2224 + $0x178] sm:$0xff]
        %v2273 = vld [vmem:[%s2224 + $0x180] sm:$0xff]
        %v2274 = vld [vmem:[%s2224 + $0x188] sm:$0xff]
        %v2275 = vld [vmem:[%s2224 + $0x190] sm:$0xff]
        %v2276 = vld [vmem:[%s2224 + $0x198] sm:$0xff]
        %v2277 = vld [vmem:[%s2224 + $0x1a0] sm:$0xff]
        %v2278 = vld [vmem:[%s2224 + $0x1a8] sm:$0xff]
        %v2279 = vld [vmem:[%s2224 + $0x1b0] sm:$0xff]
        %v2280 = vld [vmem:[%s2224 + $0x1b8] sm:$0xff]
        %v2281 = vld [vmem:[%s2224 + $0x1c0] sm:$0xff]
        %v2282 = vld [vmem:[%s2224 + $0x1c8] sm:$0xff]
        %v2283 = vld [vmem:[%s2224 + $0x1d0] sm:$0xff]
        %v2284 = vld [vmem:[%s2224 + $0x1d8] sm:$0xff]
        %v2285 = vld [vmem:[%s2224 + $0x1e0] sm:$0xff]
        %v2286 = vld [vmem:[%s2224 + $0x1e8] sm:$0xff]
        %v2287 = vld [vmem:[%s2224 + $0x1f0] sm:$0xff]
        %v2288 = vld [vmem:[%s2224 + $0x1f8] sm:$0xff]
        %v2289 = vld [vmem:[%s2224 + $0x200] sm:$0xff]
        %v2290 = vld [vmem:[%s2224 + $0x208] sm:$0xff]
        %v2291 = vld [vmem:[%s2224 + $0x210] sm:$0xff]
        %v2292 = vld [vmem:[%s2224 + $0x218] sm:$0xff]
        %v2293 = vld [vmem:[%s2224 + $0x220] sm:$0xff]
        %v2294 = vld [vmem:[%s2224 + $0x228] sm:$0xff]
        %v2295 = vld [vmem:[%s2224 + $0x230] sm:$0xff]
        %v2296 = vld [vmem:[%s2224 + $0x238] sm:$0xff]
        %v2297 = vld [vmem:[%s2224 + $0x240] sm:$0xff]
        %v2298 = vld [vmem:[%s2224 + $0x248] sm:$0xff]
        %v2299 = vld [vmem:[%s2224 + $0x250] sm:$0xff]
        %v2300 = vld [vmem:[%s2224 + $0x258] sm:$0xff]
        %v2301 = vld [vmem:[%s2224 + $0x260] sm:$0xff]
        %v2302 = vld [vmem:[%s2224 + $0x268] sm:$0xff]
        %v2303 = vld [vmem:[%s2224 + $0x270] sm:$0xff]
        %v2304 = vld [vmem:[%s2224 + $0x278] sm:$0xff]
        %v2305 = vld [vmem:[%s2224 + $0x280] sm:$0xff]
        %v2306 = vld [vmem:[%s2224 + $0x288] sm:$0xff]
        %v2307 = vld [vmem:[%s2224 + $0x290] sm:$0xff]
        %v2308 = vld [vmem:[%s2224 + $0x298] sm:$0xff]
        %v2309 = vld [vmem:[%s2224 + $0x2a0] sm:$0xff]
        %v2310 = vld [vmem:[%s2224 + $0x2a8] sm:$0xff]
        %v2311 = vld [vmem:[%s2224 + $0x2b0] sm:$0xff]
        %v2312 = vld [vmem:[%s2224 + $0x2b8] sm:$0xff]
        %v2313 = vld [vmem:[%s2224 + $0x2c0] sm:$0xff]
        %v2314 = vld [vmem:[%s2224 + $0x2c8] sm:$0xff]
        %v2315 = vld [vmem:[%s2224 + $0x2d0] sm:$0xff]
        %v2316 = vld [vmem:[%s2224 + $0x2d8] sm:$0xff]
        %v2317 = vld [vmem:[%s2224 + $0x2e0] sm:$0xff]
        %v2318 = vld [vmem:[%s2224 + $0x2e8] sm:$0xff]
        %v2319 = vld [vmem:[%s2224 + $0x2f0] sm:$0xff]
        %v2320 = vld [vmem:[%s2224 + $0x2f8] sm:$0xff]
        %v2321 = vld [vmem:[%s2224 + $0x300] sm:$0xff]
        %v2322 = vld [vmem:[%s2224 + $0x308] sm:$0xff]
        %v2323 = vld [vmem:[%s2224 + $0x310] sm:$0xff]
        %v2324 = vld [vmem:[%s2224 + $0x318] sm:$0xff]
        %v2325 = vld [vmem:[%s2224 + $0x320] sm:$0xff]
        %v2326 = vld [vmem:[%s2224 + $0x328] sm:$0xff]
        %v2327 = vld [vmem:[%s2224 + $0x330] sm:$0xff]
        %v2328 = vld [vmem:[%s2224 + $0x338] sm:$0xff]
        %v2329 = vld [vmem:[%s2224 + $0x340] sm:$0xff]
        %v2330 = vld [vmem:[%s2224 + $0x348] sm:$0xff]
        %v2331 = vld [vmem:[%s2224 + $0x350] sm:$0xff]
        %v2332 = vld [vmem:[%s2224 + $0x358] sm:$0xff]
        %v2333 = vld [vmem:[%s2224 + $0x360] sm:$0xff]
        %v2334 = vld [vmem:[%s2224 + $0x368] sm:$0xff]
        %v2335 = vld [vmem:[%s2224 + $0x370] sm:$0xff]
        %v2336 = vld [vmem:[%s2224 + $0x378] sm:$0xff]
        %v2337 = vld [vmem:[%s2224 + $0x380] sm:$0xff]
        %v2338 = vld [vmem:[%s2224 + $0x388] sm:$0xff]
        %v2339 = vld [vmem:[%s2224 + $0x390] sm:$0xff]
        %v2340 = vld [vmem:[%s2224 + $0x398] sm:$0xff]
        %v2341 = vld [vmem:[%s2224 + $0x3a0] sm:$0xff]
        %v2342 = vld [vmem:[%s2224 + $0x3a8] sm:$0xff]
        %v2343 = vld [vmem:[%s2224 + $0x3b0] sm:$0xff]
        %v2344 = vld [vmem:[%s2224 + $0x3b8] sm:$0xff]
        %v2345 = vld [vmem:[%s2224 + $0x3c0] sm:$0xff]
        %v2346 = vld [vmem:[%s2224 + $0x3c8] sm:$0xff]
        %v2347 = vld [vmem:[%s2224 + $0x3d0] sm:$0xff]
        %v2348 = vld [vmem:[%s2224 + $0x3d8] sm:$0xff]
        %v2349 = vld [vmem:[%s2224 + $0x3e0] sm:$0xff]
        %v2350 = vld [vmem:[%s2224 + $0x3e8] sm:$0xff]
        %v2351 = vld [vmem:[%s2224 + $0x3f0] sm:$0xff]
        %v2352 = vld [vmem:[%s2224 + $0x3f8] sm:$0xff]
        %s2353 = scalar_lea.vmem [#allocation10], 4
        %v2354 = vld [vmem:[%s2353] sm:$0xf]
        %v2356 = vperm.slane %v2354, 0
        %v2357 = vperm.slane %v2354, 1
        %v2358 = vperm.slane %v2354, 2
        %v2359 = vperm.slane %v2354, 3
        %v2492 = vunpack.c.l.b16 %v2225
        %v2493 = vunpack.c.h.b16 %v2225
        %v2494 = vunpack.c.l.b16 %v2226
        %v2495 = vunpack.c.h.b16 %v2226
        %v2496 = vunpack.c.l.b16 %v2227
        %v2497 = vunpack.c.h.b16 %v2227
        %v2498 = vunpack.c.l.b16 %v2228
        %v2499 = vunpack.c.h.b16 %v2228
        %v2500 = vunpack.c.l.b16 %v2229
        %v2501 = vunpack.c.h.b16 %v2229
        %v2502 = vunpack.c.l.b16 %v2230
        %v2503 = vunpack.c.h.b16 %v2230
        %v2504 = vunpack.c.l.b16 %v2231
        %v2505 = vunpack.c.h.b16 %v2231
        %v2506 = vunpack.c.l.b16 %v2232
        %v2507 = vunpack.c.h.b16 %v2232
        %v2508 = vunpack.c.l.b16 %v2233
        %v2509 = vunpack.c.h.b16 %v2233
        %v2510 = vunpack.c.l.b16 %v2234
        %v2511 = vunpack.c.h.b16 %v2234
        %v2512 = vunpack.c.l.b16 %v2235
        %v2513 = vunpack.c.h.b16 %v2235
        %v2514 = vunpack.c.l.b16 %v2236
        %v2515 = vunpack.c.h.b16 %v2236
        %v2516 = vunpack.c.l.b16 %v2237
        %v2517 = vunpack.c.h.b16 %v2237
        %v2518 = vunpack.c.l.b16 %v2238
        %v2519 = vunpack.c.h.b16 %v2238
        %v2520 = vunpack.c.l.b16 %v2239
        %v2521 = vunpack.c.h.b16 %v2239
        %v2522 = vunpack.c.l.b16 %v2240
        %v2523 = vunpack.c.h.b16 %v2240
        %v2524 = vunpack.c.l.b16 %v2241
        %v2525 = vunpack.c.h.b16 %v2241
        %v2526 = vunpack.c.l.b16 %v2242
        %v2527 = vunpack.c.h.b16 %v2242
        %v2528 = vunpack.c.l.b16 %v2243
        %v2529 = vunpack.c.h.b16 %v2243
        %v2530 = vunpack.c.l.b16 %v2244
        %v2531 = vunpack.c.h.b16 %v2244
        %v2532 = vunpack.c.l.b16 %v2245
        %v2533 = vunpack.c.h.b16 %v2245
        %v2534 = vunpack.c.l.b16 %v2246
        %v2535 = vunpack.c.h.b16 %v2246
        %v2536 = vunpack.c.l.b16 %v2247
        %v2537 = vunpack.c.h.b16 %v2247
        %v2538 = vunpack.c.l.b16 %v2248
        %v2539 = vunpack.c.h.b16 %v2248
        %v2540 = vunpack.c.l.b16 %v2249
        %v2541 = vunpack.c.h.b16 %v2249
        %v2542 = vunpack.c.l.b16 %v2250
        %v2543 = vunpack.c.h.b16 %v2250
        %v2544 = vunpack.c.l.b16 %v2251
        %v2545 = vunpack.c.h.b16 %v2251
        %v2546 = vunpack.c.l.b16 %v2252
        %v2547 = vunpack.c.h.b16 %v2252
        %v2548 = vunpack.c.l.b16 %v2253
        %v2549 = vunpack.c.h.b16 %v2253
        %v2550 = vunpack.c.l.b16 %v2254
        %v2551 = vunpack.c.h.b16 %v2254
        %v2552 = vunpack.c.l.b16 %v2255
        %v2553 = vunpack.c.h.b16 %v2255
        %v2554 = vunpack.c.l.b16 %v2256
        %v2555 = vunpack.c.h.b16 %v2256
        %v2556 = vunpack.c.l.b16 %v2257
        %v2557 = vunpack.c.h.b16 %v2257
        %v2558 = vunpack.c.l.b16 %v2258
        %v2559 = vunpack.c.h.b16 %v2258
        %v2560 = vunpack.c.l.b16 %v2259
        %v2561 = vunpack.c.h.b16 %v2259
        %v2562 = vunpack.c.l.b16 %v2260
        %v2563 = vunpack.c.h.b16 %v2260
        %v2564 = vunpack.c.l.b16 %v2261
        %v2565 = vunpack.c.h.b16 %v2261
        %v2566 = vunpack.c.l.b16 %v2262
        %v2567 = vunpack.c.h.b16 %v2262
        %v2568 = vunpack.c.l.b16 %v2263
        %v2569 = vunpack.c.h.b16 %v2263
        %v2570 = vunpack.c.l.b16 %v2264
        %v2571 = vunpack.c.h.b16 %v2264
        %v2572 = vunpack.c.l.b16 %v2265
        %v2573 = vunpack.c.h.b16 %v2265
        %v2574 = vunpack.c.l.b16 %v2266
        %v2575 = vunpack.c.h.b16 %v2266
        %v2576 = vunpack.c.l.b16 %v2267
        %v2577 = vunpack.c.h.b16 %v2267
        %v2578 = vunpack.c.l.b16 %v2268
        %v2579 = vunpack.c.h.b16 %v2268
        %v2580 = vunpack.c.l.b16 %v2269
        %v2581 = vunpack.c.h.b16 %v2269
        %v2582 = vunpack.c.l.b16 %v2270
        %v2583 = vunpack.c.h.b16 %v2270
        %v2584 = vunpack.c.l.b16 %v2271
        %v2585 = vunpack.c.h.b16 %v2271
        %v2586 = vunpack.c.l.b16 %v2272
        %v2587 = vunpack.c.h.b16 %v2272
        %v2588 = vunpack.c.l.b16 %v2273
        %v2589 = vunpack.c.h.b16 %v2273
        %v2590 = vunpack.c.l.b16 %v2274
        %v2591 = vunpack.c.h.b16 %v2274
        %v2592 = vunpack.c.l.b16 %v2275
        %v2593 = vunpack.c.h.b16 %v2275
        %v2594 = vunpack.c.l.b16 %v2276
        %v2595 = vunpack.c.h.b16 %v2276
        %v2596 = vunpack.c.l.b16 %v2277
        %v2597 = vunpack.c.h.b16 %v2277
        %v2598 = vunpack.c.l.b16 %v2278
        %v2599 = vunpack.c.h.b16 %v2278
        %v2600 = vunpack.c.l.b16 %v2279
        %v2601 = vunpack.c.h.b16 %v2279
        %v2602 = vunpack.c.l.b16 %v2280
        %v2603 = vunpack.c.h.b16 %v2280
        %v2604 = vunpack.c.l.b16 %v2281
        %v2605 = vunpack.c.h.b16 %v2281
        %v2606 = vunpack.c.l.b16 %v2282
        %v2607 = vunpack.c.h.b16 %v2282
        %v2608 = vunpack.c.l.b16 %v2283
        %v2609 = vunpack.c.h.b16 %v2283
        %v2610 = vunpack.c.l.b16 %v2284
        %v2611 = vunpack.c.h.b16 %v2284
        %v2612 = vunpack.c.l.b16 %v2285
        %v2613 = vunpack.c.h.b16 %v2285
        %v2614 = vunpack.c.l.b16 %v2286
        %v2615 = vunpack.c.h.b16 %v2286
        %v2616 = vunpack.c.l.b16 %v2287
        %v2617 = vunpack.c.h.b16 %v2287
        %v2618 = vunpack.c.l.b16 %v2288
        %v2619 = vunpack.c.h.b16 %v2288
        %v2620 = vunpack.c.l.b16 %v2289
        %v2621 = vunpack.c.h.b16 %v2289
        %v2622 = vunpack.c.l.b16 %v2290
        %v2623 = vunpack.c.h.b16 %v2290
        %v2624 = vunpack.c.l.b16 %v2291
        %v2625 = vunpack.c.h.b16 %v2291
        %v2626 = vunpack.c.l.b16 %v2292
        %v2627 = vunpack.c.h.b16 %v2292
        %v2628 = vunpack.c.l.b16 %v2293
        %v2629 = vunpack.c.h.b16 %v2293
        %v2630 = vunpack.c.l.b16 %v2294
        %v2631 = vunpack.c.h.b16 %v2294
        %v2632 = vunpack.c.l.b16 %v2295
        %v2633 = vunpack.c.h.b16 %v2295
        %v2634 = vunpack.c.l.b16 %v2296
        %v2635 = vunpack.c.h.b16 %v2296
        %v2636 = vunpack.c.l.b16 %v2297
        %v2637 = vunpack.c.h.b16 %v2297
        %v2638 = vunpack.c.l.b16 %v2298
        %v2639 = vunpack.c.h.b16 %v2298
        %v2640 = vunpack.c.l.b16 %v2299
        %v2641 = vunpack.c.h.b16 %v2299
        %v2642 = vunpack.c.l.b16 %v2300
        %v2643 = vunpack.c.h.b16 %v2300
        %v2644 = vunpack.c.l.b16 %v2301
        %v2645 = vunpack.c.h.b16 %v2301
        %v2646 = vunpack.c.l.b16 %v2302
        %v2647 = vunpack.c.h.b16 %v2302
        %v2648 = vunpack.c.l.b16 %v2303
        %v2649 = vunpack.c.h.b16 %v2303
        %v2650 = vunpack.c.l.b16 %v2304
        %v2651 = vunpack.c.h.b16 %v2304
        %v2652 = vunpack.c.l.b16 %v2305
        %v2653 = vunpack.c.h.b16 %v2305
        %v2654 = vunpack.c.l.b16 %v2306
        %v2655 = vunpack.c.h.b16 %v2306
        %v2656 = vunpack.c.l.b16 %v2307
        %v2657 = vunpack.c.h.b16 %v2307
        %v2658 = vunpack.c.l.b16 %v2308
        %v2659 = vunpack.c.h.b16 %v2308
        %v2660 = vunpack.c.l.b16 %v2309
        %v2661 = vunpack.c.h.b16 %v2309
        %v2662 = vunpack.c.l.b16 %v2310
        %v2663 = vunpack.c.h.b16 %v2310
        %v2664 = vunpack.c.l.b16 %v2311
        %v2665 = vunpack.c.h.b16 %v2311
        %v2666 = vunpack.c.l.b16 %v2312
        %v2667 = vunpack.c.h.b16 %v2312
        %v2668 = vunpack.c.l.b16 %v2313
        %v2669 = vunpack.c.h.b16 %v2313
        %v2670 = vunpack.c.l.b16 %v2314
        %v2671 = vunpack.c.h.b16 %v2314
        %v2672 = vunpack.c.l.b16 %v2315
        %v2673 = vunpack.c.h.b16 %v2315
        %v2674 = vunpack.c.l.b16 %v2316
        %v2675 = vunpack.c.h.b16 %v2316
        %v2676 = vunpack.c.l.b16 %v2317
        %v2677 = vunpack.c.h.b16 %v2317
        %v2678 = vunpack.c.l.b16 %v2318
        %v2679 = vunpack.c.h.b16 %v2318
        %v2680 = vunpack.c.l.b16 %v2319
        %v2681 = vunpack.c.h.b16 %v2319
        %v2682 = vunpack.c.l.b16 %v2320
        %v2683 = vunpack.c.h.b16 %v2320
        %v2684 = vunpack.c.l.b16 %v2321
        %v2685 = vunpack.c.h.b16 %v2321
        %v2686 = vunpack.c.l.b16 %v2322
        %v2687 = vunpack.c.h.b16 %v2322
        %v2688 = vunpack.c.l.b16 %v2323
        %v2689 = vunpack.c.h.b16 %v2323
        %v2690 = vunpack.c.l.b16 %v2324
        %v2691 = vunpack.c.h.b16 %v2324
        %v2692 = vunpack.c.l.b16 %v2325
        %v2693 = vunpack.c.h.b16 %v2325
        %v2694 = vunpack.c.l.b16 %v2326
        %v2695 = vunpack.c.h.b16 %v2326
        %v2696 = vunpack.c.l.b16 %v2327
        %v2697 = vunpack.c.h.b16 %v2327
        %v2698 = vunpack.c.l.b16 %v2328
        %v2699 = vunpack.c.h.b16 %v2328
        %v2700 = vunpack.c.l.b16 %v2329
        %v2701 = vunpack.c.h.b16 %v2329
        %v2702 = vunpack.c.l.b16 %v2330
        %v2703 = vunpack.c.h.b16 %v2330
        %v2704 = vunpack.c.l.b16 %v2331
        %v2705 = vunpack.c.h.b16 %v2331
        %v2706 = vunpack.c.l.b16 %v2332
        %v2707 = vunpack.c.h.b16 %v2332
        %v2708 = vunpack.c.l.b16 %v2333
        %v2709 = vunpack.c.h.b16 %v2333
        %v2710 = vunpack.c.l.b16 %v2334
        %v2711 = vunpack.c.h.b16 %v2334
        %v2712 = vunpack.c.l.b16 %v2335
        %v2713 = vunpack.c.h.b16 %v2335
        %v2714 = vunpack.c.l.b16 %v2336
        %v2715 = vunpack.c.h.b16 %v2336
        %v2716 = vunpack.c.l.b16 %v2337
        %v2717 = vunpack.c.h.b16 %v2337
        %v2718 = vunpack.c.l.b16 %v2338
        %v2719 = vunpack.c.h.b16 %v2338
        %v2720 = vunpack.c.l.b16 %v2339
        %v2721 = vunpack.c.h.b16 %v2339
        %v2722 = vunpack.c.l.b16 %v2340
        %v2723 = vunpack.c.h.b16 %v2340
        %v2724 = vunpack.c.l.b16 %v2341
        %v2725 = vunpack.c.h.b16 %v2341
        %v2726 = vunpack.c.l.b16 %v2342
        %v2727 = vunpack.c.h.b16 %v2342
        %v2728 = vunpack.c.l.b16 %v2343
        %v2729 = vunpack.c.h.b16 %v2343
        %v2730 = vunpack.c.l.b16 %v2344
        %v2731 = vunpack.c.h.b16 %v2344
        %v2732 = vunpack.c.l.b16 %v2345
        %v2733 = vunpack.c.h.b16 %v2345
        %v2734 = vunpack.c.l.b16 %v2346
        %v2735 = vunpack.c.h.b16 %v2346
        %v2736 = vunpack.c.l.b16 %v2347
        %v2737 = vunpack.c.h.b16 %v2347
        %v2738 = vunpack.c.l.b16 %v2348
        %v2739 = vunpack.c.h.b16 %v2348
        %v2740 = vunpack.c.l.b16 %v2349
        %v2741 = vunpack.c.h.b16 %v2349
        %v2742 = vunpack.c.l.b16 %v2350
        %v2743 = vunpack.c.h.b16 %v2350
        %v2744 = vunpack.c.l.b16 %v2351
        %v2745 = vunpack.c.h.b16 %v2351
        %v2746 = vunpack.c.l.b16 %v2352
        %v2747 = vunpack.c.h.b16 %v2352
        %v2748 = vpack.c.b16 %v2496, %v2492
        %v2749 = vpack.c.b16 %v2497, %v2493
        %v2750 = vpack.c.b16 %v2498, %v2494
        %v2751 = vpack.c.b16 %v2499, %v2495
        %v2752 = vpack.c.b16 %v2504, %v2500
        %v2753 = vpack.c.b16 %v2505, %v2501
        %v2754 = vpack.c.b16 %v2506, %v2502
        %v2755 = vpack.c.b16 %v2507, %v2503
        %v2756 = vpack.c.b16 %v2512, %v2508
        %v2757 = vpack.c.b16 %v2513, %v2509
        %v2758 = vpack.c.b16 %v2514, %v2510
        %v2759 = vpack.c.b16 %v2515, %v2511
        %v2760 = vpack.c.b16 %v2520, %v2516
        %v2761 = vpack.c.b16 %v2521, %v2517
        %v2762 = vpack.c.b16 %v2522, %v2518
        %v2763 = vpack.c.b16 %v2523, %v2519
        %v2764 = vpack.c.b16 %v2528, %v2524
        %v2765 = vpack.c.b16 %v2529, %v2525
        %v2766 = vpack.c.b16 %v2530, %v2526
        %v2767 = vpack.c.b16 %v2531, %v2527
        %v2768 = vpack.c.b16 %v2536, %v2532
        %v2769 = vpack.c.b16 %v2537, %v2533
        %v2770 = vpack.c.b16 %v2538, %v2534
        %v2771 = vpack.c.b16 %v2539, %v2535
        %v2772 = vpack.c.b16 %v2544, %v2540
        %v2773 = vpack.c.b16 %v2545, %v2541
        %v2774 = vpack.c.b16 %v2546, %v2542
        %v2775 = vpack.c.b16 %v2547, %v2543
        %v2776 = vpack.c.b16 %v2552, %v2548
        %v2777 = vpack.c.b16 %v2553, %v2549
        %v2778 = vpack.c.b16 %v2554, %v2550
        %v2779 = vpack.c.b16 %v2555, %v2551
        %v2780 = vpack.c.b16 %v2560, %v2556
        %v2781 = vpack.c.b16 %v2561, %v2557
        %v2782 = vpack.c.b16 %v2562, %v2558
        %v2783 = vpack.c.b16 %v2563, %v2559
        %v2784 = vpack.c.b16 %v2568, %v2564
        %v2785 = vpack.c.b16 %v2569, %v2565
        %v2786 = vpack.c.b16 %v2570, %v2566
        %v2787 = vpack.c.b16 %v2571, %v2567
        %v2788 = vpack.c.b16 %v2576, %v2572
        %v2789 = vpack.c.b16 %v2577, %v2573
        %v2790 = vpack.c.b16 %v2578, %v2574
        %v2791 = vpack.c.b16 %v2579, %v2575
        %v2792 = vpack.c.b16 %v2584, %v2580
        %v2793 = vpack.c.b16 %v2585, %v2581
        %v2794 = vpack.c.b16 %v2586, %v2582
        %v2795 = vpack.c.b16 %v2587, %v2583
        %v2796 = vpack.c.b16 %v2592, %v2588
        %v2797 = vpack.c.b16 %v2593, %v2589
        %v2798 = vpack.c.b16 %v2594, %v2590
        %v2799 = vpack.c.b16 %v2595, %v2591
        %v2800 = vpack.c.b16 %v2600, %v2596
        %v2801 = vpack.c.b16 %v2601, %v2597
        %v2802 = vpack.c.b16 %v2602, %v2598
        %v2803 = vpack.c.b16 %v2603, %v2599
        %v2804 = vpack.c.b16 %v2608, %v2604
        %v2805 = vpack.c.b16 %v2609, %v2605
        %v2806 = vpack.c.b16 %v2610, %v2606
        %v2807 = vpack.c.b16 %v2611, %v2607
        %v2808 = vpack.c.b16 %v2616, %v2612
        %v2809 = vpack.c.b16 %v2617, %v2613
        %v2810 = vpack.c.b16 %v2618, %v2614
        %v2811 = vpack.c.b16 %v2619, %v2615
        %v2812 = vpack.c.b16 %v2624, %v2620
        %v2813 = vpack.c.b16 %v2625, %v2621
        %v2814 = vpack.c.b16 %v2626, %v2622
        %v2815 = vpack.c.b16 %v2627, %v2623
        %v2816 = vpack.c.b16 %v2632, %v2628
        %v2817 = vpack.c.b16 %v2633, %v2629
        %v2818 = vpack.c.b16 %v2634, %v2630
        %v2819 = vpack.c.b16 %v2635, %v2631
        %v2820 = vpack.c.b16 %v2640, %v2636
        %v2821 = vpack.c.b16 %v2641, %v2637
        %v2822 = vpack.c.b16 %v2642, %v2638
        %v2823 = vpack.c.b16 %v2643, %v2639
        %v2824 = vpack.c.b16 %v2648, %v2644
        %v2825 = vpack.c.b16 %v2649, %v2645
        %v2826 = vpack.c.b16 %v2650, %v2646
        %v2827 = vpack.c.b16 %v2651, %v2647
        %v2828 = vpack.c.b16 %v2656, %v2652
        %v2829 = vpack.c.b16 %v2657, %v2653
        %v2830 = vpack.c.b16 %v2658, %v2654
        %v2831 = vpack.c.b16 %v2659, %v2655
        %v2832 = vpack.c.b16 %v2664, %v2660
        %v2833 = vpack.c.b16 %v2665, %v2661
        %v2834 = vpack.c.b16 %v2666, %v2662
        %v2835 = vpack.c.b16 %v2667, %v2663
        %v2836 = vpack.c.b16 %v2672, %v2668
        %v2837 = vpack.c.b16 %v2673, %v2669
        %v2838 = vpack.c.b16 %v2674, %v2670
        %v2839 = vpack.c.b16 %v2675, %v2671
        %v2840 = vpack.c.b16 %v2680, %v2676
        %v2841 = vpack.c.b16 %v2681, %v2677
        %v2842 = vpack.c.b16 %v2682, %v2678
        %v2843 = vpack.c.b16 %v2683, %v2679
        %v2844 = vpack.c.b16 %v2688, %v2684
        %v2845 = vpack.c.b16 %v2689, %v2685
        %v2846 = vpack.c.b16 %v2690, %v2686
        %v2847 = vpack.c.b16 %v2691, %v2687
        %v2848 = vpack.c.b16 %v2696, %v2692
        %v2849 = vpack.c.b16 %v2697, %v2693
        %v2850 = vpack.c.b16 %v2698, %v2694
        %v2851 = vpack.c.b16 %v2699, %v2695
        %v2852 = vpack.c.b16 %v2704, %v2700
        %v2853 = vpack.c.b16 %v2705, %v2701
        %v2854 = vpack.c.b16 %v2706, %v2702
        %v2855 = vpack.c.b16 %v2707, %v2703
        %v2856 = vpack.c.b16 %v2712, %v2708
        %v2857 = vpack.c.b16 %v2713, %v2709
        %v2858 = vpack.c.b16 %v2714, %v2710
        %v2859 = vpack.c.b16 %v2715, %v2711
        %v2860 = vpack.c.b16 %v2720, %v2716
        %v2861 = vpack.c.b16 %v2721, %v2717
        %v2862 = vpack.c.b16 %v2722, %v2718
        %v2863 = vpack.c.b16 %v2723, %v2719
        %v2864 = vpack.c.b16 %v2728, %v2724
        %v2865 = vpack.c.b16 %v2729, %v2725
        %v2866 = vpack.c.b16 %v2730, %v2726
        %v2867 = vpack.c.b16 %v2731, %v2727
        %v2868 = vpack.c.b16 %v2736, %v2732
        %v2869 = vpack.c.b16 %v2737, %v2733
        %v2870 = vpack.c.b16 %v2738, %v2734
        %v2871 = vpack.c.b16 %v2739, %v2735
        %v2872 = vpack.c.b16 %v2744, %v2740
        %v2873 = vpack.c.b16 %v2745, %v2741
        %v2874 = vpack.c.b16 %v2746, %v2742
        %v2875 = vpack.c.b16 %v2747, %v2743
        %3004 = vmatpush.bf16.msra.mxu0 %v2776
        %3005 = vmatpush.bf16.msra.mxu0 %v2772
        %3006 = vmatpush.bf16.msra.mxu0 %v2768
        %3007 = vmatpush.bf16.msra.mxu0 %v2764
        %3008 = vmatpush.bf16.msra.mxu0 %v2760
        %3009 = vmatpush.bf16.msra.mxu0 %v2756
        %3010 = vmatpush.bf16.msra.mxu0 %v2752
        %3011 = vmatpush.bf16.msra.mxu0 %v2748
        %3012 = vmatmul.bf16.gmra.mxu0 %v2220
        %v3013 = vpop.f32.mrf.mxu0
        %v3014 = vadd.f32 %v2356, %v3013
        %v3015 = vpop.f32.mrf.mxu0
        %v3016 = vadd.f32 %v2356, %v3015
        %3017 = vdwg.mxu0
        %3018 = vmatpush.bf16.msra.mxu0 %v2808
        %3019 = vmatpush.bf16.msra.mxu0 %v2804
        %3020 = vmatpush.bf16.msra.mxu0 %v2800
        %3021 = vmatpush.bf16.msra.mxu0 %v2796
        %3022 = vmatpush.bf16.msra.mxu0 %v2792
        %3023 = vmatpush.bf16.msra.mxu0 %v2788
        %3024 = vmatpush.bf16.msra.mxu0 %v2784
        %3025 = vmatpush.bf16.msra.mxu0 %v2780
        %3026 = vmatmul.bf16.gmra.mxu0 %v2221
        %v3027 = vpop.f32.mrf.mxu0
        %v3028 = vadd.f32 %v3014, %v3027
        %v3029 = vpop.f32.mrf.mxu0
        %v3030 = vadd.f32 %v3016, %v3029
        %3031 = vdwg.mxu0
        %3032 = vmatpush.bf16.msra.mxu0 %v2840
        %3033 = vmatpush.bf16.msra.mxu0 %v2836
        %3034 = vmatpush.bf16.msra.mxu0 %v2832
        %3035 = vmatpush.bf16.msra.mxu0 %v2828
        %3036 = vmatpush.bf16.msra.mxu0 %v2824
        %3037 = vmatpush.bf16.msra.mxu0 %v2820
        %3038 = vmatpush.bf16.msra.mxu0 %v2816
        %3039 = vmatpush.bf16.msra.mxu0 %v2812
        %3040 = vmatmul.bf16.gmra.mxu0 %v2222
        %v3041 = vpop.f32.mrf.mxu0
        %v3042 = vadd.f32 %v3028, %v3041
        %v3043 = vpop.f32.mrf.mxu0
        %v3044 = vadd.f32 %v3030, %v3043
        %3045 = vdwg.mxu0
        %3046 = vmatpush.bf16.msra.mxu0 %v2872
        %3047 = vmatpush.bf16.msra.mxu0 %v2868
        %3048 = vmatpush.bf16.msra.mxu0 %v2864
        %3049 = vmatpush.bf16.msra.mxu0 %v2860
        %3050 = vmatpush.bf16.msra.mxu0 %v2856
        %3051 = vmatpush.bf16.msra.mxu0 %v2852
        %3052 = vmatpush.bf16.msra.mxu0 %v2848
        %3053 = vmatpush.bf16.msra.mxu0 %v2844
        %3054 = vmatmul.bf16.gmra.mxu0 %v2223
        %v3055 = vpop.f32.mrf.mxu0
        %v3056 = vadd.f32 %v3042, %v3055
        %v3057 = vpop.f32.mrf.mxu0
        %v3058 = vadd.f32 %v3044, %v3057
        %3059 = vdwg.mxu0
        %3060 = vmatpush.bf16.msra.mxu0 %v2777
        %3061 = vmatpush.bf16.msra.mxu0 %v2773
        %3062 = vmatpush.bf16.msra.mxu0 %v2769
        %3063 = vmatpush.bf16.msra.mxu0 %v2765
        %3064 = vmatpush.bf16.msra.mxu0 %v2761
        %3065 = vmatpush.bf16.msra.mxu0 %v2757
        %3066 = vmatpush.bf16.msra.mxu0 %v2753
        %3067 = vmatpush.bf16.msra.mxu0 %v2749
        %3068 = vmatmul.bf16.gmra.mxu0 %v2220
        %v3069 = vpop.f32.mrf.mxu0
        %v3070 = vadd.f32 %v2357, %v3069
        %v3071 = vpop.f32.mrf.mxu0
        %v3072 = vadd.f32 %v2357, %v3071
        %3073 = vdwg.mxu0
        %3074 = vmatpush.bf16.msra.mxu0 %v2809
        %3075 = vmatpush.bf16.msra.mxu0 %v2805
        %3076 = vmatpush.bf16.msra.mxu0 %v2801
        %3077 = vmatpush.bf16.msra.mxu0 %v2797
        %3078 = vmatpush.bf16.msra.mxu0 %v2793
        %3079 = vmatpush.bf16.msra.mxu0 %v2789
        %3080 = vmatpush.bf16.msra.mxu0 %v2785
        %3081 = vmatpush.bf16.msra.mxu0 %v2781
        %3082 = vmatmul.bf16.gmra.mxu0 %v2221
        %v3083 = vpop.f32.mrf.mxu0
        %v3084 = vadd.f32 %v3070, %v3083
        %v3085 = vpop.f32.mrf.mxu0
        %v3086 = vadd.f32 %v3072, %v3085
        %3087 = vdwg.mxu0
        %3088 = vmatpush.bf16.msra.mxu0 %v2841
        %3089 = vmatpush.bf16.msra.mxu0 %v2837
        %3090 = vmatpush.bf16.msra.mxu0 %v2833
        %3091 = vmatpush.bf16.msra.mxu0 %v2829
        %3092 = vmatpush.bf16.msra.mxu0 %v2825
        %3093 = vmatpush.bf16.msra.mxu0 %v2821
        %3094 = vmatpush.bf16.msra.mxu0 %v2817
        %3095 = vmatpush.bf16.msra.mxu0 %v2813
        %3096 = vmatmul.bf16.gmra.mxu0 %v2222
        %v3097 = vpop.f32.mrf.mxu0
        %v3098 = vadd.f32 %v3084, %v3097
        %v3099 = vpop.f32.mrf.mxu0
        %v3100 = vadd.f32 %v3086, %v3099
        %3101 = vdwg.mxu0
        %3102 = vmatpush.bf16.msra.mxu0 %v2873
        %3103 = vmatpush.bf16.msra.mxu0 %v2869
        %3104 = vmatpush.bf16.msra.mxu0 %v2865
        %3105 = vmatpush.bf16.msra.mxu0 %v2861
        %3106 = vmatpush.bf16.msra.mxu0 %v2857
        %3107 = vmatpush.bf16.msra.mxu0 %v2853
        %3108 = vmatpush.bf16.msra.mxu0 %v2849
        %3109 = vmatpush.bf16.msra.mxu0 %v2845
        %3110 = vmatmul.bf16.gmra.mxu0 %v2223
        %v3111 = vpop.f32.mrf.mxu0
        %v3112 = vadd.f32 %v3098, %v3111
        %v3113 = vpop.f32.mrf.mxu0
        %v3114 = vadd.f32 %v3100, %v3113
        %3115 = vdwg.mxu0
        %3116 = vmatpush.bf16.msra.mxu0 %v2778
        %3117 = vmatpush.bf16.msra.mxu0 %v2774
        %3118 = vmatpush.bf16.msra.mxu0 %v2770
        %3119 = vmatpush.bf16.msra.mxu0 %v2766
        %3120 = vmatpush.bf16.msra.mxu0 %v2762
        %3121 = vmatpush.bf16.msra.mxu0 %v2758
        %3122 = vmatpush.bf16.msra.mxu0 %v2754
        %3123 = vmatpush.bf16.msra.mxu0 %v2750
        %3124 = vmatmul.bf16.gmra.mxu0 %v2220
        %v3125 = vpop.f32.mrf.mxu0
        %v3126 = vadd.f32 %v2358, %v3125
        %v3127 = vpop.f32.mrf.mxu0
        %v3128 = vadd.f32 %v2358, %v3127
        %3129 = vdwg.mxu0
        %3130 = vmatpush.bf16.msra.mxu0 %v2810
        %3131 = vmatpush.bf16.msra.mxu0 %v2806
        %3132 = vmatpush.bf16.msra.mxu0 %v2802
        %3133 = vmatpush.bf16.msra.mxu0 %v2798
        %3134 = vmatpush.bf16.msra.mxu0 %v2794
        %3135 = vmatpush.bf16.msra.mxu0 %v2790
        %3136 = vmatpush.bf16.msra.mxu0 %v2786
        %3137 = vmatpush.bf16.msra.mxu0 %v2782
        %3138 = vmatmul.bf16.gmra.mxu0 %v2221
        %v3139 = vpop.f32.mrf.mxu0
        %v3140 = vadd.f32 %v3126, %v3139
        %v3141 = vpop.f32.mrf.mxu0
        %v3142 = vadd.f32 %v3128, %v3141
        %3143 = vdwg.mxu0
        %3144 = vmatpush.bf16.msra.mxu0 %v2842
        %3145 = vmatpush.bf16.msra.mxu0 %v2838
        %3146 = vmatpush.bf16.msra.mxu0 %v2834
        %3147 = vmatpush.bf16.msra.mxu0 %v2830
        %3148 = vmatpush.bf16.msra.mxu0 %v2826
        %3149 = vmatpush.bf16.msra.mxu0 %v2822
        %3150 = vmatpush.bf16.msra.mxu0 %v2818
        %3151 = vmatpush.bf16.msra.mxu0 %v2814
        %3152 = vmatmul.bf16.gmra.mxu0 %v2222
        %v3153 = vpop.f32.mrf.mxu0
        %v3154 = vadd.f32 %v3140, %v3153
        %v3155 = vpop.f32.mrf.mxu0
        %v3156 = vadd.f32 %v3142, %v3155
        %3157 = vdwg.mxu0
        %3158 = vmatpush.bf16.msra.mxu0 %v2874
        %3159 = vmatpush.bf16.msra.mxu0 %v2870
        %3160 = vmatpush.bf16.msra.mxu0 %v2866
        %3161 = vmatpush.bf16.msra.mxu0 %v2862
        %3162 = vmatpush.bf16.msra.mxu0 %v2858
        %3163 = vmatpush.bf16.msra.mxu0 %v2854
        %3164 = vmatpush.bf16.msra.mxu0 %v2850
        %3165 = vmatpush.bf16.msra.mxu0 %v2846
        %3166 = vmatmul.bf16.gmra.mxu0 %v2223
        %v3167 = vpop.f32.mrf.mxu0
        %v3168 = vadd.f32 %v3154, %v3167
        %v3169 = vpop.f32.mrf.mxu0
        %v3170 = vadd.f32 %v3156, %v3169
        %3171 = vdwg.mxu0
        %3172 = vmatpush.bf16.msra.mxu0 %v2779
        %3173 = vmatpush.bf16.msra.mxu0 %v2775
        %3174 = vmatpush.bf16.msra.mxu0 %v2771
        %3175 = vmatpush.bf16.msra.mxu0 %v2767
        %3176 = vmatpush.bf16.msra.mxu0 %v2763
        %3177 = vmatpush.bf16.msra.mxu0 %v2759
        %3178 = vmatpush.bf16.msra.mxu0 %v2755
        %3179 = vmatpush.bf16.msra.mxu0 %v2751
        %3180 = vmatmul.bf16.gmra.mxu0 %v2220
        %v3181 = vpop.f32.mrf.mxu0
        %v3182 = vadd.f32 %v2359, %v3181
        %v3183 = vpop.f32.mrf.mxu0
        %v3184 = vadd.f32 %v2359, %v3183
        %3185 = vdwg.mxu0
        %3186 = vmatpush.bf16.msra.mxu0 %v2811
        %3187 = vmatpush.bf16.msra.mxu0 %v2807
        %3188 = vmatpush.bf16.msra.mxu0 %v2803
        %3189 = vmatpush.bf16.msra.mxu0 %v2799
        %3190 = vmatpush.bf16.msra.mxu0 %v2795
        %3191 = vmatpush.bf16.msra.mxu0 %v2791
        %3192 = vmatpush.bf16.msra.mxu0 %v2787
        %3193 = vmatpush.bf16.msra.mxu0 %v2783
        %3194 = vmatmul.bf16.gmra.mxu0 %v2221
        %v3195 = vpop.f32.mrf.mxu0
        %v3196 = vadd.f32 %v3182, %v3195
        %v3197 = vpop.f32.mrf.mxu0
        %v3198 = vadd.f32 %v3184, %v3197
        %3199 = vdwg.mxu0
        %3200 = vmatpush.bf16.msra.mxu0 %v2843
        %3201 = vmatpush.bf16.msra.mxu0 %v2839
        %3202 = vmatpush.bf16.msra.mxu0 %v2835
        %3203 = vmatpush.bf16.msra.mxu0 %v2831
        %3204 = vmatpush.bf16.msra.mxu0 %v2827
        %3205 = vmatpush.bf16.msra.mxu0 %v2823
        %3206 = vmatpush.bf16.msra.mxu0 %v2819
        %3207 = vmatpush.bf16.msra.mxu0 %v2815
        %3208 = vmatmul.bf16.gmra.mxu0 %v2222
        %v3209 = vpop.f32.mrf.mxu0
        %v3210 = vadd.f32 %v3196, %v3209
        %v3211 = vpop.f32.mrf.mxu0
        %v3212 = vadd.f32 %v3198, %v3211
        %3213 = vdwg.mxu0
        %3214 = vmatpush.bf16.msra.mxu0 %v2875
        %3215 = vmatpush.bf16.msra.mxu0 %v2871
        %3216 = vmatpush.bf16.msra.mxu0 %v2867
        %3217 = vmatpush.bf16.msra.mxu0 %v2863
        %3218 = vmatpush.bf16.msra.mxu0 %v2859
        %3219 = vmatpush.bf16.msra.mxu0 %v2855
        %3220 = vmatpush.bf16.msra.mxu0 %v2851
        %3221 = vmatpush.bf16.msra.mxu0 %v2847
        %3222 = vmatmul.bf16.gmra.mxu0 %v2223
        %v3223 = vpop.f32.mrf.mxu0
        %v3224 = vadd.f32 %v3210, %v3223
        %v3225 = vpop.f32.mrf.mxu0
        %v3226 = vadd.f32 %v3212, %v3225
        %3227 = vdwg.mxu0
        %v3228 = vmax.f32 %v3056, 0.0
        %v3229 = vmax.f32 %v3112, 0.0
        %v3230 = vmax.f32 %v3168, 0.0
        %v3231 = vmax.f32 %v3224, 0.0
        %v3232 = vmax.f32 %v3058, 0.0
        %v3233 = vmax.f32 %v3114, 0.0
        %v3234 = vmax.f32 %v3170, 0.0
        %v3235 = vmax.f32 %v3226, 0.0
        %v3236 = vpack.c.bf16 %v3232, %v3228
        %v3237 = vpack.c.bf16 %v3233, %v3229
        %v3238 = vpack.c.bf16 %v3234, %v3230
        %v3239 = vpack.c.bf16 %v3235, %v3231
        %s3240 = scalar_lea.vmem [#allocation9], 2048
        %v3241 = vld [vmem:[%s3240] sm:$0xff]
        %v3242 = vld [vmem:[%s3240 + $0x8] sm:$0xff]
        %v3243 = vld [vmem:[%s3240 + $0x10] sm:$0xff]
        %v3244 = vld [vmem:[%s3240 + $0x18] sm:$0xff]
        %v3245 = vld [vmem:[%s3240 + $0x20] sm:$0xff]
        %v3246 = vld [vmem:[%s3240 + $0x28] sm:$0xff]
        %v3247 = vld [vmem:[%s3240 + $0x30] sm:$0xff]
        %v3248 = vld [vmem:[%s3240 + $0x38] sm:$0xff]
        %v3249 = vld [vmem:[%s3240 + $0x40] sm:$0xff]
        %v3250 = vld [vmem:[%s3240 + $0x48] sm:$0xff]
        %v3251 = vld [vmem:[%s3240 + $0x50] sm:$0xff]
        %v3252 = vld [vmem:[%s3240 + $0x58] sm:$0xff]
        %v3253 = vld [vmem:[%s3240 + $0x60] sm:$0xff]
        %v3254 = vld [vmem:[%s3240 + $0x68] sm:$0xff]
        %v3255 = vld [vmem:[%s3240 + $0x70] sm:$0xff]
        %v3256 = vld [vmem:[%s3240 + $0x78] sm:$0xff]
        %v3257 = vld [vmem:[%s3240 + $0x80] sm:$0xff]
        %v3258 = vld [vmem:[%s3240 + $0x88] sm:$0xff]
        %v3259 = vld [vmem:[%s3240 + $0x90] sm:$0xff]
        %v3260 = vld [vmem:[%s3240 + $0x98] sm:$0xff]
        %v3261 = vld [vmem:[%s3240 + $0xa0] sm:$0xff]
        %v3262 = vld [vmem:[%s3240 + $0xa8] sm:$0xff]
        %v3263 = vld [vmem:[%s3240 + $0xb0] sm:$0xff]
        %v3264 = vld [vmem:[%s3240 + $0xb8] sm:$0xff]
        %v3265 = vld [vmem:[%s3240 + $0xc0] sm:$0xff]
        %v3266 = vld [vmem:[%s3240 + $0xc8] sm:$0xff]
        %v3267 = vld [vmem:[%s3240 + $0xd0] sm:$0xff]
        %v3268 = vld [vmem:[%s3240 + $0xd8] sm:$0xff]
        %v3269 = vld [vmem:[%s3240 + $0xe0] sm:$0xff]
        %v3270 = vld [vmem:[%s3240 + $0xe8] sm:$0xff]
        %v3271 = vld [vmem:[%s3240 + $0xf0] sm:$0xff]
        %v3272 = vld [vmem:[%s3240 + $0xf8] sm:$0xff]
        %v3273 = vld [vmem:[%s3240 + $0x100] sm:$0xff]
        %v3274 = vld [vmem:[%s3240 + $0x108] sm:$0xff]
        %v3275 = vld [vmem:[%s3240 + $0x110] sm:$0xff]
        %v3276 = vld [vmem:[%s3240 + $0x118] sm:$0xff]
        %v3277 = vld [vmem:[%s3240 + $0x120] sm:$0xff]
        %v3278 = vld [vmem:[%s3240 + $0x128] sm:$0xff]
        %v3279 = vld [vmem:[%s3240 + $0x130] sm:$0xff]
        %v3280 = vld [vmem:[%s3240 + $0x138] sm:$0xff]
        %v3281 = vld [vmem:[%s3240 + $0x140] sm:$0xff]
        %v3282 = vld [vmem:[%s3240 + $0x148] sm:$0xff]
        %v3283 = vld [vmem:[%s3240 + $0x150] sm:$0xff]
        %v3284 = vld [vmem:[%s3240 + $0x158] sm:$0xff]
        %v3285 = vld [vmem:[%s3240 + $0x160] sm:$0xff]
        %v3286 = vld [vmem:[%s3240 + $0x168] sm:$0xff]
        %v3287 = vld [vmem:[%s3240 + $0x170] sm:$0xff]
        %v3288 = vld [vmem:[%s3240 + $0x178] sm:$0xff]
        %v3289 = vld [vmem:[%s3240 + $0x180] sm:$0xff]
        %v3290 = vld [vmem:[%s3240 + $0x188] sm:$0xff]
        %v3291 = vld [vmem:[%s3240 + $0x190] sm:$0xff]
        %v3292 = vld [vmem:[%s3240 + $0x198] sm:$0xff]
        %v3293 = vld [vmem:[%s3240 + $0x1a0] sm:$0xff]
        %v3294 = vld [vmem:[%s3240 + $0x1a8] sm:$0xff]
        %v3295 = vld [vmem:[%s3240 + $0x1b0] sm:$0xff]
        %v3296 = vld [vmem:[%s3240 + $0x1b8] sm:$0xff]
        %v3297 = vld [vmem:[%s3240 + $0x1c0] sm:$0xff]
        %v3298 = vld [vmem:[%s3240 + $0x1c8] sm:$0xff]
        %v3299 = vld [vmem:[%s3240 + $0x1d0] sm:$0xff]
        %v3300 = vld [vmem:[%s3240 + $0x1d8] sm:$0xff]
        %v3301 = vld [vmem:[%s3240 + $0x1e0] sm:$0xff]
        %v3302 = vld [vmem:[%s3240 + $0x1e8] sm:$0xff]
        %v3303 = vld [vmem:[%s3240 + $0x1f0] sm:$0xff]
        %v3304 = vld [vmem:[%s3240 + $0x1f8] sm:$0xff]
        %v3305 = vld [vmem:[%s3240 + $0x200] sm:$0xff]
        %v3306 = vld [vmem:[%s3240 + $0x208] sm:$0xff]
        %v3307 = vld [vmem:[%s3240 + $0x210] sm:$0xff]
        %v3308 = vld [vmem:[%s3240 + $0x218] sm:$0xff]
        %v3309 = vld [vmem:[%s3240 + $0x220] sm:$0xff]
        %v3310 = vld [vmem:[%s3240 + $0x228] sm:$0xff]
        %v3311 = vld [vmem:[%s3240 + $0x230] sm:$0xff]
        %v3312 = vld [vmem:[%s3240 + $0x238] sm:$0xff]
        %v3313 = vld [vmem:[%s3240 + $0x240] sm:$0xff]
        %v3314 = vld [vmem:[%s3240 + $0x248] sm:$0xff]
        %v3315 = vld [vmem:[%s3240 + $0x250] sm:$0xff]
        %v3316 = vld [vmem:[%s3240 + $0x258] sm:$0xff]
        %v3317 = vld [vmem:[%s3240 + $0x260] sm:$0xff]
        %v3318 = vld [vmem:[%s3240 + $0x268] sm:$0xff]
        %v3319 = vld [vmem:[%s3240 + $0x270] sm:$0xff]
        %v3320 = vld [vmem:[%s3240 + $0x278] sm:$0xff]
        %v3321 = vld [vmem:[%s3240 + $0x280] sm:$0xff]
        %v3322 = vld [vmem:[%s3240 + $0x288] sm:$0xff]
        %v3323 = vld [vmem:[%s3240 + $0x290] sm:$0xff]
        %v3324 = vld [vmem:[%s3240 + $0x298] sm:$0xff]
        %v3325 = vld [vmem:[%s3240 + $0x2a0] sm:$0xff]
        %v3326 = vld [vmem:[%s3240 + $0x2a8] sm:$0xff]
        %v3327 = vld [vmem:[%s3240 + $0x2b0] sm:$0xff]
        %v3328 = vld [vmem:[%s3240 + $0x2b8] sm:$0xff]
        %v3329 = vld [vmem:[%s3240 + $0x2c0] sm:$0xff]
        %v3330 = vld [vmem:[%s3240 + $0x2c8] sm:$0xff]
        %v3331 = vld [vmem:[%s3240 + $0x2d0] sm:$0xff]
        %v3332 = vld [vmem:[%s3240 + $0x2d8] sm:$0xff]
        %v3333 = vld [vmem:[%s3240 + $0x2e0] sm:$0xff]
        %v3334 = vld [vmem:[%s3240 + $0x2e8] sm:$0xff]
        %v3335 = vld [vmem:[%s3240 + $0x2f0] sm:$0xff]
        %v3336 = vld [vmem:[%s3240 + $0x2f8] sm:$0xff]
        %v3337 = vld [vmem:[%s3240 + $0x300] sm:$0xff]
        %v3338 = vld [vmem:[%s3240 + $0x308] sm:$0xff]
        %v3339 = vld [vmem:[%s3240 + $0x310] sm:$0xff]
        %v3340 = vld [vmem:[%s3240 + $0x318] sm:$0xff]
        %v3341 = vld [vmem:[%s3240 + $0x320] sm:$0xff]
        %v3342 = vld [vmem:[%s3240 + $0x328] sm:$0xff]
        %v3343 = vld [vmem:[%s3240 + $0x330] sm:$0xff]
        %v3344 = vld [vmem:[%s3240 + $0x338] sm:$0xff]
        %v3345 = vld [vmem:[%s3240 + $0x340] sm:$0xff]
        %v3346 = vld [vmem:[%s3240 + $0x348] sm:$0xff]
        %v3347 = vld [vmem:[%s3240 + $0x350] sm:$0xff]
        %v3348 = vld [vmem:[%s3240 + $0x358] sm:$0xff]
        %v3349 = vld [vmem:[%s3240 + $0x360] sm:$0xff]
        %v3350 = vld [vmem:[%s3240 + $0x368] sm:$0xff]
        %v3351 = vld [vmem:[%s3240 + $0x370] sm:$0xff]
        %v3352 = vld [vmem:[%s3240 + $0x378] sm:$0xff]
        %v3353 = vld [vmem:[%s3240 + $0x380] sm:$0xff]
        %v3354 = vld [vmem:[%s3240 + $0x388] sm:$0xff]
        %v3355 = vld [vmem:[%s3240 + $0x390] sm:$0xff]
        %v3356 = vld [vmem:[%s3240 + $0x398] sm:$0xff]
        %v3357 = vld [vmem:[%s3240 + $0x3a0] sm:$0xff]
        %v3358 = vld [vmem:[%s3240 + $0x3a8] sm:$0xff]
        %v3359 = vld [vmem:[%s3240 + $0x3b0] sm:$0xff]
        %v3360 = vld [vmem:[%s3240 + $0x3b8] sm:$0xff]
        %v3361 = vld [vmem:[%s3240 + $0x3c0] sm:$0xff]
        %v3362 = vld [vmem:[%s3240 + $0x3c8] sm:$0xff]
        %v3363 = vld [vmem:[%s3240 + $0x3d0] sm:$0xff]
        %v3364 = vld [vmem:[%s3240 + $0x3d8] sm:$0xff]
        %v3365 = vld [vmem:[%s3240 + $0x3e0] sm:$0xff]
        %v3366 = vld [vmem:[%s3240 + $0x3e8] sm:$0xff]
        %v3367 = vld [vmem:[%s3240 + $0x3f0] sm:$0xff]
        %v3368 = vld [vmem:[%s3240 + $0x3f8] sm:$0xff]
        %s3369 = scalar_lea.vmem [#allocation10], 8
        %v3370 = vld [vmem:[%s3369] sm:$0xf]
        %v3372 = vperm.slane %v3370, 0
        %v3373 = vperm.slane %v3370, 1
        %v3374 = vperm.slane %v3370, 2
        %v3375 = vperm.slane %v3370, 3
        %v3508 = vunpack.c.l.b16 %v3241
        %v3509 = vunpack.c.h.b16 %v3241
        %v3510 = vunpack.c.l.b16 %v3242
        %v3511 = vunpack.c.h.b16 %v3242
        %v3512 = vunpack.c.l.b16 %v3243
        %v3513 = vunpack.c.h.b16 %v3243
        %v3514 = vunpack.c.l.b16 %v3244
        %v3515 = vunpack.c.h.b16 %v3244
        %v3516 = vunpack.c.l.b16 %v3245
        %v3517 = vunpack.c.h.b16 %v3245
        %v3518 = vunpack.c.l.b16 %v3246
        %v3519 = vunpack.c.h.b16 %v3246
        %v3520 = vunpack.c.l.b16 %v3247
        %v3521 = vunpack.c.h.b16 %v3247
        %v3522 = vunpack.c.l.b16 %v3248
        %v3523 = vunpack.c.h.b16 %v3248
        %v3524 = vunpack.c.l.b16 %v3249
        %v3525 = vunpack.c.h.b16 %v3249
        %v3526 = vunpack.c.l.b16 %v3250
        %v3527 = vunpack.c.h.b16 %v3250
        %v3528 = vunpack.c.l.b16 %v3251
        %v3529 = vunpack.c.h.b16 %v3251
        %v3530 = vunpack.c.l.b16 %v3252
        %v3531 = vunpack.c.h.b16 %v3252
        %v3532 = vunpack.c.l.b16 %v3253
        %v3533 = vunpack.c.h.b16 %v3253
        %v3534 = vunpack.c.l.b16 %v3254
        %v3535 = vunpack.c.h.b16 %v3254
        %v3536 = vunpack.c.l.b16 %v3255
        %v3537 = vunpack.c.h.b16 %v3255
        %v3538 = vunpack.c.l.b16 %v3256
        %v3539 = vunpack.c.h.b16 %v3256
        %v3540 = vunpack.c.l.b16 %v3257
        %v3541 = vunpack.c.h.b16 %v3257
        %v3542 = vunpack.c.l.b16 %v3258
        %v3543 = vunpack.c.h.b16 %v3258
        %v3544 = vunpack.c.l.b16 %v3259
        %v3545 = vunpack.c.h.b16 %v3259
        %v3546 = vunpack.c.l.b16 %v3260
        %v3547 = vunpack.c.h.b16 %v3260
        %v3548 = vunpack.c.l.b16 %v3261
        %v3549 = vunpack.c.h.b16 %v3261
        %v3550 = vunpack.c.l.b16 %v3262
        %v3551 = vunpack.c.h.b16 %v3262
        %v3552 = vunpack.c.l.b16 %v3263
        %v3553 = vunpack.c.h.b16 %v3263
        %v3554 = vunpack.c.l.b16 %v3264
        %v3555 = vunpack.c.h.b16 %v3264
        %v3556 = vunpack.c.l.b16 %v3265
        %v3557 = vunpack.c.h.b16 %v3265
        %v3558 = vunpack.c.l.b16 %v3266
        %v3559 = vunpack.c.h.b16 %v3266
        %v3560 = vunpack.c.l.b16 %v3267
        %v3561 = vunpack.c.h.b16 %v3267
        %v3562 = vunpack.c.l.b16 %v3268
        %v3563 = vunpack.c.h.b16 %v3268
        %v3564 = vunpack.c.l.b16 %v3269
        %v3565 = vunpack.c.h.b16 %v3269
        %v3566 = vunpack.c.l.b16 %v3270
        %v3567 = vunpack.c.h.b16 %v3270
        %v3568 = vunpack.c.l.b16 %v3271
        %v3569 = vunpack.c.h.b16 %v3271
        %v3570 = vunpack.c.l.b16 %v3272
        %v3571 = vunpack.c.h.b16 %v3272
        %v3572 = vunpack.c.l.b16 %v3273
        %v3573 = vunpack.c.h.b16 %v3273
        %v3574 = vunpack.c.l.b16 %v3274
        %v3575 = vunpack.c.h.b16 %v3274
        %v3576 = vunpack.c.l.b16 %v3275
        %v3577 = vunpack.c.h.b16 %v3275
        %v3578 = vunpack.c.l.b16 %v3276
        %v3579 = vunpack.c.h.b16 %v3276
        %v3580 = vunpack.c.l.b16 %v3277
        %v3581 = vunpack.c.h.b16 %v3277
        %v3582 = vunpack.c.l.b16 %v3278
        %v3583 = vunpack.c.h.b16 %v3278
        %v3584 = vunpack.c.l.b16 %v3279
        %v3585 = vunpack.c.h.b16 %v3279
        %v3586 = vunpack.c.l.b16 %v3280
        %v3587 = vunpack.c.h.b16 %v3280
        %v3588 = vunpack.c.l.b16 %v3281
        %v3589 = vunpack.c.h.b16 %v3281
        %v3590 = vunpack.c.l.b16 %v3282
        %v3591 = vunpack.c.h.b16 %v3282
        %v3592 = vunpack.c.l.b16 %v3283
        %v3593 = vunpack.c.h.b16 %v3283
        %v3594 = vunpack.c.l.b16 %v3284
        %v3595 = vunpack.c.h.b16 %v3284
        %v3596 = vunpack.c.l.b16 %v3285
        %v3597 = vunpack.c.h.b16 %v3285
        %v3598 = vunpack.c.l.b16 %v3286
        %v3599 = vunpack.c.h.b16 %v3286
        %v3600 = vunpack.c.l.b16 %v3287
        %v3601 = vunpack.c.h.b16 %v3287
        %v3602 = vunpack.c.l.b16 %v3288
        %v3603 = vunpack.c.h.b16 %v3288
        %v3604 = vunpack.c.l.b16 %v3289
        %v3605 = vunpack.c.h.b16 %v3289
        %v3606 = vunpack.c.l.b16 %v3290
        %v3607 = vunpack.c.h.b16 %v3290
        %v3608 = vunpack.c.l.b16 %v3291
        %v3609 = vunpack.c.h.b16 %v3291
        %v3610 = vunpack.c.l.b16 %v3292
        %v3611 = vunpack.c.h.b16 %v3292
        %v3612 = vunpack.c.l.b16 %v3293
        %v3613 = vunpack.c.h.b16 %v3293
        %v3614 = vunpack.c.l.b16 %v3294
        %v3615 = vunpack.c.h.b16 %v3294
        %v3616 = vunpack.c.l.b16 %v3295
        %v3617 = vunpack.c.h.b16 %v3295
        %v3618 = vunpack.c.l.b16 %v3296
        %v3619 = vunpack.c.h.b16 %v3296
        %v3620 = vunpack.c.l.b16 %v3297
        %v3621 = vunpack.c.h.b16 %v3297
        %v3622 = vunpack.c.l.b16 %v3298
        %v3623 = vunpack.c.h.b16 %v3298
        %v3624 = vunpack.c.l.b16 %v3299
        %v3625 = vunpack.c.h.b16 %v3299
        %v3626 = vunpack.c.l.b16 %v3300
        %v3627 = vunpack.c.h.b16 %v3300
        %v3628 = vunpack.c.l.b16 %v3301
        %v3629 = vunpack.c.h.b16 %v3301
        %v3630 = vunpack.c.l.b16 %v3302
        %v3631 = vunpack.c.h.b16 %v3302
        %v3632 = vunpack.c.l.b16 %v3303
        %v3633 = vunpack.c.h.b16 %v3303
        %v3634 = vunpack.c.l.b16 %v3304
        %v3635 = vunpack.c.h.b16 %v3304
        %v3636 = vunpack.c.l.b16 %v3305
        %v3637 = vunpack.c.h.b16 %v3305
        %v3638 = vunpack.c.l.b16 %v3306
        %v3639 = vunpack.c.h.b16 %v3306
        %v3640 = vunpack.c.l.b16 %v3307
        %v3641 = vunpack.c.h.b16 %v3307
        %v3642 = vunpack.c.l.b16 %v3308
        %v3643 = vunpack.c.h.b16 %v3308
        %v3644 = vunpack.c.l.b16 %v3309
        %v3645 = vunpack.c.h.b16 %v3309
        %v3646 = vunpack.c.l.b16 %v3310
        %v3647 = vunpack.c.h.b16 %v3310
        %v3648 = vunpack.c.l.b16 %v3311
        %v3649 = vunpack.c.h.b16 %v3311
        %v3650 = vunpack.c.l.b16 %v3312
        %v3651 = vunpack.c.h.b16 %v3312
        %v3652 = vunpack.c.l.b16 %v3313
        %v3653 = vunpack.c.h.b16 %v3313
        %v3654 = vunpack.c.l.b16 %v3314
        %v3655 = vunpack.c.h.b16 %v3314
        %v3656 = vunpack.c.l.b16 %v3315
        %v3657 = vunpack.c.h.b16 %v3315
        %v3658 = vunpack.c.l.b16 %v3316
        %v3659 = vunpack.c.h.b16 %v3316
        %v3660 = vunpack.c.l.b16 %v3317
        %v3661 = vunpack.c.h.b16 %v3317
        %v3662 = vunpack.c.l.b16 %v3318
        %v3663 = vunpack.c.h.b16 %v3318
        %v3664 = vunpack.c.l.b16 %v3319
        %v3665 = vunpack.c.h.b16 %v3319
        %v3666 = vunpack.c.l.b16 %v3320
        %v3667 = vunpack.c.h.b16 %v3320
        %v3668 = vunpack.c.l.b16 %v3321
        %v3669 = vunpack.c.h.b16 %v3321
        %v3670 = vunpack.c.l.b16 %v3322
        %v3671 = vunpack.c.h.b16 %v3322
        %v3672 = vunpack.c.l.b16 %v3323
        %v3673 = vunpack.c.h.b16 %v3323
        %v3674 = vunpack.c.l.b16 %v3324
        %v3675 = vunpack.c.h.b16 %v3324
        %v3676 = vunpack.c.l.b16 %v3325
        %v3677 = vunpack.c.h.b16 %v3325
        %v3678 = vunpack.c.l.b16 %v3326
        %v3679 = vunpack.c.h.b16 %v3326
        %v3680 = vunpack.c.l.b16 %v3327
        %v3681 = vunpack.c.h.b16 %v3327
        %v3682 = vunpack.c.l.b16 %v3328
        %v3683 = vunpack.c.h.b16 %v3328
        %v3684 = vunpack.c.l.b16 %v3329
        %v3685 = vunpack.c.h.b16 %v3329
        %v3686 = vunpack.c.l.b16 %v3330
        %v3687 = vunpack.c.h.b16 %v3330
        %v3688 = vunpack.c.l.b16 %v3331
        %v3689 = vunpack.c.h.b16 %v3331
        %v3690 = vunpack.c.l.b16 %v3332
        %v3691 = vunpack.c.h.b16 %v3332
        %v3692 = vunpack.c.l.b16 %v3333
        %v3693 = vunpack.c.h.b16 %v3333
        %v3694 = vunpack.c.l.b16 %v3334
        %v3695 = vunpack.c.h.b16 %v3334
        %v3696 = vunpack.c.l.b16 %v3335
        %v3697 = vunpack.c.h.b16 %v3335
        %v3698 = vunpack.c.l.b16 %v3336
        %v3699 = vunpack.c.h.b16 %v3336
        %v3700 = vunpack.c.l.b16 %v3337
        %v3701 = vunpack.c.h.b16 %v3337
        %v3702 = vunpack.c.l.b16 %v3338
        %v3703 = vunpack.c.h.b16 %v3338
        %v3704 = vunpack.c.l.b16 %v3339
        %v3705 = vunpack.c.h.b16 %v3339
        %v3706 = vunpack.c.l.b16 %v3340
        %v3707 = vunpack.c.h.b16 %v3340
        %v3708 = vunpack.c.l.b16 %v3341
        %v3709 = vunpack.c.h.b16 %v3341
        %v3710 = vunpack.c.l.b16 %v3342
        %v3711 = vunpack.c.h.b16 %v3342
        %v3712 = vunpack.c.l.b16 %v3343
        %v3713 = vunpack.c.h.b16 %v3343
        %v3714 = vunpack.c.l.b16 %v3344
        %v3715 = vunpack.c.h.b16 %v3344
        %v3716 = vunpack.c.l.b16 %v3345
        %v3717 = vunpack.c.h.b16 %v3345
        %v3718 = vunpack.c.l.b16 %v3346
        %v3719 = vunpack.c.h.b16 %v3346
        %v3720 = vunpack.c.l.b16 %v3347
        %v3721 = vunpack.c.h.b16 %v3347
        %v3722 = vunpack.c.l.b16 %v3348
        %v3723 = vunpack.c.h.b16 %v3348
        %v3724 = vunpack.c.l.b16 %v3349
        %v3725 = vunpack.c.h.b16 %v3349
        %v3726 = vunpack.c.l.b16 %v3350
        %v3727 = vunpack.c.h.b16 %v3350
        %v3728 = vunpack.c.l.b16 %v3351
        %v3729 = vunpack.c.h.b16 %v3351
        %v3730 = vunpack.c.l.b16 %v3352
        %v3731 = vunpack.c.h.b16 %v3352
        %v3732 = vunpack.c.l.b16 %v3353
        %v3733 = vunpack.c.h.b16 %v3353
        %v3734 = vunpack.c.l.b16 %v3354
        %v3735 = vunpack.c.h.b16 %v3354
        %v3736 = vunpack.c.l.b16 %v3355
        %v3737 = vunpack.c.h.b16 %v3355
        %v3738 = vunpack.c.l.b16 %v3356
        %v3739 = vunpack.c.h.b16 %v3356
        %v3740 = vunpack.c.l.b16 %v3357
        %v3741 = vunpack.c.h.b16 %v3357
        %v3742 = vunpack.c.l.b16 %v3358
        %v3743 = vunpack.c.h.b16 %v3358
        %v3744 = vunpack.c.l.b16 %v3359
        %v3745 = vunpack.c.h.b16 %v3359
        %v3746 = vunpack.c.l.b16 %v3360
        %v3747 = vunpack.c.h.b16 %v3360
        %v3748 = vunpack.c.l.b16 %v3361
        %v3749 = vunpack.c.h.b16 %v3361
        %v3750 = vunpack.c.l.b16 %v3362
        %v3751 = vunpack.c.h.b16 %v3362
        %v3752 = vunpack.c.l.b16 %v3363
        %v3753 = vunpack.c.h.b16 %v3363
        %v3754 = vunpack.c.l.b16 %v3364
        %v3755 = vunpack.c.h.b16 %v3364
        %v3756 = vunpack.c.l.b16 %v3365
        %v3757 = vunpack.c.h.b16 %v3365
        %v3758 = vunpack.c.l.b16 %v3366
        %v3759 = vunpack.c.h.b16 %v3366
        %v3760 = vunpack.c.l.b16 %v3367
        %v3761 = vunpack.c.h.b16 %v3367
        %v3762 = vunpack.c.l.b16 %v3368
        %v3763 = vunpack.c.h.b16 %v3368
        %v3764 = vpack.c.b16 %v3512, %v3508
        %v3765 = vpack.c.b16 %v3513, %v3509
        %v3766 = vpack.c.b16 %v3514, %v3510
        %v3767 = vpack.c.b16 %v3515, %v3511
        %v3768 = vpack.c.b16 %v3520, %v3516
        %v3769 = vpack.c.b16 %v3521, %v3517
        %v3770 = vpack.c.b16 %v3522, %v3518
        %v3771 = vpack.c.b16 %v3523, %v3519
        %v3772 = vpack.c.b16 %v3528, %v3524
        %v3773 = vpack.c.b16 %v3529, %v3525
        %v3774 = vpack.c.b16 %v3530, %v3526
        %v3775 = vpack.c.b16 %v3531, %v3527
        %v3776 = vpack.c.b16 %v3536, %v3532
        %v3777 = vpack.c.b16 %v3537, %v3533
        %v3778 = vpack.c.b16 %v3538, %v3534
        %v3779 = vpack.c.b16 %v3539, %v3535
        %v3780 = vpack.c.b16 %v3544, %v3540
        %v3781 = vpack.c.b16 %v3545, %v3541
        %v3782 = vpack.c.b16 %v3546, %v3542
        %v3783 = vpack.c.b16 %v3547, %v3543
        %v3784 = vpack.c.b16 %v3552, %v3548
        %v3785 = vpack.c.b16 %v3553, %v3549
        %v3786 = vpack.c.b16 %v3554, %v3550
        %v3787 = vpack.c.b16 %v3555, %v3551
        %v3788 = vpack.c.b16 %v3560, %v3556
        %v3789 = vpack.c.b16 %v3561, %v3557
        %v3790 = vpack.c.b16 %v3562, %v3558
        %v3791 = vpack.c.b16 %v3563, %v3559
        %v3792 = vpack.c.b16 %v3568, %v3564
        %v3793 = vpack.c.b16 %v3569, %v3565
        %v3794 = vpack.c.b16 %v3570, %v3566
        %v3795 = vpack.c.b16 %v3571, %v3567
        %v3796 = vpack.c.b16 %v3576, %v3572
        %v3797 = vpack.c.b16 %v3577, %v3573
        %v3798 = vpack.c.b16 %v3578, %v3574
        %v3799 = vpack.c.b16 %v3579, %v3575
        %v3800 = vpack.c.b16 %v3584, %v3580
        %v3801 = vpack.c.b16 %v3585, %v3581
        %v3802 = vpack.c.b16 %v3586, %v3582
        %v3803 = vpack.c.b16 %v3587, %v3583
        %v3804 = vpack.c.b16 %v3592, %v3588
        %v3805 = vpack.c.b16 %v3593, %v3589
        %v3806 = vpack.c.b16 %v3594, %v3590
        %v3807 = vpack.c.b16 %v3595, %v3591
        %v3808 = vpack.c.b16 %v3600, %v3596
        %v3809 = vpack.c.b16 %v3601, %v3597
        %v3810 = vpack.c.b16 %v3602, %v3598
        %v3811 = vpack.c.b16 %v3603, %v3599
        %v3812 = vpack.c.b16 %v3608, %v3604
        %v3813 = vpack.c.b16 %v3609, %v3605
        %v3814 = vpack.c.b16 %v3610, %v3606
        %v3815 = vpack.c.b16 %v3611, %v3607
        %v3816 = vpack.c.b16 %v3616, %v3612
        %v3817 = vpack.c.b16 %v3617, %v3613
        %v3818 = vpack.c.b16 %v3618, %v3614
        %v3819 = vpack.c.b16 %v3619, %v3615
        %v3820 = vpack.c.b16 %v3624, %v3620
        %v3821 = vpack.c.b16 %v3625, %v3621
        %v3822 = vpack.c.b16 %v3626, %v3622
        %v3823 = vpack.c.b16 %v3627, %v3623
        %v3824 = vpack.c.b16 %v3632, %v3628
        %v3825 = vpack.c.b16 %v3633, %v3629
        %v3826 = vpack.c.b16 %v3634, %v3630
        %v3827 = vpack.c.b16 %v3635, %v3631
        %v3828 = vpack.c.b16 %v3640, %v3636
        %v3829 = vpack.c.b16 %v3641, %v3637
        %v3830 = vpack.c.b16 %v3642, %v3638
        %v3831 = vpack.c.b16 %v3643, %v3639
        %v3832 = vpack.c.b16 %v3648, %v3644
        %v3833 = vpack.c.b16 %v3649, %v3645
        %v3834 = vpack.c.b16 %v3650, %v3646
        %v3835 = vpack.c.b16 %v3651, %v3647
        %v3836 = vpack.c.b16 %v3656, %v3652
        %v3837 = vpack.c.b16 %v3657, %v3653
        %v3838 = vpack.c.b16 %v3658, %v3654
        %v3839 = vpack.c.b16 %v3659, %v3655
        %v3840 = vpack.c.b16 %v3664, %v3660
        %v3841 = vpack.c.b16 %v3665, %v3661
        %v3842 = vpack.c.b16 %v3666, %v3662
        %v3843 = vpack.c.b16 %v3667, %v3663
        %v3844 = vpack.c.b16 %v3672, %v3668
        %v3845 = vpack.c.b16 %v3673, %v3669
        %v3846 = vpack.c.b16 %v3674, %v3670
        %v3847 = vpack.c.b16 %v3675, %v3671
        %v3848 = vpack.c.b16 %v3680, %v3676
        %v3849 = vpack.c.b16 %v3681, %v3677
        %v3850 = vpack.c.b16 %v3682, %v3678
        %v3851 = vpack.c.b16 %v3683, %v3679
        %v3852 = vpack.c.b16 %v3688, %v3684
        %v3853 = vpack.c.b16 %v3689, %v3685
        %v3854 = vpack.c.b16 %v3690, %v3686
        %v3855 = vpack.c.b16 %v3691, %v3687
        %v3856 = vpack.c.b16 %v3696, %v3692
        %v3857 = vpack.c.b16 %v3697, %v3693
        %v3858 = vpack.c.b16 %v3698, %v3694
        %v3859 = vpack.c.b16 %v3699, %v3695
        %v3860 = vpack.c.b16 %v3704, %v3700
        %v3861 = vpack.c.b16 %v3705, %v3701
        %v3862 = vpack.c.b16 %v3706, %v3702
        %v3863 = vpack.c.b16 %v3707, %v3703
        %v3864 = vpack.c.b16 %v3712, %v3708
        %v3865 = vpack.c.b16 %v3713, %v3709
        %v3866 = vpack.c.b16 %v3714, %v3710
        %v3867 = vpack.c.b16 %v3715, %v3711
        %v3868 = vpack.c.b16 %v3720, %v3716
        %v3869 = vpack.c.b16 %v3721, %v3717
        %v3870 = vpack.c.b16 %v3722, %v3718
        %v3871 = vpack.c.b16 %v3723, %v3719
        %v3872 = vpack.c.b16 %v3728, %v3724
        %v3873 = vpack.c.b16 %v3729, %v3725
        %v3874 = vpack.c.b16 %v3730, %v3726
        %v3875 = vpack.c.b16 %v3731, %v3727
        %v3876 = vpack.c.b16 %v3736, %v3732
        %v3877 = vpack.c.b16 %v3737, %v3733
        %v3878 = vpack.c.b16 %v3738, %v3734
        %v3879 = vpack.c.b16 %v3739, %v3735
        %v3880 = vpack.c.b16 %v3744, %v3740
        %v3881 = vpack.c.b16 %v3745, %v3741
        %v3882 = vpack.c.b16 %v3746, %v3742
        %v3883 = vpack.c.b16 %v3747, %v3743
        %v3884 = vpack.c.b16 %v3752, %v3748
        %v3885 = vpack.c.b16 %v3753, %v3749
        %v3886 = vpack.c.b16 %v3754, %v3750
        %v3887 = vpack.c.b16 %v3755, %v3751
        %v3888 = vpack.c.b16 %v3760, %v3756
        %v3889 = vpack.c.b16 %v3761, %v3757
        %v3890 = vpack.c.b16 %v3762, %v3758
        %v3891 = vpack.c.b16 %v3763, %v3759
        %4020 = vmatpush.bf16.msra.mxu0 %v3792
        %4021 = vmatpush.bf16.msra.mxu0 %v3788
        %4022 = vmatpush.bf16.msra.mxu0 %v3784
        %4023 = vmatpush.bf16.msra.mxu0 %v3780
        %4024 = vmatpush.bf16.msra.mxu0 %v3776
        %4025 = vmatpush.bf16.msra.mxu0 %v3772
        %4026 = vmatpush.bf16.msra.mxu0 %v3768
        %4027 = vmatpush.bf16.msra.mxu0 %v3764
        %4028 = vmatmul.bf16.gmra.mxu0 %v3236
        %v4029 = vpop.f32.mrf.mxu0
        %v4030 = vadd.f32 %v3372, %v4029
        %v4031 = vpop.f32.mrf.mxu0
        %v4032 = vadd.f32 %v3372, %v4031
        %4033 = vdwg.mxu0
        %4034 = vmatpush.bf16.msra.mxu0 %v3824
        %4035 = vmatpush.bf16.msra.mxu0 %v3820
        %4036 = vmatpush.bf16.msra.mxu0 %v3816
        %4037 = vmatpush.bf16.msra.mxu0 %v3812
        %4038 = vmatpush.bf16.msra.mxu0 %v3808
        %4039 = vmatpush.bf16.msra.mxu0 %v3804
        %4040 = vmatpush.bf16.msra.mxu0 %v3800
        %4041 = vmatpush.bf16.msra.mxu0 %v3796
        %4042 = vmatmul.bf16.gmra.mxu0 %v3237
        %v4043 = vpop.f32.mrf.mxu0
        %v4044 = vadd.f32 %v4030, %v4043
        %v4045 = vpop.f32.mrf.mxu0
        %v4046 = vadd.f32 %v4032, %v4045
        %4047 = vdwg.mxu0
        %4048 = vmatpush.bf16.msra.mxu0 %v3856
        %4049 = vmatpush.bf16.msra.mxu0 %v3852
        %4050 = vmatpush.bf16.msra.mxu0 %v3848
        %4051 = vmatpush.bf16.msra.mxu0 %v3844
        %4052 = vmatpush.bf16.msra.mxu0 %v3840
        %4053 = vmatpush.bf16.msra.mxu0 %v3836
        %4054 = vmatpush.bf16.msra.mxu0 %v3832
        %4055 = vmatpush.bf16.msra.mxu0 %v3828
        %4056 = vmatmul.bf16.gmra.mxu0 %v3238
        %v4057 = vpop.f32.mrf.mxu0
        %v4058 = vadd.f32 %v4044, %v4057
        %v4059 = vpop.f32.mrf.mxu0
        %v4060 = vadd.f32 %v4046, %v4059
        %4061 = vdwg.mxu0
        %4062 = vmatpush.bf16.msra.mxu0 %v3888
        %4063 = vmatpush.bf16.msra.mxu0 %v3884
        %4064 = vmatpush.bf16.msra.mxu0 %v3880
        %4065 = vmatpush.bf16.msra.mxu0 %v3876
        %4066 = vmatpush.bf16.msra.mxu0 %v3872
        %4067 = vmatpush.bf16.msra.mxu0 %v3868
        %4068 = vmatpush.bf16.msra.mxu0 %v3864
        %4069 = vmatpush.bf16.msra.mxu0 %v3860
        %4070 = vmatmul.bf16.gmra.mxu0 %v3239
        %v4071 = vpop.f32.mrf.mxu0
        %v4072 = vadd.f32 %v4058, %v4071
        %v4073 = vpop.f32.mrf.mxu0
        %v4074 = vadd.f32 %v4060, %v4073
        %4075 = vdwg.mxu0
        %4076 = vmatpush.bf16.msra.mxu0 %v3793
        %4077 = vmatpush.bf16.msra.mxu0 %v3789
        %4078 = vmatpush.bf16.msra.mxu0 %v3785
        %4079 = vmatpush.bf16.msra.mxu0 %v3781
        %4080 = vmatpush.bf16.msra.mxu0 %v3777
        %4081 = vmatpush.bf16.msra.mxu0 %v3773
        %4082 = vmatpush.bf16.msra.mxu0 %v3769
        %4083 = vmatpush.bf16.msra.mxu0 %v3765
        %4084 = vmatmul.bf16.gmra.mxu0 %v3236
        %v4085 = vpop.f32.mrf.mxu0
        %v4086 = vadd.f32 %v3373, %v4085
        %v4087 = vpop.f32.mrf.mxu0
        %v4088 = vadd.f32 %v3373, %v4087
        %4089 = vdwg.mxu0
        %4090 = vmatpush.bf16.msra.mxu0 %v3825
        %4091 = vmatpush.bf16.msra.mxu0 %v3821
        %4092 = vmatpush.bf16.msra.mxu0 %v3817
        %4093 = vmatpush.bf16.msra.mxu0 %v3813
        %4094 = vmatpush.bf16.msra.mxu0 %v3809
        %4095 = vmatpush.bf16.msra.mxu0 %v3805
        %4096 = vmatpush.bf16.msra.mxu0 %v3801
        %4097 = vmatpush.bf16.msra.mxu0 %v3797
        %4098 = vmatmul.bf16.gmra.mxu0 %v3237
        %v4099 = vpop.f32.mrf.mxu0
        %v4100 = vadd.f32 %v4086, %v4099
        %v4101 = vpop.f32.mrf.mxu0
        %v4102 = vadd.f32 %v4088, %v4101
        %4103 = vdwg.mxu0
        %4104 = vmatpush.bf16.msra.mxu0 %v3857
        %4105 = vmatpush.bf16.msra.mxu0 %v3853
        %4106 = vmatpush.bf16.msra.mxu0 %v3849
        %4107 = vmatpush.bf16.msra.mxu0 %v3845
        %4108 = vmatpush.bf16.msra.mxu0 %v3841
        %4109 = vmatpush.bf16.msra.mxu0 %v3837
        %4110 = vmatpush.bf16.msra.mxu0 %v3833
        %4111 = vmatpush.bf16.msra.mxu0 %v3829
        %4112 = vmatmul.bf16.gmra.mxu0 %v3238
        %v4113 = vpop.f32.mrf.mxu0
        %v4114 = vadd.f32 %v4100, %v4113
        %v4115 = vpop.f32.mrf.mxu0
        %v4116 = vadd.f32 %v4102, %v4115
        %4117 = vdwg.mxu0
        %4118 = vmatpush.bf16.msra.mxu0 %v3889
        %4119 = vmatpush.bf16.msra.mxu0 %v3885
        %4120 = vmatpush.bf16.msra.mxu0 %v3881
        %4121 = vmatpush.bf16.msra.mxu0 %v3877
        %4122 = vmatpush.bf16.msra.mxu0 %v3873
        %4123 = vmatpush.bf16.msra.mxu0 %v3869
        %4124 = vmatpush.bf16.msra.mxu0 %v3865
        %4125 = vmatpush.bf16.msra.mxu0 %v3861
        %4126 = vmatmul.bf16.gmra.mxu0 %v3239
        %v4127 = vpop.f32.mrf.mxu0
        %v4128 = vadd.f32 %v4114, %v4127
        %v4129 = vpop.f32.mrf.mxu0
        %v4130 = vadd.f32 %v4116, %v4129
        %4131 = vdwg.mxu0
        %4132 = vmatpush.bf16.msra.mxu0 %v3794
        %4133 = vmatpush.bf16.msra.mxu0 %v3790
        %4134 = vmatpush.bf16.msra.mxu0 %v3786
        %4135 = vmatpush.bf16.msra.mxu0 %v3782
        %4136 = vmatpush.bf16.msra.mxu0 %v3778
        %4137 = vmatpush.bf16.msra.mxu0 %v3774
        %4138 = vmatpush.bf16.msra.mxu0 %v3770
        %4139 = vmatpush.bf16.msra.mxu0 %v3766
        %4140 = vmatmul.bf16.gmra.mxu0 %v3236
        %v4141 = vpop.f32.mrf.mxu0
        %v4142 = vadd.f32 %v3374, %v4141
        %v4143 = vpop.f32.mrf.mxu0
        %v4144 = vadd.f32 %v3374, %v4143
        %4145 = vdwg.mxu0
        %4146 = vmatpush.bf16.msra.mxu0 %v3826
        %4147 = vmatpush.bf16.msra.mxu0 %v3822
        %4148 = vmatpush.bf16.msra.mxu0 %v3818
        %4149 = vmatpush.bf16.msra.mxu0 %v3814
        %4150 = vmatpush.bf16.msra.mxu0 %v3810
        %4151 = vmatpush.bf16.msra.mxu0 %v3806
        %4152 = vmatpush.bf16.msra.mxu0 %v3802
        %4153 = vmatpush.bf16.msra.mxu0 %v3798
        %4154 = vmatmul.bf16.gmra.mxu0 %v3237
        %v4155 = vpop.f32.mrf.mxu0
        %v4156 = vadd.f32 %v4142, %v4155
        %v4157 = vpop.f32.mrf.mxu0
        %v4158 = vadd.f32 %v4144, %v4157
        %4159 = vdwg.mxu0
        %4160 = vmatpush.bf16.msra.mxu0 %v3858
        %4161 = vmatpush.bf16.msra.mxu0 %v3854
        %4162 = vmatpush.bf16.msra.mxu0 %v3850
        %4163 = vmatpush.bf16.msra.mxu0 %v3846
        %4164 = vmatpush.bf16.msra.mxu0 %v3842
        %4165 = vmatpush.bf16.msra.mxu0 %v3838
        %4166 = vmatpush.bf16.msra.mxu0 %v3834
        %4167 = vmatpush.bf16.msra.mxu0 %v3830
        %4168 = vmatmul.bf16.gmra.mxu0 %v3238
        %v4169 = vpop.f32.mrf.mxu0
        %v4170 = vadd.f32 %v4156, %v4169
        %v4171 = vpop.f32.mrf.mxu0
        %v4172 = vadd.f32 %v4158, %v4171
        %4173 = vdwg.mxu0
        %4174 = vmatpush.bf16.msra.mxu0 %v3890
        %4175 = vmatpush.bf16.msra.mxu0 %v3886
        %4176 = vmatpush.bf16.msra.mxu0 %v3882
        %4177 = vmatpush.bf16.msra.mxu0 %v3878
        %4178 = vmatpush.bf16.msra.mxu0 %v3874
        %4179 = vmatpush.bf16.msra.mxu0 %v3870
        %4180 = vmatpush.bf16.msra.mxu0 %v3866
        %4181 = vmatpush.bf16.msra.mxu0 %v3862
        %4182 = vmatmul.bf16.gmra.mxu0 %v3239
        %v4183 = vpop.f32.mrf.mxu0
        %v4184 = vadd.f32 %v4170, %v4183
        %v4185 = vpop.f32.mrf.mxu0
        %v4186 = vadd.f32 %v4172, %v4185
        %4187 = vdwg.mxu0
        %4188 = vmatpush.bf16.msra.mxu0 %v3795
        %4189 = vmatpush.bf16.msra.mxu0 %v3791
        %4190 = vmatpush.bf16.msra.mxu0 %v3787
        %4191 = vmatpush.bf16.msra.mxu0 %v3783
        %4192 = vmatpush.bf16.msra.mxu0 %v3779
        %4193 = vmatpush.bf16.msra.mxu0 %v3775
        %4194 = vmatpush.bf16.msra.mxu0 %v3771
        %4195 = vmatpush.bf16.msra.mxu0 %v3767
        %4196 = vmatmul.bf16.gmra.mxu0 %v3236
        %v4197 = vpop.f32.mrf.mxu0
        %v4198 = vadd.f32 %v3375, %v4197
        %v4199 = vpop.f32.mrf.mxu0
        %v4200 = vadd.f32 %v3375, %v4199
        %4201 = vdwg.mxu0
        %4202 = vmatpush.bf16.msra.mxu0 %v3827
        %4203 = vmatpush.bf16.msra.mxu0 %v3823
        %4204 = vmatpush.bf16.msra.mxu0 %v3819
        %4205 = vmatpush.bf16.msra.mxu0 %v3815
        %4206 = vmatpush.bf16.msra.mxu0 %v3811
        %4207 = vmatpush.bf16.msra.mxu0 %v3807
        %4208 = vmatpush.bf16.msra.mxu0 %v3803
        %4209 = vmatpush.bf16.msra.mxu0 %v3799
        %4210 = vmatmul.bf16.gmra.mxu0 %v3237
        %v4211 = vpop.f32.mrf.mxu0
        %v4212 = vadd.f32 %v4198, %v4211
        %v4213 = vpop.f32.mrf.mxu0
        %v4214 = vadd.f32 %v4200, %v4213
        %4215 = vdwg.mxu0
        %4216 = vmatpush.bf16.msra.mxu0 %v3859
        %4217 = vmatpush.bf16.msra.mxu0 %v3855
        %4218 = vmatpush.bf16.msra.mxu0 %v3851
        %4219 = vmatpush.bf16.msra.mxu0 %v3847
        %4220 = vmatpush.bf16.msra.mxu0 %v3843
        %4221 = vmatpush.bf16.msra.mxu0 %v3839
        %4222 = vmatpush.bf16.msra.mxu0 %v3835
        %4223 = vmatpush.bf16.msra.mxu0 %v3831
        %4224 = vmatmul.bf16.gmra.mxu0 %v3238
        %v4225 = vpop.f32.mrf.mxu0
        %v4226 = vadd.f32 %v4212, %v4225
        %v4227 = vpop.f32.mrf.mxu0
        %v4228 = vadd.f32 %v4214, %v4227
        %4229 = vdwg.mxu0
        %4230 = vmatpush.bf16.msra.mxu0 %v3891
        %4231 = vmatpush.bf16.msra.mxu0 %v3887
        %4232 = vmatpush.bf16.msra.mxu0 %v3883
        %4233 = vmatpush.bf16.msra.mxu0 %v3879
        %4234 = vmatpush.bf16.msra.mxu0 %v3875
        %4235 = vmatpush.bf16.msra.mxu0 %v3871
        %4236 = vmatpush.bf16.msra.mxu0 %v3867
        %4237 = vmatpush.bf16.msra.mxu0 %v3863
        %4238 = vmatmul.bf16.gmra.mxu0 %v3239
        %v4239 = vpop.f32.mrf.mxu0
        %v4240 = vadd.f32 %v4226, %v4239
        %v4241 = vpop.f32.mrf.mxu0
        %v4242 = vadd.f32 %v4228, %v4241
        %4243 = vdwg.mxu0
        %v4244 = vmax.f32 %v4072, 0.0
        %v4245 = vmax.f32 %v4128, 0.0
        %v4246 = vmax.f32 %v4184, 0.0
        %v4247 = vmax.f32 %v4240, 0.0
        %v4248 = vmax.f32 %v4074, 0.0
        %v4249 = vmax.f32 %v4130, 0.0
        %v4250 = vmax.f32 %v4186, 0.0
        %v4251 = vmax.f32 %v4242, 0.0
        %v4252 = vpack.c.bf16 %v4248, %v4244
        %v4253 = vpack.c.bf16 %v4249, %v4245
        %v4254 = vpack.c.bf16 %v4250, %v4246
        %v4255 = vpack.c.bf16 %v4251, %v4247
        %s4256 = scalar_lea.vmem [#allocation9], 3072
        %v4257 = vld [vmem:[%s4256] sm:$0xff]
        %v4258 = vld [vmem:[%s4256 + $0x8] sm:$0xff]
        %v4259 = vld [vmem:[%s4256 + $0x10] sm:$0xff]
        %v4260 = vld [vmem:[%s4256 + $0x18] sm:$0xff]
        %v4261 = vld [vmem:[%s4256 + $0x20] sm:$0xff]
        %v4262 = vld [vmem:[%s4256 + $0x28] sm:$0xff]
        %v4263 = vld [vmem:[%s4256 + $0x30] sm:$0xff]
        %v4264 = vld [vmem:[%s4256 + $0x38] sm:$0xff]
        %v4265 = vld [vmem:[%s4256 + $0x40] sm:$0xff]
        %v4266 = vld [vmem:[%s4256 + $0x48] sm:$0xff]
        %v4267 = vld [vmem:[%s4256 + $0x50] sm:$0xff]
        %v4268 = vld [vmem:[%s4256 + $0x58] sm:$0xff]
        %v4269 = vld [vmem:[%s4256 + $0x60] sm:$0xff]
        %v4270 = vld [vmem:[%s4256 + $0x68] sm:$0xff]
        %v4271 = vld [vmem:[%s4256 + $0x70] sm:$0xff]
        %v4272 = vld [vmem:[%s4256 + $0x78] sm:$0xff]
        %v4273 = vld [vmem:[%s4256 + $0x80] sm:$0xff]
        %v4274 = vld [vmem:[%s4256 + $0x88] sm:$0xff]
        %v4275 = vld [vmem:[%s4256 + $0x90] sm:$0xff]
        %v4276 = vld [vmem:[%s4256 + $0x98] sm:$0xff]
        %v4277 = vld [vmem:[%s4256 + $0xa0] sm:$0xff]
        %v4278 = vld [vmem:[%s4256 + $0xa8] sm:$0xff]
        %v4279 = vld [vmem:[%s4256 + $0xb0] sm:$0xff]
        %v4280 = vld [vmem:[%s4256 + $0xb8] sm:$0xff]
        %v4281 = vld [vmem:[%s4256 + $0xc0] sm:$0xff]
        %v4282 = vld [vmem:[%s4256 + $0xc8] sm:$0xff]
        %v4283 = vld [vmem:[%s4256 + $0xd0] sm:$0xff]
        %v4284 = vld [vmem:[%s4256 + $0xd8] sm:$0xff]
        %v4285 = vld [vmem:[%s4256 + $0xe0] sm:$0xff]
        %v4286 = vld [vmem:[%s4256 + $0xe8] sm:$0xff]
        %v4287 = vld [vmem:[%s4256 + $0xf0] sm:$0xff]
        %v4288 = vld [vmem:[%s4256 + $0xf8] sm:$0xff]
        %v4289 = vld [vmem:[%s4256 + $0x100] sm:$0xff]
        %v4290 = vld [vmem:[%s4256 + $0x108] sm:$0xff]
        %v4291 = vld [vmem:[%s4256 + $0x110] sm:$0xff]
        %v4292 = vld [vmem:[%s4256 + $0x118] sm:$0xff]
        %v4293 = vld [vmem:[%s4256 + $0x120] sm:$0xff]
        %v4294 = vld [vmem:[%s4256 + $0x128] sm:$0xff]
        %v4295 = vld [vmem:[%s4256 + $0x130] sm:$0xff]
        %v4296 = vld [vmem:[%s4256 + $0x138] sm:$0xff]
        %v4297 = vld [vmem:[%s4256 + $0x140] sm:$0xff]
        %v4298 = vld [vmem:[%s4256 + $0x148] sm:$0xff]
        %v4299 = vld [vmem:[%s4256 + $0x150] sm:$0xff]
        %v4300 = vld [vmem:[%s4256 + $0x158] sm:$0xff]
        %v4301 = vld [vmem:[%s4256 + $0x160] sm:$0xff]
        %v4302 = vld [vmem:[%s4256 + $0x168] sm:$0xff]
        %v4303 = vld [vmem:[%s4256 + $0x170] sm:$0xff]
        %v4304 = vld [vmem:[%s4256 + $0x178] sm:$0xff]
        %v4305 = vld [vmem:[%s4256 + $0x180] sm:$0xff]
        %v4306 = vld [vmem:[%s4256 + $0x188] sm:$0xff]
        %v4307 = vld [vmem:[%s4256 + $0x190] sm:$0xff]
        %v4308 = vld [vmem:[%s4256 + $0x198] sm:$0xff]
        %v4309 = vld [vmem:[%s4256 + $0x1a0] sm:$0xff]
        %v4310 = vld [vmem:[%s4256 + $0x1a8] sm:$0xff]
        %v4311 = vld [vmem:[%s4256 + $0x1b0] sm:$0xff]
        %v4312 = vld [vmem:[%s4256 + $0x1b8] sm:$0xff]
        %v4313 = vld [vmem:[%s4256 + $0x1c0] sm:$0xff]
        %v4314 = vld [vmem:[%s4256 + $0x1c8] sm:$0xff]
        %v4315 = vld [vmem:[%s4256 + $0x1d0] sm:$0xff]
        %v4316 = vld [vmem:[%s4256 + $0x1d8] sm:$0xff]
        %v4317 = vld [vmem:[%s4256 + $0x1e0] sm:$0xff]
        %v4318 = vld [vmem:[%s4256 + $0x1e8] sm:$0xff]
        %v4319 = vld [vmem:[%s4256 + $0x1f0] sm:$0xff]
        %v4320 = vld [vmem:[%s4256 + $0x1f8] sm:$0xff]
        %v4321 = vld [vmem:[%s4256 + $0x200] sm:$0xff]
        %v4322 = vld [vmem:[%s4256 + $0x208] sm:$0xff]
        %v4323 = vld [vmem:[%s4256 + $0x210] sm:$0xff]
        %v4324 = vld [vmem:[%s4256 + $0x218] sm:$0xff]
        %v4325 = vld [vmem:[%s4256 + $0x220] sm:$0xff]
        %v4326 = vld [vmem:[%s4256 + $0x228] sm:$0xff]
        %v4327 = vld [vmem:[%s4256 + $0x230] sm:$0xff]
        %v4328 = vld [vmem:[%s4256 + $0x238] sm:$0xff]
        %v4329 = vld [vmem:[%s4256 + $0x240] sm:$0xff]
        %v4330 = vld [vmem:[%s4256 + $0x248] sm:$0xff]
        %v4331 = vld [vmem:[%s4256 + $0x250] sm:$0xff]
        %v4332 = vld [vmem:[%s4256 + $0x258] sm:$0xff]
        %v4333 = vld [vmem:[%s4256 + $0x260] sm:$0xff]
        %v4334 = vld [vmem:[%s4256 + $0x268] sm:$0xff]
        %v4335 = vld [vmem:[%s4256 + $0x270] sm:$0xff]
        %v4336 = vld [vmem:[%s4256 + $0x278] sm:$0xff]
        %v4337 = vld [vmem:[%s4256 + $0x280] sm:$0xff]
        %v4338 = vld [vmem:[%s4256 + $0x288] sm:$0xff]
        %v4339 = vld [vmem:[%s4256 + $0x290] sm:$0xff]
        %v4340 = vld [vmem:[%s4256 + $0x298] sm:$0xff]
        %v4341 = vld [vmem:[%s4256 + $0x2a0] sm:$0xff]
        %v4342 = vld [vmem:[%s4256 + $0x2a8] sm:$0xff]
        %v4343 = vld [vmem:[%s4256 + $0x2b0] sm:$0xff]
        %v4344 = vld [vmem:[%s4256 + $0x2b8] sm:$0xff]
        %v4345 = vld [vmem:[%s4256 + $0x2c0] sm:$0xff]
        %v4346 = vld [vmem:[%s4256 + $0x2c8] sm:$0xff]
        %v4347 = vld [vmem:[%s4256 + $0x2d0] sm:$0xff]
        %v4348 = vld [vmem:[%s4256 + $0x2d8] sm:$0xff]
        %v4349 = vld [vmem:[%s4256 + $0x2e0] sm:$0xff]
        %v4350 = vld [vmem:[%s4256 + $0x2e8] sm:$0xff]
        %v4351 = vld [vmem:[%s4256 + $0x2f0] sm:$0xff]
        %v4352 = vld [vmem:[%s4256 + $0x2f8] sm:$0xff]
        %v4353 = vld [vmem:[%s4256 + $0x300] sm:$0xff]
        %v4354 = vld [vmem:[%s4256 + $0x308] sm:$0xff]
        %v4355 = vld [vmem:[%s4256 + $0x310] sm:$0xff]
        %v4356 = vld [vmem:[%s4256 + $0x318] sm:$0xff]
        %v4357 = vld [vmem:[%s4256 + $0x320] sm:$0xff]
        %v4358 = vld [vmem:[%s4256 + $0x328] sm:$0xff]
        %v4359 = vld [vmem:[%s4256 + $0x330] sm:$0xff]
        %v4360 = vld [vmem:[%s4256 + $0x338] sm:$0xff]
        %v4361 = vld [vmem:[%s4256 + $0x340] sm:$0xff]
        %v4362 = vld [vmem:[%s4256 + $0x348] sm:$0xff]
        %v4363 = vld [vmem:[%s4256 + $0x350] sm:$0xff]
        %v4364 = vld [vmem:[%s4256 + $0x358] sm:$0xff]
        %v4365 = vld [vmem:[%s4256 + $0x360] sm:$0xff]
        %v4366 = vld [vmem:[%s4256 + $0x368] sm:$0xff]
        %v4367 = vld [vmem:[%s4256 + $0x370] sm:$0xff]
        %v4368 = vld [vmem:[%s4256 + $0x378] sm:$0xff]
        %v4369 = vld [vmem:[%s4256 + $0x380] sm:$0xff]
        %v4370 = vld [vmem:[%s4256 + $0x388] sm:$0xff]
        %v4371 = vld [vmem:[%s4256 + $0x390] sm:$0xff]
        %v4372 = vld [vmem:[%s4256 + $0x398] sm:$0xff]
        %v4373 = vld [vmem:[%s4256 + $0x3a0] sm:$0xff]
        %v4374 = vld [vmem:[%s4256 + $0x3a8] sm:$0xff]
        %v4375 = vld [vmem:[%s4256 + $0x3b0] sm:$0xff]
        %v4376 = vld [vmem:[%s4256 + $0x3b8] sm:$0xff]
        %v4377 = vld [vmem:[%s4256 + $0x3c0] sm:$0xff]
        %v4378 = vld [vmem:[%s4256 + $0x3c8] sm:$0xff]
        %v4379 = vld [vmem:[%s4256 + $0x3d0] sm:$0xff]
        %v4380 = vld [vmem:[%s4256 + $0x3d8] sm:$0xff]
        %v4381 = vld [vmem:[%s4256 + $0x3e0] sm:$0xff]
        %v4382 = vld [vmem:[%s4256 + $0x3e8] sm:$0xff]
        %v4383 = vld [vmem:[%s4256 + $0x3f0] sm:$0xff]
        %v4384 = vld [vmem:[%s4256 + $0x3f8] sm:$0xff]
        %s4385 = scalar_lea.vmem [#allocation10], 12
        %v4386 = vld [vmem:[%s4385] sm:$0xf]
        %v4388 = vperm.slane %v4386, 0
        %v4389 = vperm.slane %v4386, 1
        %v4390 = vperm.slane %v4386, 2
        %v4391 = vperm.slane %v4386, 3
        %v4524 = vunpack.c.l.b16 %v4257
        %v4525 = vunpack.c.h.b16 %v4257
        %v4526 = vunpack.c.l.b16 %v4258
        %v4527 = vunpack.c.h.b16 %v4258
        %v4528 = vunpack.c.l.b16 %v4259
        %v4529 = vunpack.c.h.b16 %v4259
        %v4530 = vunpack.c.l.b16 %v4260
        %v4531 = vunpack.c.h.b16 %v4260
        %v4532 = vunpack.c.l.b16 %v4261
        %v4533 = vunpack.c.h.b16 %v4261
        %v4534 = vunpack.c.l.b16 %v4262
        %v4535 = vunpack.c.h.b16 %v4262
        %v4536 = vunpack.c.l.b16 %v4263
        %v4537 = vunpack.c.h.b16 %v4263
        %v4538 = vunpack.c.l.b16 %v4264
        %v4539 = vunpack.c.h.b16 %v4264
        %v4540 = vunpack.c.l.b16 %v4265
        %v4541 = vunpack.c.h.b16 %v4265
        %v4542 = vunpack.c.l.b16 %v4266
        %v4543 = vunpack.c.h.b16 %v4266
        %v4544 = vunpack.c.l.b16 %v4267
        %v4545 = vunpack.c.h.b16 %v4267
        %v4546 = vunpack.c.l.b16 %v4268
        %v4547 = vunpack.c.h.b16 %v4268
        %v4548 = vunpack.c.l.b16 %v4269
        %v4549 = vunpack.c.h.b16 %v4269
        %v4550 = vunpack.c.l.b16 %v4270
        %v4551 = vunpack.c.h.b16 %v4270
        %v4552 = vunpack.c.l.b16 %v4271
        %v4553 = vunpack.c.h.b16 %v4271
        %v4554 = vunpack.c.l.b16 %v4272
        %v4555 = vunpack.c.h.b16 %v4272
        %v4556 = vunpack.c.l.b16 %v4273
        %v4557 = vunpack.c.h.b16 %v4273
        %v4558 = vunpack.c.l.b16 %v4274
        %v4559 = vunpack.c.h.b16 %v4274
        %v4560 = vunpack.c.l.b16 %v4275
        %v4561 = vunpack.c.h.b16 %v4275
        %v4562 = vunpack.c.l.b16 %v4276
        %v4563 = vunpack.c.h.b16 %v4276
        %v4564 = vunpack.c.l.b16 %v4277
        %v4565 = vunpack.c.h.b16 %v4277
        %v4566 = vunpack.c.l.b16 %v4278
        %v4567 = vunpack.c.h.b16 %v4278
        %v4568 = vunpack.c.l.b16 %v4279
        %v4569 = vunpack.c.h.b16 %v4279
        %v4570 = vunpack.c.l.b16 %v4280
        %v4571 = vunpack.c.h.b16 %v4280
        %v4572 = vunpack.c.l.b16 %v4281
        %v4573 = vunpack.c.h.b16 %v4281
        %v4574 = vunpack.c.l.b16 %v4282
        %v4575 = vunpack.c.h.b16 %v4282
        %v4576 = vunpack.c.l.b16 %v4283
        %v4577 = vunpack.c.h.b16 %v4283
        %v4578 = vunpack.c.l.b16 %v4284
        %v4579 = vunpack.c.h.b16 %v4284
        %v4580 = vunpack.c.l.b16 %v4285
        %v4581 = vunpack.c.h.b16 %v4285
        %v4582 = vunpack.c.l.b16 %v4286
        %v4583 = vunpack.c.h.b16 %v4286
        %v4584 = vunpack.c.l.b16 %v4287
        %v4585 = vunpack.c.h.b16 %v4287
        %v4586 = vunpack.c.l.b16 %v4288
        %v4587 = vunpack.c.h.b16 %v4288
        %v4588 = vunpack.c.l.b16 %v4289
        %v4589 = vunpack.c.h.b16 %v4289
        %v4590 = vunpack.c.l.b16 %v4290
        %v4591 = vunpack.c.h.b16 %v4290
        %v4592 = vunpack.c.l.b16 %v4291
        %v4593 = vunpack.c.h.b16 %v4291
        %v4594 = vunpack.c.l.b16 %v4292
        %v4595 = vunpack.c.h.b16 %v4292
        %v4596 = vunpack.c.l.b16 %v4293
        %v4597 = vunpack.c.h.b16 %v4293
        %v4598 = vunpack.c.l.b16 %v4294
        %v4599 = vunpack.c.h.b16 %v4294
        %v4600 = vunpack.c.l.b16 %v4295
        %v4601 = vunpack.c.h.b16 %v4295
        %v4602 = vunpack.c.l.b16 %v4296
        %v4603 = vunpack.c.h.b16 %v4296
        %v4604 = vunpack.c.l.b16 %v4297
        %v4605 = vunpack.c.h.b16 %v4297
        %v4606 = vunpack.c.l.b16 %v4298
        %v4607 = vunpack.c.h.b16 %v4298
        %v4608 = vunpack.c.l.b16 %v4299
        %v4609 = vunpack.c.h.b16 %v4299
        %v4610 = vunpack.c.l.b16 %v4300
        %v4611 = vunpack.c.h.b16 %v4300
        %v4612 = vunpack.c.l.b16 %v4301
        %v4613 = vunpack.c.h.b16 %v4301
        %v4614 = vunpack.c.l.b16 %v4302
        %v4615 = vunpack.c.h.b16 %v4302
        %v4616 = vunpack.c.l.b16 %v4303
        %v4617 = vunpack.c.h.b16 %v4303
        %v4618 = vunpack.c.l.b16 %v4304
        %v4619 = vunpack.c.h.b16 %v4304
        %v4620 = vunpack.c.l.b16 %v4305
        %v4621 = vunpack.c.h.b16 %v4305
        %v4622 = vunpack.c.l.b16 %v4306
        %v4623 = vunpack.c.h.b16 %v4306
        %v4624 = vunpack.c.l.b16 %v4307
        %v4625 = vunpack.c.h.b16 %v4307
        %v4626 = vunpack.c.l.b16 %v4308
        %v4627 = vunpack.c.h.b16 %v4308
        %v4628 = vunpack.c.l.b16 %v4309
        %v4629 = vunpack.c.h.b16 %v4309
        %v4630 = vunpack.c.l.b16 %v4310
        %v4631 = vunpack.c.h.b16 %v4310
        %v4632 = vunpack.c.l.b16 %v4311
        %v4633 = vunpack.c.h.b16 %v4311
        %v4634 = vunpack.c.l.b16 %v4312
        %v4635 = vunpack.c.h.b16 %v4312
        %v4636 = vunpack.c.l.b16 %v4313
        %v4637 = vunpack.c.h.b16 %v4313
        %v4638 = vunpack.c.l.b16 %v4314
        %v4639 = vunpack.c.h.b16 %v4314
        %v4640 = vunpack.c.l.b16 %v4315
        %v4641 = vunpack.c.h.b16 %v4315
        %v4642 = vunpack.c.l.b16 %v4316
        %v4643 = vunpack.c.h.b16 %v4316
        %v4644 = vunpack.c.l.b16 %v4317
        %v4645 = vunpack.c.h.b16 %v4317
        %v4646 = vunpack.c.l.b16 %v4318
        %v4647 = vunpack.c.h.b16 %v4318
        %v4648 = vunpack.c.l.b16 %v4319
        %v4649 = vunpack.c.h.b16 %v4319
        %v4650 = vunpack.c.l.b16 %v4320
        %v4651 = vunpack.c.h.b16 %v4320
        %v4652 = vunpack.c.l.b16 %v4321
        %v4653 = vunpack.c.h.b16 %v4321
        %v4654 = vunpack.c.l.b16 %v4322
        %v4655 = vunpack.c.h.b16 %v4322
        %v4656 = vunpack.c.l.b16 %v4323
        %v4657 = vunpack.c.h.b16 %v4323
        %v4658 = vunpack.c.l.b16 %v4324
        %v4659 = vunpack.c.h.b16 %v4324
        %v4660 = vunpack.c.l.b16 %v4325
        %v4661 = vunpack.c.h.b16 %v4325
        %v4662 = vunpack.c.l.b16 %v4326
        %v4663 = vunpack.c.h.b16 %v4326
        %v4664 = vunpack.c.l.b16 %v4327
        %v4665 = vunpack.c.h.b16 %v4327
        %v4666 = vunpack.c.l.b16 %v4328
        %v4667 = vunpack.c.h.b16 %v4328
        %v4668 = vunpack.c.l.b16 %v4329
        %v4669 = vunpack.c.h.b16 %v4329
        %v4670 = vunpack.c.l.b16 %v4330
        %v4671 = vunpack.c.h.b16 %v4330
        %v4672 = vunpack.c.l.b16 %v4331
        %v4673 = vunpack.c.h.b16 %v4331
        %v4674 = vunpack.c.l.b16 %v4332
        %v4675 = vunpack.c.h.b16 %v4332
        %v4676 = vunpack.c.l.b16 %v4333
        %v4677 = vunpack.c.h.b16 %v4333
        %v4678 = vunpack.c.l.b16 %v4334
        %v4679 = vunpack.c.h.b16 %v4334
        %v4680 = vunpack.c.l.b16 %v4335
        %v4681 = vunpack.c.h.b16 %v4335
        %v4682 = vunpack.c.l.b16 %v4336
        %v4683 = vunpack.c.h.b16 %v4336
        %v4684 = vunpack.c.l.b16 %v4337
        %v4685 = vunpack.c.h.b16 %v4337
        %v4686 = vunpack.c.l.b16 %v4338
        %v4687 = vunpack.c.h.b16 %v4338
        %v4688 = vunpack.c.l.b16 %v4339
        %v4689 = vunpack.c.h.b16 %v4339
        %v4690 = vunpack.c.l.b16 %v4340
        %v4691 = vunpack.c.h.b16 %v4340
        %v4692 = vunpack.c.l.b16 %v4341
        %v4693 = vunpack.c.h.b16 %v4341
        %v4694 = vunpack.c.l.b16 %v4342
        %v4695 = vunpack.c.h.b16 %v4342
        %v4696 = vunpack.c.l.b16 %v4343
        %v4697 = vunpack.c.h.b16 %v4343
        %v4698 = vunpack.c.l.b16 %v4344
        %v4699 = vunpack.c.h.b16 %v4344
        %v4700 = vunpack.c.l.b16 %v4345
        %v4701 = vunpack.c.h.b16 %v4345
        %v4702 = vunpack.c.l.b16 %v4346
        %v4703 = vunpack.c.h.b16 %v4346
        %v4704 = vunpack.c.l.b16 %v4347
        %v4705 = vunpack.c.h.b16 %v4347
        %v4706 = vunpack.c.l.b16 %v4348
        %v4707 = vunpack.c.h.b16 %v4348
        %v4708 = vunpack.c.l.b16 %v4349
        %v4709 = vunpack.c.h.b16 %v4349
        %v4710 = vunpack.c.l.b16 %v4350
        %v4711 = vunpack.c.h.b16 %v4350
        %v4712 = vunpack.c.l.b16 %v4351
        %v4713 = vunpack.c.h.b16 %v4351
        %v4714 = vunpack.c.l.b16 %v4352
        %v4715 = vunpack.c.h.b16 %v4352
        %v4716 = vunpack.c.l.b16 %v4353
        %v4717 = vunpack.c.h.b16 %v4353
        %v4718 = vunpack.c.l.b16 %v4354
        %v4719 = vunpack.c.h.b16 %v4354
        %v4720 = vunpack.c.l.b16 %v4355
        %v4721 = vunpack.c.h.b16 %v4355
        %v4722 = vunpack.c.l.b16 %v4356
        %v4723 = vunpack.c.h.b16 %v4356
        %v4724 = vunpack.c.l.b16 %v4357
        %v4725 = vunpack.c.h.b16 %v4357
        %v4726 = vunpack.c.l.b16 %v4358
        %v4727 = vunpack.c.h.b16 %v4358
        %v4728 = vunpack.c.l.b16 %v4359
        %v4729 = vunpack.c.h.b16 %v4359
        %v4730 = vunpack.c.l.b16 %v4360
        %v4731 = vunpack.c.h.b16 %v4360
        %v4732 = vunpack.c.l.b16 %v4361
        %v4733 = vunpack.c.h.b16 %v4361
        %v4734 = vunpack.c.l.b16 %v4362
        %v4735 = vunpack.c.h.b16 %v4362
        %v4736 = vunpack.c.l.b16 %v4363
        %v4737 = vunpack.c.h.b16 %v4363
        %v4738 = vunpack.c.l.b16 %v4364
        %v4739 = vunpack.c.h.b16 %v4364
        %v4740 = vunpack.c.l.b16 %v4365
        %v4741 = vunpack.c.h.b16 %v4365
        %v4742 = vunpack.c.l.b16 %v4366
        %v4743 = vunpack.c.h.b16 %v4366
        %v4744 = vunpack.c.l.b16 %v4367
        %v4745 = vunpack.c.h.b16 %v4367
        %v4746 = vunpack.c.l.b16 %v4368
        %v4747 = vunpack.c.h.b16 %v4368
        %v4748 = vunpack.c.l.b16 %v4369
        %v4749 = vunpack.c.h.b16 %v4369
        %v4750 = vunpack.c.l.b16 %v4370
        %v4751 = vunpack.c.h.b16 %v4370
        %v4752 = vunpack.c.l.b16 %v4371
        %v4753 = vunpack.c.h.b16 %v4371
        %v4754 = vunpack.c.l.b16 %v4372
        %v4755 = vunpack.c.h.b16 %v4372
        %v4756 = vunpack.c.l.b16 %v4373
        %v4757 = vunpack.c.h.b16 %v4373
        %v4758 = vunpack.c.l.b16 %v4374
        %v4759 = vunpack.c.h.b16 %v4374
        %v4760 = vunpack.c.l.b16 %v4375
        %v4761 = vunpack.c.h.b16 %v4375
        %v4762 = vunpack.c.l.b16 %v4376
        %v4763 = vunpack.c.h.b16 %v4376
        %v4764 = vunpack.c.l.b16 %v4377
        %v4765 = vunpack.c.h.b16 %v4377
        %v4766 = vunpack.c.l.b16 %v4378
        %v4767 = vunpack.c.h.b16 %v4378
        %v4768 = vunpack.c.l.b16 %v4379
        %v4769 = vunpack.c.h.b16 %v4379
        %v4770 = vunpack.c.l.b16 %v4380
        %v4771 = vunpack.c.h.b16 %v4380
        %v4772 = vunpack.c.l.b16 %v4381
        %v4773 = vunpack.c.h.b16 %v4381
        %v4774 = vunpack.c.l.b16 %v4382
        %v4775 = vunpack.c.h.b16 %v4382
        %v4776 = vunpack.c.l.b16 %v4383
        %v4777 = vunpack.c.h.b16 %v4383
        %v4778 = vunpack.c.l.b16 %v4384
        %v4779 = vunpack.c.h.b16 %v4384
        %v4780 = vpack.c.b16 %v4528, %v4524
        %v4781 = vpack.c.b16 %v4529, %v4525
        %v4782 = vpack.c.b16 %v4530, %v4526
        %v4783 = vpack.c.b16 %v4531, %v4527
        %v4784 = vpack.c.b16 %v4536, %v4532
        %v4785 = vpack.c.b16 %v4537, %v4533
        %v4786 = vpack.c.b16 %v4538, %v4534
        %v4787 = vpack.c.b16 %v4539, %v4535
        %v4788 = vpack.c.b16 %v4544, %v4540
        %v4789 = vpack.c.b16 %v4545, %v4541
        %v4790 = vpack.c.b16 %v4546, %v4542
        %v4791 = vpack.c.b16 %v4547, %v4543
        %v4792 = vpack.c.b16 %v4552, %v4548
        %v4793 = vpack.c.b16 %v4553, %v4549
        %v4794 = vpack.c.b16 %v4554, %v4550
        %v4795 = vpack.c.b16 %v4555, %v4551
        %v4796 = vpack.c.b16 %v4560, %v4556
        %v4797 = vpack.c.b16 %v4561, %v4557
        %v4798 = vpack.c.b16 %v4562, %v4558
        %v4799 = vpack.c.b16 %v4563, %v4559
        %v4800 = vpack.c.b16 %v4568, %v4564
        %v4801 = vpack.c.b16 %v4569, %v4565
        %v4802 = vpack.c.b16 %v4570, %v4566
        %v4803 = vpack.c.b16 %v4571, %v4567
        %v4804 = vpack.c.b16 %v4576, %v4572
        %v4805 = vpack.c.b16 %v4577, %v4573
        %v4806 = vpack.c.b16 %v4578, %v4574
        %v4807 = vpack.c.b16 %v4579, %v4575
        %v4808 = vpack.c.b16 %v4584, %v4580
        %v4809 = vpack.c.b16 %v4585, %v4581
        %v4810 = vpack.c.b16 %v4586, %v4582
        %v4811 = vpack.c.b16 %v4587, %v4583
        %v4812 = vpack.c.b16 %v4592, %v4588
        %v4813 = vpack.c.b16 %v4593, %v4589
        %v4814 = vpack.c.b16 %v4594, %v4590
        %v4815 = vpack.c.b16 %v4595, %v4591
        %v4816 = vpack.c.b16 %v4600, %v4596
        %v4817 = vpack.c.b16 %v4601, %v4597
        %v4818 = vpack.c.b16 %v4602, %v4598
        %v4819 = vpack.c.b16 %v4603, %v4599
        %v4820 = vpack.c.b16 %v4608, %v4604
        %v4821 = vpack.c.b16 %v4609, %v4605
        %v4822 = vpack.c.b16 %v4610, %v4606
        %v4823 = vpack.c.b16 %v4611, %v4607
        %v4824 = vpack.c.b16 %v4616, %v4612
        %v4825 = vpack.c.b16 %v4617, %v4613
        %v4826 = vpack.c.b16 %v4618, %v4614
        %v4827 = vpack.c.b16 %v4619, %v4615
        %v4828 = vpack.c.b16 %v4624, %v4620
        %v4829 = vpack.c.b16 %v4625, %v4621
        %v4830 = vpack.c.b16 %v4626, %v4622
        %v4831 = vpack.c.b16 %v4627, %v4623
        %v4832 = vpack.c.b16 %v4632, %v4628
        %v4833 = vpack.c.b16 %v4633, %v4629
        %v4834 = vpack.c.b16 %v4634, %v4630
        %v4835 = vpack.c.b16 %v4635, %v4631
        %v4836 = vpack.c.b16 %v4640, %v4636
        %v4837 = vpack.c.b16 %v4641, %v4637
        %v4838 = vpack.c.b16 %v4642, %v4638
        %v4839 = vpack.c.b16 %v4643, %v4639
        %v4840 = vpack.c.b16 %v4648, %v4644
        %v4841 = vpack.c.b16 %v4649, %v4645
        %v4842 = vpack.c.b16 %v4650, %v4646
        %v4843 = vpack.c.b16 %v4651, %v4647
        %v4844 = vpack.c.b16 %v4656, %v4652
        %v4845 = vpack.c.b16 %v4657, %v4653
        %v4846 = vpack.c.b16 %v4658, %v4654
        %v4847 = vpack.c.b16 %v4659, %v4655
        %v4848 = vpack.c.b16 %v4664, %v4660
        %v4849 = vpack.c.b16 %v4665, %v4661
        %v4850 = vpack.c.b16 %v4666, %v4662
        %v4851 = vpack.c.b16 %v4667, %v4663
        %v4852 = vpack.c.b16 %v4672, %v4668
        %v4853 = vpack.c.b16 %v4673, %v4669
        %v4854 = vpack.c.b16 %v4674, %v4670
        %v4855 = vpack.c.b16 %v4675, %v4671
        %v4856 = vpack.c.b16 %v4680, %v4676
        %v4857 = vpack.c.b16 %v4681, %v4677
        %v4858 = vpack.c.b16 %v4682, %v4678
        %v4859 = vpack.c.b16 %v4683, %v4679
        %v4860 = vpack.c.b16 %v4688, %v4684
        %v4861 = vpack.c.b16 %v4689, %v4685
        %v4862 = vpack.c.b16 %v4690, %v4686
        %v4863 = vpack.c.b16 %v4691, %v4687
        %v4864 = vpack.c.b16 %v4696, %v4692
        %v4865 = vpack.c.b16 %v4697, %v4693
        %v4866 = vpack.c.b16 %v4698, %v4694
        %v4867 = vpack.c.b16 %v4699, %v4695
        %v4868 = vpack.c.b16 %v4704, %v4700
        %v4869 = vpack.c.b16 %v4705, %v4701
        %v4870 = vpack.c.b16 %v4706, %v4702
        %v4871 = vpack.c.b16 %v4707, %v4703
        %v4872 = vpack.c.b16 %v4712, %v4708
        %v4873 = vpack.c.b16 %v4713, %v4709
        %v4874 = vpack.c.b16 %v4714, %v4710
        %v4875 = vpack.c.b16 %v4715, %v4711
        %v4876 = vpack.c.b16 %v4720, %v4716
        %v4877 = vpack.c.b16 %v4721, %v4717
        %v4878 = vpack.c.b16 %v4722, %v4718
        %v4879 = vpack.c.b16 %v4723, %v4719
        %v4880 = vpack.c.b16 %v4728, %v4724
        %v4881 = vpack.c.b16 %v4729, %v4725
        %v4882 = vpack.c.b16 %v4730, %v4726
        %v4883 = vpack.c.b16 %v4731, %v4727
        %v4884 = vpack.c.b16 %v4736, %v4732
        %v4885 = vpack.c.b16 %v4737, %v4733
        %v4886 = vpack.c.b16 %v4738, %v4734
        %v4887 = vpack.c.b16 %v4739, %v4735
        %v4888 = vpack.c.b16 %v4744, %v4740
        %v4889 = vpack.c.b16 %v4745, %v4741
        %v4890 = vpack.c.b16 %v4746, %v4742
        %v4891 = vpack.c.b16 %v4747, %v4743
        %v4892 = vpack.c.b16 %v4752, %v4748
        %v4893 = vpack.c.b16 %v4753, %v4749
        %v4894 = vpack.c.b16 %v4754, %v4750
        %v4895 = vpack.c.b16 %v4755, %v4751
        %v4896 = vpack.c.b16 %v4760, %v4756
        %v4897 = vpack.c.b16 %v4761, %v4757
        %v4898 = vpack.c.b16 %v4762, %v4758
        %v4899 = vpack.c.b16 %v4763, %v4759
        %v4900 = vpack.c.b16 %v4768, %v4764
        %v4901 = vpack.c.b16 %v4769, %v4765
        %v4902 = vpack.c.b16 %v4770, %v4766
        %v4903 = vpack.c.b16 %v4771, %v4767
        %v4904 = vpack.c.b16 %v4776, %v4772
        %v4905 = vpack.c.b16 %v4777, %v4773
        %v4906 = vpack.c.b16 %v4778, %v4774
        %v4907 = vpack.c.b16 %v4779, %v4775
        %5036 = vmatpush.bf16.msra.mxu0 %v4808
        %5037 = vmatpush.bf16.msra.mxu0 %v4804
        %5038 = vmatpush.bf16.msra.mxu0 %v4800
        %5039 = vmatpush.bf16.msra.mxu0 %v4796
        %5040 = vmatpush.bf16.msra.mxu0 %v4792
        %5041 = vmatpush.bf16.msra.mxu0 %v4788
        %5042 = vmatpush.bf16.msra.mxu0 %v4784
        %5043 = vmatpush.bf16.msra.mxu0 %v4780
        %5044 = vmatmul.bf16.gmra.mxu0 %v4252
        %v5045 = vpop.f32.mrf.mxu0
        %v5046 = vadd.f32 %v4388, %v5045
        %v5047 = vpop.f32.mrf.mxu0
        %v5048 = vadd.f32 %v4388, %v5047
        %5049 = vdwg.mxu0
        %5050 = vmatpush.bf16.msra.mxu0 %v4840
        %5051 = vmatpush.bf16.msra.mxu0 %v4836
        %5052 = vmatpush.bf16.msra.mxu0 %v4832
        %5053 = vmatpush.bf16.msra.mxu0 %v4828
        %5054 = vmatpush.bf16.msra.mxu0 %v4824
        %5055 = vmatpush.bf16.msra.mxu0 %v4820
        %5056 = vmatpush.bf16.msra.mxu0 %v4816
        %5057 = vmatpush.bf16.msra.mxu0 %v4812
        %5058 = vmatmul.bf16.gmra.mxu0 %v4253
        %v5059 = vpop.f32.mrf.mxu0
        %v5060 = vadd.f32 %v5046, %v5059
        %v5061 = vpop.f32.mrf.mxu0
        %v5062 = vadd.f32 %v5048, %v5061
        %5063 = vdwg.mxu0
        %5064 = vmatpush.bf16.msra.mxu0 %v4872
        %5065 = vmatpush.bf16.msra.mxu0 %v4868
        %5066 = vmatpush.bf16.msra.mxu0 %v4864
        %5067 = vmatpush.bf16.msra.mxu0 %v4860
        %5068 = vmatpush.bf16.msra.mxu0 %v4856
        %5069 = vmatpush.bf16.msra.mxu0 %v4852
        %5070 = vmatpush.bf16.msra.mxu0 %v4848
        %5071 = vmatpush.bf16.msra.mxu0 %v4844
        %5072 = vmatmul.bf16.gmra.mxu0 %v4254
        %v5073 = vpop.f32.mrf.mxu0
        %v5074 = vadd.f32 %v5060, %v5073
        %v5075 = vpop.f32.mrf.mxu0
        %v5076 = vadd.f32 %v5062, %v5075
        %5077 = vdwg.mxu0
        %5078 = vmatpush.bf16.msra.mxu0 %v4904
        %5079 = vmatpush.bf16.msra.mxu0 %v4900
        %5080 = vmatpush.bf16.msra.mxu0 %v4896
        %5081 = vmatpush.bf16.msra.mxu0 %v4892
        %5082 = vmatpush.bf16.msra.mxu0 %v4888
        %5083 = vmatpush.bf16.msra.mxu0 %v4884
        %5084 = vmatpush.bf16.msra.mxu0 %v4880
        %5085 = vmatpush.bf16.msra.mxu0 %v4876
        %5086 = vmatmul.bf16.gmra.mxu0 %v4255
        %v5087 = vpop.f32.mrf.mxu0
        %v5088 = vadd.f32 %v5074, %v5087
        %v5089 = vpop.f32.mrf.mxu0
        %v5090 = vadd.f32 %v5076, %v5089
        %5091 = vdwg.mxu0
        %5092 = vmatpush.bf16.msra.mxu0 %v4809
        %5093 = vmatpush.bf16.msra.mxu0 %v4805
        %5094 = vmatpush.bf16.msra.mxu0 %v4801
        %5095 = vmatpush.bf16.msra.mxu0 %v4797
        %5096 = vmatpush.bf16.msra.mxu0 %v4793
        %5097 = vmatpush.bf16.msra.mxu0 %v4789
        %5098 = vmatpush.bf16.msra.mxu0 %v4785
        %5099 = vmatpush.bf16.msra.mxu0 %v4781
        %5100 = vmatmul.bf16.gmra.mxu0 %v4252
        %v5101 = vpop.f32.mrf.mxu0
        %v5102 = vadd.f32 %v4389, %v5101
        %v5103 = vpop.f32.mrf.mxu0
        %v5104 = vadd.f32 %v4389, %v5103
        %5105 = vdwg.mxu0
        %5106 = vmatpush.bf16.msra.mxu0 %v4841
        %5107 = vmatpush.bf16.msra.mxu0 %v4837
        %5108 = vmatpush.bf16.msra.mxu0 %v4833
        %5109 = vmatpush.bf16.msra.mxu0 %v4829
        %5110 = vmatpush.bf16.msra.mxu0 %v4825
        %5111 = vmatpush.bf16.msra.mxu0 %v4821
        %5112 = vmatpush.bf16.msra.mxu0 %v4817
        %5113 = vmatpush.bf16.msra.mxu0 %v4813
        %5114 = vmatmul.bf16.gmra.mxu0 %v4253
        %v5115 = vpop.f32.mrf.mxu0
        %v5116 = vadd.f32 %v5102, %v5115
        %v5117 = vpop.f32.mrf.mxu0
        %v5118 = vadd.f32 %v5104, %v5117
        %5119 = vdwg.mxu0
        %5120 = vmatpush.bf16.msra.mxu0 %v4873
        %5121 = vmatpush.bf16.msra.mxu0 %v4869
        %5122 = vmatpush.bf16.msra.mxu0 %v4865
        %5123 = vmatpush.bf16.msra.mxu0 %v4861
        %5124 = vmatpush.bf16.msra.mxu0 %v4857
        %5125 = vmatpush.bf16.msra.mxu0 %v4853
        %5126 = vmatpush.bf16.msra.mxu0 %v4849
        %5127 = vmatpush.bf16.msra.mxu0 %v4845
        %5128 = vmatmul.bf16.gmra.mxu0 %v4254
        %v5129 = vpop.f32.mrf.mxu0
        %v5130 = vadd.f32 %v5116, %v5129
        %v5131 = vpop.f32.mrf.mxu0
        %v5132 = vadd.f32 %v5118, %v5131
        %5133 = vdwg.mxu0
        %5134 = vmatpush.bf16.msra.mxu0 %v4905
        %5135 = vmatpush.bf16.msra.mxu0 %v4901
        %5136 = vmatpush.bf16.msra.mxu0 %v4897
        %5137 = vmatpush.bf16.msra.mxu0 %v4893
        %5138 = vmatpush.bf16.msra.mxu0 %v4889
        %5139 = vmatpush.bf16.msra.mxu0 %v4885
        %5140 = vmatpush.bf16.msra.mxu0 %v4881
        %5141 = vmatpush.bf16.msra.mxu0 %v4877
        %5142 = vmatmul.bf16.gmra.mxu0 %v4255
        %v5143 = vpop.f32.mrf.mxu0
        %v5144 = vadd.f32 %v5130, %v5143
        %v5145 = vpop.f32.mrf.mxu0
        %v5146 = vadd.f32 %v5132, %v5145
        %5147 = vdwg.mxu0
        %5148 = vmatpush.bf16.msra.mxu0 %v4810
        %5149 = vmatpush.bf16.msra.mxu0 %v4806
        %5150 = vmatpush.bf16.msra.mxu0 %v4802
        %5151 = vmatpush.bf16.msra.mxu0 %v4798
        %5152 = vmatpush.bf16.msra.mxu0 %v4794
        %5153 = vmatpush.bf16.msra.mxu0 %v4790
        %5154 = vmatpush.bf16.msra.mxu0 %v4786
        %5155 = vmatpush.bf16.msra.mxu0 %v4782
        %5156 = vmatmul.bf16.gmra.mxu0 %v4252
        %v5157 = vpop.f32.mrf.mxu0
        %v5158 = vadd.f32 %v4390, %v5157
        %v5159 = vpop.f32.mrf.mxu0
        %v5160 = vadd.f32 %v4390, %v5159
        %5161 = vdwg.mxu0
        %5162 = vmatpush.bf16.msra.mxu0 %v4842
        %5163 = vmatpush.bf16.msra.mxu0 %v4838
        %5164 = vmatpush.bf16.msra.mxu0 %v4834
        %5165 = vmatpush.bf16.msra.mxu0 %v4830
        %5166 = vmatpush.bf16.msra.mxu0 %v4826
        %5167 = vmatpush.bf16.msra.mxu0 %v4822
        %5168 = vmatpush.bf16.msra.mxu0 %v4818
        %5169 = vmatpush.bf16.msra.mxu0 %v4814
        %5170 = vmatmul.bf16.gmra.mxu0 %v4253
        %v5171 = vpop.f32.mrf.mxu0
        %v5172 = vadd.f32 %v5158, %v5171
        %v5173 = vpop.f32.mrf.mxu0
        %v5174 = vadd.f32 %v5160, %v5173
        %5175 = vdwg.mxu0
        %5176 = vmatpush.bf16.msra.mxu0 %v4874
        %5177 = vmatpush.bf16.msra.mxu0 %v4870
        %5178 = vmatpush.bf16.msra.mxu0 %v4866
        %5179 = vmatpush.bf16.msra.mxu0 %v4862
        %5180 = vmatpush.bf16.msra.mxu0 %v4858
        %5181 = vmatpush.bf16.msra.mxu0 %v4854
        %5182 = vmatpush.bf16.msra.mxu0 %v4850
        %5183 = vmatpush.bf16.msra.mxu0 %v4846
        %5184 = vmatmul.bf16.gmra.mxu0 %v4254
        %v5185 = vpop.f32.mrf.mxu0
        %v5186 = vadd.f32 %v5172, %v5185
        %v5187 = vpop.f32.mrf.mxu0
        %v5188 = vadd.f32 %v5174, %v5187
        %5189 = vdwg.mxu0
        %5190 = vmatpush.bf16.msra.mxu0 %v4906
        %5191 = vmatpush.bf16.msra.mxu0 %v4902
        %5192 = vmatpush.bf16.msra.mxu0 %v4898
        %5193 = vmatpush.bf16.msra.mxu0 %v4894
        %5194 = vmatpush.bf16.msra.mxu0 %v4890
        %5195 = vmatpush.bf16.msra.mxu0 %v4886
        %5196 = vmatpush.bf16.msra.mxu0 %v4882
        %5197 = vmatpush.bf16.msra.mxu0 %v4878
        %5198 = vmatmul.bf16.gmra.mxu0 %v4255
        %v5199 = vpop.f32.mrf.mxu0
        %v5200 = vadd.f32 %v5186, %v5199
        %v5201 = vpop.f32.mrf.mxu0
        %v5202 = vadd.f32 %v5188, %v5201
        %5203 = vdwg.mxu0
        %5204 = vmatpush.bf16.msra.mxu0 %v4811
        %5205 = vmatpush.bf16.msra.mxu0 %v4807
        %5206 = vmatpush.bf16.msra.mxu0 %v4803
        %5207 = vmatpush.bf16.msra.mxu0 %v4799
        %5208 = vmatpush.bf16.msra.mxu0 %v4795
        %5209 = vmatpush.bf16.msra.mxu0 %v4791
        %5210 = vmatpush.bf16.msra.mxu0 %v4787
        %5211 = vmatpush.bf16.msra.mxu0 %v4783
        %5212 = vmatmul.bf16.gmra.mxu0 %v4252
        %v5213 = vpop.f32.mrf.mxu0
        %v5214 = vadd.f32 %v4391, %v5213
        %v5215 = vpop.f32.mrf.mxu0
        %v5216 = vadd.f32 %v4391, %v5215
        %5217 = vdwg.mxu0
        %5218 = vmatpush.bf16.msra.mxu0 %v4843
        %5219 = vmatpush.bf16.msra.mxu0 %v4839
        %5220 = vmatpush.bf16.msra.mxu0 %v4835
        %5221 = vmatpush.bf16.msra.mxu0 %v4831
        %5222 = vmatpush.bf16.msra.mxu0 %v4827
        %5223 = vmatpush.bf16.msra.mxu0 %v4823
        %5224 = vmatpush.bf16.msra.mxu0 %v4819
        %5225 = vmatpush.bf16.msra.mxu0 %v4815
        %5226 = vmatmul.bf16.gmra.mxu0 %v4253
        %v5227 = vpop.f32.mrf.mxu0
        %v5228 = vadd.f32 %v5214, %v5227
        %v5229 = vpop.f32.mrf.mxu0
        %v5230 = vadd.f32 %v5216, %v5229
        %5231 = vdwg.mxu0
        %5232 = vmatpush.bf16.msra.mxu0 %v4875
        %5233 = vmatpush.bf16.msra.mxu0 %v4871
        %5234 = vmatpush.bf16.msra.mxu0 %v4867
        %5235 = vmatpush.bf16.msra.mxu0 %v4863
        %5236 = vmatpush.bf16.msra.mxu0 %v4859
        %5237 = vmatpush.bf16.msra.mxu0 %v4855
        %5238 = vmatpush.bf16.msra.mxu0 %v4851
        %5239 = vmatpush.bf16.msra.mxu0 %v4847
        %5240 = vmatmul.bf16.gmra.mxu0 %v4254
        %v5241 = vpop.f32.mrf.mxu0
        %v5242 = vadd.f32 %v5228, %v5241
        %v5243 = vpop.f32.mrf.mxu0
        %v5244 = vadd.f32 %v5230, %v5243
        %5245 = vdwg.mxu0
        %5246 = vmatpush.bf16.msra.mxu0 %v4907
        %5247 = vmatpush.bf16.msra.mxu0 %v4903
        %5248 = vmatpush.bf16.msra.mxu0 %v4899
        %5249 = vmatpush.bf16.msra.mxu0 %v4895
        %5250 = vmatpush.bf16.msra.mxu0 %v4891
        %5251 = vmatpush.bf16.msra.mxu0 %v4887
        %5252 = vmatpush.bf16.msra.mxu0 %v4883
        %5253 = vmatpush.bf16.msra.mxu0 %v4879
        %5254 = vmatmul.bf16.gmra.mxu0 %v4255
        %v5255 = vpop.f32.mrf.mxu0
        %v5256 = vadd.f32 %v5242, %v5255
        %v5257 = vpop.f32.mrf.mxu0
        %v5258 = vadd.f32 %v5244, %v5257
        %5259 = vdwg.mxu0
        %v5260 = vmax.f32 %v5088, 0.0
        %v5261 = vmax.f32 %v5144, 0.0
        %v5262 = vmax.f32 %v5200, 0.0
        %v5263 = vmax.f32 %v5256, 0.0
        %v5264 = vmax.f32 %v5090, 0.0
        %v5265 = vmax.f32 %v5146, 0.0
        %v5266 = vmax.f32 %v5202, 0.0
        %v5267 = vmax.f32 %v5258, 0.0
        %v5268 = vpack.c.bf16 %v5264, %v5260
        %v5269 = vpack.c.bf16 %v5265, %v5261
        %v5270 = vpack.c.bf16 %v5266, %v5262
        %v5271 = vpack.c.bf16 %v5267, %v5263
        %s5272 = scalar_lea.vmem [#allocation9], 4096
        %v5273 = vld [vmem:[%s5272] sm:$0xff]
        %v5274 = vld [vmem:[%s5272 + $0x8] sm:$0xff]
        %v5275 = vld [vmem:[%s5272 + $0x10] sm:$0xff]
        %v5276 = vld [vmem:[%s5272 + $0x18] sm:$0xff]
        %v5277 = vld [vmem:[%s5272 + $0x20] sm:$0xff]
        %v5278 = vld [vmem:[%s5272 + $0x28] sm:$0xff]
        %v5279 = vld [vmem:[%s5272 + $0x30] sm:$0xff]
        %v5280 = vld [vmem:[%s5272 + $0x38] sm:$0xff]
        %v5281 = vld [vmem:[%s5272 + $0x40] sm:$0xff]
        %v5282 = vld [vmem:[%s5272 + $0x48] sm:$0xff]
        %v5283 = vld [vmem:[%s5272 + $0x50] sm:$0xff]
        %v5284 = vld [vmem:[%s5272 + $0x58] sm:$0xff]
        %v5285 = vld [vmem:[%s5272 + $0x60] sm:$0xff]
        %v5286 = vld [vmem:[%s5272 + $0x68] sm:$0xff]
        %v5287 = vld [vmem:[%s5272 + $0x70] sm:$0xff]
        %v5288 = vld [vmem:[%s5272 + $0x78] sm:$0xff]
        %v5289 = vld [vmem:[%s5272 + $0x80] sm:$0xff]
        %v5290 = vld [vmem:[%s5272 + $0x88] sm:$0xff]
        %v5291 = vld [vmem:[%s5272 + $0x90] sm:$0xff]
        %v5292 = vld [vmem:[%s5272 + $0x98] sm:$0xff]
        %v5293 = vld [vmem:[%s5272 + $0xa0] sm:$0xff]
        %v5294 = vld [vmem:[%s5272 + $0xa8] sm:$0xff]
        %v5295 = vld [vmem:[%s5272 + $0xb0] sm:$0xff]
        %v5296 = vld [vmem:[%s5272 + $0xb8] sm:$0xff]
        %v5297 = vld [vmem:[%s5272 + $0xc0] sm:$0xff]
        %v5298 = vld [vmem:[%s5272 + $0xc8] sm:$0xff]
        %v5299 = vld [vmem:[%s5272 + $0xd0] sm:$0xff]
        %v5300 = vld [vmem:[%s5272 + $0xd8] sm:$0xff]
        %v5301 = vld [vmem:[%s5272 + $0xe0] sm:$0xff]
        %v5302 = vld [vmem:[%s5272 + $0xe8] sm:$0xff]
        %v5303 = vld [vmem:[%s5272 + $0xf0] sm:$0xff]
        %v5304 = vld [vmem:[%s5272 + $0xf8] sm:$0xff]
        %v5305 = vld [vmem:[%s5272 + $0x100] sm:$0xff]
        %v5306 = vld [vmem:[%s5272 + $0x108] sm:$0xff]
        %v5307 = vld [vmem:[%s5272 + $0x110] sm:$0xff]
        %v5308 = vld [vmem:[%s5272 + $0x118] sm:$0xff]
        %v5309 = vld [vmem:[%s5272 + $0x120] sm:$0xff]
        %v5310 = vld [vmem:[%s5272 + $0x128] sm:$0xff]
        %v5311 = vld [vmem:[%s5272 + $0x130] sm:$0xff]
        %v5312 = vld [vmem:[%s5272 + $0x138] sm:$0xff]
        %v5313 = vld [vmem:[%s5272 + $0x140] sm:$0xff]
        %v5314 = vld [vmem:[%s5272 + $0x148] sm:$0xff]
        %v5315 = vld [vmem:[%s5272 + $0x150] sm:$0xff]
        %v5316 = vld [vmem:[%s5272 + $0x158] sm:$0xff]
        %v5317 = vld [vmem:[%s5272 + $0x160] sm:$0xff]
        %v5318 = vld [vmem:[%s5272 + $0x168] sm:$0xff]
        %v5319 = vld [vmem:[%s5272 + $0x170] sm:$0xff]
        %v5320 = vld [vmem:[%s5272 + $0x178] sm:$0xff]
        %v5321 = vld [vmem:[%s5272 + $0x180] sm:$0xff]
        %v5322 = vld [vmem:[%s5272 + $0x188] sm:$0xff]
        %v5323 = vld [vmem:[%s5272 + $0x190] sm:$0xff]
        %v5324 = vld [vmem:[%s5272 + $0x198] sm:$0xff]
        %v5325 = vld [vmem:[%s5272 + $0x1a0] sm:$0xff]
        %v5326 = vld [vmem:[%s5272 + $0x1a8] sm:$0xff]
        %v5327 = vld [vmem:[%s5272 + $0x1b0] sm:$0xff]
        %v5328 = vld [vmem:[%s5272 + $0x1b8] sm:$0xff]
        %v5329 = vld [vmem:[%s5272 + $0x1c0] sm:$0xff]
        %v5330 = vld [vmem:[%s5272 + $0x1c8] sm:$0xff]
        %v5331 = vld [vmem:[%s5272 + $0x1d0] sm:$0xff]
        %v5332 = vld [vmem:[%s5272 + $0x1d8] sm:$0xff]
        %v5333 = vld [vmem:[%s5272 + $0x1e0] sm:$0xff]
        %v5334 = vld [vmem:[%s5272 + $0x1e8] sm:$0xff]
        %v5335 = vld [vmem:[%s5272 + $0x1f0] sm:$0xff]
        %v5336 = vld [vmem:[%s5272 + $0x1f8] sm:$0xff]
        %v5337 = vld [vmem:[%s5272 + $0x200] sm:$0xff]
        %v5338 = vld [vmem:[%s5272 + $0x208] sm:$0xff]
        %v5339 = vld [vmem:[%s5272 + $0x210] sm:$0xff]
        %v5340 = vld [vmem:[%s5272 + $0x218] sm:$0xff]
        %v5341 = vld [vmem:[%s5272 + $0x220] sm:$0xff]
        %v5342 = vld [vmem:[%s5272 + $0x228] sm:$0xff]
        %v5343 = vld [vmem:[%s5272 + $0x230] sm:$0xff]
        %v5344 = vld [vmem:[%s5272 + $0x238] sm:$0xff]
        %v5345 = vld [vmem:[%s5272 + $0x240] sm:$0xff]
        %v5346 = vld [vmem:[%s5272 + $0x248] sm:$0xff]
        %v5347 = vld [vmem:[%s5272 + $0x250] sm:$0xff]
        %v5348 = vld [vmem:[%s5272 + $0x258] sm:$0xff]
        %v5349 = vld [vmem:[%s5272 + $0x260] sm:$0xff]
        %v5350 = vld [vmem:[%s5272 + $0x268] sm:$0xff]
        %v5351 = vld [vmem:[%s5272 + $0x270] sm:$0xff]
        %v5352 = vld [vmem:[%s5272 + $0x278] sm:$0xff]
        %v5353 = vld [vmem:[%s5272 + $0x280] sm:$0xff]
        %v5354 = vld [vmem:[%s5272 + $0x288] sm:$0xff]
        %v5355 = vld [vmem:[%s5272 + $0x290] sm:$0xff]
        %v5356 = vld [vmem:[%s5272 + $0x298] sm:$0xff]
        %v5357 = vld [vmem:[%s5272 + $0x2a0] sm:$0xff]
        %v5358 = vld [vmem:[%s5272 + $0x2a8] sm:$0xff]
        %v5359 = vld [vmem:[%s5272 + $0x2b0] sm:$0xff]
        %v5360 = vld [vmem:[%s5272 + $0x2b8] sm:$0xff]
        %v5361 = vld [vmem:[%s5272 + $0x2c0] sm:$0xff]
        %v5362 = vld [vmem:[%s5272 + $0x2c8] sm:$0xff]
        %v5363 = vld [vmem:[%s5272 + $0x2d0] sm:$0xff]
        %v5364 = vld [vmem:[%s5272 + $0x2d8] sm:$0xff]
        %v5365 = vld [vmem:[%s5272 + $0x2e0] sm:$0xff]
        %v5366 = vld [vmem:[%s5272 + $0x2e8] sm:$0xff]
        %v5367 = vld [vmem:[%s5272 + $0x2f0] sm:$0xff]
        %v5368 = vld [vmem:[%s5272 + $0x2f8] sm:$0xff]
        %v5369 = vld [vmem:[%s5272 + $0x300] sm:$0xff]
        %v5370 = vld [vmem:[%s5272 + $0x308] sm:$0xff]
        %v5371 = vld [vmem:[%s5272 + $0x310] sm:$0xff]
        %v5372 = vld [vmem:[%s5272 + $0x318] sm:$0xff]
        %v5373 = vld [vmem:[%s5272 + $0x320] sm:$0xff]
        %v5374 = vld [vmem:[%s5272 + $0x328] sm:$0xff]
        %v5375 = vld [vmem:[%s5272 + $0x330] sm:$0xff]
        %v5376 = vld [vmem:[%s5272 + $0x338] sm:$0xff]
        %v5377 = vld [vmem:[%s5272 + $0x340] sm:$0xff]
        %v5378 = vld [vmem:[%s5272 + $0x348] sm:$0xff]
        %v5379 = vld [vmem:[%s5272 + $0x350] sm:$0xff]
        %v5380 = vld [vmem:[%s5272 + $0x358] sm:$0xff]
        %v5381 = vld [vmem:[%s5272 + $0x360] sm:$0xff]
        %v5382 = vld [vmem:[%s5272 + $0x368] sm:$0xff]
        %v5383 = vld [vmem:[%s5272 + $0x370] sm:$0xff]
        %v5384 = vld [vmem:[%s5272 + $0x378] sm:$0xff]
        %v5385 = vld [vmem:[%s5272 + $0x380] sm:$0xff]
        %v5386 = vld [vmem:[%s5272 + $0x388] sm:$0xff]
        %v5387 = vld [vmem:[%s5272 + $0x390] sm:$0xff]
        %v5388 = vld [vmem:[%s5272 + $0x398] sm:$0xff]
        %v5389 = vld [vmem:[%s5272 + $0x3a0] sm:$0xff]
        %v5390 = vld [vmem:[%s5272 + $0x3a8] sm:$0xff]
        %v5391 = vld [vmem:[%s5272 + $0x3b0] sm:$0xff]
        %v5392 = vld [vmem:[%s5272 + $0x3b8] sm:$0xff]
        %v5393 = vld [vmem:[%s5272 + $0x3c0] sm:$0xff]
        %v5394 = vld [vmem:[%s5272 + $0x3c8] sm:$0xff]
        %v5395 = vld [vmem:[%s5272 + $0x3d0] sm:$0xff]
        %v5396 = vld [vmem:[%s5272 + $0x3d8] sm:$0xff]
        %v5397 = vld [vmem:[%s5272 + $0x3e0] sm:$0xff]
        %v5398 = vld [vmem:[%s5272 + $0x3e8] sm:$0xff]
        %v5399 = vld [vmem:[%s5272 + $0x3f0] sm:$0xff]
        %v5400 = vld [vmem:[%s5272 + $0x3f8] sm:$0xff]
        %s5401 = scalar_lea.vmem [#allocation10], 16
        %v5402 = vld [vmem:[%s5401] sm:$0xf]
        %v5404 = vperm.slane %v5402, 0
        %v5405 = vperm.slane %v5402, 1
        %v5406 = vperm.slane %v5402, 2
        %v5407 = vperm.slane %v5402, 3
        %v5540 = vunpack.c.l.b16 %v5273
        %v5541 = vunpack.c.h.b16 %v5273
        %v5542 = vunpack.c.l.b16 %v5274
        %v5543 = vunpack.c.h.b16 %v5274
        %v5544 = vunpack.c.l.b16 %v5275
        %v5545 = vunpack.c.h.b16 %v5275
        %v5546 = vunpack.c.l.b16 %v5276
        %v5547 = vunpack.c.h.b16 %v5276
        %v5548 = vunpack.c.l.b16 %v5277
        %v5549 = vunpack.c.h.b16 %v5277
        %v5550 = vunpack.c.l.b16 %v5278
        %v5551 = vunpack.c.h.b16 %v5278
        %v5552 = vunpack.c.l.b16 %v5279
        %v5553 = vunpack.c.h.b16 %v5279
        %v5554 = vunpack.c.l.b16 %v5280
        %v5555 = vunpack.c.h.b16 %v5280
        %v5556 = vunpack.c.l.b16 %v5281
        %v5557 = vunpack.c.h.b16 %v5281
        %v5558 = vunpack.c.l.b16 %v5282
        %v5559 = vunpack.c.h.b16 %v5282
        %v5560 = vunpack.c.l.b16 %v5283
        %v5561 = vunpack.c.h.b16 %v5283
        %v5562 = vunpack.c.l.b16 %v5284
        %v5563 = vunpack.c.h.b16 %v5284
        %v5564 = vunpack.c.l.b16 %v5285
        %v5565 = vunpack.c.h.b16 %v5285
        %v5566 = vunpack.c.l.b16 %v5286
        %v5567 = vunpack.c.h.b16 %v5286
        %v5568 = vunpack.c.l.b16 %v5287
        %v5569 = vunpack.c.h.b16 %v5287
        %v5570 = vunpack.c.l.b16 %v5288
        %v5571 = vunpack.c.h.b16 %v5288
        %v5572 = vunpack.c.l.b16 %v5289
        %v5573 = vunpack.c.h.b16 %v5289
        %v5574 = vunpack.c.l.b16 %v5290
        %v5575 = vunpack.c.h.b16 %v5290
        %v5576 = vunpack.c.l.b16 %v5291
        %v5577 = vunpack.c.h.b16 %v5291
        %v5578 = vunpack.c.l.b16 %v5292
        %v5579 = vunpack.c.h.b16 %v5292
        %v5580 = vunpack.c.l.b16 %v5293
        %v5581 = vunpack.c.h.b16 %v5293
        %v5582 = vunpack.c.l.b16 %v5294
        %v5583 = vunpack.c.h.b16 %v5294
        %v5584 = vunpack.c.l.b16 %v5295
        %v5585 = vunpack.c.h.b16 %v5295
        %v5586 = vunpack.c.l.b16 %v5296
        %v5587 = vunpack.c.h.b16 %v5296
        %v5588 = vunpack.c.l.b16 %v5297
        %v5589 = vunpack.c.h.b16 %v5297
        %v5590 = vunpack.c.l.b16 %v5298
        %v5591 = vunpack.c.h.b16 %v5298
        %v5592 = vunpack.c.l.b16 %v5299
        %v5593 = vunpack.c.h.b16 %v5299
        %v5594 = vunpack.c.l.b16 %v5300
        %v5595 = vunpack.c.h.b16 %v5300
        %v5596 = vunpack.c.l.b16 %v5301
        %v5597 = vunpack.c.h.b16 %v5301
        %v5598 = vunpack.c.l.b16 %v5302
        %v5599 = vunpack.c.h.b16 %v5302
        %v5600 = vunpack.c.l.b16 %v5303
        %v5601 = vunpack.c.h.b16 %v5303
        %v5602 = vunpack.c.l.b16 %v5304
        %v5603 = vunpack.c.h.b16 %v5304
        %v5604 = vunpack.c.l.b16 %v5305
        %v5605 = vunpack.c.h.b16 %v5305
        %v5606 = vunpack.c.l.b16 %v5306
        %v5607 = vunpack.c.h.b16 %v5306
        %v5608 = vunpack.c.l.b16 %v5307
        %v5609 = vunpack.c.h.b16 %v5307
        %v5610 = vunpack.c.l.b16 %v5308
        %v5611 = vunpack.c.h.b16 %v5308
        %v5612 = vunpack.c.l.b16 %v5309
        %v5613 = vunpack.c.h.b16 %v5309
        %v5614 = vunpack.c.l.b16 %v5310
        %v5615 = vunpack.c.h.b16 %v5310
        %v5616 = vunpack.c.l.b16 %v5311
        %v5617 = vunpack.c.h.b16 %v5311
        %v5618 = vunpack.c.l.b16 %v5312
        %v5619 = vunpack.c.h.b16 %v5312
        %v5620 = vunpack.c.l.b16 %v5313
        %v5621 = vunpack.c.h.b16 %v5313
        %v5622 = vunpack.c.l.b16 %v5314
        %v5623 = vunpack.c.h.b16 %v5314
        %v5624 = vunpack.c.l.b16 %v5315
        %v5625 = vunpack.c.h.b16 %v5315
        %v5626 = vunpack.c.l.b16 %v5316
        %v5627 = vunpack.c.h.b16 %v5316
        %v5628 = vunpack.c.l.b16 %v5317
        %v5629 = vunpack.c.h.b16 %v5317
        %v5630 = vunpack.c.l.b16 %v5318
        %v5631 = vunpack.c.h.b16 %v5318
        %v5632 = vunpack.c.l.b16 %v5319
        %v5633 = vunpack.c.h.b16 %v5319
        %v5634 = vunpack.c.l.b16 %v5320
        %v5635 = vunpack.c.h.b16 %v5320
        %v5636 = vunpack.c.l.b16 %v5321
        %v5637 = vunpack.c.h.b16 %v5321
        %v5638 = vunpack.c.l.b16 %v5322
        %v5639 = vunpack.c.h.b16 %v5322
        %v5640 = vunpack.c.l.b16 %v5323
        %v5641 = vunpack.c.h.b16 %v5323
        %v5642 = vunpack.c.l.b16 %v5324
        %v5643 = vunpack.c.h.b16 %v5324
        %v5644 = vunpack.c.l.b16 %v5325
        %v5645 = vunpack.c.h.b16 %v5325
        %v5646 = vunpack.c.l.b16 %v5326
        %v5647 = vunpack.c.h.b16 %v5326
        %v5648 = vunpack.c.l.b16 %v5327
        %v5649 = vunpack.c.h.b16 %v5327
        %v5650 = vunpack.c.l.b16 %v5328
        %v5651 = vunpack.c.h.b16 %v5328
        %v5652 = vunpack.c.l.b16 %v5329
        %v5653 = vunpack.c.h.b16 %v5329
        %v5654 = vunpack.c.l.b16 %v5330
        %v5655 = vunpack.c.h.b16 %v5330
        %v5656 = vunpack.c.l.b16 %v5331
        %v5657 = vunpack.c.h.b16 %v5331
        %v5658 = vunpack.c.l.b16 %v5332
        %v5659 = vunpack.c.h.b16 %v5332
        %v5660 = vunpack.c.l.b16 %v5333
        %v5661 = vunpack.c.h.b16 %v5333
        %v5662 = vunpack.c.l.b16 %v5334
        %v5663 = vunpack.c.h.b16 %v5334
        %v5664 = vunpack.c.l.b16 %v5335
        %v5665 = vunpack.c.h.b16 %v5335
        %v5666 = vunpack.c.l.b16 %v5336
        %v5667 = vunpack.c.h.b16 %v5336
        %v5668 = vunpack.c.l.b16 %v5337
        %v5669 = vunpack.c.h.b16 %v5337
        %v5670 = vunpack.c.l.b16 %v5338
        %v5671 = vunpack.c.h.b16 %v5338
        %v5672 = vunpack.c.l.b16 %v5339
        %v5673 = vunpack.c.h.b16 %v5339
        %v5674 = vunpack.c.l.b16 %v5340
        %v5675 = vunpack.c.h.b16 %v5340
        %v5676 = vunpack.c.l.b16 %v5341
        %v5677 = vunpack.c.h.b16 %v5341
        %v5678 = vunpack.c.l.b16 %v5342
        %v5679 = vunpack.c.h.b16 %v5342
        %v5680 = vunpack.c.l.b16 %v5343
        %v5681 = vunpack.c.h.b16 %v5343
        %v5682 = vunpack.c.l.b16 %v5344
        %v5683 = vunpack.c.h.b16 %v5344
        %v5684 = vunpack.c.l.b16 %v5345
        %v5685 = vunpack.c.h.b16 %v5345
        %v5686 = vunpack.c.l.b16 %v5346
        %v5687 = vunpack.c.h.b16 %v5346
        %v5688 = vunpack.c.l.b16 %v5347
        %v5689 = vunpack.c.h.b16 %v5347
        %v5690 = vunpack.c.l.b16 %v5348
        %v5691 = vunpack.c.h.b16 %v5348
        %v5692 = vunpack.c.l.b16 %v5349
        %v5693 = vunpack.c.h.b16 %v5349
        %v5694 = vunpack.c.l.b16 %v5350
        %v5695 = vunpack.c.h.b16 %v5350
        %v5696 = vunpack.c.l.b16 %v5351
        %v5697 = vunpack.c.h.b16 %v5351
        %v5698 = vunpack.c.l.b16 %v5352
        %v5699 = vunpack.c.h.b16 %v5352
        %v5700 = vunpack.c.l.b16 %v5353
        %v5701 = vunpack.c.h.b16 %v5353
        %v5702 = vunpack.c.l.b16 %v5354
        %v5703 = vunpack.c.h.b16 %v5354
        %v5704 = vunpack.c.l.b16 %v5355
        %v5705 = vunpack.c.h.b16 %v5355
        %v5706 = vunpack.c.l.b16 %v5356
        %v5707 = vunpack.c.h.b16 %v5356
        %v5708 = vunpack.c.l.b16 %v5357
        %v5709 = vunpack.c.h.b16 %v5357
        %v5710 = vunpack.c.l.b16 %v5358
        %v5711 = vunpack.c.h.b16 %v5358
        %v5712 = vunpack.c.l.b16 %v5359
        %v5713 = vunpack.c.h.b16 %v5359
        %v5714 = vunpack.c.l.b16 %v5360
        %v5715 = vunpack.c.h.b16 %v5360
        %v5716 = vunpack.c.l.b16 %v5361
        %v5717 = vunpack.c.h.b16 %v5361
        %v5718 = vunpack.c.l.b16 %v5362
        %v5719 = vunpack.c.h.b16 %v5362
        %v5720 = vunpack.c.l.b16 %v5363
        %v5721 = vunpack.c.h.b16 %v5363
        %v5722 = vunpack.c.l.b16 %v5364
        %v5723 = vunpack.c.h.b16 %v5364
        %v5724 = vunpack.c.l.b16 %v5365
        %v5725 = vunpack.c.h.b16 %v5365
        %v5726 = vunpack.c.l.b16 %v5366
        %v5727 = vunpack.c.h.b16 %v5366
        %v5728 = vunpack.c.l.b16 %v5367
        %v5729 = vunpack.c.h.b16 %v5367
        %v5730 = vunpack.c.l.b16 %v5368
        %v5731 = vunpack.c.h.b16 %v5368
        %v5732 = vunpack.c.l.b16 %v5369
        %v5733 = vunpack.c.h.b16 %v5369
        %v5734 = vunpack.c.l.b16 %v5370
        %v5735 = vunpack.c.h.b16 %v5370
        %v5736 = vunpack.c.l.b16 %v5371
        %v5737 = vunpack.c.h.b16 %v5371
        %v5738 = vunpack.c.l.b16 %v5372
        %v5739 = vunpack.c.h.b16 %v5372
        %v5740 = vunpack.c.l.b16 %v5373
        %v5741 = vunpack.c.h.b16 %v5373
        %v5742 = vunpack.c.l.b16 %v5374
        %v5743 = vunpack.c.h.b16 %v5374
        %v5744 = vunpack.c.l.b16 %v5375
        %v5745 = vunpack.c.h.b16 %v5375
        %v5746 = vunpack.c.l.b16 %v5376
        %v5747 = vunpack.c.h.b16 %v5376
        %v5748 = vunpack.c.l.b16 %v5377
        %v5749 = vunpack.c.h.b16 %v5377
        %v5750 = vunpack.c.l.b16 %v5378
        %v5751 = vunpack.c.h.b16 %v5378
        %v5752 = vunpack.c.l.b16 %v5379
        %v5753 = vunpack.c.h.b16 %v5379
        %v5754 = vunpack.c.l.b16 %v5380
        %v5755 = vunpack.c.h.b16 %v5380
        %v5756 = vunpack.c.l.b16 %v5381
        %v5757 = vunpack.c.h.b16 %v5381
        %v5758 = vunpack.c.l.b16 %v5382
        %v5759 = vunpack.c.h.b16 %v5382
        %v5760 = vunpack.c.l.b16 %v5383
        %v5761 = vunpack.c.h.b16 %v5383
        %v5762 = vunpack.c.l.b16 %v5384
        %v5763 = vunpack.c.h.b16 %v5384
        %v5764 = vunpack.c.l.b16 %v5385
        %v5765 = vunpack.c.h.b16 %v5385
        %v5766 = vunpack.c.l.b16 %v5386
        %v5767 = vunpack.c.h.b16 %v5386
        %v5768 = vunpack.c.l.b16 %v5387
        %v5769 = vunpack.c.h.b16 %v5387
        %v5770 = vunpack.c.l.b16 %v5388
        %v5771 = vunpack.c.h.b16 %v5388
        %v5772 = vunpack.c.l.b16 %v5389
        %v5773 = vunpack.c.h.b16 %v5389
        %v5774 = vunpack.c.l.b16 %v5390
        %v5775 = vunpack.c.h.b16 %v5390
        %v5776 = vunpack.c.l.b16 %v5391
        %v5777 = vunpack.c.h.b16 %v5391
        %v5778 = vunpack.c.l.b16 %v5392
        %v5779 = vunpack.c.h.b16 %v5392
        %v5780 = vunpack.c.l.b16 %v5393
        %v5781 = vunpack.c.h.b16 %v5393
        %v5782 = vunpack.c.l.b16 %v5394
        %v5783 = vunpack.c.h.b16 %v5394
        %v5784 = vunpack.c.l.b16 %v5395
        %v5785 = vunpack.c.h.b16 %v5395
        %v5786 = vunpack.c.l.b16 %v5396
        %v5787 = vunpack.c.h.b16 %v5396
        %v5788 = vunpack.c.l.b16 %v5397
        %v5789 = vunpack.c.h.b16 %v5397
        %v5790 = vunpack.c.l.b16 %v5398
        %v5791 = vunpack.c.h.b16 %v5398
        %v5792 = vunpack.c.l.b16 %v5399
        %v5793 = vunpack.c.h.b16 %v5399
        %v5794 = vunpack.c.l.b16 %v5400
        %v5795 = vunpack.c.h.b16 %v5400
        %v5796 = vpack.c.b16 %v5544, %v5540
        %v5797 = vpack.c.b16 %v5545, %v5541
        %v5798 = vpack.c.b16 %v5546, %v5542
        %v5799 = vpack.c.b16 %v5547, %v5543
        %v5800 = vpack.c.b16 %v5552, %v5548
        %v5801 = vpack.c.b16 %v5553, %v5549
        %v5802 = vpack.c.b16 %v5554, %v5550
        %v5803 = vpack.c.b16 %v5555, %v5551
        %v5804 = vpack.c.b16 %v5560, %v5556
        %v5805 = vpack.c.b16 %v5561, %v5557
        %v5806 = vpack.c.b16 %v5562, %v5558
        %v5807 = vpack.c.b16 %v5563, %v5559
        %v5808 = vpack.c.b16 %v5568, %v5564
        %v5809 = vpack.c.b16 %v5569, %v5565
        %v5810 = vpack.c.b16 %v5570, %v5566
        %v5811 = vpack.c.b16 %v5571, %v5567
        %v5812 = vpack.c.b16 %v5576, %v5572
        %v5813 = vpack.c.b16 %v5577, %v5573
        %v5814 = vpack.c.b16 %v5578, %v5574
        %v5815 = vpack.c.b16 %v5579, %v5575
        %v5816 = vpack.c.b16 %v5584, %v5580
        %v5817 = vpack.c.b16 %v5585, %v5581
        %v5818 = vpack.c.b16 %v5586, %v5582
        %v5819 = vpack.c.b16 %v5587, %v5583
        %v5820 = vpack.c.b16 %v5592, %v5588
        %v5821 = vpack.c.b16 %v5593, %v5589
        %v5822 = vpack.c.b16 %v5594, %v5590
        %v5823 = vpack.c.b16 %v5595, %v5591
        %v5824 = vpack.c.b16 %v5600, %v5596
        %v5825 = vpack.c.b16 %v5601, %v5597
        %v5826 = vpack.c.b16 %v5602, %v5598
        %v5827 = vpack.c.b16 %v5603, %v5599
        %v5828 = vpack.c.b16 %v5608, %v5604
        %v5829 = vpack.c.b16 %v5609, %v5605
        %v5830 = vpack.c.b16 %v5610, %v5606
        %v5831 = vpack.c.b16 %v5611, %v5607
        %v5832 = vpack.c.b16 %v5616, %v5612
        %v5833 = vpack.c.b16 %v5617, %v5613
        %v5834 = vpack.c.b16 %v5618, %v5614
        %v5835 = vpack.c.b16 %v5619, %v5615
        %v5836 = vpack.c.b16 %v5624, %v5620
        %v5837 = vpack.c.b16 %v5625, %v5621
        %v5838 = vpack.c.b16 %v5626, %v5622
        %v5839 = vpack.c.b16 %v5627, %v5623
        %v5840 = vpack.c.b16 %v5632, %v5628
        %v5841 = vpack.c.b16 %v5633, %v5629
        %v5842 = vpack.c.b16 %v5634, %v5630
        %v5843 = vpack.c.b16 %v5635, %v5631
        %v5844 = vpack.c.b16 %v5640, %v5636
        %v5845 = vpack.c.b16 %v5641, %v5637
        %v5846 = vpack.c.b16 %v5642, %v5638
        %v5847 = vpack.c.b16 %v5643, %v5639
        %v5848 = vpack.c.b16 %v5648, %v5644
        %v5849 = vpack.c.b16 %v5649, %v5645
        %v5850 = vpack.c.b16 %v5650, %v5646
        %v5851 = vpack.c.b16 %v5651, %v5647
        %v5852 = vpack.c.b16 %v5656, %v5652
        %v5853 = vpack.c.b16 %v5657, %v5653
        %v5854 = vpack.c.b16 %v5658, %v5654
        %v5855 = vpack.c.b16 %v5659, %v5655
        %v5856 = vpack.c.b16 %v5664, %v5660
        %v5857 = vpack.c.b16 %v5665, %v5661
        %v5858 = vpack.c.b16 %v5666, %v5662
        %v5859 = vpack.c.b16 %v5667, %v5663
        %v5860 = vpack.c.b16 %v5672, %v5668
        %v5861 = vpack.c.b16 %v5673, %v5669
        %v5862 = vpack.c.b16 %v5674, %v5670
        %v5863 = vpack.c.b16 %v5675, %v5671
        %v5864 = vpack.c.b16 %v5680, %v5676
        %v5865 = vpack.c.b16 %v5681, %v5677
        %v5866 = vpack.c.b16 %v5682, %v5678
        %v5867 = vpack.c.b16 %v5683, %v5679
        %v5868 = vpack.c.b16 %v5688, %v5684
        %v5869 = vpack.c.b16 %v5689, %v5685
        %v5870 = vpack.c.b16 %v5690, %v5686
        %v5871 = vpack.c.b16 %v5691, %v5687
        %v5872 = vpack.c.b16 %v5696, %v5692
        %v5873 = vpack.c.b16 %v5697, %v5693
        %v5874 = vpack.c.b16 %v5698, %v5694
        %v5875 = vpack.c.b16 %v5699, %v5695
        %v5876 = vpack.c.b16 %v5704, %v5700
        %v5877 = vpack.c.b16 %v5705, %v5701
        %v5878 = vpack.c.b16 %v5706, %v5702
        %v5879 = vpack.c.b16 %v5707, %v5703
        %v5880 = vpack.c.b16 %v5712, %v5708
        %v5881 = vpack.c.b16 %v5713, %v5709
        %v5882 = vpack.c.b16 %v5714, %v5710
        %v5883 = vpack.c.b16 %v5715, %v5711
        %v5884 = vpack.c.b16 %v5720, %v5716
        %v5885 = vpack.c.b16 %v5721, %v5717
        %v5886 = vpack.c.b16 %v5722, %v5718
        %v5887 = vpack.c.b16 %v5723, %v5719
        %v5888 = vpack.c.b16 %v5728, %v5724
        %v5889 = vpack.c.b16 %v5729, %v5725
        %v5890 = vpack.c.b16 %v5730, %v5726
        %v5891 = vpack.c.b16 %v5731, %v5727
        %v5892 = vpack.c.b16 %v5736, %v5732
        %v5893 = vpack.c.b16 %v5737, %v5733
        %v5894 = vpack.c.b16 %v5738, %v5734
        %v5895 = vpack.c.b16 %v5739, %v5735
        %v5896 = vpack.c.b16 %v5744, %v5740
        %v5897 = vpack.c.b16 %v5745, %v5741
        %v5898 = vpack.c.b16 %v5746, %v5742
        %v5899 = vpack.c.b16 %v5747, %v5743
        %v5900 = vpack.c.b16 %v5752, %v5748
        %v5901 = vpack.c.b16 %v5753, %v5749
        %v5902 = vpack.c.b16 %v5754, %v5750
        %v5903 = vpack.c.b16 %v5755, %v5751
        %v5904 = vpack.c.b16 %v5760, %v5756
        %v5905 = vpack.c.b16 %v5761, %v5757
        %v5906 = vpack.c.b16 %v5762, %v5758
        %v5907 = vpack.c.b16 %v5763, %v5759
        %v5908 = vpack.c.b16 %v5768, %v5764
        %v5909 = vpack.c.b16 %v5769, %v5765
        %v5910 = vpack.c.b16 %v5770, %v5766
        %v5911 = vpack.c.b16 %v5771, %v5767
        %v5912 = vpack.c.b16 %v5776, %v5772
        %v5913 = vpack.c.b16 %v5777, %v5773
        %v5914 = vpack.c.b16 %v5778, %v5774
        %v5915 = vpack.c.b16 %v5779, %v5775
        %v5916 = vpack.c.b16 %v5784, %v5780
        %v5917 = vpack.c.b16 %v5785, %v5781
        %v5918 = vpack.c.b16 %v5786, %v5782
        %v5919 = vpack.c.b16 %v5787, %v5783
        %v5920 = vpack.c.b16 %v5792, %v5788
        %v5921 = vpack.c.b16 %v5793, %v5789
        %v5922 = vpack.c.b16 %v5794, %v5790
        %v5923 = vpack.c.b16 %v5795, %v5791
        %6052 = vmatpush.bf16.msra.mxu0 %v5824
        %6053 = vmatpush.bf16.msra.mxu0 %v5820
        %6054 = vmatpush.bf16.msra.mxu0 %v5816
        %6055 = vmatpush.bf16.msra.mxu0 %v5812
        %6056 = vmatpush.bf16.msra.mxu0 %v5808
        %6057 = vmatpush.bf16.msra.mxu0 %v5804
        %6058 = vmatpush.bf16.msra.mxu0 %v5800
        %6059 = vmatpush.bf16.msra.mxu0 %v5796
        %6060 = vmatmul.bf16.gmra.mxu0 %v5268
        %v6061 = vpop.f32.mrf.mxu0
        %v6062 = vadd.f32 %v5404, %v6061
        %v6063 = vpop.f32.mrf.mxu0
        %v6064 = vadd.f32 %v5404, %v6063
        %6065 = vdwg.mxu0
        %6066 = vmatpush.bf16.msra.mxu0 %v5856
        %6067 = vmatpush.bf16.msra.mxu0 %v5852
        %6068 = vmatpush.bf16.msra.mxu0 %v5848
        %6069 = vmatpush.bf16.msra.mxu0 %v5844
        %6070 = vmatpush.bf16.msra.mxu0 %v5840
        %6071 = vmatpush.bf16.msra.mxu0 %v5836
        %6072 = vmatpush.bf16.msra.mxu0 %v5832
        %6073 = vmatpush.bf16.msra.mxu0 %v5828
        %6074 = vmatmul.bf16.gmra.mxu0 %v5269
        %v6075 = vpop.f32.mrf.mxu0
        %v6076 = vadd.f32 %v6062, %v6075
        %v6077 = vpop.f32.mrf.mxu0
        %v6078 = vadd.f32 %v6064, %v6077
        %6079 = vdwg.mxu0
        %6080 = vmatpush.bf16.msra.mxu0 %v5888
        %6081 = vmatpush.bf16.msra.mxu0 %v5884
        %6082 = vmatpush.bf16.msra.mxu0 %v5880
        %6083 = vmatpush.bf16.msra.mxu0 %v5876
        %6084 = vmatpush.bf16.msra.mxu0 %v5872
        %6085 = vmatpush.bf16.msra.mxu0 %v5868
        %6086 = vmatpush.bf16.msra.mxu0 %v5864
        %6087 = vmatpush.bf16.msra.mxu0 %v5860
        %6088 = vmatmul.bf16.gmra.mxu0 %v5270
        %v6089 = vpop.f32.mrf.mxu0
        %v6090 = vadd.f32 %v6076, %v6089
        %v6091 = vpop.f32.mrf.mxu0
        %v6092 = vadd.f32 %v6078, %v6091
        %6093 = vdwg.mxu0
        %6094 = vmatpush.bf16.msra.mxu0 %v5920
        %6095 = vmatpush.bf16.msra.mxu0 %v5916
        %6096 = vmatpush.bf16.msra.mxu0 %v5912
        %6097 = vmatpush.bf16.msra.mxu0 %v5908
        %6098 = vmatpush.bf16.msra.mxu0 %v5904
        %6099 = vmatpush.bf16.msra.mxu0 %v5900
        %6100 = vmatpush.bf16.msra.mxu0 %v5896
        %6101 = vmatpush.bf16.msra.mxu0 %v5892
        %6102 = vmatmul.bf16.gmra.mxu0 %v5271
        %v6103 = vpop.f32.mrf.mxu0
        %v6104 = vadd.f32 %v6090, %v6103
        %v6105 = vpop.f32.mrf.mxu0
        %v6106 = vadd.f32 %v6092, %v6105
        %6107 = vdwg.mxu0
        %6108 = vmatpush.bf16.msra.mxu0 %v5825
        %6109 = vmatpush.bf16.msra.mxu0 %v5821
        %6110 = vmatpush.bf16.msra.mxu0 %v5817
        %6111 = vmatpush.bf16.msra.mxu0 %v5813
        %6112 = vmatpush.bf16.msra.mxu0 %v5809
        %6113 = vmatpush.bf16.msra.mxu0 %v5805
        %6114 = vmatpush.bf16.msra.mxu0 %v5801
        %6115 = vmatpush.bf16.msra.mxu0 %v5797
        %6116 = vmatmul.bf16.gmra.mxu0 %v5268
        %v6117 = vpop.f32.mrf.mxu0
        %v6118 = vadd.f32 %v5405, %v6117
        %v6119 = vpop.f32.mrf.mxu0
        %v6120 = vadd.f32 %v5405, %v6119
        %6121 = vdwg.mxu0
        %6122 = vmatpush.bf16.msra.mxu0 %v5857
        %6123 = vmatpush.bf16.msra.mxu0 %v5853
        %6124 = vmatpush.bf16.msra.mxu0 %v5849
        %6125 = vmatpush.bf16.msra.mxu0 %v5845
        %6126 = vmatpush.bf16.msra.mxu0 %v5841
        %6127 = vmatpush.bf16.msra.mxu0 %v5837
        %6128 = vmatpush.bf16.msra.mxu0 %v5833
        %6129 = vmatpush.bf16.msra.mxu0 %v5829
        %6130 = vmatmul.bf16.gmra.mxu0 %v5269
        %v6131 = vpop.f32.mrf.mxu0
        %v6132 = vadd.f32 %v6118, %v6131
        %v6133 = vpop.f32.mrf.mxu0
        %v6134 = vadd.f32 %v6120, %v6133
        %6135 = vdwg.mxu0
        %6136 = vmatpush.bf16.msra.mxu0 %v5889
        %6137 = vmatpush.bf16.msra.mxu0 %v5885
        %6138 = vmatpush.bf16.msra.mxu0 %v5881
        %6139 = vmatpush.bf16.msra.mxu0 %v5877
        %6140 = vmatpush.bf16.msra.mxu0 %v5873
        %6141 = vmatpush.bf16.msra.mxu0 %v5869
        %6142 = vmatpush.bf16.msra.mxu0 %v5865
        %6143 = vmatpush.bf16.msra.mxu0 %v5861
        %6144 = vmatmul.bf16.gmra.mxu0 %v5270
        %v6145 = vpop.f32.mrf.mxu0
        %v6146 = vadd.f32 %v6132, %v6145
        %v6147 = vpop.f32.mrf.mxu0
        %v6148 = vadd.f32 %v6134, %v6147
        %6149 = vdwg.mxu0
        %6150 = vmatpush.bf16.msra.mxu0 %v5921
        %6151 = vmatpush.bf16.msra.mxu0 %v5917
        %6152 = vmatpush.bf16.msra.mxu0 %v5913
        %6153 = vmatpush.bf16.msra.mxu0 %v5909
        %6154 = vmatpush.bf16.msra.mxu0 %v5905
        %6155 = vmatpush.bf16.msra.mxu0 %v5901
        %6156 = vmatpush.bf16.msra.mxu0 %v5897
        %6157 = vmatpush.bf16.msra.mxu0 %v5893
        %6158 = vmatmul.bf16.gmra.mxu0 %v5271
        %v6159 = vpop.f32.mrf.mxu0
        %v6160 = vadd.f32 %v6146, %v6159
        %v6161 = vpop.f32.mrf.mxu0
        %v6162 = vadd.f32 %v6148, %v6161
        %6163 = vdwg.mxu0
        %6164 = vmatpush.bf16.msra.mxu0 %v5826
        %6165 = vmatpush.bf16.msra.mxu0 %v5822
        %6166 = vmatpush.bf16.msra.mxu0 %v5818
        %6167 = vmatpush.bf16.msra.mxu0 %v5814
        %6168 = vmatpush.bf16.msra.mxu0 %v5810
        %6169 = vmatpush.bf16.msra.mxu0 %v5806
        %6170 = vmatpush.bf16.msra.mxu0 %v5802
        %6171 = vmatpush.bf16.msra.mxu0 %v5798
        %6172 = vmatmul.bf16.gmra.mxu0 %v5268
        %v6173 = vpop.f32.mrf.mxu0
        %v6174 = vadd.f32 %v5406, %v6173
        %v6175 = vpop.f32.mrf.mxu0
        %v6176 = vadd.f32 %v5406, %v6175
        %6177 = vdwg.mxu0
        %6178 = vmatpush.bf16.msra.mxu0 %v5858
        %6179 = vmatpush.bf16.msra.mxu0 %v5854
        %6180 = vmatpush.bf16.msra.mxu0 %v5850
        %6181 = vmatpush.bf16.msra.mxu0 %v5846
        %6182 = vmatpush.bf16.msra.mxu0 %v5842
        %6183 = vmatpush.bf16.msra.mxu0 %v5838
        %6184 = vmatpush.bf16.msra.mxu0 %v5834
        %6185 = vmatpush.bf16.msra.mxu0 %v5830
        %6186 = vmatmul.bf16.gmra.mxu0 %v5269
        %v6187 = vpop.f32.mrf.mxu0
        %v6188 = vadd.f32 %v6174, %v6187
        %v6189 = vpop.f32.mrf.mxu0
        %v6190 = vadd.f32 %v6176, %v6189
        %6191 = vdwg.mxu0
        %6192 = vmatpush.bf16.msra.mxu0 %v5890
        %6193 = vmatpush.bf16.msra.mxu0 %v5886
        %6194 = vmatpush.bf16.msra.mxu0 %v5882
        %6195 = vmatpush.bf16.msra.mxu0 %v5878
        %6196 = vmatpush.bf16.msra.mxu0 %v5874
        %6197 = vmatpush.bf16.msra.mxu0 %v5870
        %6198 = vmatpush.bf16.msra.mxu0 %v5866
        %6199 = vmatpush.bf16.msra.mxu0 %v5862
        %6200 = vmatmul.bf16.gmra.mxu0 %v5270
        %v6201 = vpop.f32.mrf.mxu0
        %v6202 = vadd.f32 %v6188, %v6201
        %v6203 = vpop.f32.mrf.mxu0
        %v6204 = vadd.f32 %v6190, %v6203
        %6205 = vdwg.mxu0
        %6206 = vmatpush.bf16.msra.mxu0 %v5922
        %6207 = vmatpush.bf16.msra.mxu0 %v5918
        %6208 = vmatpush.bf16.msra.mxu0 %v5914
        %6209 = vmatpush.bf16.msra.mxu0 %v5910
        %6210 = vmatpush.bf16.msra.mxu0 %v5906
        %6211 = vmatpush.bf16.msra.mxu0 %v5902
        %6212 = vmatpush.bf16.msra.mxu0 %v5898
        %6213 = vmatpush.bf16.msra.mxu0 %v5894
        %6214 = vmatmul.bf16.gmra.mxu0 %v5271
        %v6215 = vpop.f32.mrf.mxu0
        %v6216 = vadd.f32 %v6202, %v6215
        %v6217 = vpop.f32.mrf.mxu0
        %v6218 = vadd.f32 %v6204, %v6217
        %6219 = vdwg.mxu0
        %6220 = vmatpush.bf16.msra.mxu0 %v5827
        %6221 = vmatpush.bf16.msra.mxu0 %v5823
        %6222 = vmatpush.bf16.msra.mxu0 %v5819
        %6223 = vmatpush.bf16.msra.mxu0 %v5815
        %6224 = vmatpush.bf16.msra.mxu0 %v5811
        %6225 = vmatpush.bf16.msra.mxu0 %v5807
        %6226 = vmatpush.bf16.msra.mxu0 %v5803
        %6227 = vmatpush.bf16.msra.mxu0 %v5799
        %6228 = vmatmul.bf16.gmra.mxu0 %v5268
        %v6229 = vpop.f32.mrf.mxu0
        %v6230 = vadd.f32 %v5407, %v6229
        %v6231 = vpop.f32.mrf.mxu0
        %v6232 = vadd.f32 %v5407, %v6231
        %6233 = vdwg.mxu0
        %6234 = vmatpush.bf16.msra.mxu0 %v5859
        %6235 = vmatpush.bf16.msra.mxu0 %v5855
        %6236 = vmatpush.bf16.msra.mxu0 %v5851
        %6237 = vmatpush.bf16.msra.mxu0 %v5847
        %6238 = vmatpush.bf16.msra.mxu0 %v5843
        %6239 = vmatpush.bf16.msra.mxu0 %v5839
        %6240 = vmatpush.bf16.msra.mxu0 %v5835
        %6241 = vmatpush.bf16.msra.mxu0 %v5831
        %6242 = vmatmul.bf16.gmra.mxu0 %v5269
        %v6243 = vpop.f32.mrf.mxu0
        %v6244 = vadd.f32 %v6230, %v6243
        %v6245 = vpop.f32.mrf.mxu0
        %v6246 = vadd.f32 %v6232, %v6245
        %6247 = vdwg.mxu0
        %6248 = vmatpush.bf16.msra.mxu0 %v5891
        %6249 = vmatpush.bf16.msra.mxu0 %v5887
        %6250 = vmatpush.bf16.msra.mxu0 %v5883
        %6251 = vmatpush.bf16.msra.mxu0 %v5879
        %6252 = vmatpush.bf16.msra.mxu0 %v5875
        %6253 = vmatpush.bf16.msra.mxu0 %v5871
        %6254 = vmatpush.bf16.msra.mxu0 %v5867
        %6255 = vmatpush.bf16.msra.mxu0 %v5863
        %6256 = vmatmul.bf16.gmra.mxu0 %v5270
        %v6257 = vpop.f32.mrf.mxu0
        %v6258 = vadd.f32 %v6244, %v6257
        %v6259 = vpop.f32.mrf.mxu0
        %v6260 = vadd.f32 %v6246, %v6259
        %6261 = vdwg.mxu0
        %6262 = vmatpush.bf16.msra.mxu0 %v5923
        %6263 = vmatpush.bf16.msra.mxu0 %v5919
        %6264 = vmatpush.bf16.msra.mxu0 %v5915
        %6265 = vmatpush.bf16.msra.mxu0 %v5911
        %6266 = vmatpush.bf16.msra.mxu0 %v5907
        %6267 = vmatpush.bf16.msra.mxu0 %v5903
        %6268 = vmatpush.bf16.msra.mxu0 %v5899
        %6269 = vmatpush.bf16.msra.mxu0 %v5895
        %6270 = vmatmul.bf16.gmra.mxu0 %v5271
        %v6271 = vpop.f32.mrf.mxu0
        %v6272 = vadd.f32 %v6258, %v6271
        %v6273 = vpop.f32.mrf.mxu0
        %v6274 = vadd.f32 %v6260, %v6273
        %6275 = vdwg.mxu0
        %v6276 = vmax.f32 %v6104, 0.0
        %v6277 = vmax.f32 %v6160, 0.0
        %v6278 = vmax.f32 %v6216, 0.0
        %v6279 = vmax.f32 %v6272, 0.0
        %v6280 = vmax.f32 %v6106, 0.0
        %v6281 = vmax.f32 %v6162, 0.0
        %v6282 = vmax.f32 %v6218, 0.0
        %v6283 = vmax.f32 %v6274, 0.0
        %v6284 = vpack.c.bf16 %v6280, %v6276
        %v6285 = vpack.c.bf16 %v6281, %v6277
        %v6286 = vpack.c.bf16 %v6282, %v6278
        %v6287 = vpack.c.bf16 %v6283, %v6279
        %s6288 = scalar_lea.vmem [#allocation9], 5120
        %v6289 = vld [vmem:[%s6288] sm:$0xff]
        %v6290 = vld [vmem:[%s6288 + $0x8] sm:$0xff]
        %v6291 = vld [vmem:[%s6288 + $0x10] sm:$0xff]
        %v6292 = vld [vmem:[%s6288 + $0x18] sm:$0xff]
        %v6293 = vld [vmem:[%s6288 + $0x20] sm:$0xff]
        %v6294 = vld [vmem:[%s6288 + $0x28] sm:$0xff]
        %v6295 = vld [vmem:[%s6288 + $0x30] sm:$0xff]
        %v6296 = vld [vmem:[%s6288 + $0x38] sm:$0xff]
        %v6297 = vld [vmem:[%s6288 + $0x40] sm:$0xff]
        %v6298 = vld [vmem:[%s6288 + $0x48] sm:$0xff]
        %v6299 = vld [vmem:[%s6288 + $0x50] sm:$0xff]
        %v6300 = vld [vmem:[%s6288 + $0x58] sm:$0xff]
        %v6301 = vld [vmem:[%s6288 + $0x60] sm:$0xff]
        %v6302 = vld [vmem:[%s6288 + $0x68] sm:$0xff]
        %v6303 = vld [vmem:[%s6288 + $0x70] sm:$0xff]
        %v6304 = vld [vmem:[%s6288 + $0x78] sm:$0xff]
        %v6305 = vld [vmem:[%s6288 + $0x80] sm:$0xff]
        %v6306 = vld [vmem:[%s6288 + $0x88] sm:$0xff]
        %v6307 = vld [vmem:[%s6288 + $0x90] sm:$0xff]
        %v6308 = vld [vmem:[%s6288 + $0x98] sm:$0xff]
        %v6309 = vld [vmem:[%s6288 + $0xa0] sm:$0xff]
        %v6310 = vld [vmem:[%s6288 + $0xa8] sm:$0xff]
        %v6311 = vld [vmem:[%s6288 + $0xb0] sm:$0xff]
        %v6312 = vld [vmem:[%s6288 + $0xb8] sm:$0xff]
        %v6313 = vld [vmem:[%s6288 + $0xc0] sm:$0xff]
        %v6314 = vld [vmem:[%s6288 + $0xc8] sm:$0xff]
        %v6315 = vld [vmem:[%s6288 + $0xd0] sm:$0xff]
        %v6316 = vld [vmem:[%s6288 + $0xd8] sm:$0xff]
        %v6317 = vld [vmem:[%s6288 + $0xe0] sm:$0xff]
        %v6318 = vld [vmem:[%s6288 + $0xe8] sm:$0xff]
        %v6319 = vld [vmem:[%s6288 + $0xf0] sm:$0xff]
        %v6320 = vld [vmem:[%s6288 + $0xf8] sm:$0xff]
        %v6321 = vld [vmem:[%s6288 + $0x100] sm:$0xff]
        %v6322 = vld [vmem:[%s6288 + $0x108] sm:$0xff]
        %v6323 = vld [vmem:[%s6288 + $0x110] sm:$0xff]
        %v6324 = vld [vmem:[%s6288 + $0x118] sm:$0xff]
        %v6325 = vld [vmem:[%s6288 + $0x120] sm:$0xff]
        %v6326 = vld [vmem:[%s6288 + $0x128] sm:$0xff]
        %v6327 = vld [vmem:[%s6288 + $0x130] sm:$0xff]
        %v6328 = vld [vmem:[%s6288 + $0x138] sm:$0xff]
        %v6329 = vld [vmem:[%s6288 + $0x140] sm:$0xff]
        %v6330 = vld [vmem:[%s6288 + $0x148] sm:$0xff]
        %v6331 = vld [vmem:[%s6288 + $0x150] sm:$0xff]
        %v6332 = vld [vmem:[%s6288 + $0x158] sm:$0xff]
        %v6333 = vld [vmem:[%s6288 + $0x160] sm:$0xff]
        %v6334 = vld [vmem:[%s6288 + $0x168] sm:$0xff]
        %v6335 = vld [vmem:[%s6288 + $0x170] sm:$0xff]
        %v6336 = vld [vmem:[%s6288 + $0x178] sm:$0xff]
        %v6337 = vld [vmem:[%s6288 + $0x180] sm:$0xff]
        %v6338 = vld [vmem:[%s6288 + $0x188] sm:$0xff]
        %v6339 = vld [vmem:[%s6288 + $0x190] sm:$0xff]
        %v6340 = vld [vmem:[%s6288 + $0x198] sm:$0xff]
        %v6341 = vld [vmem:[%s6288 + $0x1a0] sm:$0xff]
        %v6342 = vld [vmem:[%s6288 + $0x1a8] sm:$0xff]
        %v6343 = vld [vmem:[%s6288 + $0x1b0] sm:$0xff]
        %v6344 = vld [vmem:[%s6288 + $0x1b8] sm:$0xff]
        %v6345 = vld [vmem:[%s6288 + $0x1c0] sm:$0xff]
        %v6346 = vld [vmem:[%s6288 + $0x1c8] sm:$0xff]
        %v6347 = vld [vmem:[%s6288 + $0x1d0] sm:$0xff]
        %v6348 = vld [vmem:[%s6288 + $0x1d8] sm:$0xff]
        %v6349 = vld [vmem:[%s6288 + $0x1e0] sm:$0xff]
        %v6350 = vld [vmem:[%s6288 + $0x1e8] sm:$0xff]
        %v6351 = vld [vmem:[%s6288 + $0x1f0] sm:$0xff]
        %v6352 = vld [vmem:[%s6288 + $0x1f8] sm:$0xff]
        %v6353 = vld [vmem:[%s6288 + $0x200] sm:$0xff]
        %v6354 = vld [vmem:[%s6288 + $0x208] sm:$0xff]
        %v6355 = vld [vmem:[%s6288 + $0x210] sm:$0xff]
        %v6356 = vld [vmem:[%s6288 + $0x218] sm:$0xff]
        %v6357 = vld [vmem:[%s6288 + $0x220] sm:$0xff]
        %v6358 = vld [vmem:[%s6288 + $0x228] sm:$0xff]
        %v6359 = vld [vmem:[%s6288 + $0x230] sm:$0xff]
        %v6360 = vld [vmem:[%s6288 + $0x238] sm:$0xff]
        %v6361 = vld [vmem:[%s6288 + $0x240] sm:$0xff]
        %v6362 = vld [vmem:[%s6288 + $0x248] sm:$0xff]
        %v6363 = vld [vmem:[%s6288 + $0x250] sm:$0xff]
        %v6364 = vld [vmem:[%s6288 + $0x258] sm:$0xff]
        %v6365 = vld [vmem:[%s6288 + $0x260] sm:$0xff]
        %v6366 = vld [vmem:[%s6288 + $0x268] sm:$0xff]
        %v6367 = vld [vmem:[%s6288 + $0x270] sm:$0xff]
        %v6368 = vld [vmem:[%s6288 + $0x278] sm:$0xff]
        %v6369 = vld [vmem:[%s6288 + $0x280] sm:$0xff]
        %v6370 = vld [vmem:[%s6288 + $0x288] sm:$0xff]
        %v6371 = vld [vmem:[%s6288 + $0x290] sm:$0xff]
        %v6372 = vld [vmem:[%s6288 + $0x298] sm:$0xff]
        %v6373 = vld [vmem:[%s6288 + $0x2a0] sm:$0xff]
        %v6374 = vld [vmem:[%s6288 + $0x2a8] sm:$0xff]
        %v6375 = vld [vmem:[%s6288 + $0x2b0] sm:$0xff]
        %v6376 = vld [vmem:[%s6288 + $0x2b8] sm:$0xff]
        %v6377 = vld [vmem:[%s6288 + $0x2c0] sm:$0xff]
        %v6378 = vld [vmem:[%s6288 + $0x2c8] sm:$0xff]
        %v6379 = vld [vmem:[%s6288 + $0x2d0] sm:$0xff]
        %v6380 = vld [vmem:[%s6288 + $0x2d8] sm:$0xff]
        %v6381 = vld [vmem:[%s6288 + $0x2e0] sm:$0xff]
        %v6382 = vld [vmem:[%s6288 + $0x2e8] sm:$0xff]
        %v6383 = vld [vmem:[%s6288 + $0x2f0] sm:$0xff]
        %v6384 = vld [vmem:[%s6288 + $0x2f8] sm:$0xff]
        %v6385 = vld [vmem:[%s6288 + $0x300] sm:$0xff]
        %v6386 = vld [vmem:[%s6288 + $0x308] sm:$0xff]
        %v6387 = vld [vmem:[%s6288 + $0x310] sm:$0xff]
        %v6388 = vld [vmem:[%s6288 + $0x318] sm:$0xff]
        %v6389 = vld [vmem:[%s6288 + $0x320] sm:$0xff]
        %v6390 = vld [vmem:[%s6288 + $0x328] sm:$0xff]
        %v6391 = vld [vmem:[%s6288 + $0x330] sm:$0xff]
        %v6392 = vld [vmem:[%s6288 + $0x338] sm:$0xff]
        %v6393 = vld [vmem:[%s6288 + $0x340] sm:$0xff]
        %v6394 = vld [vmem:[%s6288 + $0x348] sm:$0xff]
        %v6395 = vld [vmem:[%s6288 + $0x350] sm:$0xff]
        %v6396 = vld [vmem:[%s6288 + $0x358] sm:$0xff]
        %v6397 = vld [vmem:[%s6288 + $0x360] sm:$0xff]
        %v6398 = vld [vmem:[%s6288 + $0x368] sm:$0xff]
        %v6399 = vld [vmem:[%s6288 + $0x370] sm:$0xff]
        %v6400 = vld [vmem:[%s6288 + $0x378] sm:$0xff]
        %v6401 = vld [vmem:[%s6288 + $0x380] sm:$0xff]
        %v6402 = vld [vmem:[%s6288 + $0x388] sm:$0xff]
        %v6403 = vld [vmem:[%s6288 + $0x390] sm:$0xff]
        %v6404 = vld [vmem:[%s6288 + $0x398] sm:$0xff]
        %v6405 = vld [vmem:[%s6288 + $0x3a0] sm:$0xff]
        %v6406 = vld [vmem:[%s6288 + $0x3a8] sm:$0xff]
        %v6407 = vld [vmem:[%s6288 + $0x3b0] sm:$0xff]
        %v6408 = vld [vmem:[%s6288 + $0x3b8] sm:$0xff]
        %v6409 = vld [vmem:[%s6288 + $0x3c0] sm:$0xff]
        %v6410 = vld [vmem:[%s6288 + $0x3c8] sm:$0xff]
        %v6411 = vld [vmem:[%s6288 + $0x3d0] sm:$0xff]
        %v6412 = vld [vmem:[%s6288 + $0x3d8] sm:$0xff]
        %v6413 = vld [vmem:[%s6288 + $0x3e0] sm:$0xff]
        %v6414 = vld [vmem:[%s6288 + $0x3e8] sm:$0xff]
        %v6415 = vld [vmem:[%s6288 + $0x3f0] sm:$0xff]
        %v6416 = vld [vmem:[%s6288 + $0x3f8] sm:$0xff]
        %s6417 = scalar_lea.vmem [#allocation10], 20
        %v6418 = vld [vmem:[%s6417] sm:$0xf]
        %v6420 = vperm.slane %v6418, 0
        %v6421 = vperm.slane %v6418, 1
        %v6422 = vperm.slane %v6418, 2
        %v6423 = vperm.slane %v6418, 3
        %v6556 = vunpack.c.l.b16 %v6289
        %v6557 = vunpack.c.h.b16 %v6289
        %v6558 = vunpack.c.l.b16 %v6290
        %v6559 = vunpack.c.h.b16 %v6290
        %v6560 = vunpack.c.l.b16 %v6291
        %v6561 = vunpack.c.h.b16 %v6291
        %v6562 = vunpack.c.l.b16 %v6292
        %v6563 = vunpack.c.h.b16 %v6292
        %v6564 = vunpack.c.l.b16 %v6293
        %v6565 = vunpack.c.h.b16 %v6293
        %v6566 = vunpack.c.l.b16 %v6294
        %v6567 = vunpack.c.h.b16 %v6294
        %v6568 = vunpack.c.l.b16 %v6295
        %v6569 = vunpack.c.h.b16 %v6295
        %v6570 = vunpack.c.l.b16 %v6296
        %v6571 = vunpack.c.h.b16 %v6296
        %v6572 = vunpack.c.l.b16 %v6297
        %v6573 = vunpack.c.h.b16 %v6297
        %v6574 = vunpack.c.l.b16 %v6298
        %v6575 = vunpack.c.h.b16 %v6298
        %v6576 = vunpack.c.l.b16 %v6299
        %v6577 = vunpack.c.h.b16 %v6299
        %v6578 = vunpack.c.l.b16 %v6300
        %v6579 = vunpack.c.h.b16 %v6300
        %v6580 = vunpack.c.l.b16 %v6301
        %v6581 = vunpack.c.h.b16 %v6301
        %v6582 = vunpack.c.l.b16 %v6302
        %v6583 = vunpack.c.h.b16 %v6302
        %v6584 = vunpack.c.l.b16 %v6303
        %v6585 = vunpack.c.h.b16 %v6303
        %v6586 = vunpack.c.l.b16 %v6304
        %v6587 = vunpack.c.h.b16 %v6304
        %v6588 = vunpack.c.l.b16 %v6305
        %v6589 = vunpack.c.h.b16 %v6305
        %v6590 = vunpack.c.l.b16 %v6306
        %v6591 = vunpack.c.h.b16 %v6306
        %v6592 = vunpack.c.l.b16 %v6307
        %v6593 = vunpack.c.h.b16 %v6307
        %v6594 = vunpack.c.l.b16 %v6308
        %v6595 = vunpack.c.h.b16 %v6308
        %v6596 = vunpack.c.l.b16 %v6309
        %v6597 = vunpack.c.h.b16 %v6309
        %v6598 = vunpack.c.l.b16 %v6310
        %v6599 = vunpack.c.h.b16 %v6310
        %v6600 = vunpack.c.l.b16 %v6311
        %v6601 = vunpack.c.h.b16 %v6311
        %v6602 = vunpack.c.l.b16 %v6312
        %v6603 = vunpack.c.h.b16 %v6312
        %v6604 = vunpack.c.l.b16 %v6313
        %v6605 = vunpack.c.h.b16 %v6313
        %v6606 = vunpack.c.l.b16 %v6314
        %v6607 = vunpack.c.h.b16 %v6314
        %v6608 = vunpack.c.l.b16 %v6315
        %v6609 = vunpack.c.h.b16 %v6315
        %v6610 = vunpack.c.l.b16 %v6316
        %v6611 = vunpack.c.h.b16 %v6316
        %v6612 = vunpack.c.l.b16 %v6317
        %v6613 = vunpack.c.h.b16 %v6317
        %v6614 = vunpack.c.l.b16 %v6318
        %v6615 = vunpack.c.h.b16 %v6318
        %v6616 = vunpack.c.l.b16 %v6319
        %v6617 = vunpack.c.h.b16 %v6319
        %v6618 = vunpack.c.l.b16 %v6320
        %v6619 = vunpack.c.h.b16 %v6320
        %v6620 = vunpack.c.l.b16 %v6321
        %v6621 = vunpack.c.h.b16 %v6321
        %v6622 = vunpack.c.l.b16 %v6322
        %v6623 = vunpack.c.h.b16 %v6322
        %v6624 = vunpack.c.l.b16 %v6323
        %v6625 = vunpack.c.h.b16 %v6323
        %v6626 = vunpack.c.l.b16 %v6324
        %v6627 = vunpack.c.h.b16 %v6324
        %v6628 = vunpack.c.l.b16 %v6325
        %v6629 = vunpack.c.h.b16 %v6325
        %v6630 = vunpack.c.l.b16 %v6326
        %v6631 = vunpack.c.h.b16 %v6326
        %v6632 = vunpack.c.l.b16 %v6327
        %v6633 = vunpack.c.h.b16 %v6327
        %v6634 = vunpack.c.l.b16 %v6328
        %v6635 = vunpack.c.h.b16 %v6328
        %v6636 = vunpack.c.l.b16 %v6329
        %v6637 = vunpack.c.h.b16 %v6329
        %v6638 = vunpack.c.l.b16 %v6330
        %v6639 = vunpack.c.h.b16 %v6330
        %v6640 = vunpack.c.l.b16 %v6331
        %v6641 = vunpack.c.h.b16 %v6331
        %v6642 = vunpack.c.l.b16 %v6332
        %v6643 = vunpack.c.h.b16 %v6332
        %v6644 = vunpack.c.l.b16 %v6333
        %v6645 = vunpack.c.h.b16 %v6333
        %v6646 = vunpack.c.l.b16 %v6334
        %v6647 = vunpack.c.h.b16 %v6334
        %v6648 = vunpack.c.l.b16 %v6335
        %v6649 = vunpack.c.h.b16 %v6335
        %v6650 = vunpack.c.l.b16 %v6336
        %v6651 = vunpack.c.h.b16 %v6336
        %v6652 = vunpack.c.l.b16 %v6337
        %v6653 = vunpack.c.h.b16 %v6337
        %v6654 = vunpack.c.l.b16 %v6338
        %v6655 = vunpack.c.h.b16 %v6338
        %v6656 = vunpack.c.l.b16 %v6339
        %v6657 = vunpack.c.h.b16 %v6339
        %v6658 = vunpack.c.l.b16 %v6340
        %v6659 = vunpack.c.h.b16 %v6340
        %v6660 = vunpack.c.l.b16 %v6341
        %v6661 = vunpack.c.h.b16 %v6341
        %v6662 = vunpack.c.l.b16 %v6342
        %v6663 = vunpack.c.h.b16 %v6342
        %v6664 = vunpack.c.l.b16 %v6343
        %v6665 = vunpack.c.h.b16 %v6343
        %v6666 = vunpack.c.l.b16 %v6344
        %v6667 = vunpack.c.h.b16 %v6344
        %v6668 = vunpack.c.l.b16 %v6345
        %v6669 = vunpack.c.h.b16 %v6345
        %v6670 = vunpack.c.l.b16 %v6346
        %v6671 = vunpack.c.h.b16 %v6346
        %v6672 = vunpack.c.l.b16 %v6347
        %v6673 = vunpack.c.h.b16 %v6347
        %v6674 = vunpack.c.l.b16 %v6348
        %v6675 = vunpack.c.h.b16 %v6348
        %v6676 = vunpack.c.l.b16 %v6349
        %v6677 = vunpack.c.h.b16 %v6349
        %v6678 = vunpack.c.l.b16 %v6350
        %v6679 = vunpack.c.h.b16 %v6350
        %v6680 = vunpack.c.l.b16 %v6351
        %v6681 = vunpack.c.h.b16 %v6351
        %v6682 = vunpack.c.l.b16 %v6352
        %v6683 = vunpack.c.h.b16 %v6352
        %v6684 = vunpack.c.l.b16 %v6353
        %v6685 = vunpack.c.h.b16 %v6353
        %v6686 = vunpack.c.l.b16 %v6354
        %v6687 = vunpack.c.h.b16 %v6354
        %v6688 = vunpack.c.l.b16 %v6355
        %v6689 = vunpack.c.h.b16 %v6355
        %v6690 = vunpack.c.l.b16 %v6356
        %v6691 = vunpack.c.h.b16 %v6356
        %v6692 = vunpack.c.l.b16 %v6357
        %v6693 = vunpack.c.h.b16 %v6357
        %v6694 = vunpack.c.l.b16 %v6358
        %v6695 = vunpack.c.h.b16 %v6358
        %v6696 = vunpack.c.l.b16 %v6359
        %v6697 = vunpack.c.h.b16 %v6359
        %v6698 = vunpack.c.l.b16 %v6360
        %v6699 = vunpack.c.h.b16 %v6360
        %v6700 = vunpack.c.l.b16 %v6361
        %v6701 = vunpack.c.h.b16 %v6361
        %v6702 = vunpack.c.l.b16 %v6362
        %v6703 = vunpack.c.h.b16 %v6362
        %v6704 = vunpack.c.l.b16 %v6363
        %v6705 = vunpack.c.h.b16 %v6363
        %v6706 = vunpack.c.l.b16 %v6364
        %v6707 = vunpack.c.h.b16 %v6364
        %v6708 = vunpack.c.l.b16 %v6365
        %v6709 = vunpack.c.h.b16 %v6365
        %v6710 = vunpack.c.l.b16 %v6366
        %v6711 = vunpack.c.h.b16 %v6366
        %v6712 = vunpack.c.l.b16 %v6367
        %v6713 = vunpack.c.h.b16 %v6367
        %v6714 = vunpack.c.l.b16 %v6368
        %v6715 = vunpack.c.h.b16 %v6368
        %v6716 = vunpack.c.l.b16 %v6369
        %v6717 = vunpack.c.h.b16 %v6369
        %v6718 = vunpack.c.l.b16 %v6370
        %v6719 = vunpack.c.h.b16 %v6370
        %v6720 = vunpack.c.l.b16 %v6371
        %v6721 = vunpack.c.h.b16 %v6371
        %v6722 = vunpack.c.l.b16 %v6372
        %v6723 = vunpack.c.h.b16 %v6372
        %v6724 = vunpack.c.l.b16 %v6373
        %v6725 = vunpack.c.h.b16 %v6373
        %v6726 = vunpack.c.l.b16 %v6374
        %v6727 = vunpack.c.h.b16 %v6374
        %v6728 = vunpack.c.l.b16 %v6375
        %v6729 = vunpack.c.h.b16 %v6375
        %v6730 = vunpack.c.l.b16 %v6376
        %v6731 = vunpack.c.h.b16 %v6376
        %v6732 = vunpack.c.l.b16 %v6377
        %v6733 = vunpack.c.h.b16 %v6377
        %v6734 = vunpack.c.l.b16 %v6378
        %v6735 = vunpack.c.h.b16 %v6378
        %v6736 = vunpack.c.l.b16 %v6379
        %v6737 = vunpack.c.h.b16 %v6379
        %v6738 = vunpack.c.l.b16 %v6380
        %v6739 = vunpack.c.h.b16 %v6380
        %v6740 = vunpack.c.l.b16 %v6381
        %v6741 = vunpack.c.h.b16 %v6381
        %v6742 = vunpack.c.l.b16 %v6382
        %v6743 = vunpack.c.h.b16 %v6382
        %v6744 = vunpack.c.l.b16 %v6383
        %v6745 = vunpack.c.h.b16 %v6383
        %v6746 = vunpack.c.l.b16 %v6384
        %v6747 = vunpack.c.h.b16 %v6384
        %v6748 = vunpack.c.l.b16 %v6385
        %v6749 = vunpack.c.h.b16 %v6385
        %v6750 = vunpack.c.l.b16 %v6386
        %v6751 = vunpack.c.h.b16 %v6386
        %v6752 = vunpack.c.l.b16 %v6387
        %v6753 = vunpack.c.h.b16 %v6387
        %v6754 = vunpack.c.l.b16 %v6388
        %v6755 = vunpack.c.h.b16 %v6388
        %v6756 = vunpack.c.l.b16 %v6389
        %v6757 = vunpack.c.h.b16 %v6389
        %v6758 = vunpack.c.l.b16 %v6390
        %v6759 = vunpack.c.h.b16 %v6390
        %v6760 = vunpack.c.l.b16 %v6391
        %v6761 = vunpack.c.h.b16 %v6391
        %v6762 = vunpack.c.l.b16 %v6392
        %v6763 = vunpack.c.h.b16 %v6392
        %v6764 = vunpack.c.l.b16 %v6393
        %v6765 = vunpack.c.h.b16 %v6393
        %v6766 = vunpack.c.l.b16 %v6394
        %v6767 = vunpack.c.h.b16 %v6394
        %v6768 = vunpack.c.l.b16 %v6395
        %v6769 = vunpack.c.h.b16 %v6395
        %v6770 = vunpack.c.l.b16 %v6396
        %v6771 = vunpack.c.h.b16 %v6396
        %v6772 = vunpack.c.l.b16 %v6397
        %v6773 = vunpack.c.h.b16 %v6397
        %v6774 = vunpack.c.l.b16 %v6398
        %v6775 = vunpack.c.h.b16 %v6398
        %v6776 = vunpack.c.l.b16 %v6399
        %v6777 = vunpack.c.h.b16 %v6399
        %v6778 = vunpack.c.l.b16 %v6400
        %v6779 = vunpack.c.h.b16 %v6400
        %v6780 = vunpack.c.l.b16 %v6401
        %v6781 = vunpack.c.h.b16 %v6401
        %v6782 = vunpack.c.l.b16 %v6402
        %v6783 = vunpack.c.h.b16 %v6402
        %v6784 = vunpack.c.l.b16 %v6403
        %v6785 = vunpack.c.h.b16 %v6403
        %v6786 = vunpack.c.l.b16 %v6404
        %v6787 = vunpack.c.h.b16 %v6404
        %v6788 = vunpack.c.l.b16 %v6405
        %v6789 = vunpack.c.h.b16 %v6405
        %v6790 = vunpack.c.l.b16 %v6406
        %v6791 = vunpack.c.h.b16 %v6406
        %v6792 = vunpack.c.l.b16 %v6407
        %v6793 = vunpack.c.h.b16 %v6407
        %v6794 = vunpack.c.l.b16 %v6408
        %v6795 = vunpack.c.h.b16 %v6408
        %v6796 = vunpack.c.l.b16 %v6409
        %v6797 = vunpack.c.h.b16 %v6409
        %v6798 = vunpack.c.l.b16 %v6410
        %v6799 = vunpack.c.h.b16 %v6410
        %v6800 = vunpack.c.l.b16 %v6411
        %v6801 = vunpack.c.h.b16 %v6411
        %v6802 = vunpack.c.l.b16 %v6412
        %v6803 = vunpack.c.h.b16 %v6412
        %v6804 = vunpack.c.l.b16 %v6413
        %v6805 = vunpack.c.h.b16 %v6413
        %v6806 = vunpack.c.l.b16 %v6414
        %v6807 = vunpack.c.h.b16 %v6414
        %v6808 = vunpack.c.l.b16 %v6415
        %v6809 = vunpack.c.h.b16 %v6415
        %v6810 = vunpack.c.l.b16 %v6416
        %v6811 = vunpack.c.h.b16 %v6416
        %v6812 = vpack.c.b16 %v6560, %v6556
        %v6813 = vpack.c.b16 %v6561, %v6557
        %v6814 = vpack.c.b16 %v6562, %v6558
        %v6815 = vpack.c.b16 %v6563, %v6559
        %v6816 = vpack.c.b16 %v6568, %v6564
        %v6817 = vpack.c.b16 %v6569, %v6565
        %v6818 = vpack.c.b16 %v6570, %v6566
        %v6819 = vpack.c.b16 %v6571, %v6567
        %v6820 = vpack.c.b16 %v6576, %v6572
        %v6821 = vpack.c.b16 %v6577, %v6573
        %v6822 = vpack.c.b16 %v6578, %v6574
        %v6823 = vpack.c.b16 %v6579, %v6575
        %v6824 = vpack.c.b16 %v6584, %v6580
        %v6825 = vpack.c.b16 %v6585, %v6581
        %v6826 = vpack.c.b16 %v6586, %v6582
        %v6827 = vpack.c.b16 %v6587, %v6583
        %v6828 = vpack.c.b16 %v6592, %v6588
        %v6829 = vpack.c.b16 %v6593, %v6589
        %v6830 = vpack.c.b16 %v6594, %v6590
        %v6831 = vpack.c.b16 %v6595, %v6591
        %v6832 = vpack.c.b16 %v6600, %v6596
        %v6833 = vpack.c.b16 %v6601, %v6597
        %v6834 = vpack.c.b16 %v6602, %v6598
        %v6835 = vpack.c.b16 %v6603, %v6599
        %v6836 = vpack.c.b16 %v6608, %v6604
        %v6837 = vpack.c.b16 %v6609, %v6605
        %v6838 = vpack.c.b16 %v6610, %v6606
        %v6839 = vpack.c.b16 %v6611, %v6607
        %v6840 = vpack.c.b16 %v6616, %v6612
        %v6841 = vpack.c.b16 %v6617, %v6613
        %v6842 = vpack.c.b16 %v6618, %v6614
        %v6843 = vpack.c.b16 %v6619, %v6615
        %v6844 = vpack.c.b16 %v6624, %v6620
        %v6845 = vpack.c.b16 %v6625, %v6621
        %v6846 = vpack.c.b16 %v6626, %v6622
        %v6847 = vpack.c.b16 %v6627, %v6623
        %v6848 = vpack.c.b16 %v6632, %v6628
        %v6849 = vpack.c.b16 %v6633, %v6629
        %v6850 = vpack.c.b16 %v6634, %v6630
        %v6851 = vpack.c.b16 %v6635, %v6631
        %v6852 = vpack.c.b16 %v6640, %v6636
        %v6853 = vpack.c.b16 %v6641, %v6637
        %v6854 = vpack.c.b16 %v6642, %v6638
        %v6855 = vpack.c.b16 %v6643, %v6639
        %v6856 = vpack.c.b16 %v6648, %v6644
        %v6857 = vpack.c.b16 %v6649, %v6645
        %v6858 = vpack.c.b16 %v6650, %v6646
        %v6859 = vpack.c.b16 %v6651, %v6647
        %v6860 = vpack.c.b16 %v6656, %v6652
        %v6861 = vpack.c.b16 %v6657, %v6653
        %v6862 = vpack.c.b16 %v6658, %v6654
        %v6863 = vpack.c.b16 %v6659, %v6655
        %v6864 = vpack.c.b16 %v6664, %v6660
        %v6865 = vpack.c.b16 %v6665, %v6661
        %v6866 = vpack.c.b16 %v6666, %v6662
        %v6867 = vpack.c.b16 %v6667, %v6663
        %v6868 = vpack.c.b16 %v6672, %v6668
        %v6869 = vpack.c.b16 %v6673, %v6669
        %v6870 = vpack.c.b16 %v6674, %v6670
        %v6871 = vpack.c.b16 %v6675, %v6671
        %v6872 = vpack.c.b16 %v6680, %v6676
        %v6873 = vpack.c.b16 %v6681, %v6677
        %v6874 = vpack.c.b16 %v6682, %v6678
        %v6875 = vpack.c.b16 %v6683, %v6679
        %v6876 = vpack.c.b16 %v6688, %v6684
        %v6877 = vpack.c.b16 %v6689, %v6685
        %v6878 = vpack.c.b16 %v6690, %v6686
        %v6879 = vpack.c.b16 %v6691, %v6687
        %v6880 = vpack.c.b16 %v6696, %v6692
        %v6881 = vpack.c.b16 %v6697, %v6693
        %v6882 = vpack.c.b16 %v6698, %v6694
        %v6883 = vpack.c.b16 %v6699, %v6695
        %v6884 = vpack.c.b16 %v6704, %v6700
        %v6885 = vpack.c.b16 %v6705, %v6701
        %v6886 = vpack.c.b16 %v6706, %v6702
        %v6887 = vpack.c.b16 %v6707, %v6703
        %v6888 = vpack.c.b16 %v6712, %v6708
        %v6889 = vpack.c.b16 %v6713, %v6709
        %v6890 = vpack.c.b16 %v6714, %v6710
        %v6891 = vpack.c.b16 %v6715, %v6711
        %v6892 = vpack.c.b16 %v6720, %v6716
        %v6893 = vpack.c.b16 %v6721, %v6717
        %v6894 = vpack.c.b16 %v6722, %v6718
        %v6895 = vpack.c.b16 %v6723, %v6719
        %v6896 = vpack.c.b16 %v6728, %v6724
        %v6897 = vpack.c.b16 %v6729, %v6725
        %v6898 = vpack.c.b16 %v6730, %v6726
        %v6899 = vpack.c.b16 %v6731, %v6727
        %v6900 = vpack.c.b16 %v6736, %v6732
        %v6901 = vpack.c.b16 %v6737, %v6733
        %v6902 = vpack.c.b16 %v6738, %v6734
        %v6903 = vpack.c.b16 %v6739, %v6735
        %v6904 = vpack.c.b16 %v6744, %v6740
        %v6905 = vpack.c.b16 %v6745, %v6741
        %v6906 = vpack.c.b16 %v6746, %v6742
        %v6907 = vpack.c.b16 %v6747, %v6743
        %v6908 = vpack.c.b16 %v6752, %v6748
        %v6909 = vpack.c.b16 %v6753, %v6749
        %v6910 = vpack.c.b16 %v6754, %v6750
        %v6911 = vpack.c.b16 %v6755, %v6751
        %v6912 = vpack.c.b16 %v6760, %v6756
        %v6913 = vpack.c.b16 %v6761, %v6757
        %v6914 = vpack.c.b16 %v6762, %v6758
        %v6915 = vpack.c.b16 %v6763, %v6759
        %v6916 = vpack.c.b16 %v6768, %v6764
        %v6917 = vpack.c.b16 %v6769, %v6765
        %v6918 = vpack.c.b16 %v6770, %v6766
        %v6919 = vpack.c.b16 %v6771, %v6767
        %v6920 = vpack.c.b16 %v6776, %v6772
        %v6921 = vpack.c.b16 %v6777, %v6773
        %v6922 = vpack.c.b16 %v6778, %v6774
        %v6923 = vpack.c.b16 %v6779, %v6775
        %v6924 = vpack.c.b16 %v6784, %v6780
        %v6925 = vpack.c.b16 %v6785, %v6781
        %v6926 = vpack.c.b16 %v6786, %v6782
        %v6927 = vpack.c.b16 %v6787, %v6783
        %v6928 = vpack.c.b16 %v6792, %v6788
        %v6929 = vpack.c.b16 %v6793, %v6789
        %v6930 = vpack.c.b16 %v6794, %v6790
        %v6931 = vpack.c.b16 %v6795, %v6791
        %v6932 = vpack.c.b16 %v6800, %v6796
        %v6933 = vpack.c.b16 %v6801, %v6797
        %v6934 = vpack.c.b16 %v6802, %v6798
        %v6935 = vpack.c.b16 %v6803, %v6799
        %v6936 = vpack.c.b16 %v6808, %v6804
        %v6937 = vpack.c.b16 %v6809, %v6805
        %v6938 = vpack.c.b16 %v6810, %v6806
        %v6939 = vpack.c.b16 %v6811, %v6807
        %7068 = vmatpush.bf16.msra.mxu0 %v6840
        %7069 = vmatpush.bf16.msra.mxu0 %v6836
        %7070 = vmatpush.bf16.msra.mxu0 %v6832
        %7071 = vmatpush.bf16.msra.mxu0 %v6828
        %7072 = vmatpush.bf16.msra.mxu0 %v6824
        %7073 = vmatpush.bf16.msra.mxu0 %v6820
        %7074 = vmatpush.bf16.msra.mxu0 %v6816
        %7075 = vmatpush.bf16.msra.mxu0 %v6812
        %7076 = vmatmul.bf16.gmra.mxu0 %v6284
        %v7077 = vpop.f32.mrf.mxu0
        %v7078 = vadd.f32 %v6420, %v7077
        %v7079 = vpop.f32.mrf.mxu0
        %v7080 = vadd.f32 %v6420, %v7079
        %7081 = vdwg.mxu0
        %7082 = vmatpush.bf16.msra.mxu0 %v6872
        %7083 = vmatpush.bf16.msra.mxu0 %v6868
        %7084 = vmatpush.bf16.msra.mxu0 %v6864
        %7085 = vmatpush.bf16.msra.mxu0 %v6860
        %7086 = vmatpush.bf16.msra.mxu0 %v6856
        %7087 = vmatpush.bf16.msra.mxu0 %v6852
        %7088 = vmatpush.bf16.msra.mxu0 %v6848
        %7089 = vmatpush.bf16.msra.mxu0 %v6844
        %7090 = vmatmul.bf16.gmra.mxu0 %v6285
        %v7091 = vpop.f32.mrf.mxu0
        %v7092 = vadd.f32 %v7078, %v7091
        %v7093 = vpop.f32.mrf.mxu0
        %v7094 = vadd.f32 %v7080, %v7093
        %7095 = vdwg.mxu0
        %7096 = vmatpush.bf16.msra.mxu0 %v6904
        %7097 = vmatpush.bf16.msra.mxu0 %v6900
        %7098 = vmatpush.bf16.msra.mxu0 %v6896
        %7099 = vmatpush.bf16.msra.mxu0 %v6892
        %7100 = vmatpush.bf16.msra.mxu0 %v6888
        %7101 = vmatpush.bf16.msra.mxu0 %v6884
        %7102 = vmatpush.bf16.msra.mxu0 %v6880
        %7103 = vmatpush.bf16.msra.mxu0 %v6876
        %7104 = vmatmul.bf16.gmra.mxu0 %v6286
        %v7105 = vpop.f32.mrf.mxu0
        %v7106 = vadd.f32 %v7092, %v7105
        %v7107 = vpop.f32.mrf.mxu0
        %v7108 = vadd.f32 %v7094, %v7107
        %7109 = vdwg.mxu0
        %7110 = vmatpush.bf16.msra.mxu0 %v6936
        %7111 = vmatpush.bf16.msra.mxu0 %v6932
        %7112 = vmatpush.bf16.msra.mxu0 %v6928
        %7113 = vmatpush.bf16.msra.mxu0 %v6924
        %7114 = vmatpush.bf16.msra.mxu0 %v6920
        %7115 = vmatpush.bf16.msra.mxu0 %v6916
        %7116 = vmatpush.bf16.msra.mxu0 %v6912
        %7117 = vmatpush.bf16.msra.mxu0 %v6908
        %7118 = vmatmul.bf16.gmra.mxu0 %v6287
        %v7119 = vpop.f32.mrf.mxu0
        %v7120 = vadd.f32 %v7106, %v7119
        %v7121 = vpop.f32.mrf.mxu0
        %v7122 = vadd.f32 %v7108, %v7121
        %7123 = vdwg.mxu0
        %7124 = vmatpush.bf16.msra.mxu0 %v6841
        %7125 = vmatpush.bf16.msra.mxu0 %v6837
        %7126 = vmatpush.bf16.msra.mxu0 %v6833
        %7127 = vmatpush.bf16.msra.mxu0 %v6829
        %7128 = vmatpush.bf16.msra.mxu0 %v6825
        %7129 = vmatpush.bf16.msra.mxu0 %v6821
        %7130 = vmatpush.bf16.msra.mxu0 %v6817
        %7131 = vmatpush.bf16.msra.mxu0 %v6813
        %7132 = vmatmul.bf16.gmra.mxu0 %v6284
        %v7133 = vpop.f32.mrf.mxu0
        %v7134 = vadd.f32 %v6421, %v7133
        %v7135 = vpop.f32.mrf.mxu0
        %v7136 = vadd.f32 %v6421, %v7135
        %7137 = vdwg.mxu0
        %7138 = vmatpush.bf16.msra.mxu0 %v6873
        %7139 = vmatpush.bf16.msra.mxu0 %v6869
        %7140 = vmatpush.bf16.msra.mxu0 %v6865
        %7141 = vmatpush.bf16.msra.mxu0 %v6861
        %7142 = vmatpush.bf16.msra.mxu0 %v6857
        %7143 = vmatpush.bf16.msra.mxu0 %v6853
        %7144 = vmatpush.bf16.msra.mxu0 %v6849
        %7145 = vmatpush.bf16.msra.mxu0 %v6845
        %7146 = vmatmul.bf16.gmra.mxu0 %v6285
        %v7147 = vpop.f32.mrf.mxu0
        %v7148 = vadd.f32 %v7134, %v7147
        %v7149 = vpop.f32.mrf.mxu0
        %v7150 = vadd.f32 %v7136, %v7149
        %7151 = vdwg.mxu0
        %7152 = vmatpush.bf16.msra.mxu0 %v6905
        %7153 = vmatpush.bf16.msra.mxu0 %v6901
        %7154 = vmatpush.bf16.msra.mxu0 %v6897
        %7155 = vmatpush.bf16.msra.mxu0 %v6893
        %7156 = vmatpush.bf16.msra.mxu0 %v6889
        %7157 = vmatpush.bf16.msra.mxu0 %v6885
        %7158 = vmatpush.bf16.msra.mxu0 %v6881
        %7159 = vmatpush.bf16.msra.mxu0 %v6877
        %7160 = vmatmul.bf16.gmra.mxu0 %v6286
        %v7161 = vpop.f32.mrf.mxu0
        %v7162 = vadd.f32 %v7148, %v7161
        %v7163 = vpop.f32.mrf.mxu0
        %v7164 = vadd.f32 %v7150, %v7163
        %7165 = vdwg.mxu0
        %7166 = vmatpush.bf16.msra.mxu0 %v6937
        %7167 = vmatpush.bf16.msra.mxu0 %v6933
        %7168 = vmatpush.bf16.msra.mxu0 %v6929
        %7169 = vmatpush.bf16.msra.mxu0 %v6925
        %7170 = vmatpush.bf16.msra.mxu0 %v6921
        %7171 = vmatpush.bf16.msra.mxu0 %v6917
        %7172 = vmatpush.bf16.msra.mxu0 %v6913
        %7173 = vmatpush.bf16.msra.mxu0 %v6909
        %7174 = vmatmul.bf16.gmra.mxu0 %v6287
        %v7175 = vpop.f32.mrf.mxu0
        %v7176 = vadd.f32 %v7162, %v7175
        %v7177 = vpop.f32.mrf.mxu0
        %v7178 = vadd.f32 %v7164, %v7177
        %7179 = vdwg.mxu0
        %7180 = vmatpush.bf16.msra.mxu0 %v6842
        %7181 = vmatpush.bf16.msra.mxu0 %v6838
        %7182 = vmatpush.bf16.msra.mxu0 %v6834
        %7183 = vmatpush.bf16.msra.mxu0 %v6830
        %7184 = vmatpush.bf16.msra.mxu0 %v6826
        %7185 = vmatpush.bf16.msra.mxu0 %v6822
        %7186 = vmatpush.bf16.msra.mxu0 %v6818
        %7187 = vmatpush.bf16.msra.mxu0 %v6814
        %7188 = vmatmul.bf16.gmra.mxu0 %v6284
        %v7189 = vpop.f32.mrf.mxu0
        %v7190 = vadd.f32 %v6422, %v7189
        %v7191 = vpop.f32.mrf.mxu0
        %v7192 = vadd.f32 %v6422, %v7191
        %7193 = vdwg.mxu0
        %7194 = vmatpush.bf16.msra.mxu0 %v6874
        %7195 = vmatpush.bf16.msra.mxu0 %v6870
        %7196 = vmatpush.bf16.msra.mxu0 %v6866
        %7197 = vmatpush.bf16.msra.mxu0 %v6862
        %7198 = vmatpush.bf16.msra.mxu0 %v6858
        %7199 = vmatpush.bf16.msra.mxu0 %v6854
        %7200 = vmatpush.bf16.msra.mxu0 %v6850
        %7201 = vmatpush.bf16.msra.mxu0 %v6846
        %7202 = vmatmul.bf16.gmra.mxu0 %v6285
        %v7203 = vpop.f32.mrf.mxu0
        %v7204 = vadd.f32 %v7190, %v7203
        %v7205 = vpop.f32.mrf.mxu0
        %v7206 = vadd.f32 %v7192, %v7205
        %7207 = vdwg.mxu0
        %7208 = vmatpush.bf16.msra.mxu0 %v6906
        %7209 = vmatpush.bf16.msra.mxu0 %v6902
        %7210 = vmatpush.bf16.msra.mxu0 %v6898
        %7211 = vmatpush.bf16.msra.mxu0 %v6894
        %7212 = vmatpush.bf16.msra.mxu0 %v6890
        %7213 = vmatpush.bf16.msra.mxu0 %v6886
        %7214 = vmatpush.bf16.msra.mxu0 %v6882
        %7215 = vmatpush.bf16.msra.mxu0 %v6878
        %7216 = vmatmul.bf16.gmra.mxu0 %v6286
        %v7217 = vpop.f32.mrf.mxu0
        %v7218 = vadd.f32 %v7204, %v7217
        %v7219 = vpop.f32.mrf.mxu0
        %v7220 = vadd.f32 %v7206, %v7219
        %7221 = vdwg.mxu0
        %7222 = vmatpush.bf16.msra.mxu0 %v6938
        %7223 = vmatpush.bf16.msra.mxu0 %v6934
        %7224 = vmatpush.bf16.msra.mxu0 %v6930
        %7225 = vmatpush.bf16.msra.mxu0 %v6926
        %7226 = vmatpush.bf16.msra.mxu0 %v6922
        %7227 = vmatpush.bf16.msra.mxu0 %v6918
        %7228 = vmatpush.bf16.msra.mxu0 %v6914
        %7229 = vmatpush.bf16.msra.mxu0 %v6910
        %7230 = vmatmul.bf16.gmra.mxu0 %v6287
        %v7231 = vpop.f32.mrf.mxu0
        %v7232 = vadd.f32 %v7218, %v7231
        %v7233 = vpop.f32.mrf.mxu0
        %v7234 = vadd.f32 %v7220, %v7233
        %7235 = vdwg.mxu0
        %7236 = vmatpush.bf16.msra.mxu0 %v6843
        %7237 = vmatpush.bf16.msra.mxu0 %v6839
        %7238 = vmatpush.bf16.msra.mxu0 %v6835
        %7239 = vmatpush.bf16.msra.mxu0 %v6831
        %7240 = vmatpush.bf16.msra.mxu0 %v6827
        %7241 = vmatpush.bf16.msra.mxu0 %v6823
        %7242 = vmatpush.bf16.msra.mxu0 %v6819
        %7243 = vmatpush.bf16.msra.mxu0 %v6815
        %7244 = vmatmul.bf16.gmra.mxu0 %v6284
        %v7245 = vpop.f32.mrf.mxu0
        %v7246 = vadd.f32 %v6423, %v7245
        %v7247 = vpop.f32.mrf.mxu0
        %v7248 = vadd.f32 %v6423, %v7247
        %7249 = vdwg.mxu0
        %7250 = vmatpush.bf16.msra.mxu0 %v6875
        %7251 = vmatpush.bf16.msra.mxu0 %v6871
        %7252 = vmatpush.bf16.msra.mxu0 %v6867
        %7253 = vmatpush.bf16.msra.mxu0 %v6863
        %7254 = vmatpush.bf16.msra.mxu0 %v6859
        %7255 = vmatpush.bf16.msra.mxu0 %v6855
        %7256 = vmatpush.bf16.msra.mxu0 %v6851
        %7257 = vmatpush.bf16.msra.mxu0 %v6847
        %7258 = vmatmul.bf16.gmra.mxu0 %v6285
        %v7259 = vpop.f32.mrf.mxu0
        %v7260 = vadd.f32 %v7246, %v7259
        %v7261 = vpop.f32.mrf.mxu0
        %v7262 = vadd.f32 %v7248, %v7261
        %7263 = vdwg.mxu0
        %7264 = vmatpush.bf16.msra.mxu0 %v6907
        %7265 = vmatpush.bf16.msra.mxu0 %v6903
        %7266 = vmatpush.bf16.msra.mxu0 %v6899
        %7267 = vmatpush.bf16.msra.mxu0 %v6895
        %7268 = vmatpush.bf16.msra.mxu0 %v6891
        %7269 = vmatpush.bf16.msra.mxu0 %v6887
        %7270 = vmatpush.bf16.msra.mxu0 %v6883
        %7271 = vmatpush.bf16.msra.mxu0 %v6879
        %7272 = vmatmul.bf16.gmra.mxu0 %v6286
        %v7273 = vpop.f32.mrf.mxu0
        %v7274 = vadd.f32 %v7260, %v7273
        %v7275 = vpop.f32.mrf.mxu0
        %v7276 = vadd.f32 %v7262, %v7275
        %7277 = vdwg.mxu0
        %7278 = vmatpush.bf16.msra.mxu0 %v6939
        %7279 = vmatpush.bf16.msra.mxu0 %v6935
        %7280 = vmatpush.bf16.msra.mxu0 %v6931
        %7281 = vmatpush.bf16.msra.mxu0 %v6927
        %7282 = vmatpush.bf16.msra.mxu0 %v6923
        %7283 = vmatpush.bf16.msra.mxu0 %v6919
        %7284 = vmatpush.bf16.msra.mxu0 %v6915
        %7285 = vmatpush.bf16.msra.mxu0 %v6911
        %7286 = vmatmul.bf16.gmra.mxu0 %v6287
        %v7287 = vpop.f32.mrf.mxu0
        %v7288 = vadd.f32 %v7274, %v7287
        %v7289 = vpop.f32.mrf.mxu0
        %v7290 = vadd.f32 %v7276, %v7289
        %7291 = vdwg.mxu0
        %v7292 = vmax.f32 %v7120, 0.0
        %v7293 = vmax.f32 %v7176, 0.0
        %v7294 = vmax.f32 %v7232, 0.0
        %v7295 = vmax.f32 %v7288, 0.0
        %v7296 = vmax.f32 %v7122, 0.0
        %v7297 = vmax.f32 %v7178, 0.0
        %v7298 = vmax.f32 %v7234, 0.0
        %v7299 = vmax.f32 %v7290, 0.0
        %v7300 = vpack.c.bf16 %v7296, %v7292
        %v7301 = vpack.c.bf16 %v7297, %v7293
        %v7302 = vpack.c.bf16 %v7298, %v7294
        %v7303 = vpack.c.bf16 %v7299, %v7295
        %s7304 = scalar_lea.vmem [#allocation9], 6144
        %v7305 = vld [vmem:[%s7304] sm:$0xff]
        %v7306 = vld [vmem:[%s7304 + $0x8] sm:$0xff]
        %v7307 = vld [vmem:[%s7304 + $0x10] sm:$0xff]
        %v7308 = vld [vmem:[%s7304 + $0x18] sm:$0xff]
        %v7309 = vld [vmem:[%s7304 + $0x20] sm:$0xff]
        %v7310 = vld [vmem:[%s7304 + $0x28] sm:$0xff]
        %v7311 = vld [vmem:[%s7304 + $0x30] sm:$0xff]
        %v7312 = vld [vmem:[%s7304 + $0x38] sm:$0xff]
        %v7313 = vld [vmem:[%s7304 + $0x40] sm:$0xff]
        %v7314 = vld [vmem:[%s7304 + $0x48] sm:$0xff]
        %v7315 = vld [vmem:[%s7304 + $0x50] sm:$0xff]
        %v7316 = vld [vmem:[%s7304 + $0x58] sm:$0xff]
        %v7317 = vld [vmem:[%s7304 + $0x60] sm:$0xff]
        %v7318 = vld [vmem:[%s7304 + $0x68] sm:$0xff]
        %v7319 = vld [vmem:[%s7304 + $0x70] sm:$0xff]
        %v7320 = vld [vmem:[%s7304 + $0x78] sm:$0xff]
        %v7321 = vld [vmem:[%s7304 + $0x80] sm:$0xff]
        %v7322 = vld [vmem:[%s7304 + $0x88] sm:$0xff]
        %v7323 = vld [vmem:[%s7304 + $0x90] sm:$0xff]
        %v7324 = vld [vmem:[%s7304 + $0x98] sm:$0xff]
        %v7325 = vld [vmem:[%s7304 + $0xa0] sm:$0xff]
        %v7326 = vld [vmem:[%s7304 + $0xa8] sm:$0xff]
        %v7327 = vld [vmem:[%s7304 + $0xb0] sm:$0xff]
        %v7328 = vld [vmem:[%s7304 + $0xb8] sm:$0xff]
        %v7329 = vld [vmem:[%s7304 + $0xc0] sm:$0xff]
        %v7330 = vld [vmem:[%s7304 + $0xc8] sm:$0xff]
        %v7331 = vld [vmem:[%s7304 + $0xd0] sm:$0xff]
        %v7332 = vld [vmem:[%s7304 + $0xd8] sm:$0xff]
        %v7333 = vld [vmem:[%s7304 + $0xe0] sm:$0xff]
        %v7334 = vld [vmem:[%s7304 + $0xe8] sm:$0xff]
        %v7335 = vld [vmem:[%s7304 + $0xf0] sm:$0xff]
        %v7336 = vld [vmem:[%s7304 + $0xf8] sm:$0xff]
        %v7337 = vld [vmem:[%s7304 + $0x100] sm:$0xff]
        %v7338 = vld [vmem:[%s7304 + $0x108] sm:$0xff]
        %v7339 = vld [vmem:[%s7304 + $0x110] sm:$0xff]
        %v7340 = vld [vmem:[%s7304 + $0x118] sm:$0xff]
        %v7341 = vld [vmem:[%s7304 + $0x120] sm:$0xff]
        %v7342 = vld [vmem:[%s7304 + $0x128] sm:$0xff]
        %v7343 = vld [vmem:[%s7304 + $0x130] sm:$0xff]
        %v7344 = vld [vmem:[%s7304 + $0x138] sm:$0xff]
        %v7345 = vld [vmem:[%s7304 + $0x140] sm:$0xff]
        %v7346 = vld [vmem:[%s7304 + $0x148] sm:$0xff]
        %v7347 = vld [vmem:[%s7304 + $0x150] sm:$0xff]
        %v7348 = vld [vmem:[%s7304 + $0x158] sm:$0xff]
        %v7349 = vld [vmem:[%s7304 + $0x160] sm:$0xff]
        %v7350 = vld [vmem:[%s7304 + $0x168] sm:$0xff]
        %v7351 = vld [vmem:[%s7304 + $0x170] sm:$0xff]
        %v7352 = vld [vmem:[%s7304 + $0x178] sm:$0xff]
        %v7353 = vld [vmem:[%s7304 + $0x180] sm:$0xff]
        %v7354 = vld [vmem:[%s7304 + $0x188] sm:$0xff]
        %v7355 = vld [vmem:[%s7304 + $0x190] sm:$0xff]
        %v7356 = vld [vmem:[%s7304 + $0x198] sm:$0xff]
        %v7357 = vld [vmem:[%s7304 + $0x1a0] sm:$0xff]
        %v7358 = vld [vmem:[%s7304 + $0x1a8] sm:$0xff]
        %v7359 = vld [vmem:[%s7304 + $0x1b0] sm:$0xff]
        %v7360 = vld [vmem:[%s7304 + $0x1b8] sm:$0xff]
        %v7361 = vld [vmem:[%s7304 + $0x1c0] sm:$0xff]
        %v7362 = vld [vmem:[%s7304 + $0x1c8] sm:$0xff]
        %v7363 = vld [vmem:[%s7304 + $0x1d0] sm:$0xff]
        %v7364 = vld [vmem:[%s7304 + $0x1d8] sm:$0xff]
        %v7365 = vld [vmem:[%s7304 + $0x1e0] sm:$0xff]
        %v7366 = vld [vmem:[%s7304 + $0x1e8] sm:$0xff]
        %v7367 = vld [vmem:[%s7304 + $0x1f0] sm:$0xff]
        %v7368 = vld [vmem:[%s7304 + $0x1f8] sm:$0xff]
        %v7369 = vld [vmem:[%s7304 + $0x200] sm:$0xff]
        %v7370 = vld [vmem:[%s7304 + $0x208] sm:$0xff]
        %v7371 = vld [vmem:[%s7304 + $0x210] sm:$0xff]
        %v7372 = vld [vmem:[%s7304 + $0x218] sm:$0xff]
        %v7373 = vld [vmem:[%s7304 + $0x220] sm:$0xff]
        %v7374 = vld [vmem:[%s7304 + $0x228] sm:$0xff]
        %v7375 = vld [vmem:[%s7304 + $0x230] sm:$0xff]
        %v7376 = vld [vmem:[%s7304 + $0x238] sm:$0xff]
        %v7377 = vld [vmem:[%s7304 + $0x240] sm:$0xff]
        %v7378 = vld [vmem:[%s7304 + $0x248] sm:$0xff]
        %v7379 = vld [vmem:[%s7304 + $0x250] sm:$0xff]
        %v7380 = vld [vmem:[%s7304 + $0x258] sm:$0xff]
        %v7381 = vld [vmem:[%s7304 + $0x260] sm:$0xff]
        %v7382 = vld [vmem:[%s7304 + $0x268] sm:$0xff]
        %v7383 = vld [vmem:[%s7304 + $0x270] sm:$0xff]
        %v7384 = vld [vmem:[%s7304 + $0x278] sm:$0xff]
        %v7385 = vld [vmem:[%s7304 + $0x280] sm:$0xff]
        %v7386 = vld [vmem:[%s7304 + $0x288] sm:$0xff]
        %v7387 = vld [vmem:[%s7304 + $0x290] sm:$0xff]
        %v7388 = vld [vmem:[%s7304 + $0x298] sm:$0xff]
        %v7389 = vld [vmem:[%s7304 + $0x2a0] sm:$0xff]
        %v7390 = vld [vmem:[%s7304 + $0x2a8] sm:$0xff]
        %v7391 = vld [vmem:[%s7304 + $0x2b0] sm:$0xff]
        %v7392 = vld [vmem:[%s7304 + $0x2b8] sm:$0xff]
        %v7393 = vld [vmem:[%s7304 + $0x2c0] sm:$0xff]
        %v7394 = vld [vmem:[%s7304 + $0x2c8] sm:$0xff]
        %v7395 = vld [vmem:[%s7304 + $0x2d0] sm:$0xff]
        %v7396 = vld [vmem:[%s7304 + $0x2d8] sm:$0xff]
        %v7397 = vld [vmem:[%s7304 + $0x2e0] sm:$0xff]
        %v7398 = vld [vmem:[%s7304 + $0x2e8] sm:$0xff]
        %v7399 = vld [vmem:[%s7304 + $0x2f0] sm:$0xff]
        %v7400 = vld [vmem:[%s7304 + $0x2f8] sm:$0xff]
        %v7401 = vld [vmem:[%s7304 + $0x300] sm:$0xff]
        %v7402 = vld [vmem:[%s7304 + $0x308] sm:$0xff]
        %v7403 = vld [vmem:[%s7304 + $0x310] sm:$0xff]
        %v7404 = vld [vmem:[%s7304 + $0x318] sm:$0xff]
        %v7405 = vld [vmem:[%s7304 + $0x320] sm:$0xff]
        %v7406 = vld [vmem:[%s7304 + $0x328] sm:$0xff]
        %v7407 = vld [vmem:[%s7304 + $0x330] sm:$0xff]
        %v7408 = vld [vmem:[%s7304 + $0x338] sm:$0xff]
        %v7409 = vld [vmem:[%s7304 + $0x340] sm:$0xff]
        %v7410 = vld [vmem:[%s7304 + $0x348] sm:$0xff]
        %v7411 = vld [vmem:[%s7304 + $0x350] sm:$0xff]
        %v7412 = vld [vmem:[%s7304 + $0x358] sm:$0xff]
        %v7413 = vld [vmem:[%s7304 + $0x360] sm:$0xff]
        %v7414 = vld [vmem:[%s7304 + $0x368] sm:$0xff]
        %v7415 = vld [vmem:[%s7304 + $0x370] sm:$0xff]
        %v7416 = vld [vmem:[%s7304 + $0x378] sm:$0xff]
        %v7417 = vld [vmem:[%s7304 + $0x380] sm:$0xff]
        %v7418 = vld [vmem:[%s7304 + $0x388] sm:$0xff]
        %v7419 = vld [vmem:[%s7304 + $0x390] sm:$0xff]
        %v7420 = vld [vmem:[%s7304 + $0x398] sm:$0xff]
        %v7421 = vld [vmem:[%s7304 + $0x3a0] sm:$0xff]
        %v7422 = vld [vmem:[%s7304 + $0x3a8] sm:$0xff]
        %v7423 = vld [vmem:[%s7304 + $0x3b0] sm:$0xff]
        %v7424 = vld [vmem:[%s7304 + $0x3b8] sm:$0xff]
        %v7425 = vld [vmem:[%s7304 + $0x3c0] sm:$0xff]
        %v7426 = vld [vmem:[%s7304 + $0x3c8] sm:$0xff]
        %v7427 = vld [vmem:[%s7304 + $0x3d0] sm:$0xff]
        %v7428 = vld [vmem:[%s7304 + $0x3d8] sm:$0xff]
        %v7429 = vld [vmem:[%s7304 + $0x3e0] sm:$0xff]
        %v7430 = vld [vmem:[%s7304 + $0x3e8] sm:$0xff]
        %v7431 = vld [vmem:[%s7304 + $0x3f0] sm:$0xff]
        %v7432 = vld [vmem:[%s7304 + $0x3f8] sm:$0xff]
        %s7433 = scalar_lea.vmem [#allocation10], 24
        %v7434 = vld [vmem:[%s7433] sm:$0xf]
        %v7436 = vperm.slane %v7434, 0
        %v7437 = vperm.slane %v7434, 1
        %v7438 = vperm.slane %v7434, 2
        %v7439 = vperm.slane %v7434, 3
        %v7572 = vunpack.c.l.b16 %v7305
        %v7573 = vunpack.c.h.b16 %v7305
        %v7574 = vunpack.c.l.b16 %v7306
        %v7575 = vunpack.c.h.b16 %v7306
        %v7576 = vunpack.c.l.b16 %v7307
        %v7577 = vunpack.c.h.b16 %v7307
        %v7578 = vunpack.c.l.b16 %v7308
        %v7579 = vunpack.c.h.b16 %v7308
        %v7580 = vunpack.c.l.b16 %v7309
        %v7581 = vunpack.c.h.b16 %v7309
        %v7582 = vunpack.c.l.b16 %v7310
        %v7583 = vunpack.c.h.b16 %v7310
        %v7584 = vunpack.c.l.b16 %v7311
        %v7585 = vunpack.c.h.b16 %v7311
        %v7586 = vunpack.c.l.b16 %v7312
        %v7587 = vunpack.c.h.b16 %v7312
        %v7588 = vunpack.c.l.b16 %v7313
        %v7589 = vunpack.c.h.b16 %v7313
        %v7590 = vunpack.c.l.b16 %v7314
        %v7591 = vunpack.c.h.b16 %v7314
        %v7592 = vunpack.c.l.b16 %v7315
        %v7593 = vunpack.c.h.b16 %v7315
        %v7594 = vunpack.c.l.b16 %v7316
        %v7595 = vunpack.c.h.b16 %v7316
        %v7596 = vunpack.c.l.b16 %v7317
        %v7597 = vunpack.c.h.b16 %v7317
        %v7598 = vunpack.c.l.b16 %v7318
        %v7599 = vunpack.c.h.b16 %v7318
        %v7600 = vunpack.c.l.b16 %v7319
        %v7601 = vunpack.c.h.b16 %v7319
        %v7602 = vunpack.c.l.b16 %v7320
        %v7603 = vunpack.c.h.b16 %v7320
        %v7604 = vunpack.c.l.b16 %v7321
        %v7605 = vunpack.c.h.b16 %v7321
        %v7606 = vunpack.c.l.b16 %v7322
        %v7607 = vunpack.c.h.b16 %v7322
        %v7608 = vunpack.c.l.b16 %v7323
        %v7609 = vunpack.c.h.b16 %v7323
        %v7610 = vunpack.c.l.b16 %v7324
        %v7611 = vunpack.c.h.b16 %v7324
        %v7612 = vunpack.c.l.b16 %v7325
        %v7613 = vunpack.c.h.b16 %v7325
        %v7614 = vunpack.c.l.b16 %v7326
        %v7615 = vunpack.c.h.b16 %v7326
        %v7616 = vunpack.c.l.b16 %v7327
        %v7617 = vunpack.c.h.b16 %v7327
        %v7618 = vunpack.c.l.b16 %v7328
        %v7619 = vunpack.c.h.b16 %v7328
        %v7620 = vunpack.c.l.b16 %v7329
        %v7621 = vunpack.c.h.b16 %v7329
        %v7622 = vunpack.c.l.b16 %v7330
        %v7623 = vunpack.c.h.b16 %v7330
        %v7624 = vunpack.c.l.b16 %v7331
        %v7625 = vunpack.c.h.b16 %v7331
        %v7626 = vunpack.c.l.b16 %v7332
        %v7627 = vunpack.c.h.b16 %v7332
        %v7628 = vunpack.c.l.b16 %v7333
        %v7629 = vunpack.c.h.b16 %v7333
        %v7630 = vunpack.c.l.b16 %v7334
        %v7631 = vunpack.c.h.b16 %v7334
        %v7632 = vunpack.c.l.b16 %v7335
        %v7633 = vunpack.c.h.b16 %v7335
        %v7634 = vunpack.c.l.b16 %v7336
        %v7635 = vunpack.c.h.b16 %v7336
        %v7636 = vunpack.c.l.b16 %v7337
        %v7637 = vunpack.c.h.b16 %v7337
        %v7638 = vunpack.c.l.b16 %v7338
        %v7639 = vunpack.c.h.b16 %v7338
        %v7640 = vunpack.c.l.b16 %v7339
        %v7641 = vunpack.c.h.b16 %v7339
        %v7642 = vunpack.c.l.b16 %v7340
        %v7643 = vunpack.c.h.b16 %v7340
        %v7644 = vunpack.c.l.b16 %v7341
        %v7645 = vunpack.c.h.b16 %v7341
        %v7646 = vunpack.c.l.b16 %v7342
        %v7647 = vunpack.c.h.b16 %v7342
        %v7648 = vunpack.c.l.b16 %v7343
        %v7649 = vunpack.c.h.b16 %v7343
        %v7650 = vunpack.c.l.b16 %v7344
        %v7651 = vunpack.c.h.b16 %v7344
        %v7652 = vunpack.c.l.b16 %v7345
        %v7653 = vunpack.c.h.b16 %v7345
        %v7654 = vunpack.c.l.b16 %v7346
        %v7655 = vunpack.c.h.b16 %v7346
        %v7656 = vunpack.c.l.b16 %v7347
        %v7657 = vunpack.c.h.b16 %v7347
        %v7658 = vunpack.c.l.b16 %v7348
        %v7659 = vunpack.c.h.b16 %v7348
        %v7660 = vunpack.c.l.b16 %v7349
        %v7661 = vunpack.c.h.b16 %v7349
        %v7662 = vunpack.c.l.b16 %v7350
        %v7663 = vunpack.c.h.b16 %v7350
        %v7664 = vunpack.c.l.b16 %v7351
        %v7665 = vunpack.c.h.b16 %v7351
        %v7666 = vunpack.c.l.b16 %v7352
        %v7667 = vunpack.c.h.b16 %v7352
        %v7668 = vunpack.c.l.b16 %v7353
        %v7669 = vunpack.c.h.b16 %v7353
        %v7670 = vunpack.c.l.b16 %v7354
        %v7671 = vunpack.c.h.b16 %v7354
        %v7672 = vunpack.c.l.b16 %v7355
        %v7673 = vunpack.c.h.b16 %v7355
        %v7674 = vunpack.c.l.b16 %v7356
        %v7675 = vunpack.c.h.b16 %v7356
        %v7676 = vunpack.c.l.b16 %v7357
        %v7677 = vunpack.c.h.b16 %v7357
        %v7678 = vunpack.c.l.b16 %v7358
        %v7679 = vunpack.c.h.b16 %v7358
        %v7680 = vunpack.c.l.b16 %v7359
        %v7681 = vunpack.c.h.b16 %v7359
        %v7682 = vunpack.c.l.b16 %v7360
        %v7683 = vunpack.c.h.b16 %v7360
        %v7684 = vunpack.c.l.b16 %v7361
        %v7685 = vunpack.c.h.b16 %v7361
        %v7686 = vunpack.c.l.b16 %v7362
        %v7687 = vunpack.c.h.b16 %v7362
        %v7688 = vunpack.c.l.b16 %v7363
        %v7689 = vunpack.c.h.b16 %v7363
        %v7690 = vunpack.c.l.b16 %v7364
        %v7691 = vunpack.c.h.b16 %v7364
        %v7692 = vunpack.c.l.b16 %v7365
        %v7693 = vunpack.c.h.b16 %v7365
        %v7694 = vunpack.c.l.b16 %v7366
        %v7695 = vunpack.c.h.b16 %v7366
        %v7696 = vunpack.c.l.b16 %v7367
        %v7697 = vunpack.c.h.b16 %v7367
        %v7698 = vunpack.c.l.b16 %v7368
        %v7699 = vunpack.c.h.b16 %v7368
        %v7700 = vunpack.c.l.b16 %v7369
        %v7701 = vunpack.c.h.b16 %v7369
        %v7702 = vunpack.c.l.b16 %v7370
        %v7703 = vunpack.c.h.b16 %v7370
        %v7704 = vunpack.c.l.b16 %v7371
        %v7705 = vunpack.c.h.b16 %v7371
        %v7706 = vunpack.c.l.b16 %v7372
        %v7707 = vunpack.c.h.b16 %v7372
        %v7708 = vunpack.c.l.b16 %v7373
        %v7709 = vunpack.c.h.b16 %v7373
        %v7710 = vunpack.c.l.b16 %v7374
        %v7711 = vunpack.c.h.b16 %v7374
        %v7712 = vunpack.c.l.b16 %v7375
        %v7713 = vunpack.c.h.b16 %v7375
        %v7714 = vunpack.c.l.b16 %v7376
        %v7715 = vunpack.c.h.b16 %v7376
        %v7716 = vunpack.c.l.b16 %v7377
        %v7717 = vunpack.c.h.b16 %v7377
        %v7718 = vunpack.c.l.b16 %v7378
        %v7719 = vunpack.c.h.b16 %v7378
        %v7720 = vunpack.c.l.b16 %v7379
        %v7721 = vunpack.c.h.b16 %v7379
        %v7722 = vunpack.c.l.b16 %v7380
        %v7723 = vunpack.c.h.b16 %v7380
        %v7724 = vunpack.c.l.b16 %v7381
        %v7725 = vunpack.c.h.b16 %v7381
        %v7726 = vunpack.c.l.b16 %v7382
        %v7727 = vunpack.c.h.b16 %v7382
        %v7728 = vunpack.c.l.b16 %v7383
        %v7729 = vunpack.c.h.b16 %v7383
        %v7730 = vunpack.c.l.b16 %v7384
        %v7731 = vunpack.c.h.b16 %v7384
        %v7732 = vunpack.c.l.b16 %v7385
        %v7733 = vunpack.c.h.b16 %v7385
        %v7734 = vunpack.c.l.b16 %v7386
        %v7735 = vunpack.c.h.b16 %v7386
        %v7736 = vunpack.c.l.b16 %v7387
        %v7737 = vunpack.c.h.b16 %v7387
        %v7738 = vunpack.c.l.b16 %v7388
        %v7739 = vunpack.c.h.b16 %v7388
        %v7740 = vunpack.c.l.b16 %v7389
        %v7741 = vunpack.c.h.b16 %v7389
        %v7742 = vunpack.c.l.b16 %v7390
        %v7743 = vunpack.c.h.b16 %v7390
        %v7744 = vunpack.c.l.b16 %v7391
        %v7745 = vunpack.c.h.b16 %v7391
        %v7746 = vunpack.c.l.b16 %v7392
        %v7747 = vunpack.c.h.b16 %v7392
        %v7748 = vunpack.c.l.b16 %v7393
        %v7749 = vunpack.c.h.b16 %v7393
        %v7750 = vunpack.c.l.b16 %v7394
        %v7751 = vunpack.c.h.b16 %v7394
        %v7752 = vunpack.c.l.b16 %v7395
        %v7753 = vunpack.c.h.b16 %v7395
        %v7754 = vunpack.c.l.b16 %v7396
        %v7755 = vunpack.c.h.b16 %v7396
        %v7756 = vunpack.c.l.b16 %v7397
        %v7757 = vunpack.c.h.b16 %v7397
        %v7758 = vunpack.c.l.b16 %v7398
        %v7759 = vunpack.c.h.b16 %v7398
        %v7760 = vunpack.c.l.b16 %v7399
        %v7761 = vunpack.c.h.b16 %v7399
        %v7762 = vunpack.c.l.b16 %v7400
        %v7763 = vunpack.c.h.b16 %v7400
        %v7764 = vunpack.c.l.b16 %v7401
        %v7765 = vunpack.c.h.b16 %v7401
        %v7766 = vunpack.c.l.b16 %v7402
        %v7767 = vunpack.c.h.b16 %v7402
        %v7768 = vunpack.c.l.b16 %v7403
        %v7769 = vunpack.c.h.b16 %v7403
        %v7770 = vunpack.c.l.b16 %v7404
        %v7771 = vunpack.c.h.b16 %v7404
        %v7772 = vunpack.c.l.b16 %v7405
        %v7773 = vunpack.c.h.b16 %v7405
        %v7774 = vunpack.c.l.b16 %v7406
        %v7775 = vunpack.c.h.b16 %v7406
        %v7776 = vunpack.c.l.b16 %v7407
        %v7777 = vunpack.c.h.b16 %v7407
        %v7778 = vunpack.c.l.b16 %v7408
        %v7779 = vunpack.c.h.b16 %v7408
        %v7780 = vunpack.c.l.b16 %v7409
        %v7781 = vunpack.c.h.b16 %v7409
        %v7782 = vunpack.c.l.b16 %v7410
        %v7783 = vunpack.c.h.b16 %v7410
        %v7784 = vunpack.c.l.b16 %v7411
        %v7785 = vunpack.c.h.b16 %v7411
        %v7786 = vunpack.c.l.b16 %v7412
        %v7787 = vunpack.c.h.b16 %v7412
        %v7788 = vunpack.c.l.b16 %v7413
        %v7789 = vunpack.c.h.b16 %v7413
        %v7790 = vunpack.c.l.b16 %v7414
        %v7791 = vunpack.c.h.b16 %v7414
        %v7792 = vunpack.c.l.b16 %v7415
        %v7793 = vunpack.c.h.b16 %v7415
        %v7794 = vunpack.c.l.b16 %v7416
        %v7795 = vunpack.c.h.b16 %v7416
        %v7796 = vunpack.c.l.b16 %v7417
        %v7797 = vunpack.c.h.b16 %v7417
        %v7798 = vunpack.c.l.b16 %v7418
        %v7799 = vunpack.c.h.b16 %v7418
        %v7800 = vunpack.c.l.b16 %v7419
        %v7801 = vunpack.c.h.b16 %v7419
        %v7802 = vunpack.c.l.b16 %v7420
        %v7803 = vunpack.c.h.b16 %v7420
        %v7804 = vunpack.c.l.b16 %v7421
        %v7805 = vunpack.c.h.b16 %v7421
        %v7806 = vunpack.c.l.b16 %v7422
        %v7807 = vunpack.c.h.b16 %v7422
        %v7808 = vunpack.c.l.b16 %v7423
        %v7809 = vunpack.c.h.b16 %v7423
        %v7810 = vunpack.c.l.b16 %v7424
        %v7811 = vunpack.c.h.b16 %v7424
        %v7812 = vunpack.c.l.b16 %v7425
        %v7813 = vunpack.c.h.b16 %v7425
        %v7814 = vunpack.c.l.b16 %v7426
        %v7815 = vunpack.c.h.b16 %v7426
        %v7816 = vunpack.c.l.b16 %v7427
        %v7817 = vunpack.c.h.b16 %v7427
        %v7818 = vunpack.c.l.b16 %v7428
        %v7819 = vunpack.c.h.b16 %v7428
        %v7820 = vunpack.c.l.b16 %v7429
        %v7821 = vunpack.c.h.b16 %v7429
        %v7822 = vunpack.c.l.b16 %v7430
        %v7823 = vunpack.c.h.b16 %v7430
        %v7824 = vunpack.c.l.b16 %v7431
        %v7825 = vunpack.c.h.b16 %v7431
        %v7826 = vunpack.c.l.b16 %v7432
        %v7827 = vunpack.c.h.b16 %v7432
        %v7828 = vpack.c.b16 %v7576, %v7572
        %v7829 = vpack.c.b16 %v7577, %v7573
        %v7830 = vpack.c.b16 %v7578, %v7574
        %v7831 = vpack.c.b16 %v7579, %v7575
        %v7832 = vpack.c.b16 %v7584, %v7580
        %v7833 = vpack.c.b16 %v7585, %v7581
        %v7834 = vpack.c.b16 %v7586, %v7582
        %v7835 = vpack.c.b16 %v7587, %v7583
        %v7836 = vpack.c.b16 %v7592, %v7588
        %v7837 = vpack.c.b16 %v7593, %v7589
        %v7838 = vpack.c.b16 %v7594, %v7590
        %v7839 = vpack.c.b16 %v7595, %v7591
        %v7840 = vpack.c.b16 %v7600, %v7596
        %v7841 = vpack.c.b16 %v7601, %v7597
        %v7842 = vpack.c.b16 %v7602, %v7598
        %v7843 = vpack.c.b16 %v7603, %v7599
        %v7844 = vpack.c.b16 %v7608, %v7604
        %v7845 = vpack.c.b16 %v7609, %v7605
        %v7846 = vpack.c.b16 %v7610, %v7606
        %v7847 = vpack.c.b16 %v7611, %v7607
        %v7848 = vpack.c.b16 %v7616, %v7612
        %v7849 = vpack.c.b16 %v7617, %v7613
        %v7850 = vpack.c.b16 %v7618, %v7614
        %v7851 = vpack.c.b16 %v7619, %v7615
        %v7852 = vpack.c.b16 %v7624, %v7620
        %v7853 = vpack.c.b16 %v7625, %v7621
        %v7854 = vpack.c.b16 %v7626, %v7622
        %v7855 = vpack.c.b16 %v7627, %v7623
        %v7856 = vpack.c.b16 %v7632, %v7628
        %v7857 = vpack.c.b16 %v7633, %v7629
        %v7858 = vpack.c.b16 %v7634, %v7630
        %v7859 = vpack.c.b16 %v7635, %v7631
        %v7860 = vpack.c.b16 %v7640, %v7636
        %v7861 = vpack.c.b16 %v7641, %v7637
        %v7862 = vpack.c.b16 %v7642, %v7638
        %v7863 = vpack.c.b16 %v7643, %v7639
        %v7864 = vpack.c.b16 %v7648, %v7644
        %v7865 = vpack.c.b16 %v7649, %v7645
        %v7866 = vpack.c.b16 %v7650, %v7646
        %v7867 = vpack.c.b16 %v7651, %v7647
        %v7868 = vpack.c.b16 %v7656, %v7652
        %v7869 = vpack.c.b16 %v7657, %v7653
        %v7870 = vpack.c.b16 %v7658, %v7654
        %v7871 = vpack.c.b16 %v7659, %v7655
        %v7872 = vpack.c.b16 %v7664, %v7660
        %v7873 = vpack.c.b16 %v7665, %v7661
        %v7874 = vpack.c.b16 %v7666, %v7662
        %v7875 = vpack.c.b16 %v7667, %v7663
        %v7876 = vpack.c.b16 %v7672, %v7668
        %v7877 = vpack.c.b16 %v7673, %v7669
        %v7878 = vpack.c.b16 %v7674, %v7670
        %v7879 = vpack.c.b16 %v7675, %v7671
        %v7880 = vpack.c.b16 %v7680, %v7676
        %v7881 = vpack.c.b16 %v7681, %v7677
        %v7882 = vpack.c.b16 %v7682, %v7678
        %v7883 = vpack.c.b16 %v7683, %v7679
        %v7884 = vpack.c.b16 %v7688, %v7684
        %v7885 = vpack.c.b16 %v7689, %v7685
        %v7886 = vpack.c.b16 %v7690, %v7686
        %v7887 = vpack.c.b16 %v7691, %v7687
        %v7888 = vpack.c.b16 %v7696, %v7692
        %v7889 = vpack.c.b16 %v7697, %v7693
        %v7890 = vpack.c.b16 %v7698, %v7694
        %v7891 = vpack.c.b16 %v7699, %v7695
        %v7892 = vpack.c.b16 %v7704, %v7700
        %v7893 = vpack.c.b16 %v7705, %v7701
        %v7894 = vpack.c.b16 %v7706, %v7702
        %v7895 = vpack.c.b16 %v7707, %v7703
        %v7896 = vpack.c.b16 %v7712, %v7708
        %v7897 = vpack.c.b16 %v7713, %v7709
        %v7898 = vpack.c.b16 %v7714, %v7710
        %v7899 = vpack.c.b16 %v7715, %v7711
        %v7900 = vpack.c.b16 %v7720, %v7716
        %v7901 = vpack.c.b16 %v7721, %v7717
        %v7902 = vpack.c.b16 %v7722, %v7718
        %v7903 = vpack.c.b16 %v7723, %v7719
        %v7904 = vpack.c.b16 %v7728, %v7724
        %v7905 = vpack.c.b16 %v7729, %v7725
        %v7906 = vpack.c.b16 %v7730, %v7726
        %v7907 = vpack.c.b16 %v7731, %v7727
        %v7908 = vpack.c.b16 %v7736, %v7732
        %v7909 = vpack.c.b16 %v7737, %v7733
        %v7910 = vpack.c.b16 %v7738, %v7734
        %v7911 = vpack.c.b16 %v7739, %v7735
        %v7912 = vpack.c.b16 %v7744, %v7740
        %v7913 = vpack.c.b16 %v7745, %v7741
        %v7914 = vpack.c.b16 %v7746, %v7742
        %v7915 = vpack.c.b16 %v7747, %v7743
        %v7916 = vpack.c.b16 %v7752, %v7748
        %v7917 = vpack.c.b16 %v7753, %v7749
        %v7918 = vpack.c.b16 %v7754, %v7750
        %v7919 = vpack.c.b16 %v7755, %v7751
        %v7920 = vpack.c.b16 %v7760, %v7756
        %v7921 = vpack.c.b16 %v7761, %v7757
        %v7922 = vpack.c.b16 %v7762, %v7758
        %v7923 = vpack.c.b16 %v7763, %v7759
        %v7924 = vpack.c.b16 %v7768, %v7764
        %v7925 = vpack.c.b16 %v7769, %v7765
        %v7926 = vpack.c.b16 %v7770, %v7766
        %v7927 = vpack.c.b16 %v7771, %v7767
        %v7928 = vpack.c.b16 %v7776, %v7772
        %v7929 = vpack.c.b16 %v7777, %v7773
        %v7930 = vpack.c.b16 %v7778, %v7774
        %v7931 = vpack.c.b16 %v7779, %v7775
        %v7932 = vpack.c.b16 %v7784, %v7780
        %v7933 = vpack.c.b16 %v7785, %v7781
        %v7934 = vpack.c.b16 %v7786, %v7782
        %v7935 = vpack.c.b16 %v7787, %v7783
        %v7936 = vpack.c.b16 %v7792, %v7788
        %v7937 = vpack.c.b16 %v7793, %v7789
        %v7938 = vpack.c.b16 %v7794, %v7790
        %v7939 = vpack.c.b16 %v7795, %v7791
        %v7940 = vpack.c.b16 %v7800, %v7796
        %v7941 = vpack.c.b16 %v7801, %v7797
        %v7942 = vpack.c.b16 %v7802, %v7798
        %v7943 = vpack.c.b16 %v7803, %v7799
        %v7944 = vpack.c.b16 %v7808, %v7804
        %v7945 = vpack.c.b16 %v7809, %v7805
        %v7946 = vpack.c.b16 %v7810, %v7806
        %v7947 = vpack.c.b16 %v7811, %v7807
        %v7948 = vpack.c.b16 %v7816, %v7812
        %v7949 = vpack.c.b16 %v7817, %v7813
        %v7950 = vpack.c.b16 %v7818, %v7814
        %v7951 = vpack.c.b16 %v7819, %v7815
        %v7952 = vpack.c.b16 %v7824, %v7820
        %v7953 = vpack.c.b16 %v7825, %v7821
        %v7954 = vpack.c.b16 %v7826, %v7822
        %v7955 = vpack.c.b16 %v7827, %v7823
        %8084 = vmatpush.bf16.msra.mxu0 %v7856
        %8085 = vmatpush.bf16.msra.mxu0 %v7852
        %8086 = vmatpush.bf16.msra.mxu0 %v7848
        %8087 = vmatpush.bf16.msra.mxu0 %v7844
        %8088 = vmatpush.bf16.msra.mxu0 %v7840
        %8089 = vmatpush.bf16.msra.mxu0 %v7836
        %8090 = vmatpush.bf16.msra.mxu0 %v7832
        %8091 = vmatpush.bf16.msra.mxu0 %v7828
        %8092 = vmatmul.bf16.gmra.mxu0 %v7300
        %v8093 = vpop.f32.mrf.mxu0
        %v8094 = vadd.f32 %v7436, %v8093
        %v8095 = vpop.f32.mrf.mxu0
        %v8096 = vadd.f32 %v7436, %v8095
        %8097 = vdwg.mxu0
        %8098 = vmatpush.bf16.msra.mxu0 %v7888
        %8099 = vmatpush.bf16.msra.mxu0 %v7884
        %8100 = vmatpush.bf16.msra.mxu0 %v7880
        %8101 = vmatpush.bf16.msra.mxu0 %v7876
        %8102 = vmatpush.bf16.msra.mxu0 %v7872
        %8103 = vmatpush.bf16.msra.mxu0 %v7868
        %8104 = vmatpush.bf16.msra.mxu0 %v7864
        %8105 = vmatpush.bf16.msra.mxu0 %v7860
        %8106 = vmatmul.bf16.gmra.mxu0 %v7301
        %v8107 = vpop.f32.mrf.mxu0
        %v8108 = vadd.f32 %v8094, %v8107
        %v8109 = vpop.f32.mrf.mxu0
        %v8110 = vadd.f32 %v8096, %v8109
        %8111 = vdwg.mxu0
        %8112 = vmatpush.bf16.msra.mxu0 %v7920
        %8113 = vmatpush.bf16.msra.mxu0 %v7916
        %8114 = vmatpush.bf16.msra.mxu0 %v7912
        %8115 = vmatpush.bf16.msra.mxu0 %v7908
        %8116 = vmatpush.bf16.msra.mxu0 %v7904
        %8117 = vmatpush.bf16.msra.mxu0 %v7900
        %8118 = vmatpush.bf16.msra.mxu0 %v7896
        %8119 = vmatpush.bf16.msra.mxu0 %v7892
        %8120 = vmatmul.bf16.gmra.mxu0 %v7302
        %v8121 = vpop.f32.mrf.mxu0
        %v8122 = vadd.f32 %v8108, %v8121
        %v8123 = vpop.f32.mrf.mxu0
        %v8124 = vadd.f32 %v8110, %v8123
        %8125 = vdwg.mxu0
        %8126 = vmatpush.bf16.msra.mxu0 %v7952
        %8127 = vmatpush.bf16.msra.mxu0 %v7948
        %8128 = vmatpush.bf16.msra.mxu0 %v7944
        %8129 = vmatpush.bf16.msra.mxu0 %v7940
        %8130 = vmatpush.bf16.msra.mxu0 %v7936
        %8131 = vmatpush.bf16.msra.mxu0 %v7932
        %8132 = vmatpush.bf16.msra.mxu0 %v7928
        %8133 = vmatpush.bf16.msra.mxu0 %v7924
        %8134 = vmatmul.bf16.gmra.mxu0 %v7303
        %v8135 = vpop.f32.mrf.mxu0
        %v8136 = vadd.f32 %v8122, %v8135
        %v8137 = vpop.f32.mrf.mxu0
        %v8138 = vadd.f32 %v8124, %v8137
        %8139 = vdwg.mxu0
        %8140 = vmatpush.bf16.msra.mxu0 %v7857
        %8141 = vmatpush.bf16.msra.mxu0 %v7853
        %8142 = vmatpush.bf16.msra.mxu0 %v7849
        %8143 = vmatpush.bf16.msra.mxu0 %v7845
        %8144 = vmatpush.bf16.msra.mxu0 %v7841
        %8145 = vmatpush.bf16.msra.mxu0 %v7837
        %8146 = vmatpush.bf16.msra.mxu0 %v7833
        %8147 = vmatpush.bf16.msra.mxu0 %v7829
        %8148 = vmatmul.bf16.gmra.mxu0 %v7300
        %v8149 = vpop.f32.mrf.mxu0
        %v8150 = vadd.f32 %v7437, %v8149
        %v8151 = vpop.f32.mrf.mxu0
        %v8152 = vadd.f32 %v7437, %v8151
        %8153 = vdwg.mxu0
        %8154 = vmatpush.bf16.msra.mxu0 %v7889
        %8155 = vmatpush.bf16.msra.mxu0 %v7885
        %8156 = vmatpush.bf16.msra.mxu0 %v7881
        %8157 = vmatpush.bf16.msra.mxu0 %v7877
        %8158 = vmatpush.bf16.msra.mxu0 %v7873
        %8159 = vmatpush.bf16.msra.mxu0 %v7869
        %8160 = vmatpush.bf16.msra.mxu0 %v7865
        %8161 = vmatpush.bf16.msra.mxu0 %v7861
        %8162 = vmatmul.bf16.gmra.mxu0 %v7301
        %v8163 = vpop.f32.mrf.mxu0
        %v8164 = vadd.f32 %v8150, %v8163
        %v8165 = vpop.f32.mrf.mxu0
        %v8166 = vadd.f32 %v8152, %v8165
        %8167 = vdwg.mxu0
        %8168 = vmatpush.bf16.msra.mxu0 %v7921
        %8169 = vmatpush.bf16.msra.mxu0 %v7917
        %8170 = vmatpush.bf16.msra.mxu0 %v7913
        %8171 = vmatpush.bf16.msra.mxu0 %v7909
        %8172 = vmatpush.bf16.msra.mxu0 %v7905
        %8173 = vmatpush.bf16.msra.mxu0 %v7901
        %8174 = vmatpush.bf16.msra.mxu0 %v7897
        %8175 = vmatpush.bf16.msra.mxu0 %v7893
        %8176 = vmatmul.bf16.gmra.mxu0 %v7302
        %v8177 = vpop.f32.mrf.mxu0
        %v8178 = vadd.f32 %v8164, %v8177
        %v8179 = vpop.f32.mrf.mxu0
        %v8180 = vadd.f32 %v8166, %v8179
        %8181 = vdwg.mxu0
        %8182 = vmatpush.bf16.msra.mxu0 %v7953
        %8183 = vmatpush.bf16.msra.mxu0 %v7949
        %8184 = vmatpush.bf16.msra.mxu0 %v7945
        %8185 = vmatpush.bf16.msra.mxu0 %v7941
        %8186 = vmatpush.bf16.msra.mxu0 %v7937
        %8187 = vmatpush.bf16.msra.mxu0 %v7933
        %8188 = vmatpush.bf16.msra.mxu0 %v7929
        %8189 = vmatpush.bf16.msra.mxu0 %v7925
        %8190 = vmatmul.bf16.gmra.mxu0 %v7303
        %v8191 = vpop.f32.mrf.mxu0
        %v8192 = vadd.f32 %v8178, %v8191
        %v8193 = vpop.f32.mrf.mxu0
        %v8194 = vadd.f32 %v8180, %v8193
        %8195 = vdwg.mxu0
        %8196 = vmatpush.bf16.msra.mxu0 %v7858
        %8197 = vmatpush.bf16.msra.mxu0 %v7854
        %8198 = vmatpush.bf16.msra.mxu0 %v7850
        %8199 = vmatpush.bf16.msra.mxu0 %v7846
        %8200 = vmatpush.bf16.msra.mxu0 %v7842
        %8201 = vmatpush.bf16.msra.mxu0 %v7838
        %8202 = vmatpush.bf16.msra.mxu0 %v7834
        %8203 = vmatpush.bf16.msra.mxu0 %v7830
        %8204 = vmatmul.bf16.gmra.mxu0 %v7300
        %v8205 = vpop.f32.mrf.mxu0
        %v8206 = vadd.f32 %v7438, %v8205
        %v8207 = vpop.f32.mrf.mxu0
        %v8208 = vadd.f32 %v7438, %v8207
        %8209 = vdwg.mxu0
        %8210 = vmatpush.bf16.msra.mxu0 %v7890
        %8211 = vmatpush.bf16.msra.mxu0 %v7886
        %8212 = vmatpush.bf16.msra.mxu0 %v7882
        %8213 = vmatpush.bf16.msra.mxu0 %v7878
        %8214 = vmatpush.bf16.msra.mxu0 %v7874
        %8215 = vmatpush.bf16.msra.mxu0 %v7870
        %8216 = vmatpush.bf16.msra.mxu0 %v7866
        %8217 = vmatpush.bf16.msra.mxu0 %v7862
        %8218 = vmatmul.bf16.gmra.mxu0 %v7301
        %v8219 = vpop.f32.mrf.mxu0
        %v8220 = vadd.f32 %v8206, %v8219
        %v8221 = vpop.f32.mrf.mxu0
        %v8222 = vadd.f32 %v8208, %v8221
        %8223 = vdwg.mxu0
        %8224 = vmatpush.bf16.msra.mxu0 %v7922
        %8225 = vmatpush.bf16.msra.mxu0 %v7918
        %8226 = vmatpush.bf16.msra.mxu0 %v7914
        %8227 = vmatpush.bf16.msra.mxu0 %v7910
        %8228 = vmatpush.bf16.msra.mxu0 %v7906
        %8229 = vmatpush.bf16.msra.mxu0 %v7902
        %8230 = vmatpush.bf16.msra.mxu0 %v7898
        %8231 = vmatpush.bf16.msra.mxu0 %v7894
        %8232 = vmatmul.bf16.gmra.mxu0 %v7302
        %v8233 = vpop.f32.mrf.mxu0
        %v8234 = vadd.f32 %v8220, %v8233
        %v8235 = vpop.f32.mrf.mxu0
        %v8236 = vadd.f32 %v8222, %v8235
        %8237 = vdwg.mxu0
        %8238 = vmatpush.bf16.msra.mxu0 %v7954
        %8239 = vmatpush.bf16.msra.mxu0 %v7950
        %8240 = vmatpush.bf16.msra.mxu0 %v7946
        %8241 = vmatpush.bf16.msra.mxu0 %v7942
        %8242 = vmatpush.bf16.msra.mxu0 %v7938
        %8243 = vmatpush.bf16.msra.mxu0 %v7934
        %8244 = vmatpush.bf16.msra.mxu0 %v7930
        %8245 = vmatpush.bf16.msra.mxu0 %v7926
        %8246 = vmatmul.bf16.gmra.mxu0 %v7303
        %v8247 = vpop.f32.mrf.mxu0
        %v8248 = vadd.f32 %v8234, %v8247
        %v8249 = vpop.f32.mrf.mxu0
        %v8250 = vadd.f32 %v8236, %v8249
        %8251 = vdwg.mxu0
        %8252 = vmatpush.bf16.msra.mxu0 %v7859
        %8253 = vmatpush.bf16.msra.mxu0 %v7855
        %8254 = vmatpush.bf16.msra.mxu0 %v7851
        %8255 = vmatpush.bf16.msra.mxu0 %v7847
        %8256 = vmatpush.bf16.msra.mxu0 %v7843
        %8257 = vmatpush.bf16.msra.mxu0 %v7839
        %8258 = vmatpush.bf16.msra.mxu0 %v7835
        %8259 = vmatpush.bf16.msra.mxu0 %v7831
        %8260 = vmatmul.bf16.gmra.mxu0 %v7300
        %v8261 = vpop.f32.mrf.mxu0
        %v8262 = vadd.f32 %v7439, %v8261
        %v8263 = vpop.f32.mrf.mxu0
        %v8264 = vadd.f32 %v7439, %v8263
        %8265 = vdwg.mxu0
        %8266 = vmatpush.bf16.msra.mxu0 %v7891
        %8267 = vmatpush.bf16.msra.mxu0 %v7887
        %8268 = vmatpush.bf16.msra.mxu0 %v7883
        %8269 = vmatpush.bf16.msra.mxu0 %v7879
        %8270 = vmatpush.bf16.msra.mxu0 %v7875
        %8271 = vmatpush.bf16.msra.mxu0 %v7871
        %8272 = vmatpush.bf16.msra.mxu0 %v7867
        %8273 = vmatpush.bf16.msra.mxu0 %v7863
        %8274 = vmatmul.bf16.gmra.mxu0 %v7301
        %v8275 = vpop.f32.mrf.mxu0
        %v8276 = vadd.f32 %v8262, %v8275
        %v8277 = vpop.f32.mrf.mxu0
        %v8278 = vadd.f32 %v8264, %v8277
        %8279 = vdwg.mxu0
        %8280 = vmatpush.bf16.msra.mxu0 %v7923
        %8281 = vmatpush.bf16.msra.mxu0 %v7919
        %8282 = vmatpush.bf16.msra.mxu0 %v7915
        %8283 = vmatpush.bf16.msra.mxu0 %v7911
        %8284 = vmatpush.bf16.msra.mxu0 %v7907
        %8285 = vmatpush.bf16.msra.mxu0 %v7903
        %8286 = vmatpush.bf16.msra.mxu0 %v7899
        %8287 = vmatpush.bf16.msra.mxu0 %v7895
        %8288 = vmatmul.bf16.gmra.mxu0 %v7302
        %v8289 = vpop.f32.mrf.mxu0
        %v8290 = vadd.f32 %v8276, %v8289
        %v8291 = vpop.f32.mrf.mxu0
        %v8292 = vadd.f32 %v8278, %v8291
        %8293 = vdwg.mxu0
        %8294 = vmatpush.bf16.msra.mxu0 %v7955
        %8295 = vmatpush.bf16.msra.mxu0 %v7951
        %8296 = vmatpush.bf16.msra.mxu0 %v7947
        %8297 = vmatpush.bf16.msra.mxu0 %v7943
        %8298 = vmatpush.bf16.msra.mxu0 %v7939
        %8299 = vmatpush.bf16.msra.mxu0 %v7935
        %8300 = vmatpush.bf16.msra.mxu0 %v7931
        %8301 = vmatpush.bf16.msra.mxu0 %v7927
        %8302 = vmatmul.bf16.gmra.mxu0 %v7303
        %v8303 = vpop.f32.mrf.mxu0
        %v8304 = vadd.f32 %v8290, %v8303
        %v8305 = vpop.f32.mrf.mxu0
        %v8306 = vadd.f32 %v8292, %v8305
        %8307 = vdwg.mxu0
        %v8308 = vmax.f32 %v8136, 0.0
        %v8309 = vmax.f32 %v8192, 0.0
        %v8310 = vmax.f32 %v8248, 0.0
        %v8311 = vmax.f32 %v8304, 0.0
        %v8312 = vmax.f32 %v8138, 0.0
        %v8313 = vmax.f32 %v8194, 0.0
        %v8314 = vmax.f32 %v8250, 0.0
        %v8315 = vmax.f32 %v8306, 0.0
        %v8316 = vpack.c.bf16 %v8312, %v8308
        %v8317 = vpack.c.bf16 %v8313, %v8309
        %v8318 = vpack.c.bf16 %v8314, %v8310
        %v8319 = vpack.c.bf16 %v8315, %v8311
        %s8320 = scalar_lea.vmem [#allocation9], 7168
        %v8321 = vld [vmem:[%s8320] sm:$0xff]
        %v8322 = vld [vmem:[%s8320 + $0x8] sm:$0xff]
        %v8323 = vld [vmem:[%s8320 + $0x10] sm:$0xff]
        %v8324 = vld [vmem:[%s8320 + $0x18] sm:$0xff]
        %v8325 = vld [vmem:[%s8320 + $0x20] sm:$0xff]
        %v8326 = vld [vmem:[%s8320 + $0x28] sm:$0xff]
        %v8327 = vld [vmem:[%s8320 + $0x30] sm:$0xff]
        %v8328 = vld [vmem:[%s8320 + $0x38] sm:$0xff]
        %v8329 = vld [vmem:[%s8320 + $0x40] sm:$0xff]
        %v8330 = vld [vmem:[%s8320 + $0x48] sm:$0xff]
        %v8331 = vld [vmem:[%s8320 + $0x50] sm:$0xff]
        %v8332 = vld [vmem:[%s8320 + $0x58] sm:$0xff]
        %v8333 = vld [vmem:[%s8320 + $0x60] sm:$0xff]
        %v8334 = vld [vmem:[%s8320 + $0x68] sm:$0xff]
        %v8335 = vld [vmem:[%s8320 + $0x70] sm:$0xff]
        %v8336 = vld [vmem:[%s8320 + $0x78] sm:$0xff]
        %v8337 = vld [vmem:[%s8320 + $0x80] sm:$0xff]
        %v8338 = vld [vmem:[%s8320 + $0x88] sm:$0xff]
        %v8339 = vld [vmem:[%s8320 + $0x90] sm:$0xff]
        %v8340 = vld [vmem:[%s8320 + $0x98] sm:$0xff]
        %v8341 = vld [vmem:[%s8320 + $0xa0] sm:$0xff]
        %v8342 = vld [vmem:[%s8320 + $0xa8] sm:$0xff]
        %v8343 = vld [vmem:[%s8320 + $0xb0] sm:$0xff]
        %v8344 = vld [vmem:[%s8320 + $0xb8] sm:$0xff]
        %v8345 = vld [vmem:[%s8320 + $0xc0] sm:$0xff]
        %v8346 = vld [vmem:[%s8320 + $0xc8] sm:$0xff]
        %v8347 = vld [vmem:[%s8320 + $0xd0] sm:$0xff]
        %v8348 = vld [vmem:[%s8320 + $0xd8] sm:$0xff]
        %v8349 = vld [vmem:[%s8320 + $0xe0] sm:$0xff]
        %v8350 = vld [vmem:[%s8320 + $0xe8] sm:$0xff]
        %v8351 = vld [vmem:[%s8320 + $0xf0] sm:$0xff]
        %v8352 = vld [vmem:[%s8320 + $0xf8] sm:$0xff]
        %v8353 = vld [vmem:[%s8320 + $0x100] sm:$0xff]
        %v8354 = vld [vmem:[%s8320 + $0x108] sm:$0xff]
        %v8355 = vld [vmem:[%s8320 + $0x110] sm:$0xff]
        %v8356 = vld [vmem:[%s8320 + $0x118] sm:$0xff]
        %v8357 = vld [vmem:[%s8320 + $0x120] sm:$0xff]
        %v8358 = vld [vmem:[%s8320 + $0x128] sm:$0xff]
        %v8359 = vld [vmem:[%s8320 + $0x130] sm:$0xff]
        %v8360 = vld [vmem:[%s8320 + $0x138] sm:$0xff]
        %v8361 = vld [vmem:[%s8320 + $0x140] sm:$0xff]
        %v8362 = vld [vmem:[%s8320 + $0x148] sm:$0xff]
        %v8363 = vld [vmem:[%s8320 + $0x150] sm:$0xff]
        %v8364 = vld [vmem:[%s8320 + $0x158] sm:$0xff]
        %v8365 = vld [vmem:[%s8320 + $0x160] sm:$0xff]
        %v8366 = vld [vmem:[%s8320 + $0x168] sm:$0xff]
        %v8367 = vld [vmem:[%s8320 + $0x170] sm:$0xff]
        %v8368 = vld [vmem:[%s8320 + $0x178] sm:$0xff]
        %v8369 = vld [vmem:[%s8320 + $0x180] sm:$0xff]
        %v8370 = vld [vmem:[%s8320 + $0x188] sm:$0xff]
        %v8371 = vld [vmem:[%s8320 + $0x190] sm:$0xff]
        %v8372 = vld [vmem:[%s8320 + $0x198] sm:$0xff]
        %v8373 = vld [vmem:[%s8320 + $0x1a0] sm:$0xff]
        %v8374 = vld [vmem:[%s8320 + $0x1a8] sm:$0xff]
        %v8375 = vld [vmem:[%s8320 + $0x1b0] sm:$0xff]
        %v8376 = vld [vmem:[%s8320 + $0x1b8] sm:$0xff]
        %v8377 = vld [vmem:[%s8320 + $0x1c0] sm:$0xff]
        %v8378 = vld [vmem:[%s8320 + $0x1c8] sm:$0xff]
        %v8379 = vld [vmem:[%s8320 + $0x1d0] sm:$0xff]
        %v8380 = vld [vmem:[%s8320 + $0x1d8] sm:$0xff]
        %v8381 = vld [vmem:[%s8320 + $0x1e0] sm:$0xff]
        %v8382 = vld [vmem:[%s8320 + $0x1e8] sm:$0xff]
        %v8383 = vld [vmem:[%s8320 + $0x1f0] sm:$0xff]
        %v8384 = vld [vmem:[%s8320 + $0x1f8] sm:$0xff]
        %v8385 = vld [vmem:[%s8320 + $0x200] sm:$0xff]
        %v8386 = vld [vmem:[%s8320 + $0x208] sm:$0xff]
        %v8387 = vld [vmem:[%s8320 + $0x210] sm:$0xff]
        %v8388 = vld [vmem:[%s8320 + $0x218] sm:$0xff]
        %v8389 = vld [vmem:[%s8320 + $0x220] sm:$0xff]
        %v8390 = vld [vmem:[%s8320 + $0x228] sm:$0xff]
        %v8391 = vld [vmem:[%s8320 + $0x230] sm:$0xff]
        %v8392 = vld [vmem:[%s8320 + $0x238] sm:$0xff]
        %v8393 = vld [vmem:[%s8320 + $0x240] sm:$0xff]
        %v8394 = vld [vmem:[%s8320 + $0x248] sm:$0xff]
        %v8395 = vld [vmem:[%s8320 + $0x250] sm:$0xff]
        %v8396 = vld [vmem:[%s8320 + $0x258] sm:$0xff]
        %v8397 = vld [vmem:[%s8320 + $0x260] sm:$0xff]
        %v8398 = vld [vmem:[%s8320 + $0x268] sm:$0xff]
        %v8399 = vld [vmem:[%s8320 + $0x270] sm:$0xff]
        %v8400 = vld [vmem:[%s8320 + $0x278] sm:$0xff]
        %v8401 = vld [vmem:[%s8320 + $0x280] sm:$0xff]
        %v8402 = vld [vmem:[%s8320 + $0x288] sm:$0xff]
        %v8403 = vld [vmem:[%s8320 + $0x290] sm:$0xff]
        %v8404 = vld [vmem:[%s8320 + $0x298] sm:$0xff]
        %v8405 = vld [vmem:[%s8320 + $0x2a0] sm:$0xff]
        %v8406 = vld [vmem:[%s8320 + $0x2a8] sm:$0xff]
        %v8407 = vld [vmem:[%s8320 + $0x2b0] sm:$0xff]
        %v8408 = vld [vmem:[%s8320 + $0x2b8] sm:$0xff]
        %v8409 = vld [vmem:[%s8320 + $0x2c0] sm:$0xff]
        %v8410 = vld [vmem:[%s8320 + $0x2c8] sm:$0xff]
        %v8411 = vld [vmem:[%s8320 + $0x2d0] sm:$0xff]
        %v8412 = vld [vmem:[%s8320 + $0x2d8] sm:$0xff]
        %v8413 = vld [vmem:[%s8320 + $0x2e0] sm:$0xff]
        %v8414 = vld [vmem:[%s8320 + $0x2e8] sm:$0xff]
        %v8415 = vld [vmem:[%s8320 + $0x2f0] sm:$0xff]
        %v8416 = vld [vmem:[%s8320 + $0x2f8] sm:$0xff]
        %v8417 = vld [vmem:[%s8320 + $0x300] sm:$0xff]
        %v8418 = vld [vmem:[%s8320 + $0x308] sm:$0xff]
        %v8419 = vld [vmem:[%s8320 + $0x310] sm:$0xff]
        %v8420 = vld [vmem:[%s8320 + $0x318] sm:$0xff]
        %v8421 = vld [vmem:[%s8320 + $0x320] sm:$0xff]
        %v8422 = vld [vmem:[%s8320 + $0x328] sm:$0xff]
        %v8423 = vld [vmem:[%s8320 + $0x330] sm:$0xff]
        %v8424 = vld [vmem:[%s8320 + $0x338] sm:$0xff]
        %v8425 = vld [vmem:[%s8320 + $0x340] sm:$0xff]
        %v8426 = vld [vmem:[%s8320 + $0x348] sm:$0xff]
        %v8427 = vld [vmem:[%s8320 + $0x350] sm:$0xff]
        %v8428 = vld [vmem:[%s8320 + $0x358] sm:$0xff]
        %v8429 = vld [vmem:[%s8320 + $0x360] sm:$0xff]
        %v8430 = vld [vmem:[%s8320 + $0x368] sm:$0xff]
        %v8431 = vld [vmem:[%s8320 + $0x370] sm:$0xff]
        %v8432 = vld [vmem:[%s8320 + $0x378] sm:$0xff]
        %v8433 = vld [vmem:[%s8320 + $0x380] sm:$0xff]
        %v8434 = vld [vmem:[%s8320 + $0x388] sm:$0xff]
        %v8435 = vld [vmem:[%s8320 + $0x390] sm:$0xff]
        %v8436 = vld [vmem:[%s8320 + $0x398] sm:$0xff]
        %v8437 = vld [vmem:[%s8320 + $0x3a0] sm:$0xff]
        %v8438 = vld [vmem:[%s8320 + $0x3a8] sm:$0xff]
        %v8439 = vld [vmem:[%s8320 + $0x3b0] sm:$0xff]
        %v8440 = vld [vmem:[%s8320 + $0x3b8] sm:$0xff]
        %v8441 = vld [vmem:[%s8320 + $0x3c0] sm:$0xff]
        %v8442 = vld [vmem:[%s8320 + $0x3c8] sm:$0xff]
        %v8443 = vld [vmem:[%s8320 + $0x3d0] sm:$0xff]
        %v8444 = vld [vmem:[%s8320 + $0x3d8] sm:$0xff]
        %v8445 = vld [vmem:[%s8320 + $0x3e0] sm:$0xff]
        %v8446 = vld [vmem:[%s8320 + $0x3e8] sm:$0xff]
        %v8447 = vld [vmem:[%s8320 + $0x3f0] sm:$0xff]
        %v8448 = vld [vmem:[%s8320 + $0x3f8] sm:$0xff]
        %s8449 = scalar_lea.vmem [#allocation10], 28
        %v8450 = vld [vmem:[%s8449] sm:$0xf]
        %v8452 = vperm.slane %v8450, 0
        %v8453 = vperm.slane %v8450, 1
        %v8454 = vperm.slane %v8450, 2
        %v8455 = vperm.slane %v8450, 3
        %v8588 = vunpack.c.l.b16 %v8321
        %v8589 = vunpack.c.h.b16 %v8321
        %v8590 = vunpack.c.l.b16 %v8322
        %v8591 = vunpack.c.h.b16 %v8322
        %v8592 = vunpack.c.l.b16 %v8323
        %v8593 = vunpack.c.h.b16 %v8323
        %v8594 = vunpack.c.l.b16 %v8324
        %v8595 = vunpack.c.h.b16 %v8324
        %v8596 = vunpack.c.l.b16 %v8325
        %v8597 = vunpack.c.h.b16 %v8325
        %v8598 = vunpack.c.l.b16 %v8326
        %v8599 = vunpack.c.h.b16 %v8326
        %v8600 = vunpack.c.l.b16 %v8327
        %v8601 = vunpack.c.h.b16 %v8327
        %v8602 = vunpack.c.l.b16 %v8328
        %v8603 = vunpack.c.h.b16 %v8328
        %v8604 = vunpack.c.l.b16 %v8329
        %v8605 = vunpack.c.h.b16 %v8329
        %v8606 = vunpack.c.l.b16 %v8330
        %v8607 = vunpack.c.h.b16 %v8330
        %v8608 = vunpack.c.l.b16 %v8331
        %v8609 = vunpack.c.h.b16 %v8331
        %v8610 = vunpack.c.l.b16 %v8332
        %v8611 = vunpack.c.h.b16 %v8332
        %v8612 = vunpack.c.l.b16 %v8333
        %v8613 = vunpack.c.h.b16 %v8333
        %v8614 = vunpack.c.l.b16 %v8334
        %v8615 = vunpack.c.h.b16 %v8334
        %v8616 = vunpack.c.l.b16 %v8335
        %v8617 = vunpack.c.h.b16 %v8335
        %v8618 = vunpack.c.l.b16 %v8336
        %v8619 = vunpack.c.h.b16 %v8336
        %v8620 = vunpack.c.l.b16 %v8337
        %v8621 = vunpack.c.h.b16 %v8337
        %v8622 = vunpack.c.l.b16 %v8338
        %v8623 = vunpack.c.h.b16 %v8338
        %v8624 = vunpack.c.l.b16 %v8339
        %v8625 = vunpack.c.h.b16 %v8339
        %v8626 = vunpack.c.l.b16 %v8340
        %v8627 = vunpack.c.h.b16 %v8340
        %v8628 = vunpack.c.l.b16 %v8341
        %v8629 = vunpack.c.h.b16 %v8341
        %v8630 = vunpack.c.l.b16 %v8342
        %v8631 = vunpack.c.h.b16 %v8342
        %v8632 = vunpack.c.l.b16 %v8343
        %v8633 = vunpack.c.h.b16 %v8343
        %v8634 = vunpack.c.l.b16 %v8344
        %v8635 = vunpack.c.h.b16 %v8344
        %v8636 = vunpack.c.l.b16 %v8345
        %v8637 = vunpack.c.h.b16 %v8345
        %v8638 = vunpack.c.l.b16 %v8346
        %v8639 = vunpack.c.h.b16 %v8346
        %v8640 = vunpack.c.l.b16 %v8347
        %v8641 = vunpack.c.h.b16 %v8347
        %v8642 = vunpack.c.l.b16 %v8348
        %v8643 = vunpack.c.h.b16 %v8348
        %v8644 = vunpack.c.l.b16 %v8349
        %v8645 = vunpack.c.h.b16 %v8349
        %v8646 = vunpack.c.l.b16 %v8350
        %v8647 = vunpack.c.h.b16 %v8350
        %v8648 = vunpack.c.l.b16 %v8351
        %v8649 = vunpack.c.h.b16 %v8351
        %v8650 = vunpack.c.l.b16 %v8352
        %v8651 = vunpack.c.h.b16 %v8352
        %v8652 = vunpack.c.l.b16 %v8353
        %v8653 = vunpack.c.h.b16 %v8353
        %v8654 = vunpack.c.l.b16 %v8354
        %v8655 = vunpack.c.h.b16 %v8354
        %v8656 = vunpack.c.l.b16 %v8355
        %v8657 = vunpack.c.h.b16 %v8355
        %v8658 = vunpack.c.l.b16 %v8356
        %v8659 = vunpack.c.h.b16 %v8356
        %v8660 = vunpack.c.l.b16 %v8357
        %v8661 = vunpack.c.h.b16 %v8357
        %v8662 = vunpack.c.l.b16 %v8358
        %v8663 = vunpack.c.h.b16 %v8358
        %v8664 = vunpack.c.l.b16 %v8359
        %v8665 = vunpack.c.h.b16 %v8359
        %v8666 = vunpack.c.l.b16 %v8360
        %v8667 = vunpack.c.h.b16 %v8360
        %v8668 = vunpack.c.l.b16 %v8361
        %v8669 = vunpack.c.h.b16 %v8361
        %v8670 = vunpack.c.l.b16 %v8362
        %v8671 = vunpack.c.h.b16 %v8362
        %v8672 = vunpack.c.l.b16 %v8363
        %v8673 = vunpack.c.h.b16 %v8363
        %v8674 = vunpack.c.l.b16 %v8364
        %v8675 = vunpack.c.h.b16 %v8364
        %v8676 = vunpack.c.l.b16 %v8365
        %v8677 = vunpack.c.h.b16 %v8365
        %v8678 = vunpack.c.l.b16 %v8366
        %v8679 = vunpack.c.h.b16 %v8366
        %v8680 = vunpack.c.l.b16 %v8367
        %v8681 = vunpack.c.h.b16 %v8367
        %v8682 = vunpack.c.l.b16 %v8368
        %v8683 = vunpack.c.h.b16 %v8368
        %v8684 = vunpack.c.l.b16 %v8369
        %v8685 = vunpack.c.h.b16 %v8369
        %v8686 = vunpack.c.l.b16 %v8370
        %v8687 = vunpack.c.h.b16 %v8370
        %v8688 = vunpack.c.l.b16 %v8371
        %v8689 = vunpack.c.h.b16 %v8371
        %v8690 = vunpack.c.l.b16 %v8372
        %v8691 = vunpack.c.h.b16 %v8372
        %v8692 = vunpack.c.l.b16 %v8373
        %v8693 = vunpack.c.h.b16 %v8373
        %v8694 = vunpack.c.l.b16 %v8374
        %v8695 = vunpack.c.h.b16 %v8374
        %v8696 = vunpack.c.l.b16 %v8375
        %v8697 = vunpack.c.h.b16 %v8375
        %v8698 = vunpack.c.l.b16 %v8376
        %v8699 = vunpack.c.h.b16 %v8376
        %v8700 = vunpack.c.l.b16 %v8377
        %v8701 = vunpack.c.h.b16 %v8377
        %v8702 = vunpack.c.l.b16 %v8378
        %v8703 = vunpack.c.h.b16 %v8378
        %v8704 = vunpack.c.l.b16 %v8379
        %v8705 = vunpack.c.h.b16 %v8379
        %v8706 = vunpack.c.l.b16 %v8380
        %v8707 = vunpack.c.h.b16 %v8380
        %v8708 = vunpack.c.l.b16 %v8381
        %v8709 = vunpack.c.h.b16 %v8381
        %v8710 = vunpack.c.l.b16 %v8382
        %v8711 = vunpack.c.h.b16 %v8382
        %v8712 = vunpack.c.l.b16 %v8383
        %v8713 = vunpack.c.h.b16 %v8383
        %v8714 = vunpack.c.l.b16 %v8384
        %v8715 = vunpack.c.h.b16 %v8384
        %v8716 = vunpack.c.l.b16 %v8385
        %v8717 = vunpack.c.h.b16 %v8385
        %v8718 = vunpack.c.l.b16 %v8386
        %v8719 = vunpack.c.h.b16 %v8386
        %v8720 = vunpack.c.l.b16 %v8387
        %v8721 = vunpack.c.h.b16 %v8387
        %v8722 = vunpack.c.l.b16 %v8388
        %v8723 = vunpack.c.h.b16 %v8388
        %v8724 = vunpack.c.l.b16 %v8389
        %v8725 = vunpack.c.h.b16 %v8389
        %v8726 = vunpack.c.l.b16 %v8390
        %v8727 = vunpack.c.h.b16 %v8390
        %v8728 = vunpack.c.l.b16 %v8391
        %v8729 = vunpack.c.h.b16 %v8391
        %v8730 = vunpack.c.l.b16 %v8392
        %v8731 = vunpack.c.h.b16 %v8392
        %v8732 = vunpack.c.l.b16 %v8393
        %v8733 = vunpack.c.h.b16 %v8393
        %v8734 = vunpack.c.l.b16 %v8394
        %v8735 = vunpack.c.h.b16 %v8394
        %v8736 = vunpack.c.l.b16 %v8395
        %v8737 = vunpack.c.h.b16 %v8395
        %v8738 = vunpack.c.l.b16 %v8396
        %v8739 = vunpack.c.h.b16 %v8396
        %v8740 = vunpack.c.l.b16 %v8397
        %v8741 = vunpack.c.h.b16 %v8397
        %v8742 = vunpack.c.l.b16 %v8398
        %v8743 = vunpack.c.h.b16 %v8398
        %v8744 = vunpack.c.l.b16 %v8399
        %v8745 = vunpack.c.h.b16 %v8399
        %v8746 = vunpack.c.l.b16 %v8400
        %v8747 = vunpack.c.h.b16 %v8400
        %v8748 = vunpack.c.l.b16 %v8401
        %v8749 = vunpack.c.h.b16 %v8401
        %v8750 = vunpack.c.l.b16 %v8402
        %v8751 = vunpack.c.h.b16 %v8402
        %v8752 = vunpack.c.l.b16 %v8403
        %v8753 = vunpack.c.h.b16 %v8403
        %v8754 = vunpack.c.l.b16 %v8404
        %v8755 = vunpack.c.h.b16 %v8404
        %v8756 = vunpack.c.l.b16 %v8405
        %v8757 = vunpack.c.h.b16 %v8405
        %v8758 = vunpack.c.l.b16 %v8406
        %v8759 = vunpack.c.h.b16 %v8406
        %v8760 = vunpack.c.l.b16 %v8407
        %v8761 = vunpack.c.h.b16 %v8407
        %v8762 = vunpack.c.l.b16 %v8408
        %v8763 = vunpack.c.h.b16 %v8408
        %v8764 = vunpack.c.l.b16 %v8409
        %v8765 = vunpack.c.h.b16 %v8409
        %v8766 = vunpack.c.l.b16 %v8410
        %v8767 = vunpack.c.h.b16 %v8410
        %v8768 = vunpack.c.l.b16 %v8411
        %v8769 = vunpack.c.h.b16 %v8411
        %v8770 = vunpack.c.l.b16 %v8412
        %v8771 = vunpack.c.h.b16 %v8412
        %v8772 = vunpack.c.l.b16 %v8413
        %v8773 = vunpack.c.h.b16 %v8413
        %v8774 = vunpack.c.l.b16 %v8414
        %v8775 = vunpack.c.h.b16 %v8414
        %v8776 = vunpack.c.l.b16 %v8415
        %v8777 = vunpack.c.h.b16 %v8415
        %v8778 = vunpack.c.l.b16 %v8416
        %v8779 = vunpack.c.h.b16 %v8416
        %v8780 = vunpack.c.l.b16 %v8417
        %v8781 = vunpack.c.h.b16 %v8417
        %v8782 = vunpack.c.l.b16 %v8418
        %v8783 = vunpack.c.h.b16 %v8418
        %v8784 = vunpack.c.l.b16 %v8419
        %v8785 = vunpack.c.h.b16 %v8419
        %v8786 = vunpack.c.l.b16 %v8420
        %v8787 = vunpack.c.h.b16 %v8420
        %v8788 = vunpack.c.l.b16 %v8421
        %v8789 = vunpack.c.h.b16 %v8421
        %v8790 = vunpack.c.l.b16 %v8422
        %v8791 = vunpack.c.h.b16 %v8422
        %v8792 = vunpack.c.l.b16 %v8423
        %v8793 = vunpack.c.h.b16 %v8423
        %v8794 = vunpack.c.l.b16 %v8424
        %v8795 = vunpack.c.h.b16 %v8424
        %v8796 = vunpack.c.l.b16 %v8425
        %v8797 = vunpack.c.h.b16 %v8425
        %v8798 = vunpack.c.l.b16 %v8426
        %v8799 = vunpack.c.h.b16 %v8426
        %v8800 = vunpack.c.l.b16 %v8427
        %v8801 = vunpack.c.h.b16 %v8427
        %v8802 = vunpack.c.l.b16 %v8428
        %v8803 = vunpack.c.h.b16 %v8428
        %v8804 = vunpack.c.l.b16 %v8429
        %v8805 = vunpack.c.h.b16 %v8429
        %v8806 = vunpack.c.l.b16 %v8430
        %v8807 = vunpack.c.h.b16 %v8430
        %v8808 = vunpack.c.l.b16 %v8431
        %v8809 = vunpack.c.h.b16 %v8431
        %v8810 = vunpack.c.l.b16 %v8432
        %v8811 = vunpack.c.h.b16 %v8432
        %v8812 = vunpack.c.l.b16 %v8433
        %v8813 = vunpack.c.h.b16 %v8433
        %v8814 = vunpack.c.l.b16 %v8434
        %v8815 = vunpack.c.h.b16 %v8434
        %v8816 = vunpack.c.l.b16 %v8435
        %v8817 = vunpack.c.h.b16 %v8435
        %v8818 = vunpack.c.l.b16 %v8436
        %v8819 = vunpack.c.h.b16 %v8436
        %v8820 = vunpack.c.l.b16 %v8437
        %v8821 = vunpack.c.h.b16 %v8437
        %v8822 = vunpack.c.l.b16 %v8438
        %v8823 = vunpack.c.h.b16 %v8438
        %v8824 = vunpack.c.l.b16 %v8439
        %v8825 = vunpack.c.h.b16 %v8439
        %v8826 = vunpack.c.l.b16 %v8440
        %v8827 = vunpack.c.h.b16 %v8440
        %v8828 = vunpack.c.l.b16 %v8441
        %v8829 = vunpack.c.h.b16 %v8441
        %v8830 = vunpack.c.l.b16 %v8442
        %v8831 = vunpack.c.h.b16 %v8442
        %v8832 = vunpack.c.l.b16 %v8443
        %v8833 = vunpack.c.h.b16 %v8443
        %v8834 = vunpack.c.l.b16 %v8444
        %v8835 = vunpack.c.h.b16 %v8444
        %v8836 = vunpack.c.l.b16 %v8445
        %v8837 = vunpack.c.h.b16 %v8445
        %v8838 = vunpack.c.l.b16 %v8446
        %v8839 = vunpack.c.h.b16 %v8446
        %v8840 = vunpack.c.l.b16 %v8447
        %v8841 = vunpack.c.h.b16 %v8447
        %v8842 = vunpack.c.l.b16 %v8448
        %v8843 = vunpack.c.h.b16 %v8448
        %v8844 = vpack.c.b16 %v8592, %v8588
        %v8845 = vpack.c.b16 %v8593, %v8589
        %v8846 = vpack.c.b16 %v8594, %v8590
        %v8847 = vpack.c.b16 %v8595, %v8591
        %v8848 = vpack.c.b16 %v8600, %v8596
        %v8849 = vpack.c.b16 %v8601, %v8597
        %v8850 = vpack.c.b16 %v8602, %v8598
        %v8851 = vpack.c.b16 %v8603, %v8599
        %v8852 = vpack.c.b16 %v8608, %v8604
        %v8853 = vpack.c.b16 %v8609, %v8605
        %v8854 = vpack.c.b16 %v8610, %v8606
        %v8855 = vpack.c.b16 %v8611, %v8607
        %v8856 = vpack.c.b16 %v8616, %v8612
        %v8857 = vpack.c.b16 %v8617, %v8613
        %v8858 = vpack.c.b16 %v8618, %v8614
        %v8859 = vpack.c.b16 %v8619, %v8615
        %v8860 = vpack.c.b16 %v8624, %v8620
        %v8861 = vpack.c.b16 %v8625, %v8621
        %v8862 = vpack.c.b16 %v8626, %v8622
        %v8863 = vpack.c.b16 %v8627, %v8623
        %v8864 = vpack.c.b16 %v8632, %v8628
        %v8865 = vpack.c.b16 %v8633, %v8629
        %v8866 = vpack.c.b16 %v8634, %v8630
        %v8867 = vpack.c.b16 %v8635, %v8631
        %v8868 = vpack.c.b16 %v8640, %v8636
        %v8869 = vpack.c.b16 %v8641, %v8637
        %v8870 = vpack.c.b16 %v8642, %v8638
        %v8871 = vpack.c.b16 %v8643, %v8639
        %v8872 = vpack.c.b16 %v8648, %v8644
        %v8873 = vpack.c.b16 %v8649, %v8645
        %v8874 = vpack.c.b16 %v8650, %v8646
        %v8875 = vpack.c.b16 %v8651, %v8647
        %v8876 = vpack.c.b16 %v8656, %v8652
        %v8877 = vpack.c.b16 %v8657, %v8653
        %v8878 = vpack.c.b16 %v8658, %v8654
        %v8879 = vpack.c.b16 %v8659, %v8655
        %v8880 = vpack.c.b16 %v8664, %v8660
        %v8881 = vpack.c.b16 %v8665, %v8661
        %v8882 = vpack.c.b16 %v8666, %v8662
        %v8883 = vpack.c.b16 %v8667, %v8663
        %v8884 = vpack.c.b16 %v8672, %v8668
        %v8885 = vpack.c.b16 %v8673, %v8669
        %v8886 = vpack.c.b16 %v8674, %v8670
        %v8887 = vpack.c.b16 %v8675, %v8671
        %v8888 = vpack.c.b16 %v8680, %v8676
        %v8889 = vpack.c.b16 %v8681, %v8677
        %v8890 = vpack.c.b16 %v8682, %v8678
        %v8891 = vpack.c.b16 %v8683, %v8679
        %v8892 = vpack.c.b16 %v8688, %v8684
        %v8893 = vpack.c.b16 %v8689, %v8685
        %v8894 = vpack.c.b16 %v8690, %v8686
        %v8895 = vpack.c.b16 %v8691, %v8687
        %v8896 = vpack.c.b16 %v8696, %v8692
        %v8897 = vpack.c.b16 %v8697, %v8693
        %v8898 = vpack.c.b16 %v8698, %v8694
        %v8899 = vpack.c.b16 %v8699, %v8695
        %v8900 = vpack.c.b16 %v8704, %v8700
        %v8901 = vpack.c.b16 %v8705, %v8701
        %v8902 = vpack.c.b16 %v8706, %v8702
        %v8903 = vpack.c.b16 %v8707, %v8703
        %v8904 = vpack.c.b16 %v8712, %v8708
        %v8905 = vpack.c.b16 %v8713, %v8709
        %v8906 = vpack.c.b16 %v8714, %v8710
        %v8907 = vpack.c.b16 %v8715, %v8711
        %v8908 = vpack.c.b16 %v8720, %v8716
        %v8909 = vpack.c.b16 %v8721, %v8717
        %v8910 = vpack.c.b16 %v8722, %v8718
        %v8911 = vpack.c.b16 %v8723, %v8719
        %v8912 = vpack.c.b16 %v8728, %v8724
        %v8913 = vpack.c.b16 %v8729, %v8725
        %v8914 = vpack.c.b16 %v8730, %v8726
        %v8915 = vpack.c.b16 %v8731, %v8727
        %v8916 = vpack.c.b16 %v8736, %v8732
        %v8917 = vpack.c.b16 %v8737, %v8733
        %v8918 = vpack.c.b16 %v8738, %v8734
        %v8919 = vpack.c.b16 %v8739, %v8735
        %v8920 = vpack.c.b16 %v8744, %v8740
        %v8921 = vpack.c.b16 %v8745, %v8741
        %v8922 = vpack.c.b16 %v8746, %v8742
        %v8923 = vpack.c.b16 %v8747, %v8743
        %v8924 = vpack.c.b16 %v8752, %v8748
        %v8925 = vpack.c.b16 %v8753, %v8749
        %v8926 = vpack.c.b16 %v8754, %v8750
        %v8927 = vpack.c.b16 %v8755, %v8751
        %v8928 = vpack.c.b16 %v8760, %v8756
        %v8929 = vpack.c.b16 %v8761, %v8757
        %v8930 = vpack.c.b16 %v8762, %v8758
        %v8931 = vpack.c.b16 %v8763, %v8759
        %v8932 = vpack.c.b16 %v8768, %v8764
        %v8933 = vpack.c.b16 %v8769, %v8765
        %v8934 = vpack.c.b16 %v8770, %v8766
        %v8935 = vpack.c.b16 %v8771, %v8767
        %v8936 = vpack.c.b16 %v8776, %v8772
        %v8937 = vpack.c.b16 %v8777, %v8773
        %v8938 = vpack.c.b16 %v8778, %v8774
        %v8939 = vpack.c.b16 %v8779, %v8775
        %v8940 = vpack.c.b16 %v8784, %v8780
        %v8941 = vpack.c.b16 %v8785, %v8781
        %v8942 = vpack.c.b16 %v8786, %v8782
        %v8943 = vpack.c.b16 %v8787, %v8783
        %v8944 = vpack.c.b16 %v8792, %v8788
        %v8945 = vpack.c.b16 %v8793, %v8789
        %v8946 = vpack.c.b16 %v8794, %v8790
        %v8947 = vpack.c.b16 %v8795, %v8791
        %v8948 = vpack.c.b16 %v8800, %v8796
        %v8949 = vpack.c.b16 %v8801, %v8797
        %v8950 = vpack.c.b16 %v8802, %v8798
        %v8951 = vpack.c.b16 %v8803, %v8799
        %v8952 = vpack.c.b16 %v8808, %v8804
        %v8953 = vpack.c.b16 %v8809, %v8805
        %v8954 = vpack.c.b16 %v8810, %v8806
        %v8955 = vpack.c.b16 %v8811, %v8807
        %v8956 = vpack.c.b16 %v8816, %v8812
        %v8957 = vpack.c.b16 %v8817, %v8813
        %v8958 = vpack.c.b16 %v8818, %v8814
        %v8959 = vpack.c.b16 %v8819, %v8815
        %v8960 = vpack.c.b16 %v8824, %v8820
        %v8961 = vpack.c.b16 %v8825, %v8821
        %v8962 = vpack.c.b16 %v8826, %v8822
        %v8963 = vpack.c.b16 %v8827, %v8823
        %v8964 = vpack.c.b16 %v8832, %v8828
        %v8965 = vpack.c.b16 %v8833, %v8829
        %v8966 = vpack.c.b16 %v8834, %v8830
        %v8967 = vpack.c.b16 %v8835, %v8831
        %v8968 = vpack.c.b16 %v8840, %v8836
        %v8969 = vpack.c.b16 %v8841, %v8837
        %v8970 = vpack.c.b16 %v8842, %v8838
        %v8971 = vpack.c.b16 %v8843, %v8839
        %9100 = vmatpush.bf16.msra.mxu0 %v8872
        %9101 = vmatpush.bf16.msra.mxu0 %v8868
        %9102 = vmatpush.bf16.msra.mxu0 %v8864
        %9103 = vmatpush.bf16.msra.mxu0 %v8860
        %9104 = vmatpush.bf16.msra.mxu0 %v8856
        %9105 = vmatpush.bf16.msra.mxu0 %v8852
        %9106 = vmatpush.bf16.msra.mxu0 %v8848
        %9107 = vmatpush.bf16.msra.mxu0 %v8844
        %9108 = vmatmul.bf16.gmra.mxu0 %v8316
        %v9109 = vpop.f32.mrf.mxu0
        %v9110 = vadd.f32 %v8452, %v9109
        %v9111 = vpop.f32.mrf.mxu0
        %v9112 = vadd.f32 %v8452, %v9111
        %9113 = vdwg.mxu0
        %9114 = vmatpush.bf16.msra.mxu0 %v8904
        %9115 = vmatpush.bf16.msra.mxu0 %v8900
        %9116 = vmatpush.bf16.msra.mxu0 %v8896
        %9117 = vmatpush.bf16.msra.mxu0 %v8892
        %9118 = vmatpush.bf16.msra.mxu0 %v8888
        %9119 = vmatpush.bf16.msra.mxu0 %v8884
        %9120 = vmatpush.bf16.msra.mxu0 %v8880
        %9121 = vmatpush.bf16.msra.mxu0 %v8876
        %9122 = vmatmul.bf16.gmra.mxu0 %v8317
        %v9123 = vpop.f32.mrf.mxu0
        %v9124 = vadd.f32 %v9110, %v9123
        %v9125 = vpop.f32.mrf.mxu0
        %v9126 = vadd.f32 %v9112, %v9125
        %9127 = vdwg.mxu0
        %9128 = vmatpush.bf16.msra.mxu0 %v8936
        %9129 = vmatpush.bf16.msra.mxu0 %v8932
        %9130 = vmatpush.bf16.msra.mxu0 %v8928
        %9131 = vmatpush.bf16.msra.mxu0 %v8924
        %9132 = vmatpush.bf16.msra.mxu0 %v8920
        %9133 = vmatpush.bf16.msra.mxu0 %v8916
        %9134 = vmatpush.bf16.msra.mxu0 %v8912
        %9135 = vmatpush.bf16.msra.mxu0 %v8908
        %9136 = vmatmul.bf16.gmra.mxu0 %v8318
        %v9137 = vpop.f32.mrf.mxu0
        %v9138 = vadd.f32 %v9124, %v9137
        %v9139 = vpop.f32.mrf.mxu0
        %v9140 = vadd.f32 %v9126, %v9139
        %9141 = vdwg.mxu0
        %9142 = vmatpush.bf16.msra.mxu0 %v8968
        %9143 = vmatpush.bf16.msra.mxu0 %v8964
        %9144 = vmatpush.bf16.msra.mxu0 %v8960
        %9145 = vmatpush.bf16.msra.mxu0 %v8956
        %9146 = vmatpush.bf16.msra.mxu0 %v8952
        %9147 = vmatpush.bf16.msra.mxu0 %v8948
        %9148 = vmatpush.bf16.msra.mxu0 %v8944
        %9149 = vmatpush.bf16.msra.mxu0 %v8940
        %9150 = vmatmul.bf16.gmra.mxu0 %v8319
        %v9151 = vpop.f32.mrf.mxu0
        %v9152 = vadd.f32 %v9138, %v9151
        %v9153 = vpop.f32.mrf.mxu0
        %v9154 = vadd.f32 %v9140, %v9153
        %9155 = vdwg.mxu0
        %9156 = vmatpush.bf16.msra.mxu0 %v8873
        %9157 = vmatpush.bf16.msra.mxu0 %v8869
        %9158 = vmatpush.bf16.msra.mxu0 %v8865
        %9159 = vmatpush.bf16.msra.mxu0 %v8861
        %9160 = vmatpush.bf16.msra.mxu0 %v8857
        %9161 = vmatpush.bf16.msra.mxu0 %v8853
        %9162 = vmatpush.bf16.msra.mxu0 %v8849
        %9163 = vmatpush.bf16.msra.mxu0 %v8845
        %9164 = vmatmul.bf16.gmra.mxu0 %v8316
        %v9165 = vpop.f32.mrf.mxu0
        %v9166 = vadd.f32 %v8453, %v9165
        %v9167 = vpop.f32.mrf.mxu0
        %v9168 = vadd.f32 %v8453, %v9167
        %9169 = vdwg.mxu0
        %9170 = vmatpush.bf16.msra.mxu0 %v8905
        %9171 = vmatpush.bf16.msra.mxu0 %v8901
        %9172 = vmatpush.bf16.msra.mxu0 %v8897
        %9173 = vmatpush.bf16.msra.mxu0 %v8893
        %9174 = vmatpush.bf16.msra.mxu0 %v8889
        %9175 = vmatpush.bf16.msra.mxu0 %v8885
        %9176 = vmatpush.bf16.msra.mxu0 %v8881
        %9177 = vmatpush.bf16.msra.mxu0 %v8877
        %9178 = vmatmul.bf16.gmra.mxu0 %v8317
        %v9179 = vpop.f32.mrf.mxu0
        %v9180 = vadd.f32 %v9166, %v9179
        %v9181 = vpop.f32.mrf.mxu0
        %v9182 = vadd.f32 %v9168, %v9181
        %9183 = vdwg.mxu0
        %9184 = vmatpush.bf16.msra.mxu0 %v8937
        %9185 = vmatpush.bf16.msra.mxu0 %v8933
        %9186 = vmatpush.bf16.msra.mxu0 %v8929
        %9187 = vmatpush.bf16.msra.mxu0 %v8925
        %9188 = vmatpush.bf16.msra.mxu0 %v8921
        %9189 = vmatpush.bf16.msra.mxu0 %v8917
        %9190 = vmatpush.bf16.msra.mxu0 %v8913
        %9191 = vmatpush.bf16.msra.mxu0 %v8909
        %9192 = vmatmul.bf16.gmra.mxu0 %v8318
        %v9193 = vpop.f32.mrf.mxu0
        %v9194 = vadd.f32 %v9180, %v9193
        %v9195 = vpop.f32.mrf.mxu0
        %v9196 = vadd.f32 %v9182, %v9195
        %9197 = vdwg.mxu0
        %9198 = vmatpush.bf16.msra.mxu0 %v8969
        %9199 = vmatpush.bf16.msra.mxu0 %v8965
        %9200 = vmatpush.bf16.msra.mxu0 %v8961
        %9201 = vmatpush.bf16.msra.mxu0 %v8957
        %9202 = vmatpush.bf16.msra.mxu0 %v8953
        %9203 = vmatpush.bf16.msra.mxu0 %v8949
        %9204 = vmatpush.bf16.msra.mxu0 %v8945
        %9205 = vmatpush.bf16.msra.mxu0 %v8941
        %9206 = vmatmul.bf16.gmra.mxu0 %v8319
        %v9207 = vpop.f32.mrf.mxu0
        %v9208 = vadd.f32 %v9194, %v9207
        %v9209 = vpop.f32.mrf.mxu0
        %v9210 = vadd.f32 %v9196, %v9209
        %9211 = vdwg.mxu0
        %9212 = vmatpush.bf16.msra.mxu0 %v8874
        %9213 = vmatpush.bf16.msra.mxu0 %v8870
        %9214 = vmatpush.bf16.msra.mxu0 %v8866
        %9215 = vmatpush.bf16.msra.mxu0 %v8862
        %9216 = vmatpush.bf16.msra.mxu0 %v8858
        %9217 = vmatpush.bf16.msra.mxu0 %v8854
        %9218 = vmatpush.bf16.msra.mxu0 %v8850
        %9219 = vmatpush.bf16.msra.mxu0 %v8846
        %9220 = vmatmul.bf16.gmra.mxu0 %v8316
        %v9221 = vpop.f32.mrf.mxu0
        %v9222 = vadd.f32 %v8454, %v9221
        %v9223 = vpop.f32.mrf.mxu0
        %v9224 = vadd.f32 %v8454, %v9223
        %9225 = vdwg.mxu0
        %9226 = vmatpush.bf16.msra.mxu0 %v8906
        %9227 = vmatpush.bf16.msra.mxu0 %v8902
        %9228 = vmatpush.bf16.msra.mxu0 %v8898
        %9229 = vmatpush.bf16.msra.mxu0 %v8894
        %9230 = vmatpush.bf16.msra.mxu0 %v8890
        %9231 = vmatpush.bf16.msra.mxu0 %v8886
        %9232 = vmatpush.bf16.msra.mxu0 %v8882
        %9233 = vmatpush.bf16.msra.mxu0 %v8878
        %9234 = vmatmul.bf16.gmra.mxu0 %v8317
        %v9235 = vpop.f32.mrf.mxu0
        %v9236 = vadd.f32 %v9222, %v9235
        %v9237 = vpop.f32.mrf.mxu0
        %v9238 = vadd.f32 %v9224, %v9237
        %9239 = vdwg.mxu0
        %9240 = vmatpush.bf16.msra.mxu0 %v8938
        %9241 = vmatpush.bf16.msra.mxu0 %v8934
        %9242 = vmatpush.bf16.msra.mxu0 %v8930
        %9243 = vmatpush.bf16.msra.mxu0 %v8926
        %9244 = vmatpush.bf16.msra.mxu0 %v8922
        %9245 = vmatpush.bf16.msra.mxu0 %v8918
        %9246 = vmatpush.bf16.msra.mxu0 %v8914
        %9247 = vmatpush.bf16.msra.mxu0 %v8910
        %9248 = vmatmul.bf16.gmra.mxu0 %v8318
        %v9249 = vpop.f32.mrf.mxu0
        %v9250 = vadd.f32 %v9236, %v9249
        %v9251 = vpop.f32.mrf.mxu0
        %v9252 = vadd.f32 %v9238, %v9251
        %9253 = vdwg.mxu0
        %9254 = vmatpush.bf16.msra.mxu0 %v8970
        %9255 = vmatpush.bf16.msra.mxu0 %v8966
        %9256 = vmatpush.bf16.msra.mxu0 %v8962
        %9257 = vmatpush.bf16.msra.mxu0 %v8958
        %9258 = vmatpush.bf16.msra.mxu0 %v8954
        %9259 = vmatpush.bf16.msra.mxu0 %v8950
        %9260 = vmatpush.bf16.msra.mxu0 %v8946
        %9261 = vmatpush.bf16.msra.mxu0 %v8942
        %9262 = vmatmul.bf16.gmra.mxu0 %v8319
        %v9263 = vpop.f32.mrf.mxu0
        %v9264 = vadd.f32 %v9250, %v9263
        %v9265 = vpop.f32.mrf.mxu0
        %v9266 = vadd.f32 %v9252, %v9265
        %9267 = vdwg.mxu0
        %9268 = vmatpush.bf16.msra.mxu0 %v8875
        %9269 = vmatpush.bf16.msra.mxu0 %v8871
        %9270 = vmatpush.bf16.msra.mxu0 %v8867
        %9271 = vmatpush.bf16.msra.mxu0 %v8863
        %9272 = vmatpush.bf16.msra.mxu0 %v8859
        %9273 = vmatpush.bf16.msra.mxu0 %v8855
        %9274 = vmatpush.bf16.msra.mxu0 %v8851
        %9275 = vmatpush.bf16.msra.mxu0 %v8847
        %9276 = vmatmul.bf16.gmra.mxu0 %v8316
        %v9277 = vpop.f32.mrf.mxu0
        %v9278 = vadd.f32 %v8455, %v9277
        %v9279 = vpop.f32.mrf.mxu0
        %v9280 = vadd.f32 %v8455, %v9279
        %9281 = vdwg.mxu0
        %9282 = vmatpush.bf16.msra.mxu0 %v8907
        %9283 = vmatpush.bf16.msra.mxu0 %v8903
        %9284 = vmatpush.bf16.msra.mxu0 %v8899
        %9285 = vmatpush.bf16.msra.mxu0 %v8895
        %9286 = vmatpush.bf16.msra.mxu0 %v8891
        %9287 = vmatpush.bf16.msra.mxu0 %v8887
        %9288 = vmatpush.bf16.msra.mxu0 %v8883
        %9289 = vmatpush.bf16.msra.mxu0 %v8879
        %9290 = vmatmul.bf16.gmra.mxu0 %v8317
        %v9291 = vpop.f32.mrf.mxu0
        %v9292 = vadd.f32 %v9278, %v9291
        %v9293 = vpop.f32.mrf.mxu0
        %v9294 = vadd.f32 %v9280, %v9293
        %9295 = vdwg.mxu0
        %9296 = vmatpush.bf16.msra.mxu0 %v8939
        %9297 = vmatpush.bf16.msra.mxu0 %v8935
        %9298 = vmatpush.bf16.msra.mxu0 %v8931
        %9299 = vmatpush.bf16.msra.mxu0 %v8927
        %9300 = vmatpush.bf16.msra.mxu0 %v8923
        %9301 = vmatpush.bf16.msra.mxu0 %v8919
        %9302 = vmatpush.bf16.msra.mxu0 %v8915
        %9303 = vmatpush.bf16.msra.mxu0 %v8911
        %9304 = vmatmul.bf16.gmra.mxu0 %v8318
        %v9305 = vpop.f32.mrf.mxu0
        %v9306 = vadd.f32 %v9292, %v9305
        %v9307 = vpop.f32.mrf.mxu0
        %v9308 = vadd.f32 %v9294, %v9307
        %9309 = vdwg.mxu0
        %9310 = vmatpush.bf16.msra.mxu0 %v8971
        %9311 = vmatpush.bf16.msra.mxu0 %v8967
        %9312 = vmatpush.bf16.msra.mxu0 %v8963
        %9313 = vmatpush.bf16.msra.mxu0 %v8959
        %9314 = vmatpush.bf16.msra.mxu0 %v8955
        %9315 = vmatpush.bf16.msra.mxu0 %v8951
        %9316 = vmatpush.bf16.msra.mxu0 %v8947
        %9317 = vmatpush.bf16.msra.mxu0 %v8943
        %9318 = vmatmul.bf16.gmra.mxu0 %v8319
        %v9319 = vpop.f32.mrf.mxu0
        %v9320 = vadd.f32 %v9306, %v9319
        %v9321 = vpop.f32.mrf.mxu0
        %v9322 = vadd.f32 %v9308, %v9321
        %9323 = vdwg.mxu0
        %v9324 = vmax.f32 %v9152, 0.0
        %v9325 = vmax.f32 %v9208, 0.0
        %v9326 = vmax.f32 %v9264, 0.0
        %v9327 = vmax.f32 %v9320, 0.0
        %v9328 = vmax.f32 %v9154, 0.0
        %v9329 = vmax.f32 %v9210, 0.0
        %v9330 = vmax.f32 %v9266, 0.0
        %v9331 = vmax.f32 %v9322, 0.0
        %v9332 = vpack.c.bf16 %v9328, %v9324
        %v9333 = vpack.c.bf16 %v9329, %v9325
        %v9334 = vpack.c.bf16 %v9330, %v9326
        %v9335 = vpack.c.bf16 %v9331, %v9327
        %s9336 = scalar_lea.vmem [#allocation9], 8192
        %v9337 = vld [vmem:[%s9336] sm:$0xff]
        %v9338 = vld [vmem:[%s9336 + $0x8] sm:$0xff]
        %v9339 = vld [vmem:[%s9336 + $0x10] sm:$0xff]
        %v9340 = vld [vmem:[%s9336 + $0x18] sm:$0xff]
        %v9341 = vld [vmem:[%s9336 + $0x20] sm:$0xff]
        %v9342 = vld [vmem:[%s9336 + $0x28] sm:$0xff]
        %v9343 = vld [vmem:[%s9336 + $0x30] sm:$0xff]
        %v9344 = vld [vmem:[%s9336 + $0x38] sm:$0xff]
        %v9345 = vld [vmem:[%s9336 + $0x40] sm:$0xff]
        %v9346 = vld [vmem:[%s9336 + $0x48] sm:$0xff]
        %v9347 = vld [vmem:[%s9336 + $0x50] sm:$0xff]
        %v9348 = vld [vmem:[%s9336 + $0x58] sm:$0xff]
        %v9349 = vld [vmem:[%s9336 + $0x60] sm:$0xff]
        %v9350 = vld [vmem:[%s9336 + $0x68] sm:$0xff]
        %v9351 = vld [vmem:[%s9336 + $0x70] sm:$0xff]
        %v9352 = vld [vmem:[%s9336 + $0x78] sm:$0xff]
        %v9353 = vld [vmem:[%s9336 + $0x80] sm:$0xff]
        %v9354 = vld [vmem:[%s9336 + $0x88] sm:$0xff]
        %v9355 = vld [vmem:[%s9336 + $0x90] sm:$0xff]
        %v9356 = vld [vmem:[%s9336 + $0x98] sm:$0xff]
        %v9357 = vld [vmem:[%s9336 + $0xa0] sm:$0xff]
        %v9358 = vld [vmem:[%s9336 + $0xa8] sm:$0xff]
        %v9359 = vld [vmem:[%s9336 + $0xb0] sm:$0xff]
        %v9360 = vld [vmem:[%s9336 + $0xb8] sm:$0xff]
        %v9361 = vld [vmem:[%s9336 + $0xc0] sm:$0xff]
        %v9362 = vld [vmem:[%s9336 + $0xc8] sm:$0xff]
        %v9363 = vld [vmem:[%s9336 + $0xd0] sm:$0xff]
        %v9364 = vld [vmem:[%s9336 + $0xd8] sm:$0xff]
        %v9365 = vld [vmem:[%s9336 + $0xe0] sm:$0xff]
        %v9366 = vld [vmem:[%s9336 + $0xe8] sm:$0xff]
        %v9367 = vld [vmem:[%s9336 + $0xf0] sm:$0xff]
        %v9368 = vld [vmem:[%s9336 + $0xf8] sm:$0xff]
        %v9369 = vld [vmem:[%s9336 + $0x100] sm:$0xff]
        %v9370 = vld [vmem:[%s9336 + $0x108] sm:$0xff]
        %v9371 = vld [vmem:[%s9336 + $0x110] sm:$0xff]
        %v9372 = vld [vmem:[%s9336 + $0x118] sm:$0xff]
        %v9373 = vld [vmem:[%s9336 + $0x120] sm:$0xff]
        %v9374 = vld [vmem:[%s9336 + $0x128] sm:$0xff]
        %v9375 = vld [vmem:[%s9336 + $0x130] sm:$0xff]
        %v9376 = vld [vmem:[%s9336 + $0x138] sm:$0xff]
        %v9377 = vld [vmem:[%s9336 + $0x140] sm:$0xff]
        %v9378 = vld [vmem:[%s9336 + $0x148] sm:$0xff]
        %v9379 = vld [vmem:[%s9336 + $0x150] sm:$0xff]
        %v9380 = vld [vmem:[%s9336 + $0x158] sm:$0xff]
        %v9381 = vld [vmem:[%s9336 + $0x160] sm:$0xff]
        %v9382 = vld [vmem:[%s9336 + $0x168] sm:$0xff]
        %v9383 = vld [vmem:[%s9336 + $0x170] sm:$0xff]
        %v9384 = vld [vmem:[%s9336 + $0x178] sm:$0xff]
        %v9385 = vld [vmem:[%s9336 + $0x180] sm:$0xff]
        %v9386 = vld [vmem:[%s9336 + $0x188] sm:$0xff]
        %v9387 = vld [vmem:[%s9336 + $0x190] sm:$0xff]
        %v9388 = vld [vmem:[%s9336 + $0x198] sm:$0xff]
        %v9389 = vld [vmem:[%s9336 + $0x1a0] sm:$0xff]
        %v9390 = vld [vmem:[%s9336 + $0x1a8] sm:$0xff]
        %v9391 = vld [vmem:[%s9336 + $0x1b0] sm:$0xff]
        %v9392 = vld [vmem:[%s9336 + $0x1b8] sm:$0xff]
        %v9393 = vld [vmem:[%s9336 + $0x1c0] sm:$0xff]
        %v9394 = vld [vmem:[%s9336 + $0x1c8] sm:$0xff]
        %v9395 = vld [vmem:[%s9336 + $0x1d0] sm:$0xff]
        %v9396 = vld [vmem:[%s9336 + $0x1d8] sm:$0xff]
        %v9397 = vld [vmem:[%s9336 + $0x1e0] sm:$0xff]
        %v9398 = vld [vmem:[%s9336 + $0x1e8] sm:$0xff]
        %v9399 = vld [vmem:[%s9336 + $0x1f0] sm:$0xff]
        %v9400 = vld [vmem:[%s9336 + $0x1f8] sm:$0xff]
        %v9401 = vld [vmem:[%s9336 + $0x200] sm:$0xff]
        %v9402 = vld [vmem:[%s9336 + $0x208] sm:$0xff]
        %v9403 = vld [vmem:[%s9336 + $0x210] sm:$0xff]
        %v9404 = vld [vmem:[%s9336 + $0x218] sm:$0xff]
        %v9405 = vld [vmem:[%s9336 + $0x220] sm:$0xff]
        %v9406 = vld [vmem:[%s9336 + $0x228] sm:$0xff]
        %v9407 = vld [vmem:[%s9336 + $0x230] sm:$0xff]
        %v9408 = vld [vmem:[%s9336 + $0x238] sm:$0xff]
        %v9409 = vld [vmem:[%s9336 + $0x240] sm:$0xff]
        %v9410 = vld [vmem:[%s9336 + $0x248] sm:$0xff]
        %v9411 = vld [vmem:[%s9336 + $0x250] sm:$0xff]
        %v9412 = vld [vmem:[%s9336 + $0x258] sm:$0xff]
        %v9413 = vld [vmem:[%s9336 + $0x260] sm:$0xff]
        %v9414 = vld [vmem:[%s9336 + $0x268] sm:$0xff]
        %v9415 = vld [vmem:[%s9336 + $0x270] sm:$0xff]
        %v9416 = vld [vmem:[%s9336 + $0x278] sm:$0xff]
        %v9417 = vld [vmem:[%s9336 + $0x280] sm:$0xff]
        %v9418 = vld [vmem:[%s9336 + $0x288] sm:$0xff]
        %v9419 = vld [vmem:[%s9336 + $0x290] sm:$0xff]
        %v9420 = vld [vmem:[%s9336 + $0x298] sm:$0xff]
        %v9421 = vld [vmem:[%s9336 + $0x2a0] sm:$0xff]
        %v9422 = vld [vmem:[%s9336 + $0x2a8] sm:$0xff]
        %v9423 = vld [vmem:[%s9336 + $0x2b0] sm:$0xff]
        %v9424 = vld [vmem:[%s9336 + $0x2b8] sm:$0xff]
        %v9425 = vld [vmem:[%s9336 + $0x2c0] sm:$0xff]
        %v9426 = vld [vmem:[%s9336 + $0x2c8] sm:$0xff]
        %v9427 = vld [vmem:[%s9336 + $0x2d0] sm:$0xff]
        %v9428 = vld [vmem:[%s9336 + $0x2d8] sm:$0xff]
        %v9429 = vld [vmem:[%s9336 + $0x2e0] sm:$0xff]
        %v9430 = vld [vmem:[%s9336 + $0x2e8] sm:$0xff]
        %v9431 = vld [vmem:[%s9336 + $0x2f0] sm:$0xff]
        %v9432 = vld [vmem:[%s9336 + $0x2f8] sm:$0xff]
        %v9433 = vld [vmem:[%s9336 + $0x300] sm:$0xff]
        %v9434 = vld [vmem:[%s9336 + $0x308] sm:$0xff]
        %v9435 = vld [vmem:[%s9336 + $0x310] sm:$0xff]
        %v9436 = vld [vmem:[%s9336 + $0x318] sm:$0xff]
        %v9437 = vld [vmem:[%s9336 + $0x320] sm:$0xff]
        %v9438 = vld [vmem:[%s9336 + $0x328] sm:$0xff]
        %v9439 = vld [vmem:[%s9336 + $0x330] sm:$0xff]
        %v9440 = vld [vmem:[%s9336 + $0x338] sm:$0xff]
        %v9441 = vld [vmem:[%s9336 + $0x340] sm:$0xff]
        %v9442 = vld [vmem:[%s9336 + $0x348] sm:$0xff]
        %v9443 = vld [vmem:[%s9336 + $0x350] sm:$0xff]
        %v9444 = vld [vmem:[%s9336 + $0x358] sm:$0xff]
        %v9445 = vld [vmem:[%s9336 + $0x360] sm:$0xff]
        %v9446 = vld [vmem:[%s9336 + $0x368] sm:$0xff]
        %v9447 = vld [vmem:[%s9336 + $0x370] sm:$0xff]
        %v9448 = vld [vmem:[%s9336 + $0x378] sm:$0xff]
        %v9449 = vld [vmem:[%s9336 + $0x380] sm:$0xff]
        %v9450 = vld [vmem:[%s9336 + $0x388] sm:$0xff]
        %v9451 = vld [vmem:[%s9336 + $0x390] sm:$0xff]
        %v9452 = vld [vmem:[%s9336 + $0x398] sm:$0xff]
        %v9453 = vld [vmem:[%s9336 + $0x3a0] sm:$0xff]
        %v9454 = vld [vmem:[%s9336 + $0x3a8] sm:$0xff]
        %v9455 = vld [vmem:[%s9336 + $0x3b0] sm:$0xff]
        %v9456 = vld [vmem:[%s9336 + $0x3b8] sm:$0xff]
        %v9457 = vld [vmem:[%s9336 + $0x3c0] sm:$0xff]
        %v9458 = vld [vmem:[%s9336 + $0x3c8] sm:$0xff]
        %v9459 = vld [vmem:[%s9336 + $0x3d0] sm:$0xff]
        %v9460 = vld [vmem:[%s9336 + $0x3d8] sm:$0xff]
        %v9461 = vld [vmem:[%s9336 + $0x3e0] sm:$0xff]
        %v9462 = vld [vmem:[%s9336 + $0x3e8] sm:$0xff]
        %v9463 = vld [vmem:[%s9336 + $0x3f0] sm:$0xff]
        %v9464 = vld [vmem:[%s9336 + $0x3f8] sm:$0xff]
        %s9465 = scalar_lea.vmem [#allocation10], 32
        %v9466 = vld [vmem:[%s9465] sm:$0xf]
        %v9468 = vperm.slane %v9466, 0
        %v9469 = vperm.slane %v9466, 1
        %v9470 = vperm.slane %v9466, 2
        %v9471 = vperm.slane %v9466, 3
        %v9604 = vunpack.c.l.b16 %v9337
        %v9605 = vunpack.c.h.b16 %v9337
        %v9606 = vunpack.c.l.b16 %v9338
        %v9607 = vunpack.c.h.b16 %v9338
        %v9608 = vunpack.c.l.b16 %v9339
        %v9609 = vunpack.c.h.b16 %v9339
        %v9610 = vunpack.c.l.b16 %v9340
        %v9611 = vunpack.c.h.b16 %v9340
        %v9612 = vunpack.c.l.b16 %v9341
        %v9613 = vunpack.c.h.b16 %v9341
        %v9614 = vunpack.c.l.b16 %v9342
        %v9615 = vunpack.c.h.b16 %v9342
        %v9616 = vunpack.c.l.b16 %v9343
        %v9617 = vunpack.c.h.b16 %v9343
        %v9618 = vunpack.c.l.b16 %v9344
        %v9619 = vunpack.c.h.b16 %v9344
        %v9620 = vunpack.c.l.b16 %v9345
        %v9621 = vunpack.c.h.b16 %v9345
        %v9622 = vunpack.c.l.b16 %v9346
        %v9623 = vunpack.c.h.b16 %v9346
        %v9624 = vunpack.c.l.b16 %v9347
        %v9625 = vunpack.c.h.b16 %v9347
        %v9626 = vunpack.c.l.b16 %v9348
        %v9627 = vunpack.c.h.b16 %v9348
        %v9628 = vunpack.c.l.b16 %v9349
        %v9629 = vunpack.c.h.b16 %v9349
        %v9630 = vunpack.c.l.b16 %v9350
        %v9631 = vunpack.c.h.b16 %v9350
        %v9632 = vunpack.c.l.b16 %v9351
        %v9633 = vunpack.c.h.b16 %v9351
        %v9634 = vunpack.c.l.b16 %v9352
        %v9635 = vunpack.c.h.b16 %v9352
        %v9636 = vunpack.c.l.b16 %v9353
        %v9637 = vunpack.c.h.b16 %v9353
        %v9638 = vunpack.c.l.b16 %v9354
        %v9639 = vunpack.c.h.b16 %v9354
        %v9640 = vunpack.c.l.b16 %v9355
        %v9641 = vunpack.c.h.b16 %v9355
        %v9642 = vunpack.c.l.b16 %v9356
        %v9643 = vunpack.c.h.b16 %v9356
        %v9644 = vunpack.c.l.b16 %v9357
        %v9645 = vunpack.c.h.b16 %v9357
        %v9646 = vunpack.c.l.b16 %v9358
        %v9647 = vunpack.c.h.b16 %v9358
        %v9648 = vunpack.c.l.b16 %v9359
        %v9649 = vunpack.c.h.b16 %v9359
        %v9650 = vunpack.c.l.b16 %v9360
        %v9651 = vunpack.c.h.b16 %v9360
        %v9652 = vunpack.c.l.b16 %v9361
        %v9653 = vunpack.c.h.b16 %v9361
        %v9654 = vunpack.c.l.b16 %v9362
        %v9655 = vunpack.c.h.b16 %v9362
        %v9656 = vunpack.c.l.b16 %v9363
        %v9657 = vunpack.c.h.b16 %v9363
        %v9658 = vunpack.c.l.b16 %v9364
        %v9659 = vunpack.c.h.b16 %v9364
        %v9660 = vunpack.c.l.b16 %v9365
        %v9661 = vunpack.c.h.b16 %v9365
        %v9662 = vunpack.c.l.b16 %v9366
        %v9663 = vunpack.c.h.b16 %v9366
        %v9664 = vunpack.c.l.b16 %v9367
        %v9665 = vunpack.c.h.b16 %v9367
        %v9666 = vunpack.c.l.b16 %v9368
        %v9667 = vunpack.c.h.b16 %v9368
        %v9668 = vunpack.c.l.b16 %v9369
        %v9669 = vunpack.c.h.b16 %v9369
        %v9670 = vunpack.c.l.b16 %v9370
        %v9671 = vunpack.c.h.b16 %v9370
        %v9672 = vunpack.c.l.b16 %v9371
        %v9673 = vunpack.c.h.b16 %v9371
        %v9674 = vunpack.c.l.b16 %v9372
        %v9675 = vunpack.c.h.b16 %v9372
        %v9676 = vunpack.c.l.b16 %v9373
        %v9677 = vunpack.c.h.b16 %v9373
        %v9678 = vunpack.c.l.b16 %v9374
        %v9679 = vunpack.c.h.b16 %v9374
        %v9680 = vunpack.c.l.b16 %v9375
        %v9681 = vunpack.c.h.b16 %v9375
        %v9682 = vunpack.c.l.b16 %v9376
        %v9683 = vunpack.c.h.b16 %v9376
        %v9684 = vunpack.c.l.b16 %v9377
        %v9685 = vunpack.c.h.b16 %v9377
        %v9686 = vunpack.c.l.b16 %v9378
        %v9687 = vunpack.c.h.b16 %v9378
        %v9688 = vunpack.c.l.b16 %v9379
        %v9689 = vunpack.c.h.b16 %v9379
        %v9690 = vunpack.c.l.b16 %v9380
        %v9691 = vunpack.c.h.b16 %v9380
        %v9692 = vunpack.c.l.b16 %v9381
        %v9693 = vunpack.c.h.b16 %v9381
        %v9694 = vunpack.c.l.b16 %v9382
        %v9695 = vunpack.c.h.b16 %v9382
        %v9696 = vunpack.c.l.b16 %v9383
        %v9697 = vunpack.c.h.b16 %v9383
        %v9698 = vunpack.c.l.b16 %v9384
        %v9699 = vunpack.c.h.b16 %v9384
        %v9700 = vunpack.c.l.b16 %v9385
        %v9701 = vunpack.c.h.b16 %v9385
        %v9702 = vunpack.c.l.b16 %v9386
        %v9703 = vunpack.c.h.b16 %v9386
        %v9704 = vunpack.c.l.b16 %v9387
        %v9705 = vunpack.c.h.b16 %v9387
        %v9706 = vunpack.c.l.b16 %v9388
        %v9707 = vunpack.c.h.b16 %v9388
        %v9708 = vunpack.c.l.b16 %v9389
        %v9709 = vunpack.c.h.b16 %v9389
        %v9710 = vunpack.c.l.b16 %v9390
        %v9711 = vunpack.c.h.b16 %v9390
        %v9712 = vunpack.c.l.b16 %v9391
        %v9713 = vunpack.c.h.b16 %v9391
        %v9714 = vunpack.c.l.b16 %v9392
        %v9715 = vunpack.c.h.b16 %v9392
        %v9716 = vunpack.c.l.b16 %v9393
        %v9717 = vunpack.c.h.b16 %v9393
        %v9718 = vunpack.c.l.b16 %v9394
        %v9719 = vunpack.c.h.b16 %v9394
        %v9720 = vunpack.c.l.b16 %v9395
        %v9721 = vunpack.c.h.b16 %v9395
        %v9722 = vunpack.c.l.b16 %v9396
        %v9723 = vunpack.c.h.b16 %v9396
        %v9724 = vunpack.c.l.b16 %v9397
        %v9725 = vunpack.c.h.b16 %v9397
        %v9726 = vunpack.c.l.b16 %v9398
        %v9727 = vunpack.c.h.b16 %v9398
        %v9728 = vunpack.c.l.b16 %v9399
        %v9729 = vunpack.c.h.b16 %v9399
        %v9730 = vunpack.c.l.b16 %v9400
        %v9731 = vunpack.c.h.b16 %v9400
        %v9732 = vunpack.c.l.b16 %v9401
        %v9733 = vunpack.c.h.b16 %v9401
        %v9734 = vunpack.c.l.b16 %v9402
        %v9735 = vunpack.c.h.b16 %v9402
        %v9736 = vunpack.c.l.b16 %v9403
        %v9737 = vunpack.c.h.b16 %v9403
        %v9738 = vunpack.c.l.b16 %v9404
        %v9739 = vunpack.c.h.b16 %v9404
        %v9740 = vunpack.c.l.b16 %v9405
        %v9741 = vunpack.c.h.b16 %v9405
        %v9742 = vunpack.c.l.b16 %v9406
        %v9743 = vunpack.c.h.b16 %v9406
        %v9744 = vunpack.c.l.b16 %v9407
        %v9745 = vunpack.c.h.b16 %v9407
        %v9746 = vunpack.c.l.b16 %v9408
        %v9747 = vunpack.c.h.b16 %v9408
        %v9748 = vunpack.c.l.b16 %v9409
        %v9749 = vunpack.c.h.b16 %v9409
        %v9750 = vunpack.c.l.b16 %v9410
        %v9751 = vunpack.c.h.b16 %v9410
        %v9752 = vunpack.c.l.b16 %v9411
        %v9753 = vunpack.c.h.b16 %v9411
        %v9754 = vunpack.c.l.b16 %v9412
        %v9755 = vunpack.c.h.b16 %v9412
        %v9756 = vunpack.c.l.b16 %v9413
        %v9757 = vunpack.c.h.b16 %v9413
        %v9758 = vunpack.c.l.b16 %v9414
        %v9759 = vunpack.c.h.b16 %v9414
        %v9760 = vunpack.c.l.b16 %v9415
        %v9761 = vunpack.c.h.b16 %v9415
        %v9762 = vunpack.c.l.b16 %v9416
        %v9763 = vunpack.c.h.b16 %v9416
        %v9764 = vunpack.c.l.b16 %v9417
        %v9765 = vunpack.c.h.b16 %v9417
        %v9766 = vunpack.c.l.b16 %v9418
        %v9767 = vunpack.c.h.b16 %v9418
        %v9768 = vunpack.c.l.b16 %v9419
        %v9769 = vunpack.c.h.b16 %v9419
        %v9770 = vunpack.c.l.b16 %v9420
        %v9771 = vunpack.c.h.b16 %v9420
        %v9772 = vunpack.c.l.b16 %v9421
        %v9773 = vunpack.c.h.b16 %v9421
        %v9774 = vunpack.c.l.b16 %v9422
        %v9775 = vunpack.c.h.b16 %v9422
        %v9776 = vunpack.c.l.b16 %v9423
        %v9777 = vunpack.c.h.b16 %v9423
        %v9778 = vunpack.c.l.b16 %v9424
        %v9779 = vunpack.c.h.b16 %v9424
        %v9780 = vunpack.c.l.b16 %v9425
        %v9781 = vunpack.c.h.b16 %v9425
        %v9782 = vunpack.c.l.b16 %v9426
        %v9783 = vunpack.c.h.b16 %v9426
        %v9784 = vunpack.c.l.b16 %v9427
        %v9785 = vunpack.c.h.b16 %v9427
        %v9786 = vunpack.c.l.b16 %v9428
        %v9787 = vunpack.c.h.b16 %v9428
        %v9788 = vunpack.c.l.b16 %v9429
        %v9789 = vunpack.c.h.b16 %v9429
        %v9790 = vunpack.c.l.b16 %v9430
        %v9791 = vunpack.c.h.b16 %v9430
        %v9792 = vunpack.c.l.b16 %v9431
        %v9793 = vunpack.c.h.b16 %v9431
        %v9794 = vunpack.c.l.b16 %v9432
        %v9795 = vunpack.c.h.b16 %v9432
        %v9796 = vunpack.c.l.b16 %v9433
        %v9797 = vunpack.c.h.b16 %v9433
        %v9798 = vunpack.c.l.b16 %v9434
        %v9799 = vunpack.c.h.b16 %v9434
        %v9800 = vunpack.c.l.b16 %v9435
        %v9801 = vunpack.c.h.b16 %v9435
        %v9802 = vunpack.c.l.b16 %v9436
        %v9803 = vunpack.c.h.b16 %v9436
        %v9804 = vunpack.c.l.b16 %v9437
        %v9805 = vunpack.c.h.b16 %v9437
        %v9806 = vunpack.c.l.b16 %v9438
        %v9807 = vunpack.c.h.b16 %v9438
        %v9808 = vunpack.c.l.b16 %v9439
        %v9809 = vunpack.c.h.b16 %v9439
        %v9810 = vunpack.c.l.b16 %v9440
        %v9811 = vunpack.c.h.b16 %v9440
        %v9812 = vunpack.c.l.b16 %v9441
        %v9813 = vunpack.c.h.b16 %v9441
        %v9814 = vunpack.c.l.b16 %v9442
        %v9815 = vunpack.c.h.b16 %v9442
        %v9816 = vunpack.c.l.b16 %v9443
        %v9817 = vunpack.c.h.b16 %v9443
        %v9818 = vunpack.c.l.b16 %v9444
        %v9819 = vunpack.c.h.b16 %v9444
        %v9820 = vunpack.c.l.b16 %v9445
        %v9821 = vunpack.c.h.b16 %v9445
        %v9822 = vunpack.c.l.b16 %v9446
        %v9823 = vunpack.c.h.b16 %v9446
        %v9824 = vunpack.c.l.b16 %v9447
        %v9825 = vunpack.c.h.b16 %v9447
        %v9826 = vunpack.c.l.b16 %v9448
        %v9827 = vunpack.c.h.b16 %v9448
        %v9828 = vunpack.c.l.b16 %v9449
        %v9829 = vunpack.c.h.b16 %v9449
        %v9830 = vunpack.c.l.b16 %v9450
        %v9831 = vunpack.c.h.b16 %v9450
        %v9832 = vunpack.c.l.b16 %v9451
        %v9833 = vunpack.c.h.b16 %v9451
        %v9834 = vunpack.c.l.b16 %v9452
        %v9835 = vunpack.c.h.b16 %v9452
        %v9836 = vunpack.c.l.b16 %v9453
        %v9837 = vunpack.c.h.b16 %v9453
        %v9838 = vunpack.c.l.b16 %v9454
        %v9839 = vunpack.c.h.b16 %v9454
        %v9840 = vunpack.c.l.b16 %v9455
        %v9841 = vunpack.c.h.b16 %v9455
        %v9842 = vunpack.c.l.b16 %v9456
        %v9843 = vunpack.c.h.b16 %v9456
        %v9844 = vunpack.c.l.b16 %v9457
        %v9845 = vunpack.c.h.b16 %v9457
        %v9846 = vunpack.c.l.b16 %v9458
        %v9847 = vunpack.c.h.b16 %v9458
        %v9848 = vunpack.c.l.b16 %v9459
        %v9849 = vunpack.c.h.b16 %v9459
        %v9850 = vunpack.c.l.b16 %v9460
        %v9851 = vunpack.c.h.b16 %v9460
        %v9852 = vunpack.c.l.b16 %v9461
        %v9853 = vunpack.c.h.b16 %v9461
        %v9854 = vunpack.c.l.b16 %v9462
        %v9855 = vunpack.c.h.b16 %v9462
        %v9856 = vunpack.c.l.b16 %v9463
        %v9857 = vunpack.c.h.b16 %v9463
        %v9858 = vunpack.c.l.b16 %v9464
        %v9859 = vunpack.c.h.b16 %v9464
        %v9860 = vpack.c.b16 %v9608, %v9604
        %v9861 = vpack.c.b16 %v9609, %v9605
        %v9862 = vpack.c.b16 %v9610, %v9606
        %v9863 = vpack.c.b16 %v9611, %v9607
        %v9864 = vpack.c.b16 %v9616, %v9612
        %v9865 = vpack.c.b16 %v9617, %v9613
        %v9866 = vpack.c.b16 %v9618, %v9614
        %v9867 = vpack.c.b16 %v9619, %v9615
        %v9868 = vpack.c.b16 %v9624, %v9620
        %v9869 = vpack.c.b16 %v9625, %v9621
        %v9870 = vpack.c.b16 %v9626, %v9622
        %v9871 = vpack.c.b16 %v9627, %v9623
        %v9872 = vpack.c.b16 %v9632, %v9628
        %v9873 = vpack.c.b16 %v9633, %v9629
        %v9874 = vpack.c.b16 %v9634, %v9630
        %v9875 = vpack.c.b16 %v9635, %v9631
        %v9876 = vpack.c.b16 %v9640, %v9636
        %v9877 = vpack.c.b16 %v9641, %v9637
        %v9878 = vpack.c.b16 %v9642, %v9638
        %v9879 = vpack.c.b16 %v9643, %v9639
        %v9880 = vpack.c.b16 %v9648, %v9644
        %v9881 = vpack.c.b16 %v9649, %v9645
        %v9882 = vpack.c.b16 %v9650, %v9646
        %v9883 = vpack.c.b16 %v9651, %v9647
        %v9884 = vpack.c.b16 %v9656, %v9652
        %v9885 = vpack.c.b16 %v9657, %v9653
        %v9886 = vpack.c.b16 %v9658, %v9654
        %v9887 = vpack.c.b16 %v9659, %v9655
        %v9888 = vpack.c.b16 %v9664, %v9660
        %v9889 = vpack.c.b16 %v9665, %v9661
        %v9890 = vpack.c.b16 %v9666, %v9662
        %v9891 = vpack.c.b16 %v9667, %v9663
        %v9892 = vpack.c.b16 %v9672, %v9668
        %v9893 = vpack.c.b16 %v9673, %v9669
        %v9894 = vpack.c.b16 %v9674, %v9670
        %v9895 = vpack.c.b16 %v9675, %v9671
        %v9896 = vpack.c.b16 %v9680, %v9676
        %v9897 = vpack.c.b16 %v9681, %v9677
        %v9898 = vpack.c.b16 %v9682, %v9678
        %v9899 = vpack.c.b16 %v9683, %v9679
        %v9900 = vpack.c.b16 %v9688, %v9684
        %v9901 = vpack.c.b16 %v9689, %v9685
        %v9902 = vpack.c.b16 %v9690, %v9686
        %v9903 = vpack.c.b16 %v9691, %v9687
        %v9904 = vpack.c.b16 %v9696, %v9692
        %v9905 = vpack.c.b16 %v9697, %v9693
        %v9906 = vpack.c.b16 %v9698, %v9694
        %v9907 = vpack.c.b16 %v9699, %v9695
        %v9908 = vpack.c.b16 %v9704, %v9700
        %v9909 = vpack.c.b16 %v9705, %v9701
        %v9910 = vpack.c.b16 %v9706, %v9702
        %v9911 = vpack.c.b16 %v9707, %v9703
        %v9912 = vpack.c.b16 %v9712, %v9708
        %v9913 = vpack.c.b16 %v9713, %v9709
        %v9914 = vpack.c.b16 %v9714, %v9710
        %v9915 = vpack.c.b16 %v9715, %v9711
        %v9916 = vpack.c.b16 %v9720, %v9716
        %v9917 = vpack.c.b16 %v9721, %v9717
        %v9918 = vpack.c.b16 %v9722, %v9718
        %v9919 = vpack.c.b16 %v9723, %v9719
        %v9920 = vpack.c.b16 %v9728, %v9724
        %v9921 = vpack.c.b16 %v9729, %v9725
        %v9922 = vpack.c.b16 %v9730, %v9726
        %v9923 = vpack.c.b16 %v9731, %v9727
        %v9924 = vpack.c.b16 %v9736, %v9732
        %v9925 = vpack.c.b16 %v9737, %v9733
        %v9926 = vpack.c.b16 %v9738, %v9734
        %v9927 = vpack.c.b16 %v9739, %v9735
        %v9928 = vpack.c.b16 %v9744, %v9740
        %v9929 = vpack.c.b16 %v9745, %v9741
        %v9930 = vpack.c.b16 %v9746, %v9742
        %v9931 = vpack.c.b16 %v9747, %v9743
        %v9932 = vpack.c.b16 %v9752, %v9748
        %v9933 = vpack.c.b16 %v9753, %v9749
        %v9934 = vpack.c.b16 %v9754, %v9750
        %v9935 = vpack.c.b16 %v9755, %v9751
        %v9936 = vpack.c.b16 %v9760, %v9756
        %v9937 = vpack.c.b16 %v9761, %v9757
        %v9938 = vpack.c.b16 %v9762, %v9758
        %v9939 = vpack.c.b16 %v9763, %v9759
        %v9940 = vpack.c.b16 %v9768, %v9764
        %v9941 = vpack.c.b16 %v9769, %v9765
        %v9942 = vpack.c.b16 %v9770, %v9766
        %v9943 = vpack.c.b16 %v9771, %v9767
        %v9944 = vpack.c.b16 %v9776, %v9772
        %v9945 = vpack.c.b16 %v9777, %v9773
        %v9946 = vpack.c.b16 %v9778, %v9774
        %v9947 = vpack.c.b16 %v9779, %v9775
        %v9948 = vpack.c.b16 %v9784, %v9780
        %v9949 = vpack.c.b16 %v9785, %v9781
        %v9950 = vpack.c.b16 %v9786, %v9782
        %v9951 = vpack.c.b16 %v9787, %v9783
        %v9952 = vpack.c.b16 %v9792, %v9788
        %v9953 = vpack.c.b16 %v9793, %v9789
        %v9954 = vpack.c.b16 %v9794, %v9790
        %v9955 = vpack.c.b16 %v9795, %v9791
        %v9956 = vpack.c.b16 %v9800, %v9796
        %v9957 = vpack.c.b16 %v9801, %v9797
        %v9958 = vpack.c.b16 %v9802, %v9798
        %v9959 = vpack.c.b16 %v9803, %v9799
        %v9960 = vpack.c.b16 %v9808, %v9804
        %v9961 = vpack.c.b16 %v9809, %v9805
        %v9962 = vpack.c.b16 %v9810, %v9806
        %v9963 = vpack.c.b16 %v9811, %v9807
        %v9964 = vpack.c.b16 %v9816, %v9812
        %v9965 = vpack.c.b16 %v9817, %v9813
        %v9966 = vpack.c.b16 %v9818, %v9814
        %v9967 = vpack.c.b16 %v9819, %v9815
        %v9968 = vpack.c.b16 %v9824, %v9820
        %v9969 = vpack.c.b16 %v9825, %v9821
        %v9970 = vpack.c.b16 %v9826, %v9822
        %v9971 = vpack.c.b16 %v9827, %v9823
        %v9972 = vpack.c.b16 %v9832, %v9828
        %v9973 = vpack.c.b16 %v9833, %v9829
        %v9974 = vpack.c.b16 %v9834, %v9830
        %v9975 = vpack.c.b16 %v9835, %v9831
        %v9976 = vpack.c.b16 %v9840, %v9836
        %v9977 = vpack.c.b16 %v9841, %v9837
        %v9978 = vpack.c.b16 %v9842, %v9838
        %v9979 = vpack.c.b16 %v9843, %v9839
        %v9980 = vpack.c.b16 %v9848, %v9844
        %v9981 = vpack.c.b16 %v9849, %v9845
        %v9982 = vpack.c.b16 %v9850, %v9846
        %v9983 = vpack.c.b16 %v9851, %v9847
        %v9984 = vpack.c.b16 %v9856, %v9852
        %v9985 = vpack.c.b16 %v9857, %v9853
        %v9986 = vpack.c.b16 %v9858, %v9854
        %v9987 = vpack.c.b16 %v9859, %v9855
        %10116 = vmatpush.bf16.msra.mxu0 %v9888
        %10117 = vmatpush.bf16.msra.mxu0 %v9884
        %10118 = vmatpush.bf16.msra.mxu0 %v9880
        %10119 = vmatpush.bf16.msra.mxu0 %v9876
        %10120 = vmatpush.bf16.msra.mxu0 %v9872
        %10121 = vmatpush.bf16.msra.mxu0 %v9868
        %10122 = vmatpush.bf16.msra.mxu0 %v9864
        %10123 = vmatpush.bf16.msra.mxu0 %v9860
        %10124 = vmatmul.bf16.gmra.mxu0 %v9332
        %v10125 = vpop.f32.mrf.mxu0
        %v10126 = vadd.f32 %v9468, %v10125
        %v10127 = vpop.f32.mrf.mxu0
        %v10128 = vadd.f32 %v9468, %v10127
        %10129 = vdwg.mxu0
        %10130 = vmatpush.bf16.msra.mxu0 %v9920
        %10131 = vmatpush.bf16.msra.mxu0 %v9916
        %10132 = vmatpush.bf16.msra.mxu0 %v9912
        %10133 = vmatpush.bf16.msra.mxu0 %v9908
        %10134 = vmatpush.bf16.msra.mxu0 %v9904
        %10135 = vmatpush.bf16.msra.mxu0 %v9900
        %10136 = vmatpush.bf16.msra.mxu0 %v9896
        %10137 = vmatpush.bf16.msra.mxu0 %v9892
        %10138 = vmatmul.bf16.gmra.mxu0 %v9333
        %v10139 = vpop.f32.mrf.mxu0
        %v10140 = vadd.f32 %v10126, %v10139
        %v10141 = vpop.f32.mrf.mxu0
        %v10142 = vadd.f32 %v10128, %v10141
        %10143 = vdwg.mxu0
        %10144 = vmatpush.bf16.msra.mxu0 %v9952
        %10145 = vmatpush.bf16.msra.mxu0 %v9948
        %10146 = vmatpush.bf16.msra.mxu0 %v9944
        %10147 = vmatpush.bf16.msra.mxu0 %v9940
        %10148 = vmatpush.bf16.msra.mxu0 %v9936
        %10149 = vmatpush.bf16.msra.mxu0 %v9932
        %10150 = vmatpush.bf16.msra.mxu0 %v9928
        %10151 = vmatpush.bf16.msra.mxu0 %v9924
        %10152 = vmatmul.bf16.gmra.mxu0 %v9334
        %v10153 = vpop.f32.mrf.mxu0
        %v10154 = vadd.f32 %v10140, %v10153
        %v10155 = vpop.f32.mrf.mxu0
        %v10156 = vadd.f32 %v10142, %v10155
        %10157 = vdwg.mxu0
        %10158 = vmatpush.bf16.msra.mxu0 %v9984
        %10159 = vmatpush.bf16.msra.mxu0 %v9980
        %10160 = vmatpush.bf16.msra.mxu0 %v9976
        %10161 = vmatpush.bf16.msra.mxu0 %v9972
        %10162 = vmatpush.bf16.msra.mxu0 %v9968
        %10163 = vmatpush.bf16.msra.mxu0 %v9964
        %10164 = vmatpush.bf16.msra.mxu0 %v9960
        %10165 = vmatpush.bf16.msra.mxu0 %v9956
        %10166 = vmatmul.bf16.gmra.mxu0 %v9335
        %v10167 = vpop.f32.mrf.mxu0
        %v10168 = vadd.f32 %v10154, %v10167
        %v10169 = vpop.f32.mrf.mxu0
        %v10170 = vadd.f32 %v10156, %v10169
        %10171 = vdwg.mxu0
        %10172 = vmatpush.bf16.msra.mxu0 %v9889
        %10173 = vmatpush.bf16.msra.mxu0 %v9885
        %10174 = vmatpush.bf16.msra.mxu0 %v9881
        %10175 = vmatpush.bf16.msra.mxu0 %v9877
        %10176 = vmatpush.bf16.msra.mxu0 %v9873
        %10177 = vmatpush.bf16.msra.mxu0 %v9869
        %10178 = vmatpush.bf16.msra.mxu0 %v9865
        %10179 = vmatpush.bf16.msra.mxu0 %v9861
        %10180 = vmatmul.bf16.gmra.mxu0 %v9332
        %v10181 = vpop.f32.mrf.mxu0
        %v10182 = vadd.f32 %v9469, %v10181
        %v10183 = vpop.f32.mrf.mxu0
        %v10184 = vadd.f32 %v9469, %v10183
        %10185 = vdwg.mxu0
        %10186 = vmatpush.bf16.msra.mxu0 %v9921
        %10187 = vmatpush.bf16.msra.mxu0 %v9917
        %10188 = vmatpush.bf16.msra.mxu0 %v9913
        %10189 = vmatpush.bf16.msra.mxu0 %v9909
        %10190 = vmatpush.bf16.msra.mxu0 %v9905
        %10191 = vmatpush.bf16.msra.mxu0 %v9901
        %10192 = vmatpush.bf16.msra.mxu0 %v9897
        %10193 = vmatpush.bf16.msra.mxu0 %v9893
        %10194 = vmatmul.bf16.gmra.mxu0 %v9333
        %v10195 = vpop.f32.mrf.mxu0
        %v10196 = vadd.f32 %v10182, %v10195
        %v10197 = vpop.f32.mrf.mxu0
        %v10198 = vadd.f32 %v10184, %v10197
        %10199 = vdwg.mxu0
        %10200 = vmatpush.bf16.msra.mxu0 %v9953
        %10201 = vmatpush.bf16.msra.mxu0 %v9949
        %10202 = vmatpush.bf16.msra.mxu0 %v9945
        %10203 = vmatpush.bf16.msra.mxu0 %v9941
        %10204 = vmatpush.bf16.msra.mxu0 %v9937
        %10205 = vmatpush.bf16.msra.mxu0 %v9933
        %10206 = vmatpush.bf16.msra.mxu0 %v9929
        %10207 = vmatpush.bf16.msra.mxu0 %v9925
        %10208 = vmatmul.bf16.gmra.mxu0 %v9334
        %v10209 = vpop.f32.mrf.mxu0
        %v10210 = vadd.f32 %v10196, %v10209
        %v10211 = vpop.f32.mrf.mxu0
        %v10212 = vadd.f32 %v10198, %v10211
        %10213 = vdwg.mxu0
        %10214 = vmatpush.bf16.msra.mxu0 %v9985
        %10215 = vmatpush.bf16.msra.mxu0 %v9981
        %10216 = vmatpush.bf16.msra.mxu0 %v9977
        %10217 = vmatpush.bf16.msra.mxu0 %v9973
        %10218 = vmatpush.bf16.msra.mxu0 %v9969
        %10219 = vmatpush.bf16.msra.mxu0 %v9965
        %10220 = vmatpush.bf16.msra.mxu0 %v9961
        %10221 = vmatpush.bf16.msra.mxu0 %v9957
        %10222 = vmatmul.bf16.gmra.mxu0 %v9335
        %v10223 = vpop.f32.mrf.mxu0
        %v10224 = vadd.f32 %v10210, %v10223
        %v10225 = vpop.f32.mrf.mxu0
        %v10226 = vadd.f32 %v10212, %v10225
        %10227 = vdwg.mxu0
        %10228 = vmatpush.bf16.msra.mxu0 %v9890
        %10229 = vmatpush.bf16.msra.mxu0 %v9886
        %10230 = vmatpush.bf16.msra.mxu0 %v9882
        %10231 = vmatpush.bf16.msra.mxu0 %v9878
        %10232 = vmatpush.bf16.msra.mxu0 %v9874
        %10233 = vmatpush.bf16.msra.mxu0 %v9870
        %10234 = vmatpush.bf16.msra.mxu0 %v9866
        %10235 = vmatpush.bf16.msra.mxu0 %v9862
        %10236 = vmatmul.bf16.gmra.mxu0 %v9332
        %v10237 = vpop.f32.mrf.mxu0
        %v10238 = vadd.f32 %v9470, %v10237
        %v10239 = vpop.f32.mrf.mxu0
        %v10240 = vadd.f32 %v9470, %v10239
        %10241 = vdwg.mxu0
        %10242 = vmatpush.bf16.msra.mxu0 %v9922
        %10243 = vmatpush.bf16.msra.mxu0 %v9918
        %10244 = vmatpush.bf16.msra.mxu0 %v9914
        %10245 = vmatpush.bf16.msra.mxu0 %v9910
        %10246 = vmatpush.bf16.msra.mxu0 %v9906
        %10247 = vmatpush.bf16.msra.mxu0 %v9902
        %10248 = vmatpush.bf16.msra.mxu0 %v9898
        %10249 = vmatpush.bf16.msra.mxu0 %v9894
        %10250 = vmatmul.bf16.gmra.mxu0 %v9333
        %v10251 = vpop.f32.mrf.mxu0
        %v10252 = vadd.f32 %v10238, %v10251
        %v10253 = vpop.f32.mrf.mxu0
        %v10254 = vadd.f32 %v10240, %v10253
        %10255 = vdwg.mxu0
        %10256 = vmatpush.bf16.msra.mxu0 %v9954
        %10257 = vmatpush.bf16.msra.mxu0 %v9950
        %10258 = vmatpush.bf16.msra.mxu0 %v9946
        %10259 = vmatpush.bf16.msra.mxu0 %v9942
        %10260 = vmatpush.bf16.msra.mxu0 %v9938
        %10261 = vmatpush.bf16.msra.mxu0 %v9934
        %10262 = vmatpush.bf16.msra.mxu0 %v9930
        %10263 = vmatpush.bf16.msra.mxu0 %v9926
        %10264 = vmatmul.bf16.gmra.mxu0 %v9334
        %v10265 = vpop.f32.mrf.mxu0
        %v10266 = vadd.f32 %v10252, %v10265
        %v10267 = vpop.f32.mrf.mxu0
        %v10268 = vadd.f32 %v10254, %v10267
        %10269 = vdwg.mxu0
        %10270 = vmatpush.bf16.msra.mxu0 %v9986
        %10271 = vmatpush.bf16.msra.mxu0 %v9982
        %10272 = vmatpush.bf16.msra.mxu0 %v9978
        %10273 = vmatpush.bf16.msra.mxu0 %v9974
        %10274 = vmatpush.bf16.msra.mxu0 %v9970
        %10275 = vmatpush.bf16.msra.mxu0 %v9966
        %10276 = vmatpush.bf16.msra.mxu0 %v9962
        %10277 = vmatpush.bf16.msra.mxu0 %v9958
        %10278 = vmatmul.bf16.gmra.mxu0 %v9335
        %v10279 = vpop.f32.mrf.mxu0
        %v10280 = vadd.f32 %v10266, %v10279
        %v10281 = vpop.f32.mrf.mxu0
        %v10282 = vadd.f32 %v10268, %v10281
        %10283 = vdwg.mxu0
        %10284 = vmatpush.bf16.msra.mxu0 %v9891
        %10285 = vmatpush.bf16.msra.mxu0 %v9887
        %10286 = vmatpush.bf16.msra.mxu0 %v9883
        %10287 = vmatpush.bf16.msra.mxu0 %v9879
        %10288 = vmatpush.bf16.msra.mxu0 %v9875
        %10289 = vmatpush.bf16.msra.mxu0 %v9871
        %10290 = vmatpush.bf16.msra.mxu0 %v9867
        %10291 = vmatpush.bf16.msra.mxu0 %v9863
        %10292 = vmatmul.bf16.gmra.mxu0 %v9332
        %v10293 = vpop.f32.mrf.mxu0
        %v10294 = vadd.f32 %v9471, %v10293
        %v10295 = vpop.f32.mrf.mxu0
        %v10296 = vadd.f32 %v9471, %v10295
        %10297 = vdwg.mxu0
        %10298 = vmatpush.bf16.msra.mxu0 %v9923
        %10299 = vmatpush.bf16.msra.mxu0 %v9919
        %10300 = vmatpush.bf16.msra.mxu0 %v9915
        %10301 = vmatpush.bf16.msra.mxu0 %v9911
        %10302 = vmatpush.bf16.msra.mxu0 %v9907
        %10303 = vmatpush.bf16.msra.mxu0 %v9903
        %10304 = vmatpush.bf16.msra.mxu0 %v9899
        %10305 = vmatpush.bf16.msra.mxu0 %v9895
        %10306 = vmatmul.bf16.gmra.mxu0 %v9333
        %v10307 = vpop.f32.mrf.mxu0
        %v10308 = vadd.f32 %v10294, %v10307
        %v10309 = vpop.f32.mrf.mxu0
        %v10310 = vadd.f32 %v10296, %v10309
        %10311 = vdwg.mxu0
        %10312 = vmatpush.bf16.msra.mxu0 %v9955
        %10313 = vmatpush.bf16.msra.mxu0 %v9951
        %10314 = vmatpush.bf16.msra.mxu0 %v9947
        %10315 = vmatpush.bf16.msra.mxu0 %v9943
        %10316 = vmatpush.bf16.msra.mxu0 %v9939
        %10317 = vmatpush.bf16.msra.mxu0 %v9935
        %10318 = vmatpush.bf16.msra.mxu0 %v9931
        %10319 = vmatpush.bf16.msra.mxu0 %v9927
        %10320 = vmatmul.bf16.gmra.mxu0 %v9334
        %v10321 = vpop.f32.mrf.mxu0
        %v10322 = vadd.f32 %v10308, %v10321
        %v10323 = vpop.f32.mrf.mxu0
        %v10324 = vadd.f32 %v10310, %v10323
        %10325 = vdwg.mxu0
        %10326 = vmatpush.bf16.msra.mxu0 %v9987
        %10327 = vmatpush.bf16.msra.mxu0 %v9983
        %10328 = vmatpush.bf16.msra.mxu0 %v9979
        %10329 = vmatpush.bf16.msra.mxu0 %v9975
        %10330 = vmatpush.bf16.msra.mxu0 %v9971
        %10331 = vmatpush.bf16.msra.mxu0 %v9967
        %10332 = vmatpush.bf16.msra.mxu0 %v9963
        %10333 = vmatpush.bf16.msra.mxu0 %v9959
        %10334 = vmatmul.bf16.gmra.mxu0 %v9335
        %v10335 = vpop.f32.mrf.mxu0
        %v10336 = vadd.f32 %v10322, %v10335
        %v10337 = vpop.f32.mrf.mxu0
        %v10338 = vadd.f32 %v10324, %v10337
        %10339 = vdwg.mxu0
        %v10340 = vmax.f32 %v10168, 0.0
        %v10341 = vmax.f32 %v10224, 0.0
        %v10342 = vmax.f32 %v10280, 0.0
        %v10343 = vmax.f32 %v10336, 0.0
        %v10344 = vmax.f32 %v10170, 0.0
        %v10345 = vmax.f32 %v10226, 0.0
        %v10346 = vmax.f32 %v10282, 0.0
        %v10347 = vmax.f32 %v10338, 0.0
        %v10348 = vpack.c.bf16 %v10344, %v10340
        %v10349 = vpack.c.bf16 %v10345, %v10341
        %v10350 = vpack.c.bf16 %v10346, %v10342
        %v10351 = vpack.c.bf16 %v10347, %v10343
        %v10352 = vld [vmem:[#allocation12] sm:$0xff]
        %v10353 = vld [vmem:[#allocation12 + $0x8] sm:$0xff]
        %v10354 = vld [vmem:[#allocation12 + $0x10] sm:$0xff]
        %v10355 = vld [vmem:[#allocation12 + $0x18] sm:$0xff]
        %v10356 = vld [vmem:[#allocation12 + $0x20] sm:$0xff]
        %v10357 = vld [vmem:[#allocation12 + $0x28] sm:$0xff]
        %v10358 = vld [vmem:[#allocation12 + $0x30] sm:$0xff]
        %v10359 = vld [vmem:[#allocation12 + $0x38] sm:$0xff]
        %v10360 = vld [vmem:[#allocation12 + $0x40] sm:$0xff]
        %v10361 = vld [vmem:[#allocation12 + $0x48] sm:$0xff]
        %v10362 = vld [vmem:[#allocation12 + $0x50] sm:$0xff]
        %v10363 = vld [vmem:[#allocation12 + $0x58] sm:$0xff]
        %v10364 = vld [vmem:[#allocation12 + $0x60] sm:$0xff]
        %v10365 = vld [vmem:[#allocation12 + $0x68] sm:$0xff]
        %v10366 = vld [vmem:[#allocation12 + $0x70] sm:$0xff]
        %v10367 = vld [vmem:[#allocation12 + $0x78] sm:$0xff]
        %v10368 = vld [vmem:[#allocation12 + $0x80] sm:$0xff]
        %v10369 = vld [vmem:[#allocation12 + $0x88] sm:$0xff]
        %v10370 = vld [vmem:[#allocation12 + $0x90] sm:$0xff]
        %v10371 = vld [vmem:[#allocation12 + $0x98] sm:$0xff]
        %v10372 = vld [vmem:[#allocation12 + $0xa0] sm:$0xff]
        %v10373 = vld [vmem:[#allocation12 + $0xa8] sm:$0xff]
        %v10374 = vld [vmem:[#allocation12 + $0xb0] sm:$0xff]
        %v10375 = vld [vmem:[#allocation12 + $0xb8] sm:$0xff]
        %v10376 = vld [vmem:[#allocation12 + $0xc0] sm:$0xff]
        %v10377 = vld [vmem:[#allocation12 + $0xc8] sm:$0xff]
        %v10378 = vld [vmem:[#allocation12 + $0xd0] sm:$0xff]
        %v10379 = vld [vmem:[#allocation12 + $0xd8] sm:$0xff]
        %v10380 = vld [vmem:[#allocation12 + $0xe0] sm:$0xff]
        %v10381 = vld [vmem:[#allocation12 + $0xe8] sm:$0xff]
        %v10382 = vld [vmem:[#allocation12 + $0xf0] sm:$0xff]
        %v10383 = vld [vmem:[#allocation12 + $0xf8] sm:$0xff]
        %v10384 = vld [vmem:[#allocation12 + $0x100] sm:$0xff]
        %v10385 = vld [vmem:[#allocation12 + $0x108] sm:$0xff]
        %v10386 = vld [vmem:[#allocation12 + $0x110] sm:$0xff]
        %v10387 = vld [vmem:[#allocation12 + $0x118] sm:$0xff]
        %v10388 = vld [vmem:[#allocation12 + $0x120] sm:$0xff]
        %v10389 = vld [vmem:[#allocation12 + $0x128] sm:$0xff]
        %v10390 = vld [vmem:[#allocation12 + $0x130] sm:$0xff]
        %v10391 = vld [vmem:[#allocation12 + $0x138] sm:$0xff]
        %v10392 = vld [vmem:[#allocation12 + $0x140] sm:$0xff]
        %v10393 = vld [vmem:[#allocation12 + $0x148] sm:$0xff]
        %v10394 = vld [vmem:[#allocation12 + $0x150] sm:$0xff]
        %v10395 = vld [vmem:[#allocation12 + $0x158] sm:$0xff]
        %v10396 = vld [vmem:[#allocation12 + $0x160] sm:$0xff]
        %v10397 = vld [vmem:[#allocation12 + $0x168] sm:$0xff]
        %v10398 = vld [vmem:[#allocation12 + $0x170] sm:$0xff]
        %v10399 = vld [vmem:[#allocation12 + $0x178] sm:$0xff]
        %v10400 = vld [vmem:[#allocation12 + $0x180] sm:$0xff]
        %v10401 = vld [vmem:[#allocation12 + $0x188] sm:$0xff]
        %v10402 = vld [vmem:[#allocation12 + $0x190] sm:$0xff]
        %v10403 = vld [vmem:[#allocation12 + $0x198] sm:$0xff]
        %v10404 = vld [vmem:[#allocation12 + $0x1a0] sm:$0xff]
        %v10405 = vld [vmem:[#allocation12 + $0x1a8] sm:$0xff]
        %v10406 = vld [vmem:[#allocation12 + $0x1b0] sm:$0xff]
        %v10407 = vld [vmem:[#allocation12 + $0x1b8] sm:$0xff]
        %v10408 = vld [vmem:[#allocation12 + $0x1c0] sm:$0xff]
        %v10409 = vld [vmem:[#allocation12 + $0x1c8] sm:$0xff]
        %v10410 = vld [vmem:[#allocation12 + $0x1d0] sm:$0xff]
        %v10411 = vld [vmem:[#allocation12 + $0x1d8] sm:$0xff]
        %v10412 = vld [vmem:[#allocation12 + $0x1e0] sm:$0xff]
        %v10413 = vld [vmem:[#allocation12 + $0x1e8] sm:$0xff]
        %v10414 = vld [vmem:[#allocation12 + $0x1f0] sm:$0xff]
        %v10415 = vld [vmem:[#allocation12 + $0x1f8] sm:$0xff]
        %v10416 = vld [vmem:[#allocation13] sm:$0x3]
        %v10418 = vperm.slane %v10416, 0
        %v10419 = vperm.slane %v10416, 1
        %v10486 = vunpack.c.l.b16 %v10352
        %v10487 = vunpack.c.h.b16 %v10352
        %v10488 = vunpack.c.l.b16 %v10353
        %v10489 = vunpack.c.h.b16 %v10353
        %v10490 = vunpack.c.l.b16 %v10354
        %v10491 = vunpack.c.h.b16 %v10354
        %v10492 = vunpack.c.l.b16 %v10355
        %v10493 = vunpack.c.h.b16 %v10355
        %v10494 = vunpack.c.l.b16 %v10356
        %v10495 = vunpack.c.h.b16 %v10356
        %v10496 = vunpack.c.l.b16 %v10357
        %v10497 = vunpack.c.h.b16 %v10357
        %v10498 = vunpack.c.l.b16 %v10358
        %v10499 = vunpack.c.h.b16 %v10358
        %v10500 = vunpack.c.l.b16 %v10359
        %v10501 = vunpack.c.h.b16 %v10359
        %v10502 = vunpack.c.l.b16 %v10360
        %v10503 = vunpack.c.h.b16 %v10360
        %v10504 = vunpack.c.l.b16 %v10361
        %v10505 = vunpack.c.h.b16 %v10361
        %v10506 = vunpack.c.l.b16 %v10362
        %v10507 = vunpack.c.h.b16 %v10362
        %v10508 = vunpack.c.l.b16 %v10363
        %v10509 = vunpack.c.h.b16 %v10363
        %v10510 = vunpack.c.l.b16 %v10364
        %v10511 = vunpack.c.h.b16 %v10364
        %v10512 = vunpack.c.l.b16 %v10365
        %v10513 = vunpack.c.h.b16 %v10365
        %v10514 = vunpack.c.l.b16 %v10366
        %v10515 = vunpack.c.h.b16 %v10366
        %v10516 = vunpack.c.l.b16 %v10367
        %v10517 = vunpack.c.h.b16 %v10367
        %v10518 = vunpack.c.l.b16 %v10368
        %v10519 = vunpack.c.h.b16 %v10368
        %v10520 = vunpack.c.l.b16 %v10369
        %v10521 = vunpack.c.h.b16 %v10369
        %v10522 = vunpack.c.l.b16 %v10370
        %v10523 = vunpack.c.h.b16 %v10370
        %v10524 = vunpack.c.l.b16 %v10371
        %v10525 = vunpack.c.h.b16 %v10371
        %v10526 = vunpack.c.l.b16 %v10372
        %v10527 = vunpack.c.h.b16 %v10372
        %v10528 = vunpack.c.l.b16 %v10373
        %v10529 = vunpack.c.h.b16 %v10373
        %v10530 = vunpack.c.l.b16 %v10374
        %v10531 = vunpack.c.h.b16 %v10374
        %v10532 = vunpack.c.l.b16 %v10375
        %v10533 = vunpack.c.h.b16 %v10375
        %v10534 = vunpack.c.l.b16 %v10376
        %v10535 = vunpack.c.h.b16 %v10376
        %v10536 = vunpack.c.l.b16 %v10377
        %v10537 = vunpack.c.h.b16 %v10377
        %v10538 = vunpack.c.l.b16 %v10378
        %v10539 = vunpack.c.h.b16 %v10378
        %v10540 = vunpack.c.l.b16 %v10379
        %v10541 = vunpack.c.h.b16 %v10379
        %v10542 = vunpack.c.l.b16 %v10380
        %v10543 = vunpack.c.h.b16 %v10380
        %v10544 = vunpack.c.l.b16 %v10381
        %v10545 = vunpack.c.h.b16 %v10381
        %v10546 = vunpack.c.l.b16 %v10382
        %v10547 = vunpack.c.h.b16 %v10382
        %v10548 = vunpack.c.l.b16 %v10383
        %v10549 = vunpack.c.h.b16 %v10383
        %v10550 = vunpack.c.l.b16 %v10384
        %v10551 = vunpack.c.h.b16 %v10384
        %v10552 = vunpack.c.l.b16 %v10385
        %v10553 = vunpack.c.h.b16 %v10385
        %v10554 = vunpack.c.l.b16 %v10386
        %v10555 = vunpack.c.h.b16 %v10386
        %v10556 = vunpack.c.l.b16 %v10387
        %v10557 = vunpack.c.h.b16 %v10387
        %v10558 = vunpack.c.l.b16 %v10388
        %v10559 = vunpack.c.h.b16 %v10388
        %v10560 = vunpack.c.l.b16 %v10389
        %v10561 = vunpack.c.h.b16 %v10389
        %v10562 = vunpack.c.l.b16 %v10390
        %v10563 = vunpack.c.h.b16 %v10390
        %v10564 = vunpack.c.l.b16 %v10391
        %v10565 = vunpack.c.h.b16 %v10391
        %v10566 = vunpack.c.l.b16 %v10392
        %v10567 = vunpack.c.h.b16 %v10392
        %v10568 = vunpack.c.l.b16 %v10393
        %v10569 = vunpack.c.h.b16 %v10393
        %v10570 = vunpack.c.l.b16 %v10394
        %v10571 = vunpack.c.h.b16 %v10394
        %v10572 = vunpack.c.l.b16 %v10395
        %v10573 = vunpack.c.h.b16 %v10395
        %v10574 = vunpack.c.l.b16 %v10396
        %v10575 = vunpack.c.h.b16 %v10396
        %v10576 = vunpack.c.l.b16 %v10397
        %v10577 = vunpack.c.h.b16 %v10397
        %v10578 = vunpack.c.l.b16 %v10398
        %v10579 = vunpack.c.h.b16 %v10398
        %v10580 = vunpack.c.l.b16 %v10399
        %v10581 = vunpack.c.h.b16 %v10399
        %v10582 = vunpack.c.l.b16 %v10400
        %v10583 = vunpack.c.h.b16 %v10400
        %v10584 = vunpack.c.l.b16 %v10401
        %v10585 = vunpack.c.h.b16 %v10401
        %v10586 = vunpack.c.l.b16 %v10402
        %v10587 = vunpack.c.h.b16 %v10402
        %v10588 = vunpack.c.l.b16 %v10403
        %v10589 = vunpack.c.h.b16 %v10403
        %v10590 = vunpack.c.l.b16 %v10404
        %v10591 = vunpack.c.h.b16 %v10404
        %v10592 = vunpack.c.l.b16 %v10405
        %v10593 = vunpack.c.h.b16 %v10405
        %v10594 = vunpack.c.l.b16 %v10406
        %v10595 = vunpack.c.h.b16 %v10406
        %v10596 = vunpack.c.l.b16 %v10407
        %v10597 = vunpack.c.h.b16 %v10407
        %v10598 = vunpack.c.l.b16 %v10408
        %v10599 = vunpack.c.h.b16 %v10408
        %v10600 = vunpack.c.l.b16 %v10409
        %v10601 = vunpack.c.h.b16 %v10409
        %v10602 = vunpack.c.l.b16 %v10410
        %v10603 = vunpack.c.h.b16 %v10410
        %v10604 = vunpack.c.l.b16 %v10411
        %v10605 = vunpack.c.h.b16 %v10411
        %v10606 = vunpack.c.l.b16 %v10412
        %v10607 = vunpack.c.h.b16 %v10412
        %v10608 = vunpack.c.l.b16 %v10413
        %v10609 = vunpack.c.h.b16 %v10413
        %v10610 = vunpack.c.l.b16 %v10414
        %v10611 = vunpack.c.h.b16 %v10414
        %v10612 = vunpack.c.l.b16 %v10415
        %v10613 = vunpack.c.h.b16 %v10415
        %v10614 = vpack.c.b16 %v10488, %v10486
        %v10615 = vpack.c.b16 %v10489, %v10487
        %v10616 = vpack.c.b16 %v10492, %v10490
        %v10617 = vpack.c.b16 %v10493, %v10491
        %v10618 = vpack.c.b16 %v10496, %v10494
        %v10619 = vpack.c.b16 %v10497, %v10495
        %v10620 = vpack.c.b16 %v10500, %v10498
        %v10621 = vpack.c.b16 %v10501, %v10499
        %v10622 = vpack.c.b16 %v10504, %v10502
        %v10623 = vpack.c.b16 %v10505, %v10503
        %v10624 = vpack.c.b16 %v10508, %v10506
        %v10625 = vpack.c.b16 %v10509, %v10507
        %v10626 = vpack.c.b16 %v10512, %v10510
        %v10627 = vpack.c.b16 %v10513, %v10511
        %v10628 = vpack.c.b16 %v10516, %v10514
        %v10629 = vpack.c.b16 %v10517, %v10515
        %v10630 = vpack.c.b16 %v10520, %v10518
        %v10631 = vpack.c.b16 %v10521, %v10519
        %v10632 = vpack.c.b16 %v10524, %v10522
        %v10633 = vpack.c.b16 %v10525, %v10523
        %v10634 = vpack.c.b16 %v10528, %v10526
        %v10635 = vpack.c.b16 %v10529, %v10527
        %v10636 = vpack.c.b16 %v10532, %v10530
        %v10637 = vpack.c.b16 %v10533, %v10531
        %v10638 = vpack.c.b16 %v10536, %v10534
        %v10639 = vpack.c.b16 %v10537, %v10535
        %v10640 = vpack.c.b16 %v10540, %v10538
        %v10641 = vpack.c.b16 %v10541, %v10539
        %v10642 = vpack.c.b16 %v10544, %v10542
        %v10643 = vpack.c.b16 %v10545, %v10543
        %v10644 = vpack.c.b16 %v10548, %v10546
        %v10645 = vpack.c.b16 %v10549, %v10547
        %v10646 = vpack.c.b16 %v10552, %v10550
        %v10647 = vpack.c.b16 %v10553, %v10551
        %v10648 = vpack.c.b16 %v10556, %v10554
        %v10649 = vpack.c.b16 %v10557, %v10555
        %v10650 = vpack.c.b16 %v10560, %v10558
        %v10651 = vpack.c.b16 %v10561, %v10559
        %v10652 = vpack.c.b16 %v10564, %v10562
        %v10653 = vpack.c.b16 %v10565, %v10563
        %v10654 = vpack.c.b16 %v10568, %v10566
        %v10655 = vpack.c.b16 %v10569, %v10567
        %v10656 = vpack.c.b16 %v10572, %v10570
        %v10657 = vpack.c.b16 %v10573, %v10571
        %v10658 = vpack.c.b16 %v10576, %v10574
        %v10659 = vpack.c.b16 %v10577, %v10575
        %v10660 = vpack.c.b16 %v10580, %v10578
        %v10661 = vpack.c.b16 %v10581, %v10579
        %v10662 = vpack.c.b16 %v10584, %v10582
        %v10663 = vpack.c.b16 %v10585, %v10583
        %v10664 = vpack.c.b16 %v10588, %v10586
        %v10665 = vpack.c.b16 %v10589, %v10587
        %v10666 = vpack.c.b16 %v10592, %v10590
        %v10667 = vpack.c.b16 %v10593, %v10591
        %v10668 = vpack.c.b16 %v10596, %v10594
        %v10669 = vpack.c.b16 %v10597, %v10595
        %v10670 = vpack.c.b16 %v10600, %v10598
        %v10671 = vpack.c.b16 %v10601, %v10599
        %v10672 = vpack.c.b16 %v10604, %v10602
        %v10673 = vpack.c.b16 %v10605, %v10603
        %v10674 = vpack.c.b16 %v10608, %v10606
        %v10675 = vpack.c.b16 %v10609, %v10607
        %v10676 = vpack.c.b16 %v10612, %v10610
        %v10677 = vpack.c.b16 %v10613, %v10611
        %10742 = vmatpush.bf16.msra.mxu0 %v10628
        %10743 = vmatpush.bf16.msra.mxu0 %v10626
        %10744 = vmatpush.bf16.msra.mxu0 %v10624
        %10745 = vmatpush.bf16.msra.mxu0 %v10622
        %10746 = vmatpush.bf16.msra.mxu0 %v10620
        %10747 = vmatpush.bf16.msra.mxu0 %v10618
        %10748 = vmatpush.bf16.msra.mxu0 %v10616
        %10749 = vmatpush.bf16.msra.mxu0 %v10614
        %10750 = vmatmul.bf16.gmra.mxu0 %v10348
        %v10751 = vpop.f32.mrf.mxu0
        %v10752 = vadd.f32 %v10418, %v10751
        %v10753 = vpop.f32.mrf.mxu0
        %v10754 = vadd.f32 %v10418, %v10753
        %10755 = vdwg.mxu0
        %10756 = vmatpush.bf16.msra.mxu0 %v10644
        %10757 = vmatpush.bf16.msra.mxu0 %v10642
        %10758 = vmatpush.bf16.msra.mxu0 %v10640
        %10759 = vmatpush.bf16.msra.mxu0 %v10638
        %10760 = vmatpush.bf16.msra.mxu0 %v10636
        %10761 = vmatpush.bf16.msra.mxu0 %v10634
        %10762 = vmatpush.bf16.msra.mxu0 %v10632
        %10763 = vmatpush.bf16.msra.mxu0 %v10630
        %10764 = vmatmul.bf16.gmra.mxu0 %v10349
        %v10765 = vpop.f32.mrf.mxu0
        %v10766 = vadd.f32 %v10752, %v10765
        %v10767 = vpop.f32.mrf.mxu0
        %v10768 = vadd.f32 %v10754, %v10767
        %10769 = vdwg.mxu0
        %10770 = vmatpush.bf16.msra.mxu0 %v10660
        %10771 = vmatpush.bf16.msra.mxu0 %v10658
        %10772 = vmatpush.bf16.msra.mxu0 %v10656
        %10773 = vmatpush.bf16.msra.mxu0 %v10654
        %10774 = vmatpush.bf16.msra.mxu0 %v10652
        %10775 = vmatpush.bf16.msra.mxu0 %v10650
        %10776 = vmatpush.bf16.msra.mxu0 %v10648
        %10777 = vmatpush.bf16.msra.mxu0 %v10646
        %10778 = vmatmul.bf16.gmra.mxu0 %v10350
        %v10779 = vpop.f32.mrf.mxu0
        %v10780 = vadd.f32 %v10766, %v10779
        %v10781 = vpop.f32.mrf.mxu0
        %v10782 = vadd.f32 %v10768, %v10781
        %10783 = vdwg.mxu0
        %10784 = vmatpush.bf16.msra.mxu0 %v10676
        %10785 = vmatpush.bf16.msra.mxu0 %v10674
        %10786 = vmatpush.bf16.msra.mxu0 %v10672
        %10787 = vmatpush.bf16.msra.mxu0 %v10670
        %10788 = vmatpush.bf16.msra.mxu0 %v10668
        %10789 = vmatpush.bf16.msra.mxu0 %v10666
        %10790 = vmatpush.bf16.msra.mxu0 %v10664
        %10791 = vmatpush.bf16.msra.mxu0 %v10662
        %10792 = vmatmul.bf16.gmra.mxu0 %v10351
        %v10793 = vpop.f32.mrf.mxu0
        %v10794 = vadd.f32 %v10780, %v10793
        %v10795 = vpop.f32.mrf.mxu0
        %v10796 = vadd.f32 %v10782, %v10795
        %10797 = vdwg.mxu0
        %10798 = vmatpush.bf16.msra.mxu0 %v10629
        %10799 = vmatpush.bf16.msra.mxu0 %v10627
        %10800 = vmatpush.bf16.msra.mxu0 %v10625
        %10801 = vmatpush.bf16.msra.mxu0 %v10623
        %10802 = vmatpush.bf16.msra.mxu0 %v10621
        %10803 = vmatpush.bf16.msra.mxu0 %v10619
        %10804 = vmatpush.bf16.msra.mxu0 %v10617
        %10805 = vmatpush.bf16.msra.mxu0 %v10615
        %10806 = vmatmul.bf16.gmra.mxu0 %v10348
        %v10807 = vpop.f32.mrf.mxu0
        %v10808 = vadd.f32 %v10419, %v10807
        %v10809 = vpop.f32.mrf.mxu0
        %v10810 = vadd.f32 %v10419, %v10809
        %10811 = vdwg.mxu0
        %10812 = vmatpush.bf16.msra.mxu0 %v10645
        %10813 = vmatpush.bf16.msra.mxu0 %v10643
        %10814 = vmatpush.bf16.msra.mxu0 %v10641
        %10815 = vmatpush.bf16.msra.mxu0 %v10639
        %10816 = vmatpush.bf16.msra.mxu0 %v10637
        %10817 = vmatpush.bf16.msra.mxu0 %v10635
        %10818 = vmatpush.bf16.msra.mxu0 %v10633
        %10819 = vmatpush.bf16.msra.mxu0 %v10631
        %10820 = vmatmul.bf16.gmra.mxu0 %v10349
        %v10821 = vpop.f32.mrf.mxu0
        %v10822 = vadd.f32 %v10808, %v10821
        %v10823 = vpop.f32.mrf.mxu0
        %v10824 = vadd.f32 %v10810, %v10823
        %10825 = vdwg.mxu0
        %10826 = vmatpush.bf16.msra.mxu0 %v10661
        %10827 = vmatpush.bf16.msra.mxu0 %v10659
        %10828 = vmatpush.bf16.msra.mxu0 %v10657
        %10829 = vmatpush.bf16.msra.mxu0 %v10655
        %10830 = vmatpush.bf16.msra.mxu0 %v10653
        %10831 = vmatpush.bf16.msra.mxu0 %v10651
        %10832 = vmatpush.bf16.msra.mxu0 %v10649
        %10833 = vmatpush.bf16.msra.mxu0 %v10647
        %10834 = vmatmul.bf16.gmra.mxu0 %v10350
        %v10835 = vpop.f32.mrf.mxu0
        %v10836 = vadd.f32 %v10822, %v10835
        %v10837 = vpop.f32.mrf.mxu0
        %v10838 = vadd.f32 %v10824, %v10837
        %10839 = vdwg.mxu0
        %10840 = vmatpush.bf16.msra.mxu0 %v10677
        %10841 = vmatpush.bf16.msra.mxu0 %v10675
        %10842 = vmatpush.bf16.msra.mxu0 %v10673
        %10843 = vmatpush.bf16.msra.mxu0 %v10671
        %10844 = vmatpush.bf16.msra.mxu0 %v10669
        %10845 = vmatpush.bf16.msra.mxu0 %v10667
        %10846 = vmatpush.bf16.msra.mxu0 %v10665
        %10847 = vmatpush.bf16.msra.mxu0 %v10663
        %10848 = vmatmul.bf16.gmra.mxu0 %v10351
        %v10849 = vpop.f32.mrf.mxu0
        %v10850 = vadd.f32 %v10836, %v10849
        %v10851 = vpop.f32.mrf.mxu0
        %v10852 = vadd.f32 %v10838, %v10851
        %10853 = vdwg.mxu0
        %v10854 = vmax.f32 %v10794, 0.0
        %v10855 = vmax.f32 %v10850, 0.0
        %v10856 = vmax.f32 %v10796, 0.0
        %v10857 = vmax.f32 %v10852, 0.0
        %v10858 = vpack.c.bf16 %v10856, %v10854
        %v10859 = vpack.c.bf16 %v10857, %v10855
        %v10860 = vld [vmem:[#allocation15] sm:$0xf]
        %v10861 = vld [vmem:[#allocation15 + $0x4] sm:$0xf]
        %v10862 = vld [vmem:[#allocation15 + $0x8] sm:$0xf]
        %v10863 = vld [vmem:[#allocation15 + $0xc] sm:$0xf]
        %v10864 = vld [vmem:[#allocation15 + $0x10] sm:$0xf]
        %v10865 = vld [vmem:[#allocation15 + $0x14] sm:$0xf]
        %v10866 = vld [vmem:[#allocation15 + $0x18] sm:$0xf]
        %v10867 = vld [vmem:[#allocation15 + $0x1c] sm:$0xf]
        %v10868 = vld [vmem:[#allocation15 + $0x20] sm:$0xf]
        %v10869 = vld [vmem:[#allocation15 + $0x24] sm:$0xf]
        %v10870 = vld [vmem:[#allocation15 + $0x28] sm:$0xf]
        %v10871 = vld [vmem:[#allocation15 + $0x2c] sm:$0xf]
        %v10872 = vld [vmem:[#allocation15 + $0x30] sm:$0xf]
        %v10873 = vld [vmem:[#allocation15 + $0x34] sm:$0xf]
        %v10874 = vld [vmem:[#allocation15 + $0x38] sm:$0xf]
        %v10875 = vld [vmem:[#allocation15 + $0x3c] sm:$0xf]
        %v10876 = vld [vmem:[#allocation15 + $0x40] sm:$0xf]
        %v10877 = vld [vmem:[#allocation15 + $0x44] sm:$0xf]
        %v10878 = vld [vmem:[#allocation15 + $0x48] sm:$0xf]
        %v10879 = vld [vmem:[#allocation15 + $0x4c] sm:$0xf]
        %v10880 = vld [vmem:[#allocation15 + $0x50] sm:$0xf]
        %v10881 = vld [vmem:[#allocation15 + $0x54] sm:$0xf]
        %v10882 = vld [vmem:[#allocation15 + $0x58] sm:$0xf]
        %v10883 = vld [vmem:[#allocation15 + $0x5c] sm:$0xf]
        %v10884 = vld [vmem:[#allocation15 + $0x60] sm:$0xf]
        %v10885 = vld [vmem:[#allocation15 + $0x64] sm:$0xf]
        %v10886 = vld [vmem:[#allocation15 + $0x68] sm:$0xf]
        %v10887 = vld [vmem:[#allocation15 + $0x6c] sm:$0xf]
        %v10888 = vld [vmem:[#allocation15 + $0x70] sm:$0xf]
        %v10889 = vld [vmem:[#allocation15 + $0x74] sm:$0xf]
        %v10890 = vld [vmem:[#allocation15 + $0x78] sm:$0xf]
        %v10891 = vld [vmem:[#allocation15 + $0x7c] sm:$0xf]
        %v10892 = vld [vmem:[#allocation16] sm:$0x1]
        %v10894 = vperm.slane %v10892, 0
        %v10928 = vunpack.c.l.b16 %v10860
        %v10929 = vunpack.c.l.b16 %v10861
        %v10930 = vunpack.c.l.b16 %v10862
        %v10931 = vunpack.c.l.b16 %v10863
        %v10932 = vunpack.c.l.b16 %v10864
        %v10933 = vunpack.c.l.b16 %v10865
        %v10934 = vunpack.c.l.b16 %v10866
        %v10935 = vunpack.c.l.b16 %v10867
        %v10936 = vunpack.c.l.b16 %v10868
        %v10937 = vunpack.c.l.b16 %v10869
        %v10938 = vunpack.c.l.b16 %v10870
        %v10939 = vunpack.c.l.b16 %v10871
        %v10940 = vunpack.c.l.b16 %v10872
        %v10941 = vunpack.c.l.b16 %v10873
        %v10942 = vunpack.c.l.b16 %v10874
        %v10943 = vunpack.c.l.b16 %v10875
        %v10944 = vunpack.c.l.b16 %v10876
        %v10945 = vunpack.c.l.b16 %v10877
        %v10946 = vunpack.c.l.b16 %v10878
        %v10947 = vunpack.c.l.b16 %v10879
        %v10948 = vunpack.c.l.b16 %v10880
        %v10949 = vunpack.c.l.b16 %v10881
        %v10950 = vunpack.c.l.b16 %v10882
        %v10951 = vunpack.c.l.b16 %v10883
        %v10952 = vunpack.c.l.b16 %v10884
        %v10953 = vunpack.c.l.b16 %v10885
        %v10954 = vunpack.c.l.b16 %v10886
        %v10955 = vunpack.c.l.b16 %v10887
        %v10956 = vunpack.c.l.b16 %v10888
        %v10957 = vunpack.c.l.b16 %v10889
        %v10958 = vunpack.c.l.b16 %v10890
        %v10959 = vunpack.c.l.b16 %v10891
        %v10960 = vpack.c.b16 %v10929, %v10928
        %v10961 = vpack.c.b16 %v10931, %v10930
        %v10962 = vpack.c.b16 %v10933, %v10932
        %v10963 = vpack.c.b16 %v10935, %v10934
        %v10964 = vpack.c.b16 %v10937, %v10936
        %v10965 = vpack.c.b16 %v10939, %v10938
        %v10966 = vpack.c.b16 %v10941, %v10940
        %v10967 = vpack.c.b16 %v10943, %v10942
        %v10968 = vpack.c.b16 %v10945, %v10944
        %v10969 = vpack.c.b16 %v10947, %v10946
        %v10970 = vpack.c.b16 %v10949, %v10948
        %v10971 = vpack.c.b16 %v10951, %v10950
        %v10972 = vpack.c.b16 %v10953, %v10952
        %v10973 = vpack.c.b16 %v10955, %v10954
        %v10974 = vpack.c.b16 %v10957, %v10956
        %v10975 = vpack.c.b16 %v10959, %v10958
        %10992 = vmatpush.bf16.msra.mxu0 %v10967
        %10993 = vmatpush.bf16.msra.mxu0 %v10966
        %10994 = vmatpush.bf16.msra.mxu0 %v10965
        %10995 = vmatpush.bf16.msra.mxu0 %v10964
        %10996 = vmatpush.bf16.msra.mxu0 %v10963
        %10997 = vmatpush.bf16.msra.mxu0 %v10962
        %10998 = vmatpush.bf16.msra.mxu0 %v10961
        %10999 = vmatpush.bf16.msra.mxu0 %v10960
        %11000 = vmatmul.bf16.gmra.mxu0 %v10858
        %v11001 = vpop.f32.mrf.mxu0
        %v11002 = vadd.f32 %v10894, %v11001
        %v11003 = vpop.f32.mrf.mxu0
        %v11004 = vadd.f32 %v10894, %v11003
        %11005 = vdwg.mxu0
        %11006 = vmatpush.bf16.msra.mxu0 %v10975
        %11007 = vmatpush.bf16.msra.mxu0 %v10974
        %11008 = vmatpush.bf16.msra.mxu0 %v10973
        %11009 = vmatpush.bf16.msra.mxu0 %v10972
        %11010 = vmatpush.bf16.msra.mxu0 %v10971
        %11011 = vmatpush.bf16.msra.mxu0 %v10970
        %11012 = vmatpush.bf16.msra.mxu0 %v10969
        %11013 = vmatpush.bf16.msra.mxu0 %v10968
        %11014 = vmatmul.bf16.gmra.mxu0 %v10859
        %v11015 = vpop.f32.mrf.mxu0
        %v11016 = vadd.f32 %v11002, %v11015
        %v11017 = vpop.f32.mrf.mxu0
        %v11018 = vadd.f32 %v11004, %v11017
        %11019 = vdwg.mxu0
        %11020 = vst [vmem:[%s546] sm:$0xff] %v11016
        %11021 = vst [vmem:[%s546 + $0x8] sm:$0xff] %v11018
        %s11022 = smul.u32 2, %s28
        %p11023 = scmp.lt.s32.totalorder %s11022, 5
        %s11024 = scalar_select %p11023, %s11022, 5
        %s11025 = smul.addr %s11024, 8
        %s11026 = scalar_lea.vmem %s11, %s11025
        // Predicated region
        $region105: #{mlp12_forward.1} parent=63 // pred_check
          %p11027 = pneg %p282
        $region106: #{mlp12_forward.1} parent=63 // pred_check_branch
          %11029 = sbr.rel (%p11027) target = $region108
        $region107: #{mlp12_forward.1} parent=63 // pred_region
          %s11030 = smul.u32 2, %s28
        $region108: #{mlp12_forward.1} parent=63 // pred_fallthru
          _
      $region64: #{mlp12_forward.1} parent=5 // pred_fallthru
        _
      %p11031 = scmp.le.s32.totalorder 2, %s23
      // Predicated region
      $region109: #{mlp12_forward.1} parent=5 // pred_check
        %p11032 = pneg %p11031
      $region110: #{mlp12_forward.1} parent=5 // pred_check_branch
        %11034 = sbr.rel (%p11032) target = $region112
      $region111: #{mlp12_forward.1} parent=5 // pred_region
        %s11035 = ssub.s32 %s23, 2
        // Predicated region
        $region113: #{mlp12_forward.1} parent=111 // pred_check
          %p11036 = pneg %p288
        $region114: #{mlp12_forward.1} parent=111 // pred_check_branch
          %11038 = sbr.rel (%p11036) target = $region116
        $region115: #{mlp12_forward.1} parent=111 // pred_region
          %s11039 = smul.u32 2, %s29
          %p11040 = scmp.lt.s32.totalorder %s11039, 5
          %s11041 = scalar_select %p11040, %s11039, 5
          %s11042 = smul.addr %s11041, 8
          %s11043 = scalar_lea.vmem %s11, %s11042
        $region116: #{mlp12_forward.1} parent=111 // pred_fallthru
          _
      $region112: #{mlp12_forward.1} parent=5 // pred_fallthru
        _
    $region6: #{mlp12_forward.1} parent=1 // loop_footer
      %s27 = sadd.s32 1, %s23
    $region7: #{mlp12_forward.1} parent=1 // loop_footer_branch
      %22 = sbr.rel target = $region3
    $region8: #{mlp12_forward.1} parent=1 // loop_exit
      _
    %11044 = vsyncpa [#allocation3], 1
    %s11045 = scalar_lea.sflag [#allocation3], 1
    %11046 = vsyncpa %s11045, 1
    %11047 = vsyncpa [#allocation5], 1
    %11048 = vsyncpa [#allocation8], 1
    %11049 = vsyncpa [#allocation11], 1
    %11050 = vsyncpa [#allocation14], 1
    %11051 = vsyncpa [#allocation17], 1

</llo_original>
